<compile_context>
chip_gen: v7x
topology: tpu7x:2x2x1
jax: 0.10.0
libtpu: 0.0.40
codegen_flags: <defaults>
</compile_context>

<pallas_src>
import functools

import jax
import jax.numpy as jnp
from jax import lax
from jax.experimental import pallas as pl
from jax.experimental.pallas import tpu as pltpu

_LANE = 128


def _cdiv(a, b):
    return (a + b - 1) // b


def _round_up(x, m):
    return _cdiv(x, m) * m


def _vmem_capacity_bytes():
    """Physical VMEM per TensorCore; conservative fallback if undetectable."""
    try:
        cap = int(pltpu.get_tpu_info().vmem_capacity_bytes)
        if cap > 0:
            return cap
    except Exception:
        pass
    return 64 << 20  # v7x physical size -- safe lower bound for every generation


def _num_core_shards():
    """2 leading grid shards only on 2-TensorCore chips (v7x); 1 elsewhere."""
    try:
        kind = jax.devices()[0].device_kind.lower()
        if "v7" in kind or "7x" in kind:
            return 2
    except Exception:
        pass
    return 1


def _ece_bins_kernel(logits_ref, labels_ref, out_ref, *,
                     n_total, tile_n, chunk, tiles_per_shard, n_bins, use_mxu):
    core = pl.program_id(0)
    step = pl.program_id(1)

    @pl.when(step == 0)
    def _init():
        out_ref[...] = jnp.zeros_like(out_ref)

    c = logits_ref.shape[1]
    num_chunks = tile_n // chunk
    tile_row0 = (core * tiles_per_shard + step) * tile_n

    # Loop-invariant iotas / bin boundaries, hoisted (JAX does not CSE broadcasts).
    cls_iota = lax.broadcasted_iota(jnp.int32, (chunk, c), 1)
    row_iota = lax.broadcasted_iota(jnp.int32, (chunk, 1), 0)
    bin_iota = lax.broadcasted_iota(jnp.int32, (1, n_bins), 1).astype(jnp.float32)
    lowers = bin_iota / jnp.float32(n_bins)
    uppers = (bin_iota + 1.0) / jnp.float32(n_bins)

    def body(j, carry):
        r0 = j * chunk
        start = pl.multiple_of(r0, chunk)
        logits = logits_ref[pl.ds(start, chunk), :].astype(jnp.float32)  # (chunk, c)
        labels = labels_ref[pl.ds(start, chunk), :]                      # (chunk, 1)

        # confidence = max(softmax) = 1 / sum(exp(x - rowmax)); exact divide.
        rowmax = jnp.max(logits, axis=1, keepdims=True)
        denom = jnp.sum(jnp.exp(logits - rowmax), axis=1, keepdims=True)
        conf = 1.0 / denom

        # prediction = argmax(logits) with lowest-index tie-break (torch.max).
        pred = jnp.min(jnp.where(logits == rowmax, cls_iota, c),
                       axis=1, keepdims=True)
        acc = (pred == labels).astype(jnp.float32)                       # (chunk, 1)

        # Padded rows of the global batch: push conf outside every bin.
        valid = (tile_row0 + r0 + row_iota) < n_total
        conf = jnp.where(valid, conf, -1.0)

        # Bin membership: conf in (lower, upper].
        in_bin_f = jnp.logical_and(conf > lowers,
                                   conf <= uppers).astype(jnp.float32)   # (chunk, nb)

        if use_mxu:
            # count / accuracy sums on the MXU: operands are exact 0/1, so the
            # result is exact under any MXU precision mode.
            ca, sc = carry
            stats = jnp.concatenate([jnp.ones_like(acc), acc], axis=1)   # (chunk, 2)
            ca = ca + lax.dot_general(
                stats, in_bin_f,
                dimension_numbers=(((0,), (0,)), ((), ())),
                preferred_element_type=jnp.float32)                      # (2, nb)
            # conf is not exactly representable in bf16 -> keep its sum on the VPU.
            sc = sc + jnp.sum(in_bin_f * conf, axis=0, keepdims=True)    # (1, nb)
            return ca, sc
        else:
            c0, c1, c2 = carry
            c0 = c0 + jnp.sum(in_bin_f, axis=0, keepdims=True)
            c1 = c1 + jnp.sum(in_bin_f * acc, axis=0, keepdims=True)
            c2 = c2 + jnp.sum(in_bin_f * conf, axis=0, keepdims=True)
            return c0, c1, c2

    if use_mxu:
        init = (jnp.zeros((2, n_bins), jnp.float32),
                jnp.zeros((1, n_bins), jnp.float32))
        cnt_acc, sum_conf = lax.fori_loop(0, num_chunks, body, init)
        out_ref[0:1, 0:2, :] += cnt_acc.reshape(1, 2, n_bins)
        out_ref[0:1, 2:3, :] += sum_conf.reshape(1, 1, n_bins)
    else:
        init = (jnp.zeros((1, n_bins), jnp.float32),
                jnp.zeros((1, n_bins), jnp.float32),
                jnp.zeros((1, n_bins), jnp.float32))
        cnt, sacc, sconf = lax.fori_loop(0, num_chunks, body, init)
        out_ref[0:1, 0:1, :] += cnt.reshape(1, 1, n_bins)
        out_ref[0:1, 1:2, :] += sacc.reshape(1, 1, n_bins)
        out_ref[0:1, 2:3, :] += sconf.reshape(1, 1, n_bins)


def ece_loss(logits, labels, n_bins=15):
    """Pallas implementation of _ECELoss.forward.

    logits: (N, C) float32/bf16 logits (NOT softmax scores)
    labels: (N,)   int class labels
    returns: (1,)  float32 ECE (same shape as the torch module's output)
    """
    n, c = logits.shape
    itemsize = jnp.dtype(logits.dtype).itemsize
    shards = _num_core_shards()
    padded_c = _round_up(c, _LANE)

    # Rows per in-kernel compute chunk: bounds the lane-padded (chunk, C) and
    # (chunk, n_bins) intermediates independently of the DMA tile size.
    chunk = min(512, max(8, ((2 << 20) // (padded_c * 4)) // 8 * 8))

    # Generation-aware VMEM budget; vmem_limit_bytes is set explicitly so the
    # large tiles actually compile (default scoped limit is only 16/32 MiB).
    vmem_cap = _vmem_capacity_bytes()                 # 128 MiB v5e/v6e, 64 MiB v7x
    vmem_limit = min((vmem_cap * 3) // 4, 100 << 20)

    # Per-row VMEM cost of the double-buffered input tiles.  The (tile_n, 1)
    # int32 labels block pads to 128 lanes (512 B/row) and the logits block
    # pads C to a multiple of 128 lanes; both are charged here (HBM DMAs still
    # read only the real bytes).
    row_vmem = 2 * (padded_c * itemsize + _LANE * 4)
    # Reserve room for per-chunk compute intermediates + misc scratch.
    reserve = chunk * (10 * padded_c + 8 * _LANE) * 4 + (4 << 20)
    if vmem_limit < reserve + chunk * row_vmem:
        # TODO(synk): very wide logits (huge C) would be better served by a
        # class-axis grid with an online max/denominator (two-pass softmax).
        vmem_limit = min(reserve + chunk * row_vmem, (vmem_cap * 7) // 8)

    tile_cap = max(chunk, ((vmem_limit - reserve) // row_vmem) // chunk * chunk)
    rows_per_shard = _cdiv(n, shards)
    tile_n = min(tile_cap, _round_up(rows_per_shard, chunk))
    tiles_per_shard = _cdiv(rows_per_shard, tile_n)
    n_padded = shards * tiles_per_shard * tile_n

    labels_2d = labels.astype(jnp.int32).reshape(n, 1)
    if n_padded != n:
        # Padded rows are masked inside the kernel (conf forced to -1).
        logits = jnp.pad(logits, ((0, n_padded - n), (0, 0)))
        labels_2d = jnp.pad(labels_2d, ((0, n_padded - n), (0, 0)),
                            constant_values=-1)

    out_shape = jax.ShapeDtypeStruct((shards, 3, n_bins), jnp.float32)
    grid_spec = pltpu.PrefetchScalarGridSpec(
        num_scalar_prefetch=0,
        grid=(shards, tiles_per_shard),
        in_specs=[
            pl.BlockSpec((tile_n, c), lambda s, i: (s * tiles_per_shard + i, 0)),
            pl.BlockSpec((tile_n, 1), lambda s, i: (s * tiles_per_shard + i, 0)),
        ],
        out_specs=pl.BlockSpec((1, 3, n_bins), lambda s, i: (s, 0, 0)),
    )
    compiler_params = pltpu.CompilerParams(
        dimension_semantics=("parallel", "arbitrary"),
        vmem_limit_bytes=int(vmem_limit),
    )
    cost = pl.CostEstimate(
        flops=10 * n_padded * c + 12 * n_padded * n_bins,
        transcendentals=n_padded * (c + 1),
        bytes_accessed=n_padded * (c * itemsize + 4) + shards * 3 * n_bins * 4,
    )

    def _run(use_mxu):
        kernel = functools.partial(
            _ece_bins_kernel, n_total=n, tile_n=tile_n, chunk=chunk,
            tiles_per_shard=tiles_per_shard, n_bins=n_bins, use_mxu=use_mxu)
        out = pl.pallas_call(
            kernel,
            out_shape=out_shape,
            grid_spec=grid_spec,
            compiler_params=compiler_params,
            cost_estimate=cost,
        )(logits, labels_2d)
        return jax.block_until_ready(out)

    try:
        partials = _run(True)      # per-bin count/acc sums on the idle MXU
    except Exception:
        partials = _run(False)     # pure-VPU accumulation (always lowers)

    # Tiny epilogue in plain JAX (runs once, not per grid step).
    totals = jnp.sum(partials, axis=0)            # (3, n_bins)
    count, sum_acc, sum_conf = totals[0], totals[1], totals[2]
    prop_in_bin = count / jnp.float32(n)          # GLOBAL unpadded N
    safe = jnp.where(count > 0.0, count, 1.0)
    gap = jnp.abs(sum_conf / safe - sum_acc / safe)
    ece = jnp.sum(jnp.where(count > 0.0, gap * prop_in_bin, 0.0))
    return ece.reshape(1)


if __name__ == "__main__":
    key = jax.random.PRNGKey(0)
    k_logits, k_labels = jax.random.split(key)

    N, C, N_BINS = 100, 16, 15          # N=100 also exercises the padding/mask path
    logits = jax.random.normal(k_logits, (N, C), dtype=jnp.float32) * 3.0
    labels = jax.random.randint(k_labels, (N,), 0, C, dtype=jnp.int32)

    ece = ece_loss(logits, labels, n_bins=N_BINS)
    jax.block_until_ready(ece)

    # Pure-JAX reference of the same math (torch _ECELoss semantics).
    sm = jax.nn.softmax(logits, axis=1)
    conf = jnp.max(sm, axis=1)
    pred = jnp.argmax(sm, axis=1)
    acc = (pred == labels).astype(jnp.float32)
    bounds = jnp.linspace(0.0, 1.0, N_BINS + 1)
    ref = 0.0
    for lo, hi in zip(bounds[:-1], bounds[1:]):
        in_bin = (conf > lo) & (conf <= hi)
        cnt = jnp.sum(in_bin)
        prop = cnt / N
        a = jnp.sum(jnp.where(in_bin, acc, 0.0)) / jnp.maximum(cnt, 1)
        cc = jnp.sum(jnp.where(in_bin, conf, 0.0)) / jnp.maximum(cnt, 1)
        ref = ref + jnp.where(cnt > 0, jnp.abs(cc - a) * prop, 0.0)
    assert jnp.allclose(ece[0], ref, atol=1e-5), (ece, ref)

    print("KERNEL_OK")
</pallas_src>

<mosaic_0001>
module attributes {stable_mosaic.version = 11 : i64} {
  func.func @_ece_bins_kernel(%arg0: i32, %arg1: i32, %arg2: memref<512x16xf32, #tpu.memory_space<vmem>>, %arg3: memref<512x1xi32, #tpu.memory_space<vmem>>, %arg4: memref<1x3x15xf32, #tpu.memory_space<vmem>>) attributes {dimension_semantics = [#tpu.dimension_semantics<parallel>, #tpu.dimension_semantics<arbitrary>], iteration_bounds = array<i64: 1, 1>, scalar_prefetch = 0 : i64, scratch_operands = 0 : i64, tpu.core_type = #tpu.core_type<tc>, window_params = [{transform_indices = @transform_0, window_bounds = array<i64: 512, 16>}, {transform_indices = @transform_1, window_bounds = array<i64: 512, 1>}, {transform_indices = @transform_2, window_bounds = array<i64: 1, 3, 15>}]} {
    %c0_i32 = arith.constant 0 : i32
    %0 = arith.cmpi eq, %arg1, %c0_i32 : i32
    %1 = arith.extui %0 : i1 to i32
    %c0_i32_0 = arith.constant 0 : i32
    %2 = arith.cmpi ne, %1, %c0_i32_0 : i32
    scf.if %2 {
      %cst_28 = arith.constant 0.000000e+00 : f32
      %75 = vector.broadcast %cst_28 : f32 to vector<1x3x15xf32>
      %c0_29 = arith.constant 0 : index
      %c0_30 = arith.constant 0 : index
      %c0_31 = arith.constant 0 : index
      %76 = vector.load %arg4[%c0_29, %c0_30, %c0_31] : memref<1x3x15xf32, #tpu.memory_space<vmem>>, vector<1x3x15xf32>
      tpu.vector_store %arg4[%c0_29, %c0_30, %c0_31], %75 {strides = array<i32>} : memref<1x3x15xf32, #tpu.memory_space<vmem>>, vector<1x3x15xf32>,
    } else {
    }
    %c1_i32 = arith.constant 1 : i32
    %3 = arith.muli %arg0, %c1_i32 : i32
    %4 = arith.addi %3, %arg1 : i32
    %c512_i32 = arith.constant 512 : i32
    %5 = arith.muli %4, %c512_i32 : i32
    %6 = tpu.iota {dimensions = array<i32: 1>} : vector<512x16xi32>
    %7 = tpu.iota {dimensions = array<i32: 0>} : vector<512x1xi32>
    %8 = tpu.iota {dimensions = array<i32: 1>} : vector<1x15xi32>
    %9 = arith.sitofp %8 : vector<1x15xi32> to vector<1x15xf32>
    %cst = arith.constant 1.500000e+01 : f32
    %10 = vector.broadcast %cst : f32 to vector<1x15xf32>
    %11 = arith.divf %9, %10 : vector<1x15xf32>
    %cst_1 = arith.constant 1.000000e+00 : f32
    %12 = vector.broadcast %cst_1 : f32 to vector<1x15xf32>
    %13 = arith.addf %9, %12 : vector<1x15xf32>
    %cst_2 = arith.constant 1.500000e+01 : f32
    %14 = vector.broadcast %cst_2 : f32 to vector<1x15xf32>
    %15 = arith.divf %13, %14 : vector<1x15xf32>
    %cst_3 = arith.constant 0.000000e+00 : f32
    %16 = vector.broadcast %cst_3 : f32 to vector<2x15xf32>
    %cst_4 = arith.constant 0.000000e+00 : f32
    %17 = vector.broadcast %cst_4 : f32 to vector<1x15xf32>
    %c0_i32_5 = arith.constant 0 : i32
    %c512_i32_6 = arith.constant 512 : i32
    %18 = arith.muli %c0_i32_5, %c512_i32_6 : i32
    %19 = tpu.assume_multiple %18, 512 : i32
    %20 = arith.index_cast %19 : i32 to index
    %c0 = arith.constant 0 : index
    %21 = vector.load %arg2[%20, %c0] : memref<512x16xf32, #tpu.memory_space<vmem>>, vector<512x16xf32>
    %22 = arith.index_cast %19 : i32 to index
    %c0_7 = arith.constant 0 : index
    %23 = vector.load %arg3[%22, %c0_7] : memref<512x1xi32, #tpu.memory_space<vmem>>, vector<512x1xi32>
    %cst_8 = arith.constant dense<0xFF800000> : vector<512xf32>
    %24 = vector.multi_reduction <maximumf>, %21, %cst_8 [1] : vector<512x16xf32> to vector<512xf32>
    %25 = vector.shape_cast %24 : vector<512xf32> to vector<512x1xf32>
    %26 = vector.broadcast %25 : vector<512x1xf32> to vector<512x16xf32>
    %27 = arith.subf %21, %26 : vector<512x16xf32>
    %28 = math.exp %27 : vector<512x16xf32>
    %cst_9 = arith.constant dense<0.000000e+00> : vector<512xf32>
    %29 = vector.multi_reduction <add>, %28, %cst_9 [1] : vector<512x16xf32> to vector<512xf32>
    %30 = vector.shape_cast %29 : vector<512xf32> to vector<512x1xf32>
    %cst_10 = arith.constant 1.000000e+00 : f32
    %31 = vector.broadcast %cst_10 : f32 to vector<512x1xf32>
    %32 = arith.divf %31, %30 : vector<512x1xf32>
    %33 = vector.broadcast %25 : vector<512x1xf32> to vector<512x16xf32>
    %34 = arith.cmpf oeq, %21, %33 : vector<512x16xf32>
    %c16_i32 = arith.constant 16 : i32
    %35 = vector.broadcast %c16_i32 : i32 to vector<512x16xi32>
    %36 = arith.select %34, %6, %35 : vector<512x16xi1>, vector<512x16xi32>
    %cst_11 = arith.constant dense<2147483647> : vector<512xi32>
    %37 = vector.multi_reduction <minsi>, %36, %cst_11 [1] : vector<512x16xi32> to vector<512xi32>
    %38 = vector.shape_cast %37 : vector<512xi32> to vector<512x1xi32>
    %39 = arith.cmpi eq, %38, %23 : vector<512x1xi32>
    %40 = arith.extui %39 : vector<512x1xi1> to vector<512x1xi32>
    %41 = arith.sitofp %40 : vector<512x1xi32> to vector<512x1xf32>
    %42 = arith.addi %5, %18 : i32
    %43 = vector.broadcast %42 : i32 to vector<512x1xi32>
    %44 = arith.addi %43, %7 : vector<512x1xi32>
    %c100_i32 = arith.constant 100 : i32
    %45 = vector.broadcast %c100_i32 : i32 to vector<512x1xi32>
    %46 = arith.cmpi slt, %44, %45 : vector<512x1xi32>
    %cst_12 = arith.constant -1.000000e+00 : f32
    %47 = vector.broadcast %cst_12 : f32 to vector<512x1xf32>
    %48 = arith.select %46, %32, %47 : vector<512x1xi1>, vector<512x1xf32>
    %49 = vector.broadcast %48 : vector<512x1xf32> to vector<512x15xf32>
    %50 = vector.broadcast %11 : vector<1x15xf32> to vector<512x15xf32>
    %51 = arith.cmpf ogt, %49, %50 : vector<512x15xf32>
    %52 = vector.broadcast %48 : vector<512x1xf32> to vector<512x15xf32>
    %53 = vector.broadcast %15 : vector<1x15xf32> to vector<512x15xf32>
    %54 = arith.cmpf ole, %52, %53 : vector<512x15xf32>
    %55 = arith.andi %51, %54 : vector<512x15xi1>
    %56 = arith.extui %55 : vector<512x15xi1> to vector<512x15xi32>
    %57 = arith.sitofp %56 : vector<512x15xi32> to vector<512x15xf32>
    %cst_13 = arith.constant 1.000000e+00 : f32
    %58 = vector.broadcast %cst_13 : f32 to vector<512x1xf32>
    %59 = tpu.concatenate %58, %41 in 1 : vector<512x1xf32>, vector<512x1xf32> -> vector<512x2xf32>
    %cst_14 = arith.constant dense<0.000000e+00> : vector<2x15xf32>
    %60 = tpu.matmul %59, %57, %cst_14 {dimension_numbers = #tpu.dot_dimension_numbers<[0], [0], [1], [1], [0, 1, 1, 1], [], []>} : vector<512x2xf32>, vector<512x15xf32>, vector<2x15xf32> -> vector<2x15xf32>
    %61 = arith.addf %16, %60 : vector<2x15xf32>
    %62 = vector.broadcast %48 : vector<512x1xf32> to vector<512x15xf32>
    %63 = arith.mulf %57, %62 : vector<512x15xf32>
    %cst_15 = arith.constant dense<0.000000e+00> : vector<15xf32>
    %64 = vector.multi_reduction <add>, %63, %cst_15 [0] : vector<512x15xf32> to vector<15xf32>
    %65 = vector.shape_cast %64 : vector<15xf32> to vector<1x15xf32>
    %66 = arith.addf %17, %65 : vector<1x15xf32>
    %c1_i32_16 = arith.constant 1 : i32
    %c0_17 = arith.constant 0 : index
    %c0_18 = arith.constant 0 : index
    %c0_19 = arith.constant 0 : index
    %67 = vector.load %arg4[%c0_17, %c0_18, %c0_19] : memref<1x3x15xf32, #tpu.memory_space<vmem>>, vector<1x2x15xf32>
    %68 = vector.shape_cast %61 : vector<2x15xf32> to vector<1x2x15xf32>
    %69 = arith.addf %67, %68 : vector<1x2x15xf32>
    %c0_20 = arith.constant 0 : index
    %c0_21 = arith.constant 0 : index
    %c0_22 = arith.constant 0 : index
    %70 = vector.load %arg4[%c0_20, %c0_21, %c0_22] : memref<1x3x15xf32, #tpu.memory_space<vmem>>, vector<1x2x15xf32>
    tpu.vector_store %arg4[%c0_20, %c0_21, %c0_22], %69 {strides = array<i32>} : memref<1x3x15xf32, #tpu.memory_space<vmem>>, vector<1x2x15xf32>,
    %c0_23 = arith.constant 0 : index
    %c2 = arith.constant 2 : index
    %c0_24 = arith.constant 0 : index
    %71 = vector.load %arg4[%c0_23, %c2, %c0_24] : memref<1x3x15xf32, #tpu.memory_space<vmem>>, vector<1x1x15xf32>
    %72 = vector.shape_cast %66 : vector<1x15xf32> to vector<1x1x15xf32>
    %73 = arith.addf %71, %72 : vector<1x1x15xf32>
    %c0_25 = arith.constant 0 : index
    %c2_26 = arith.constant 2 : index
    %c0_27 = arith.constant 0 : index
    %74 = vector.load %arg4[%c0_25, %c2_26, %c0_27] : memref<1x3x15xf32, #tpu.memory_space<vmem>>, vector<1x1x15xf32>
    tpu.vector_store %arg4[%c0_25, %c2_26, %c0_27], %73 {strides = array<i32>} : memref<1x3x15xf32, #tpu.memory_space<vmem>>, vector<1x1x15xf32>,
    return
  }
  func.func @transform_0(%arg0: i32, %arg1: i32) -> (i32, i32) {
    %c1_i32 = arith.constant 1 : i32
    %0 = arith.muli %arg0, %c1_i32 : i32
    %1 = arith.addi %0, %arg1 : i32
    %c0_i32 = arith.constant 0 : i32
    %c0_i32_0 = arith.constant 0 : i32
    return %1, %c0_i32 : i32, i32
  }
  func.func @transform_1(%arg0: i32, %arg1: i32) -> (i32, i32) {
    %c1_i32 = arith.constant 1 : i32
    %0 = arith.muli %arg0, %c1_i32 : i32
    %1 = arith.addi %0, %arg1 : i32
    %c0_i32 = arith.constant 0 : i32
    %c0_i32_0 = arith.constant 0 : i32
    return %1, %c0_i32 : i32, i32
  }
  func.func @transform_2(%arg0: i32, %arg1: i32) -> (i32, i32, i32) {
    %c0_i32 = arith.constant 0 : i32
    %c0_i32_0 = arith.constant 0 : i32
    %c0_i32_1 = arith.constant 0 : i32
    return %arg0, %c0_i32, %c0_i32_0 : i32, i32, i32
  }
}

module attributes {stable_mosaic.version = 11 : i64} {
  func.func @_ece_bins_kernel(%arg0: i32, %arg1: i32, %arg2: memref<512x16xf32, #tpu.memory_space<vmem>>, %arg3: memref<512x1xi32, #tpu.memory_space<vmem>>, %arg4: memref<1x3x15xf32, #tpu.memory_space<vmem>>) attributes {dimension_semantics = [#tpu.dimension_semantics<parallel>, #tpu.dimension_semantics<arbitrary>], iteration_bounds = array<i64: 1, 1>, scalar_prefetch = 0 : i64, scratch_operands = 0 : i64, tpu.core_type = #tpu.core_type<tc>, window_params = [{transform_indices = @transform_0, window_bounds = array<i64: 512, 16>}, {transform_indices = @transform_1, window_bounds = array<i64: 512, 1>}, {transform_indices = @transform_2, window_bounds = array<i64: 1, 3, 15>}]} {
    %c0_i32 = arith.constant 0 : i32
    %0 = arith.cmpi eq, %arg1, %c0_i32 : i32
    %1 = arith.extui %0 : i1 to i32
    %c0_i32_0 = arith.constant 0 : i32
    %2 = arith.cmpi ne, %1, %c0_i32_0 : i32
    scf.if %2 {
      %cst_34 = arith.constant 0.000000e+00 : f32
      %84 = vector.broadcast %cst_34 : f32 to vector<1x3x15xf32>
      %c0_35 = arith.constant 0 : index
      %c0_36 = arith.constant 0 : index
      %c0_37 = arith.constant 0 : index
      %85 = vector.load %arg4[%c0_35, %c0_36, %c0_37] : memref<1x3x15xf32, #tpu.memory_space<vmem>>, vector<1x3x15xf32>
      tpu.vector_store %arg4[%c0_35, %c0_36, %c0_37], %84 {strides = array<i32>} : memref<1x3x15xf32, #tpu.memory_space<vmem>>, vector<1x3x15xf32>,
    } else {
    }
    %c1_i32 = arith.constant 1 : i32
    %3 = arith.muli %arg0, %c1_i32 : i32
    %4 = arith.addi %3, %arg1 : i32
    %c512_i32 = arith.constant 512 : i32
    %5 = arith.muli %4, %c512_i32 : i32
    %6 = tpu.iota {dimensions = array<i32: 1>} : vector<512x16xi32>
    %7 = tpu.iota {dimensions = array<i32: 0>} : vector<512x1xi32>
    %8 = tpu.iota {dimensions = array<i32: 1>} : vector<1x15xi32>
    %9 = arith.sitofp %8 : vector<1x15xi32> to vector<1x15xf32>
    %cst = arith.constant 1.500000e+01 : f32
    %10 = vector.broadcast %cst : f32 to vector<1x15xf32>
    %11 = arith.divf %9, %10 : vector<1x15xf32>
    %cst_1 = arith.constant 1.000000e+00 : f32
    %12 = vector.broadcast %cst_1 : f32 to vector<1x15xf32>
    %13 = arith.addf %9, %12 : vector<1x15xf32>
    %cst_2 = arith.constant 1.500000e+01 : f32
    %14 = vector.broadcast %cst_2 : f32 to vector<1x15xf32>
    %15 = arith.divf %13, %14 : vector<1x15xf32>
    %cst_3 = arith.constant 0.000000e+00 : f32
    %16 = vector.broadcast %cst_3 : f32 to vector<1x15xf32>
    %cst_4 = arith.constant 0.000000e+00 : f32
    %17 = vector.broadcast %cst_4 : f32 to vector<1x15xf32>
    %cst_5 = arith.constant 0.000000e+00 : f32
    %18 = vector.broadcast %cst_5 : f32 to vector<1x15xf32>
    %c0_i32_6 = arith.constant 0 : i32
    %c512_i32_7 = arith.constant 512 : i32
    %19 = arith.muli %c0_i32_6, %c512_i32_7 : i32
    %20 = tpu.assume_multiple %19, 512 : i32
    %21 = arith.index_cast %20 : i32 to index
    %c0 = arith.constant 0 : index
    %22 = vector.load %arg2[%21, %c0] : memref<512x16xf32, #tpu.memory_space<vmem>>, vector<512x16xf32>
    %23 = arith.index_cast %20 : i32 to index
    %c0_8 = arith.constant 0 : index
    %24 = vector.load %arg3[%23, %c0_8] : memref<512x1xi32, #tpu.memory_space<vmem>>, vector<512x1xi32>
    %cst_9 = arith.constant dense<0xFF800000> : vector<512xf32>
    %25 = vector.multi_reduction <maximumf>, %22, %cst_9 [1] : vector<512x16xf32> to vector<512xf32>
    %26 = vector.shape_cast %25 : vector<512xf32> to vector<512x1xf32>
    %27 = vector.broadcast %26 : vector<512x1xf32> to vector<512x16xf32>
    %28 = arith.subf %22, %27 : vector<512x16xf32>
    %29 = math.exp %28 : vector<512x16xf32>
    %cst_10 = arith.constant dense<0.000000e+00> : vector<512xf32>
    %30 = vector.multi_reduction <add>, %29, %cst_10 [1] : vector<512x16xf32> to vector<512xf32>
    %31 = vector.shape_cast %30 : vector<512xf32> to vector<512x1xf32>
    %cst_11 = arith.constant 1.000000e+00 : f32
    %32 = vector.broadcast %cst_11 : f32 to vector<512x1xf32>
    %33 = arith.divf %32, %31 : vector<512x1xf32>
    %34 = vector.broadcast %26 : vector<512x1xf32> to vector<512x16xf32>
    %35 = arith.cmpf oeq, %22, %34 : vector<512x16xf32>
    %c16_i32 = arith.constant 16 : i32
    %36 = vector.broadcast %c16_i32 : i32 to vector<512x16xi32>
    %37 = arith.select %35, %6, %36 : vector<512x16xi1>, vector<512x16xi32>
    %cst_12 = arith.constant dense<2147483647> : vector<512xi32>
    %38 = vector.multi_reduction <minsi>, %37, %cst_12 [1] : vector<512x16xi32> to vector<512xi32>
    %39 = vector.shape_cast %38 : vector<512xi32> to vector<512x1xi32>
    %40 = arith.cmpi eq, %39, %24 : vector<512x1xi32>
    %41 = arith.extui %40 : vector<512x1xi1> to vector<512x1xi32>
    %42 = arith.sitofp %41 : vector<512x1xi32> to vector<512x1xf32>
    %43 = arith.addi %5, %19 : i32
    %44 = vector.broadcast %43 : i32 to vector<512x1xi32>
    %45 = arith.addi %44, %7 : vector<512x1xi32>
    %c100_i32 = arith.constant 100 : i32
    %46 = vector.broadcast %c100_i32 : i32 to vector<512x1xi32>
    %47 = arith.cmpi slt, %45, %46 : vector<512x1xi32>
    %cst_13 = arith.constant -1.000000e+00 : f32
    %48 = vector.broadcast %cst_13 : f32 to vector<512x1xf32>
    %49 = arith.select %47, %33, %48 : vector<512x1xi1>, vector<512x1xf32>
    %50 = vector.broadcast %49 : vector<512x1xf32> to vector<512x15xf32>
    %51 = vector.broadcast %11 : vector<1x15xf32> to vector<512x15xf32>
    %52 = arith.cmpf ogt, %50, %51 : vector<512x15xf32>
    %53 = vector.broadcast %49 : vector<512x1xf32> to vector<512x15xf32>
    %54 = vector.broadcast %15 : vector<1x15xf32> to vector<512x15xf32>
    %55 = arith.cmpf ole, %53, %54 : vector<512x15xf32>
    %56 = arith.andi %52, %55 : vector<512x15xi1>
    %57 = arith.extui %56 : vector<512x15xi1> to vector<512x15xi32>
    %58 = arith.sitofp %57 : vector<512x15xi32> to vector<512x15xf32>
    %cst_14 = arith.constant dense<0.000000e+00> : vector<15xf32>
    %59 = vector.multi_reduction <add>, %58, %cst_14 [0] : vector<512x15xf32> to vector<15xf32>
    %60 = vector.shape_cast %59 : vector<15xf32> to vector<1x15xf32>
    %61 = arith.addf %16, %60 : vector<1x15xf32>
    %62 = vector.broadcast %42 : vector<512x1xf32> to vector<512x15xf32>
    %63 = arith.mulf %58, %62 : vector<512x15xf32>
    %cst_15 = arith.constant dense<0.000000e+00> : vector<15xf32>
    %64 = vector.multi_reduction <add>, %63, %cst_15 [0] : vector<512x15xf32> to vector<15xf32>
    %65 = vector.shape_cast %64 : vector<15xf32> to vector<1x15xf32>
    %66 = arith.addf %17, %65 : vector<1x15xf32>
    %67 = vector.broadcast %49 : vector<512x1xf32> to vector<512x15xf32>
    %68 = arith.mulf %58, %67 : vector<512x15xf32>
    %cst_16 = arith.constant dense<0.000000e+00> : vector<15xf32>
    %69 = vector.multi_reduction <add>, %68, %cst_16 [0] : vector<512x15xf32> to vector<15xf32>
    %70 = vector.shape_cast %69 : vector<15xf32> to vector<1x15xf32>
    %71 = arith.addf %18, %70 : vector<1x15xf32>
    %c1_i32_17 = arith.constant 1 : i32
    %c0_18 = arith.constant 0 : index
    %c0_19 = arith.constant 0 : index
    %c0_20 = arith.constant 0 : index
    %72 = vector.load %arg4[%c0_18, %c0_19, %c0_20] : memref<1x3x15xf32, #tpu.memory_space<vmem>>, vector<1x1x15xf32>
    %73 = vector.shape_cast %61 : vector<1x15xf32> to vector<1x1x15xf32>
    %74 = arith.addf %72, %73 : vector<1x1x15xf32>
    %c0_21 = arith.constant 0 : index
    %c0_22 = arith.constant 0 : index
    %c0_23 = arith.constant 0 : index
    %75 = vector.load %arg4[%c0_21, %c0_22, %c0_23] : memref<1x3x15xf32, #tpu.memory_space<vmem>>, vector<1x1x15xf32>
    tpu.vector_store %arg4[%c0_21, %c0_22, %c0_23], %74 {strides = array<i32>} : memref<1x3x15xf32, #tpu.memory_space<vmem>>, vector<1x1x15xf32>,
    %c0_24 = arith.constant 0 : index
    %c1 = arith.constant 1 : index
    %c0_25 = arith.constant 0 : index
    %76 = vector.load %arg4[%c0_24, %c1, %c0_25] : memref<1x3x15xf32, #tpu.memory_space<vmem>>, vector<1x1x15xf32>
    %77 = vector.shape_cast %66 : vector<1x15xf32> to vector<1x1x15xf32>
    %78 = arith.addf %76, %77 : vector<1x1x15xf32>
    %c0_26 = arith.constant 0 : index
    %c1_27 = arith.constant 1 : index
    %c0_28 = arith.constant 0 : index
    %79 = vector.load %arg4[%c0_26, %c1_27, %c0_28] : memref<1x3x15xf32, #tpu.memory_space<vmem>>, vector<1x1x15xf32>
    tpu.vector_store %arg4[%c0_26, %c1_27, %c0_28], %78 {strides = array<i32>} : memref<1x3x15xf32, #tpu.memory_space<vmem>>, vector<1x1x15xf32>,
    %c0_29 = arith.constant 0 : index
    %c2 = arith.constant 2 : index
    %c0_30 = arith.constant 0 : index
    %80 = vector.load %arg4[%c0_29, %c2, %c0_30] : memref<1x3x15xf32, #tpu.memory_space<vmem>>, vector<1x1x15xf32>
    %81 = vector.shape_cast %71 : vector<1x15xf32> to vector<1x1x15xf32>
    %82 = arith.addf %80, %81 : vector<1x1x15xf32>
    %c0_31 = arith.constant 0 : index
    %c2_32 = arith.constant 2 : index
    %c0_33 = arith.constant 0 : index
    %83 = vector.load %arg4[%c0_31, %c2_32, %c0_33] : memref<1x3x15xf32, #tpu.memory_space<vmem>>, vector<1x1x15xf32>
    tpu.vector_store %arg4[%c0_31, %c2_32, %c0_33], %82 {strides = array<i32>} : memref<1x3x15xf32, #tpu.memory_space<vmem>>, vector<1x1x15xf32>,
    return
  }
  func.func @transform_0(%arg0: i32, %arg1: i32) -> (i32, i32) {
    %c1_i32 = arith.constant 1 : i32
    %0 = arith.muli %arg0, %c1_i32 : i32
    %1 = arith.addi %0, %arg1 : i32
    %c0_i32 = arith.constant 0 : i32
    %c0_i32_0 = arith.constant 0 : i32
    return %1, %c0_i32 : i32, i32
  }
  func.func @transform_1(%arg0: i32, %arg1: i32) -> (i32, i32) {
    %c1_i32 = arith.constant 1 : i32
    %0 = arith.muli %arg0, %c1_i32 : i32
    %1 = arith.addi %0, %arg1 : i32
    %c0_i32 = arith.constant 0 : i32
    %c0_i32_0 = arith.constant 0 : i32
    return %1, %c0_i32 : i32, i32
  }
  func.func @transform_2(%arg0: i32, %arg1: i32) -> (i32, i32, i32) {
    %c0_i32 = arith.constant 0 : i32
    %c0_i32_0 = arith.constant 0 : i32
    %c0_i32_1 = arith.constant 0 : i32
    return %arg0, %c0_i32, %c0_i32_0 : i32, i32, i32
  }
}

</mosaic_0001>

<llo_original>
// kernel: tpu_custom_call.1
$region0: #{tpu_custom_call.1}
  #allocation0 [shape = 'u32[]', space=smem, size = 0x4, offset = 0x4, fixed_abs, tag = 'smem constant byte address 0x4 - core index']
  #allocation1 [shape = 'u32[144,128]{1,0:T(1,128)}', space=vmem, size = 0x12000, scoped, tag = 'internal scratch']
  %s0 = inlined_call_operand.vmem [shape: f32[512,16], index: 0, kind: input, shape index: {}]
  %s1 = inlined_call_operand.vmem [shape: s32[512,1], index: 1, kind: input, shape index: {}]
  %s2 = inlined_call_operand.vmem [shape: f32[1,3,15], index: 2, kind: output, shape index: {}]
  %s3 = sld [smem:[#allocation0]]
  $region22: #{tpu_custom_call.1} parent=0
    _
  %s5 = ssub.s32 1, %s3
  %s6 = scalar_select 0, %s5, %s3
  // Predicated region
  $region2: #{tpu_custom_call.1} parent=0 // pred_check
    _
  $region3: #{tpu_custom_call.1} parent=0 // pred_check_branch
    %8 = sbr.rel (0) target = $region5
  $region4: #{tpu_custom_call.1} parent=0 // pred_region
    %s9 = sadd.s32 0, 0
    %s10 = smul.u32 64, %s9
    %p11 = scmp.lt.s32.totalorder %s10, 63
    %s12 = scalar_select %p11, %s10, 63
    %s13 = smul.addr %s12, 8
    %s14 = scalar_lea.vmem %s0, %s13
    %s15 = sadd.s32 0, 0
    %s16 = smul.u32 64, %s15
  $region5: #{tpu_custom_call.1} parent=0 // pred_fallthru
    _
  // Predicated region
  $region6: #{tpu_custom_call.1} parent=0 // pred_check
    _
  $region7: #{tpu_custom_call.1} parent=0 // pred_check_branch
    %18 = sbr.rel (0) target = $region9
  $region8: #{tpu_custom_call.1} parent=0 // pred_region
    %s19 = sadd.s32 0, 0
    %s20 = smul.u32 64, %s19
    %p21 = scmp.lt.s32.totalorder %s20, 63
    %s22 = scalar_select %p21, %s20, 63
    %s23 = smul.addr %s22, 8
    %s24 = scalar_lea.vmem %s1, %s23
    %s25 = sadd.s32 0, 0
    %s26 = smul.u32 64, %s25
  $region9: #{tpu_custom_call.1} parent=0 // pred_fallthru
    _
  %s27 = sadd.s32 0, 0
  %s28 = smul.u32 64, %s27
  %p29 = scmp.lt.s32.totalorder %s28, 63
  %s30 = scalar_select %p29, %s28, 63
  %s31 = smul.addr %s30, 8
  %s32 = scalar_lea.vmem %s0, %s31
  %s33 = sadd.s32 0, 0
  %s34 = smul.u32 64, %s33
  %p35 = scmp.lt.s32.totalorder %s34, 63
  %s36 = scalar_select %p35, %s34, 63
  %s37 = smul.addr %s36, 8
  %s38 = scalar_lea.vmem %s1, %s37
  %s39 = sadd.s32 0, 0
  %s40 = smul.u32 64, %s39
  %p41 = scmp.lt.s32.totalorder %s40, 63
  %s42 = scalar_select %p41, %s40, 63
  %s43 = smul.addr %s42, 8
  %s44 = scalar_lea.vmem %s0, %s43
  %s45 = sadd.s32 0, 0
  %s46 = smul.u32 64, %s45
  %s47 = sadd.s32 0, 0
  %s48 = smul.u32 64, %s47
  %p49 = scmp.lt.s32.totalorder %s48, 63
  %s50 = scalar_select %p49, %s48, 63
  %s51 = smul.addr %s50, 8
  %s52 = scalar_lea.vmem %s1, %s51
  %s53 = sadd.s32 0, 0
  %s54 = smul.u32 64, %s53
  %p55 = scmp.eq.s32.totalorder 0, 0
  // Predicated region
  $region10: #{tpu_custom_call.1} parent=0 // pred_check
    %p56 = pneg %p55
  $region11: #{tpu_custom_call.1} parent=0 // pred_check_branch
    %58 = sbr.rel (%p56) target = $region13
  $region12: #{tpu_custom_call.1} parent=0 // pred_region
    %vm59 = vcmask 116736
    %60 = vst.msk [vmem:[%s2] sm:$0x7] %vm59, 0.0
  $region13: #{tpu_custom_call.1} parent=0 // pred_fallthru
    _
  %s61 = sadd.s32 0, 0
  %s62 = smul.u32 %s61, 512
  %v63 = vlaneseq
  %v64 = vand.u32 %v63, 127
  %v65 = vlaneseq
  %v66 = vshrl.u32 %v65, 7
  %v67 = vadd.s32 %v66, 8
  %v68 = vadd.s32 %v66, 16
  %v69 = vadd.s32 %v66, 24
  %v70 = vadd.s32 %v66, 32
  %v71 = vadd.s32 %v66, 40
  %v72 = vadd.s32 %v66, 48
  %v73 = vadd.s32 %v66, 56
  %v74 = vadd.s32 %v66, 64
  %v75 = vadd.s32 %v66, 72
  %v76 = vadd.s32 %v66, 80
  %v77 = vadd.s32 %v66, 88
  %v78 = vadd.s32 %v66, 96
  %v79 = vadd.s32 %v66, 104
  %v80 = vadd.s32 %v66, 112
  %v81 = vadd.s32 %v66, 120
  %v82 = vadd.s32 %v66, 128
  %v83 = vadd.s32 %v66, 136
  %v84 = vadd.s32 %v66, 144
  %v85 = vadd.s32 %v66, 152
  %v86 = vadd.s32 %v66, 160
  %v87 = vadd.s32 %v66, 168
  %v88 = vadd.s32 %v66, 176
  %v89 = vadd.s32 %v66, 184
  %v90 = vadd.s32 %v66, 192
  %v91 = vadd.s32 %v66, 200
  %v92 = vadd.s32 %v66, 208
  %v93 = vadd.s32 %v66, 216
  %v94 = vadd.s32 %v66, 224
  %v95 = vadd.s32 %v66, 232
  %v96 = vadd.s32 %v66, 240
  %v97 = vadd.s32 %v66, 248
  %v98 = vadd.s32 %v66, 256
  %v99 = vadd.s32 %v66, 264
  %v100 = vadd.s32 %v66, 272
  %v101 = vadd.s32 %v66, 280
  %v102 = vadd.s32 %v66, 288
  %v103 = vadd.s32 %v66, 296
  %v104 = vadd.s32 %v66, 304
  %v105 = vadd.s32 %v66, 312
  %v106 = vadd.s32 %v66, 320
  %v107 = vadd.s32 %v66, 328
  %v108 = vadd.s32 %v66, 336
  %v109 = vadd.s32 %v66, 344
  %v110 = vadd.s32 %v66, 352
  %v111 = vadd.s32 %v66, 360
  %v112 = vadd.s32 %v66, 368
  %v113 = vadd.s32 %v66, 376
  %v114 = vadd.s32 %v66, 384
  %v115 = vadd.s32 %v66, 392
  %v116 = vadd.s32 %v66, 400
  %v117 = vadd.s32 %v66, 408
  %v118 = vadd.s32 %v66, 416
  %v119 = vadd.s32 %v66, 424
  %v120 = vadd.s32 %v66, 432
  %v121 = vadd.s32 %v66, 440
  %v122 = vadd.s32 %v66, 448
  %v123 = vadd.s32 %v66, 456
  %v124 = vadd.s32 %v66, 464
  %v125 = vadd.s32 %v66, 472
  %v126 = vadd.s32 %v66, 480
  %v127 = vadd.s32 %v66, 488
  %v128 = vadd.s32 %v66, 496
  %v129 = vadd.s32 %v66, 504
  %v130 = vcvt.s32.f32 %v64
  %v131 = vrcp.pop 15.0
  %v132 = vmul.f32 %v130, %v131
  %v133 = vadd.f32 %v130, 1.0
  %v134 = vmul.f32 %v133, %v131
  %v135 = vld [vmem:[%s44] sm:$0xff]
  %v136 = vld [vmem:[%s44 + $0x8] sm:$0xff]
  %v137 = vld [vmem:[%s44 + $0x10] sm:$0xff]
  %v138 = vld [vmem:[%s44 + $0x18] sm:$0xff]
  %v139 = vld [vmem:[%s44 + $0x20] sm:$0xff]
  %v140 = vld [vmem:[%s44 + $0x28] sm:$0xff]
  %v141 = vld [vmem:[%s44 + $0x30] sm:$0xff]
  %v142 = vld [vmem:[%s44 + $0x38] sm:$0xff]
  %v143 = vld [vmem:[%s44 + $0x40] sm:$0xff]
  %v144 = vld [vmem:[%s44 + $0x48] sm:$0xff]
  %v145 = vld [vmem:[%s44 + $0x50] sm:$0xff]
  %v146 = vld [vmem:[%s44 + $0x58] sm:$0xff]
  %v147 = vld [vmem:[%s44 + $0x60] sm:$0xff]
  %v148 = vld [vmem:[%s44 + $0x68] sm:$0xff]
  %v149 = vld [vmem:[%s44 + $0x70] sm:$0xff]
  %v150 = vld [vmem:[%s44 + $0x78] sm:$0xff]
  %v151 = vld [vmem:[%s44 + $0x80] sm:$0xff]
  %v152 = vld [vmem:[%s44 + $0x88] sm:$0xff]
  %v153 = vld [vmem:[%s44 + $0x90] sm:$0xff]
  %v154 = vld [vmem:[%s44 + $0x98] sm:$0xff]
  %v155 = vld [vmem:[%s44 + $0xa0] sm:$0xff]
  %v156 = vld [vmem:[%s44 + $0xa8] sm:$0xff]
  %v157 = vld [vmem:[%s44 + $0xb0] sm:$0xff]
  %v158 = vld [vmem:[%s44 + $0xb8] sm:$0xff]
  %v159 = vld [vmem:[%s44 + $0xc0] sm:$0xff]
  %v160 = vld [vmem:[%s44 + $0xc8] sm:$0xff]
  %v161 = vld [vmem:[%s44 + $0xd0] sm:$0xff]
  %v162 = vld [vmem:[%s44 + $0xd8] sm:$0xff]
  %v163 = vld [vmem:[%s44 + $0xe0] sm:$0xff]
  %v164 = vld [vmem:[%s44 + $0xe8] sm:$0xff]
  %v165 = vld [vmem:[%s44 + $0xf0] sm:$0xff]
  %v166 = vld [vmem:[%s44 + $0xf8] sm:$0xff]
  %v167 = vld [vmem:[%s44 + $0x100] sm:$0xff]
  %v168 = vld [vmem:[%s44 + $0x108] sm:$0xff]
  %v169 = vld [vmem:[%s44 + $0x110] sm:$0xff]
  %v170 = vld [vmem:[%s44 + $0x118] sm:$0xff]
  %v171 = vld [vmem:[%s44 + $0x120] sm:$0xff]
  %v172 = vld [vmem:[%s44 + $0x128] sm:$0xff]
  %v173 = vld [vmem:[%s44 + $0x130] sm:$0xff]
  %v174 = vld [vmem:[%s44 + $0x138] sm:$0xff]
  %v175 = vld [vmem:[%s44 + $0x140] sm:$0xff]
  %v176 = vld [vmem:[%s44 + $0x148] sm:$0xff]
  %v177 = vld [vmem:[%s44 + $0x150] sm:$0xff]
  %v178 = vld [vmem:[%s44 + $0x158] sm:$0xff]
  %v179 = vld [vmem:[%s44 + $0x160] sm:$0xff]
  %v180 = vld [vmem:[%s44 + $0x168] sm:$0xff]
  %v181 = vld [vmem:[%s44 + $0x170] sm:$0xff]
  %v182 = vld [vmem:[%s44 + $0x178] sm:$0xff]
  %v183 = vld [vmem:[%s44 + $0x180] sm:$0xff]
  %v184 = vld [vmem:[%s44 + $0x188] sm:$0xff]
  %v185 = vld [vmem:[%s44 + $0x190] sm:$0xff]
  %v186 = vld [vmem:[%s44 + $0x198] sm:$0xff]
  %v187 = vld [vmem:[%s44 + $0x1a0] sm:$0xff]
  %v188 = vld [vmem:[%s44 + $0x1a8] sm:$0xff]
  %v189 = vld [vmem:[%s44 + $0x1b0] sm:$0xff]
  %v190 = vld [vmem:[%s44 + $0x1b8] sm:$0xff]
  %v191 = vld [vmem:[%s44 + $0x1c0] sm:$0xff]
  %v192 = vld [vmem:[%s44 + $0x1c8] sm:$0xff]
  %v193 = vld [vmem:[%s44 + $0x1d0] sm:$0xff]
  %v194 = vld [vmem:[%s44 + $0x1d8] sm:$0xff]
  %v195 = vld [vmem:[%s44 + $0x1e0] sm:$0xff]
  %v196 = vld [vmem:[%s44 + $0x1e8] sm:$0xff]
  %v197 = vld [vmem:[%s44 + $0x1f0] sm:$0xff]
  %v198 = vld [vmem:[%s44 + $0x1f8] sm:$0xff]
  %v199 = vld [vmem:[%s52] sm:$0xff]
  %v200 = vld [vmem:[%s52 + $0x8] sm:$0xff]
  %v201 = vld [vmem:[%s52 + $0x10] sm:$0xff]
  %v202 = vld [vmem:[%s52 + $0x18] sm:$0xff]
  %v203 = vld [vmem:[%s52 + $0x20] sm:$0xff]
  %v204 = vld [vmem:[%s52 + $0x28] sm:$0xff]
  %v205 = vld [vmem:[%s52 + $0x30] sm:$0xff]
  %v206 = vld [vmem:[%s52 + $0x38] sm:$0xff]
  %v207 = vld [vmem:[%s52 + $0x40] sm:$0xff]
  %v208 = vld [vmem:[%s52 + $0x48] sm:$0xff]
  %v209 = vld [vmem:[%s52 + $0x50] sm:$0xff]
  %v210 = vld [vmem:[%s52 + $0x58] sm:$0xff]
  %v211 = vld [vmem:[%s52 + $0x60] sm:$0xff]
  %v212 = vld [vmem:[%s52 + $0x68] sm:$0xff]
  %v213 = vld [vmem:[%s52 + $0x70] sm:$0xff]
  %v214 = vld [vmem:[%s52 + $0x78] sm:$0xff]
  %v215 = vld [vmem:[%s52 + $0x80] sm:$0xff]
  %v216 = vld [vmem:[%s52 + $0x88] sm:$0xff]
  %v217 = vld [vmem:[%s52 + $0x90] sm:$0xff]
  %v218 = vld [vmem:[%s52 + $0x98] sm:$0xff]
  %v219 = vld [vmem:[%s52 + $0xa0] sm:$0xff]
  %v220 = vld [vmem:[%s52 + $0xa8] sm:$0xff]
  %v221 = vld [vmem:[%s52 + $0xb0] sm:$0xff]
  %v222 = vld [vmem:[%s52 + $0xb8] sm:$0xff]
  %v223 = vld [vmem:[%s52 + $0xc0] sm:$0xff]
  %v224 = vld [vmem:[%s52 + $0xc8] sm:$0xff]
  %v225 = vld [vmem:[%s52 + $0xd0] sm:$0xff]
  %v226 = vld [vmem:[%s52 + $0xd8] sm:$0xff]
  %v227 = vld [vmem:[%s52 + $0xe0] sm:$0xff]
  %v228 = vld [vmem:[%s52 + $0xe8] sm:$0xff]
  %v229 = vld [vmem:[%s52 + $0xf0] sm:$0xff]
  %v230 = vld [vmem:[%s52 + $0xf8] sm:$0xff]
  %v231 = vld [vmem:[%s52 + $0x100] sm:$0xff]
  %v232 = vld [vmem:[%s52 + $0x108] sm:$0xff]
  %v233 = vld [vmem:[%s52 + $0x110] sm:$0xff]
  %v234 = vld [vmem:[%s52 + $0x118] sm:$0xff]
  %v235 = vld [vmem:[%s52 + $0x120] sm:$0xff]
  %v236 = vld [vmem:[%s52 + $0x128] sm:$0xff]
  %v237 = vld [vmem:[%s52 + $0x130] sm:$0xff]
  %v238 = vld [vmem:[%s52 + $0x138] sm:$0xff]
  %v239 = vld [vmem:[%s52 + $0x140] sm:$0xff]
  %v240 = vld [vmem:[%s52 + $0x148] sm:$0xff]
  %v241 = vld [vmem:[%s52 + $0x150] sm:$0xff]
  %v242 = vld [vmem:[%s52 + $0x158] sm:$0xff]
  %v243 = vld [vmem:[%s52 + $0x160] sm:$0xff]
  %v244 = vld [vmem:[%s52 + $0x168] sm:$0xff]
  %v245 = vld [vmem:[%s52 + $0x170] sm:$0xff]
  %v246 = vld [vmem:[%s52 + $0x178] sm:$0xff]
  %v247 = vld [vmem:[%s52 + $0x180] sm:$0xff]
  %v248 = vld [vmem:[%s52 + $0x188] sm:$0xff]
  %v249 = vld [vmem:[%s52 + $0x190] sm:$0xff]
  %v250 = vld [vmem:[%s52 + $0x198] sm:$0xff]
  %v251 = vld [vmem:[%s52 + $0x1a0] sm:$0xff]
  %v252 = vld [vmem:[%s52 + $0x1a8] sm:$0xff]
  %v253 = vld [vmem:[%s52 + $0x1b0] sm:$0xff]
  %v254 = vld [vmem:[%s52 + $0x1b8] sm:$0xff]
  %v255 = vld [vmem:[%s52 + $0x1c0] sm:$0xff]
  %v256 = vld [vmem:[%s52 + $0x1c8] sm:$0xff]
  %v257 = vld [vmem:[%s52 + $0x1d0] sm:$0xff]
  %v258 = vld [vmem:[%s52 + $0x1d8] sm:$0xff]
  %v259 = vld [vmem:[%s52 + $0x1e0] sm:$0xff]
  %v260 = vld [vmem:[%s52 + $0x1e8] sm:$0xff]
  %v261 = vld [vmem:[%s52 + $0x1f0] sm:$0xff]
  %v262 = vld [vmem:[%s52 + $0x1f8] sm:$0xff]
  %vm263 = vcmask 130048
  %v264 = vsel %vm263, %v135, -inf
  %265 = vmax.xlane.f32.xlu0 %v264
  %v266 = vpop.xlane.xlu0 %265
  %v267 = vsel %vm263, %v136, -inf
  %268 = vmax.xlane.f32.xlu0 %v267
  %v269 = vpop.xlane.xlu0 %268
  %v270 = vsel %vm263, %v137, -inf
  %271 = vmax.xlane.f32.xlu0 %v270
  %v272 = vpop.xlane.xlu0 %271
  %v273 = vsel %vm263, %v138, -inf
  %274 = vmax.xlane.f32.xlu0 %v273
  %v275 = vpop.xlane.xlu0 %274
  %v276 = vsel %vm263, %v139, -inf
  %277 = vmax.xlane.f32.xlu0 %v276
  %v278 = vpop.xlane.xlu0 %277
  %v279 = vsel %vm263, %v140, -inf
  %280 = vmax.xlane.f32.xlu0 %v279
  %v281 = vpop.xlane.xlu0 %280
  %v282 = vsel %vm263, %v141, -inf
  %283 = vmax.xlane.f32.xlu0 %v282
  %v284 = vpop.xlane.xlu0 %283
  %v285 = vsel %vm263, %v142, -inf
  %286 = vmax.xlane.f32.xlu0 %v285
  %v287 = vpop.xlane.xlu0 %286
  %v288 = vsel %vm263, %v143, -inf
  %289 = vmax.xlane.f32.xlu0 %v288
  %v290 = vpop.xlane.xlu0 %289
  %v291 = vsel %vm263, %v144, -inf
  %292 = vmax.xlane.f32.xlu0 %v291
  %v293 = vpop.xlane.xlu0 %292
  %v294 = vsel %vm263, %v145, -inf
  %295 = vmax.xlane.f32.xlu0 %v294
  %v296 = vpop.xlane.xlu0 %295
  %v297 = vsel %vm263, %v146, -inf
  %298 = vmax.xlane.f32.xlu0 %v297
  %v299 = vpop.xlane.xlu0 %298
  %v300 = vsel %vm263, %v147, -inf
  %301 = vmax.xlane.f32.xlu0 %v300
  %v302 = vpop.xlane.xlu0 %301
  %v303 = vsel %vm263, %v148, -inf
  %304 = vmax.xlane.f32.xlu0 %v303
  %v305 = vpop.xlane.xlu0 %304
  %v306 = vsel %vm263, %v149, -inf
  %307 = vmax.xlane.f32.xlu0 %v306
  %v308 = vpop.xlane.xlu0 %307
  %v309 = vsel %vm263, %v150, -inf
  %310 = vmax.xlane.f32.xlu0 %v309
  %v311 = vpop.xlane.xlu0 %310
  %v312 = vsel %vm263, %v151, -inf
  %313 = vmax.xlane.f32.xlu0 %v312
  %v314 = vpop.xlane.xlu0 %313
  %v315 = vsel %vm263, %v152, -inf
  %316 = vmax.xlane.f32.xlu0 %v315
  %v317 = vpop.xlane.xlu0 %316
  %v318 = vsel %vm263, %v153, -inf
  %319 = vmax.xlane.f32.xlu0 %v318
  %v320 = vpop.xlane.xlu0 %319
  %v321 = vsel %vm263, %v154, -inf
  %322 = vmax.xlane.f32.xlu0 %v321
  %v323 = vpop.xlane.xlu0 %322
  %v324 = vsel %vm263, %v155, -inf
  %325 = vmax.xlane.f32.xlu0 %v324
  %v326 = vpop.xlane.xlu0 %325
  %v327 = vsel %vm263, %v156, -inf
  %328 = vmax.xlane.f32.xlu0 %v327
  %v329 = vpop.xlane.xlu0 %328
  %v330 = vsel %vm263, %v157, -inf
  %331 = vmax.xlane.f32.xlu0 %v330
  %v332 = vpop.xlane.xlu0 %331
  %v333 = vsel %vm263, %v158, -inf
  %334 = vmax.xlane.f32.xlu0 %v333
  %v335 = vpop.xlane.xlu0 %334
  %v336 = vsel %vm263, %v159, -inf
  %337 = vmax.xlane.f32.xlu0 %v336
  %v338 = vpop.xlane.xlu0 %337
  %v339 = vsel %vm263, %v160, -inf
  %340 = vmax.xlane.f32.xlu0 %v339
  %v341 = vpop.xlane.xlu0 %340
  %v342 = vsel %vm263, %v161, -inf
  %343 = vmax.xlane.f32.xlu0 %v342
  %v344 = vpop.xlane.xlu0 %343
  %v345 = vsel %vm263, %v162, -inf
  %346 = vmax.xlane.f32.xlu0 %v345
  %v347 = vpop.xlane.xlu0 %346
  %v348 = vsel %vm263, %v163, -inf
  %349 = vmax.xlane.f32.xlu0 %v348
  %v350 = vpop.xlane.xlu0 %349
  %v351 = vsel %vm263, %v164, -inf
  %352 = vmax.xlane.f32.xlu0 %v351
  %v353 = vpop.xlane.xlu0 %352
  %v354 = vsel %vm263, %v165, -inf
  %355 = vmax.xlane.f32.xlu0 %v354
  %v356 = vpop.xlane.xlu0 %355
  %v357 = vsel %vm263, %v166, -inf
  %358 = vmax.xlane.f32.xlu0 %v357
  %v359 = vpop.xlane.xlu0 %358
  %v360 = vsel %vm263, %v167, -inf
  %361 = vmax.xlane.f32.xlu0 %v360
  %v362 = vpop.xlane.xlu0 %361
  %v363 = vsel %vm263, %v168, -inf
  %364 = vmax.xlane.f32.xlu0 %v363
  %v365 = vpop.xlane.xlu0 %364
  %v366 = vsel %vm263, %v169, -inf
  %367 = vmax.xlane.f32.xlu0 %v366
  %v368 = vpop.xlane.xlu0 %367
  %v369 = vsel %vm263, %v170, -inf
  %370 = vmax.xlane.f32.xlu0 %v369
  %v371 = vpop.xlane.xlu0 %370
  %v372 = vsel %vm263, %v171, -inf
  %373 = vmax.xlane.f32.xlu0 %v372
  %v374 = vpop.xlane.xlu0 %373
  %v375 = vsel %vm263, %v172, -inf
  %376 = vmax.xlane.f32.xlu0 %v375
  %v377 = vpop.xlane.xlu0 %376
  %v378 = vsel %vm263, %v173, -inf
  %379 = vmax.xlane.f32.xlu0 %v378
  %v380 = vpop.xlane.xlu0 %379
  %v381 = vsel %vm263, %v174, -inf
  %382 = vmax.xlane.f32.xlu0 %v381
  %v383 = vpop.xlane.xlu0 %382
  %v384 = vsel %vm263, %v175, -inf
  %385 = vmax.xlane.f32.xlu0 %v384
  %v386 = vpop.xlane.xlu0 %385
  %v387 = vsel %vm263, %v176, -inf
  %388 = vmax.xlane.f32.xlu0 %v387
  %v389 = vpop.xlane.xlu0 %388
  %v390 = vsel %vm263, %v177, -inf
  %391 = vmax.xlane.f32.xlu0 %v390
  %v392 = vpop.xlane.xlu0 %391
  %v393 = vsel %vm263, %v178, -inf
  %394 = vmax.xlane.f32.xlu0 %v393
  %v395 = vpop.xlane.xlu0 %394
  %v396 = vsel %vm263, %v179, -inf
  %397 = vmax.xlane.f32.xlu0 %v396
  %v398 = vpop.xlane.xlu0 %397
  %v399 = vsel %vm263, %v180, -inf
  %400 = vmax.xlane.f32.xlu0 %v399
  %v401 = vpop.xlane.xlu0 %400
  %v402 = vsel %vm263, %v181, -inf
  %403 = vmax.xlane.f32.xlu0 %v402
  %v404 = vpop.xlane.xlu0 %403
  %v405 = vsel %vm263, %v182, -inf
  %406 = vmax.xlane.f32.xlu0 %v405
  %v407 = vpop.xlane.xlu0 %406
  %v408 = vsel %vm263, %v183, -inf
  %409 = vmax.xlane.f32.xlu0 %v408
  %v410 = vpop.xlane.xlu0 %409
  %v411 = vsel %vm263, %v184, -inf
  %412 = vmax.xlane.f32.xlu0 %v411
  %v413 = vpop.xlane.xlu0 %412
  %v414 = vsel %vm263, %v185, -inf
  %415 = vmax.xlane.f32.xlu0 %v414
  %v416 = vpop.xlane.xlu0 %415
  %v417 = vsel %vm263, %v186, -inf
  %418 = vmax.xlane.f32.xlu0 %v417
  %v419 = vpop.xlane.xlu0 %418
  %v420 = vsel %vm263, %v187, -inf
  %421 = vmax.xlane.f32.xlu0 %v420
  %v422 = vpop.xlane.xlu0 %421
  %v423 = vsel %vm263, %v188, -inf
  %424 = vmax.xlane.f32.xlu0 %v423
  %v425 = vpop.xlane.xlu0 %424
  %v426 = vsel %vm263, %v189, -inf
  %427 = vmax.xlane.f32.xlu0 %v426
  %v428 = vpop.xlane.xlu0 %427
  %v429 = vsel %vm263, %v190, -inf
  %430 = vmax.xlane.f32.xlu0 %v429
  %v431 = vpop.xlane.xlu0 %430
  %v432 = vsel %vm263, %v191, -inf
  %433 = vmax.xlane.f32.xlu0 %v432
  %v434 = vpop.xlane.xlu0 %433
  %v435 = vsel %vm263, %v192, -inf
  %436 = vmax.xlane.f32.xlu0 %v435
  %v437 = vpop.xlane.xlu0 %436
  %v438 = vsel %vm263, %v193, -inf
  %439 = vmax.xlane.f32.xlu0 %v438
  %v440 = vpop.xlane.xlu0 %439
  %v441 = vsel %vm263, %v194, -inf
  %442 = vmax.xlane.f32.xlu0 %v441
  %v443 = vpop.xlane.xlu0 %442
  %v444 = vsel %vm263, %v195, -inf
  %445 = vmax.xlane.f32.xlu0 %v444
  %v446 = vpop.xlane.xlu0 %445
  %v447 = vsel %vm263, %v196, -inf
  %448 = vmax.xlane.f32.xlu0 %v447
  %v449 = vpop.xlane.xlu0 %448
  %v450 = vsel %vm263, %v197, -inf
  %451 = vmax.xlane.f32.xlu0 %v450
  %v452 = vpop.xlane.xlu0 %451
  %v453 = vsel %vm263, %v198, -inf
  %454 = vmax.xlane.f32.xlu0 %v453
  %v455 = vpop.xlane.xlu0 %454
  %v456 = vsub.f32 %v135, %v266
  %v457 = vsub.f32 %v136, %v269
  %v458 = vsub.f32 %v137, %v272
  %v459 = vsub.f32 %v138, %v275
  %v460 = vsub.f32 %v139, %v278
  %v461 = vsub.f32 %v140, %v281
  %v462 = vsub.f32 %v141, %v284
  %v463 = vsub.f32 %v142, %v287
  %v464 = vsub.f32 %v143, %v290
  %v465 = vsub.f32 %v144, %v293
  %v466 = vsub.f32 %v145, %v296
  %v467 = vsub.f32 %v146, %v299
  %v468 = vsub.f32 %v147, %v302
  %v469 = vsub.f32 %v148, %v305
  %v470 = vsub.f32 %v149, %v308
  %v471 = vsub.f32 %v150, %v311
  %v472 = vsub.f32 %v151, %v314
  %v473 = vsub.f32 %v152, %v317
  %v474 = vsub.f32 %v153, %v320
  %v475 = vsub.f32 %v154, %v323
  %v476 = vsub.f32 %v155, %v326
  %v477 = vsub.f32 %v156, %v329
  %v478 = vsub.f32 %v157, %v332
  %v479 = vsub.f32 %v158, %v335
  %v480 = vsub.f32 %v159, %v338
  %v481 = vsub.f32 %v160, %v341
  %v482 = vsub.f32 %v161, %v344
  %v483 = vsub.f32 %v162, %v347
  %v484 = vsub.f32 %v163, %v350
  %v485 = vsub.f32 %v164, %v353
  %v486 = vsub.f32 %v165, %v356
  %v487 = vsub.f32 %v166, %v359
  %v488 = vsub.f32 %v167, %v362
  %v489 = vsub.f32 %v168, %v365
  %v490 = vsub.f32 %v169, %v368
  %v491 = vsub.f32 %v170, %v371
  %v492 = vsub.f32 %v171, %v374
  %v493 = vsub.f32 %v172, %v377
  %v494 = vsub.f32 %v173, %v380
  %v495 = vsub.f32 %v174, %v383
  %v496 = vsub.f32 %v175, %v386
  %v497 = vsub.f32 %v176, %v389
  %v498 = vsub.f32 %v177, %v392
  %v499 = vsub.f32 %v178, %v395
  %v500 = vsub.f32 %v179, %v398
  %v501 = vsub.f32 %v180, %v401
  %v502 = vsub.f32 %v181, %v404
  %v503 = vsub.f32 %v182, %v407
  %v504 = vsub.f32 %v183, %v410
  %v505 = vsub.f32 %v184, %v413
  %v506 = vsub.f32 %v185, %v416
  %v507 = vsub.f32 %v186, %v419
  %v508 = vsub.f32 %v187, %v422
  %v509 = vsub.f32 %v188, %v425
  %v510 = vsub.f32 %v189, %v428
  %v511 = vsub.f32 %v190, %v431
  %v512 = vsub.f32 %v191, %v434
  %v513 = vsub.f32 %v192, %v437
  %v514 = vsub.f32 %v193, %v440
  %v515 = vsub.f32 %v194, %v443
  %v516 = vsub.f32 %v195, %v446
  %v517 = vsub.f32 %v196, %v449
  %v518 = vsub.f32 %v197, %v452
  %v519 = vsub.f32 %v198, %v455
  %v520 = vmul.f32 %v456, 1.442695
  %v521 = vpow.pop %v520
  %v522 = vmul.f32 %v457, 1.442695
  %v523 = vpow.pop %v522
  %v524 = vmul.f32 %v458, 1.442695
  %v525 = vpow.pop %v524
  %v526 = vmul.f32 %v459, 1.442695
  %v527 = vpow.pop %v526
  %v528 = vmul.f32 %v460, 1.442695
  %v529 = vpow.pop %v528
  %v530 = vmul.f32 %v461, 1.442695
  %v531 = vpow.pop %v530
  %v532 = vmul.f32 %v462, 1.442695
  %v533 = vpow.pop %v532
  %v534 = vmul.f32 %v463, 1.442695
  %v535 = vpow.pop %v534
  %v536 = vmul.f32 %v464, 1.442695
  %v537 = vpow.pop %v536
  %v538 = vmul.f32 %v465, 1.442695
  %v539 = vpow.pop %v538
  %v540 = vmul.f32 %v466, 1.442695
  %v541 = vpow.pop %v540
  %v542 = vmul.f32 %v467, 1.442695
  %v543 = vpow.pop %v542
  %v544 = vmul.f32 %v468, 1.442695
  %v545 = vpow.pop %v544
  %v546 = vmul.f32 %v469, 1.442695
  %v547 = vpow.pop %v546
  %v548 = vmul.f32 %v470, 1.442695
  %v549 = vpow.pop %v548
  %v550 = vmul.f32 %v471, 1.442695
  %v551 = vpow.pop %v550
  %v552 = vmul.f32 %v472, 1.442695
  %v553 = vpow.pop %v552
  %v554 = vmul.f32 %v473, 1.442695
  %v555 = vpow.pop %v554
  %v556 = vmul.f32 %v474, 1.442695
  %v557 = vpow.pop %v556
  %v558 = vmul.f32 %v475, 1.442695
  %v559 = vpow.pop %v558
  %v560 = vmul.f32 %v476, 1.442695
  %v561 = vpow.pop %v560
  %v562 = vmul.f32 %v477, 1.442695
  %v563 = vpow.pop %v562
  %v564 = vmul.f32 %v478, 1.442695
  %v565 = vpow.pop %v564
  %v566 = vmul.f32 %v479, 1.442695
  %v567 = vpow.pop %v566
  %v568 = vmul.f32 %v480, 1.442695
  %v569 = vpow.pop %v568
  %v570 = vmul.f32 %v481, 1.442695
  %v571 = vpow.pop %v570
  %v572 = vmul.f32 %v482, 1.442695
  %v573 = vpow.pop %v572
  %v574 = vmul.f32 %v483, 1.442695
  %v575 = vpow.pop %v574
  %v576 = vmul.f32 %v484, 1.442695
  %v577 = vpow.pop %v576
  %v578 = vmul.f32 %v485, 1.442695
  %v579 = vpow.pop %v578
  %v580 = vmul.f32 %v486, 1.442695
  %v581 = vpow.pop %v580
  %v582 = vmul.f32 %v487, 1.442695
  %v583 = vpow.pop %v582
  %v584 = vmul.f32 %v488, 1.442695
  %v585 = vpow.pop %v584
  %v586 = vmul.f32 %v489, 1.442695
  %v587 = vpow.pop %v586
  %v588 = vmul.f32 %v490, 1.442695
  %v589 = vpow.pop %v588
  %v590 = vmul.f32 %v491, 1.442695
  %v591 = vpow.pop %v590
  %v592 = vmul.f32 %v492, 1.442695
  %v593 = vpow.pop %v592
  %v594 = vmul.f32 %v493, 1.442695
  %v595 = vpow.pop %v594
  %v596 = vmul.f32 %v494, 1.442695
  %v597 = vpow.pop %v596
  %v598 = vmul.f32 %v495, 1.442695
  %v599 = vpow.pop %v598
  %v600 = vmul.f32 %v496, 1.442695
  %v601 = vpow.pop %v600
  %v602 = vmul.f32 %v497, 1.442695
  %v603 = vpow.pop %v602
  %v604 = vmul.f32 %v498, 1.442695
  %v605 = vpow.pop %v604
  %v606 = vmul.f32 %v499, 1.442695
  %v607 = vpow.pop %v606
  %v608 = vmul.f32 %v500, 1.442695
  %v609 = vpow.pop %v608
  %v610 = vmul.f32 %v501, 1.442695
  %v611 = vpow.pop %v610
  %v612 = vmul.f32 %v502, 1.442695
  %v613 = vpow.pop %v612
  %v614 = vmul.f32 %v503, 1.442695
  %v615 = vpow.pop %v614
  %v616 = vmul.f32 %v504, 1.442695
  %v617 = vpow.pop %v616
  %v618 = vmul.f32 %v505, 1.442695
  %v619 = vpow.pop %v618
  %v620 = vmul.f32 %v506, 1.442695
  %v621 = vpow.pop %v620
  %v622 = vmul.f32 %v507, 1.442695
  %v623 = vpow.pop %v622
  %v624 = vmul.f32 %v508, 1.442695
  %v625 = vpow.pop %v624
  %v626 = vmul.f32 %v509, 1.442695
  %v627 = vpow.pop %v626
  %v628 = vmul.f32 %v510, 1.442695
  %v629 = vpow.pop %v628
  %v630 = vmul.f32 %v511, 1.442695
  %v631 = vpow.pop %v630
  %v632 = vmul.f32 %v512, 1.442695
  %v633 = vpow.pop %v632
  %v634 = vmul.f32 %v513, 1.442695
  %v635 = vpow.pop %v634
  %v636 = vmul.f32 %v514, 1.442695
  %v637 = vpow.pop %v636
  %v638 = vmul.f32 %v515, 1.442695
  %v639 = vpow.pop %v638
  %v640 = vmul.f32 %v516, 1.442695
  %v641 = vpow.pop %v640
  %v642 = vmul.f32 %v517, 1.442695
  %v643 = vpow.pop %v642
  %v644 = vmul.f32 %v518, 1.442695
  %v645 = vpow.pop %v644
  %v646 = vmul.f32 %v519, 1.442695
  %v647 = vpow.pop %v646
  %v648 = vsel %vm263, %v521, 0.0
  %649 = vadd.xlane.f32.xlu0 %v648
  %v650 = vpop.xlane.xlu0 %649
  %v651 = vsel %vm263, %v523, 0.0
  %652 = vadd.xlane.f32.xlu0 %v651
  %v653 = vpop.xlane.xlu0 %652
  %v654 = vsel %vm263, %v525, 0.0
  %655 = vadd.xlane.f32.xlu0 %v654
  %v656 = vpop.xlane.xlu0 %655
  %v657 = vsel %vm263, %v527, 0.0
  %658 = vadd.xlane.f32.xlu0 %v657
  %v659 = vpop.xlane.xlu0 %658
  %v660 = vsel %vm263, %v529, 0.0
  %661 = vadd.xlane.f32.xlu0 %v660
  %v662 = vpop.xlane.xlu0 %661
  %v663 = vsel %vm263, %v531, 0.0
  %664 = vadd.xlane.f32.xlu0 %v663
  %v665 = vpop.xlane.xlu0 %664
  %v666 = vsel %vm263, %v533, 0.0
  %667 = vadd.xlane.f32.xlu0 %v666
  %v668 = vpop.xlane.xlu0 %667
  %v669 = vsel %vm263, %v535, 0.0
  %670 = vadd.xlane.f32.xlu0 %v669
  %v671 = vpop.xlane.xlu0 %670
  %v672 = vsel %vm263, %v537, 0.0
  %673 = vadd.xlane.f32.xlu0 %v672
  %v674 = vpop.xlane.xlu0 %673
  %v675 = vsel %vm263, %v539, 0.0
  %676 = vadd.xlane.f32.xlu0 %v675
  %v677 = vpop.xlane.xlu0 %676
  %v678 = vsel %vm263, %v541, 0.0
  %679 = vadd.xlane.f32.xlu0 %v678
  %v680 = vpop.xlane.xlu0 %679
  %v681 = vsel %vm263, %v543, 0.0
  %682 = vadd.xlane.f32.xlu0 %v681
  %v683 = vpop.xlane.xlu0 %682
  %v684 = vsel %vm263, %v545, 0.0
  %685 = vadd.xlane.f32.xlu0 %v684
  %v686 = vpop.xlane.xlu0 %685
  %v687 = vsel %vm263, %v547, 0.0
  %688 = vadd.xlane.f32.xlu0 %v687
  %v689 = vpop.xlane.xlu0 %688
  %v690 = vsel %vm263, %v549, 0.0
  %691 = vadd.xlane.f32.xlu0 %v690
  %v692 = vpop.xlane.xlu0 %691
  %v693 = vsel %vm263, %v551, 0.0
  %694 = vadd.xlane.f32.xlu0 %v693
  %v695 = vpop.xlane.xlu0 %694
  %v696 = vsel %vm263, %v553, 0.0
  %697 = vadd.xlane.f32.xlu0 %v696
  %v698 = vpop.xlane.xlu0 %697
  %v699 = vsel %vm263, %v555, 0.0
  %700 = vadd.xlane.f32.xlu0 %v699
  %v701 = vpop.xlane.xlu0 %700
  %v702 = vsel %vm263, %v557, 0.0
  %703 = vadd.xlane.f32.xlu0 %v702
  %v704 = vpop.xlane.xlu0 %703
  %v705 = vsel %vm263, %v559, 0.0
  %706 = vadd.xlane.f32.xlu0 %v705
  %v707 = vpop.xlane.xlu0 %706
  %v708 = vsel %vm263, %v561, 0.0
  %709 = vadd.xlane.f32.xlu0 %v708
  %v710 = vpop.xlane.xlu0 %709
  %v711 = vsel %vm263, %v563, 0.0
  %712 = vadd.xlane.f32.xlu0 %v711
  %v713 = vpop.xlane.xlu0 %712
  %v714 = vsel %vm263, %v565, 0.0
  %715 = vadd.xlane.f32.xlu0 %v714
  %v716 = vpop.xlane.xlu0 %715
  %v717 = vsel %vm263, %v567, 0.0
  %718 = vadd.xlane.f32.xlu0 %v717
  %v719 = vpop.xlane.xlu0 %718
  %v720 = vsel %vm263, %v569, 0.0
  %721 = vadd.xlane.f32.xlu0 %v720
  %v722 = vpop.xlane.xlu0 %721
  %v723 = vsel %vm263, %v571, 0.0
  %724 = vadd.xlane.f32.xlu0 %v723
  %v725 = vpop.xlane.xlu0 %724
  %v726 = vsel %vm263, %v573, 0.0
  %727 = vadd.xlane.f32.xlu0 %v726
  %v728 = vpop.xlane.xlu0 %727
  %v729 = vsel %vm263, %v575, 0.0
  %730 = vadd.xlane.f32.xlu0 %v729
  %v731 = vpop.xlane.xlu0 %730
  %v732 = vsel %vm263, %v577, 0.0
  %733 = vadd.xlane.f32.xlu0 %v732
  %v734 = vpop.xlane.xlu0 %733
  %v735 = vsel %vm263, %v579, 0.0
  %736 = vadd.xlane.f32.xlu0 %v735
  %v737 = vpop.xlane.xlu0 %736
  %v738 = vsel %vm263, %v581, 0.0
  %739 = vadd.xlane.f32.xlu0 %v738
  %v740 = vpop.xlane.xlu0 %739
  %v741 = vsel %vm263, %v583, 0.0
  %742 = vadd.xlane.f32.xlu0 %v741
  %v743 = vpop.xlane.xlu0 %742
  %v744 = vsel %vm263, %v585, 0.0
  %745 = vadd.xlane.f32.xlu0 %v744
  %v746 = vpop.xlane.xlu0 %745
  %v747 = vsel %vm263, %v587, 0.0
  %748 = vadd.xlane.f32.xlu0 %v747
  %v749 = vpop.xlane.xlu0 %748
  %v750 = vsel %vm263, %v589, 0.0
  %751 = vadd.xlane.f32.xlu0 %v750
  %v752 = vpop.xlane.xlu0 %751
  %v753 = vsel %vm263, %v591, 0.0
  %754 = vadd.xlane.f32.xlu0 %v753
  %v755 = vpop.xlane.xlu0 %754
  %v756 = vsel %vm263, %v593, 0.0
  %757 = vadd.xlane.f32.xlu0 %v756
  %v758 = vpop.xlane.xlu0 %757
  %v759 = vsel %vm263, %v595, 0.0
  %760 = vadd.xlane.f32.xlu0 %v759
  %v761 = vpop.xlane.xlu0 %760
  %v762 = vsel %vm263, %v597, 0.0
  %763 = vadd.xlane.f32.xlu0 %v762
  %v764 = vpop.xlane.xlu0 %763
  %v765 = vsel %vm263, %v599, 0.0
  %766 = vadd.xlane.f32.xlu0 %v765
  %v767 = vpop.xlane.xlu0 %766
  %v768 = vsel %vm263, %v601, 0.0
  %769 = vadd.xlane.f32.xlu0 %v768
  %v770 = vpop.xlane.xlu0 %769
  %v771 = vsel %vm263, %v603, 0.0
  %772 = vadd.xlane.f32.xlu0 %v771
  %v773 = vpop.xlane.xlu0 %772
  %v774 = vsel %vm263, %v605, 0.0
  %775 = vadd.xlane.f32.xlu0 %v774
  %v776 = vpop.xlane.xlu0 %775
  %v777 = vsel %vm263, %v607, 0.0
  %778 = vadd.xlane.f32.xlu0 %v777
  %v779 = vpop.xlane.xlu0 %778
  %v780 = vsel %vm263, %v609, 0.0
  %781 = vadd.xlane.f32.xlu0 %v780
  %v782 = vpop.xlane.xlu0 %781
  %v783 = vsel %vm263, %v611, 0.0
  %784 = vadd.xlane.f32.xlu0 %v783
  %v785 = vpop.xlane.xlu0 %784
  %v786 = vsel %vm263, %v613, 0.0
  %787 = vadd.xlane.f32.xlu0 %v786
  %v788 = vpop.xlane.xlu0 %787
  %v789 = vsel %vm263, %v615, 0.0
  %790 = vadd.xlane.f32.xlu0 %v789
  %v791 = vpop.xlane.xlu0 %790
  %v792 = vsel %vm263, %v617, 0.0
  %793 = vadd.xlane.f32.xlu0 %v792
  %v794 = vpop.xlane.xlu0 %793
  %v795 = vsel %vm263, %v619, 0.0
  %796 = vadd.xlane.f32.xlu0 %v795
  %v797 = vpop.xlane.xlu0 %796
  %v798 = vsel %vm263, %v621, 0.0
  %799 = vadd.xlane.f32.xlu0 %v798
  %v800 = vpop.xlane.xlu0 %799
  %v801 = vsel %vm263, %v623, 0.0
  %802 = vadd.xlane.f32.xlu0 %v801
  %v803 = vpop.xlane.xlu0 %802
  %v804 = vsel %vm263, %v625, 0.0
  %805 = vadd.xlane.f32.xlu0 %v804
  %v806 = vpop.xlane.xlu0 %805
  %v807 = vsel %vm263, %v627, 0.0
  %808 = vadd.xlane.f32.xlu0 %v807
  %v809 = vpop.xlane.xlu0 %808
  %v810 = vsel %vm263, %v629, 0.0
  %811 = vadd.xlane.f32.xlu0 %v810
  %v812 = vpop.xlane.xlu0 %811
  %v813 = vsel %vm263, %v631, 0.0
  %814 = vadd.xlane.f32.xlu0 %v813
  %v815 = vpop.xlane.xlu0 %814
  %v816 = vsel %vm263, %v633, 0.0
  %817 = vadd.xlane.f32.xlu0 %v816
  %v818 = vpop.xlane.xlu0 %817
  %v819 = vsel %vm263, %v635, 0.0
  %820 = vadd.xlane.f32.xlu0 %v819
  %v821 = vpop.xlane.xlu0 %820
  %v822 = vsel %vm263, %v637, 0.0
  %823 = vadd.xlane.f32.xlu0 %v822
  %v824 = vpop.xlane.xlu0 %823
  %v825 = vsel %vm263, %v639, 0.0
  %826 = vadd.xlane.f32.xlu0 %v825
  %v827 = vpop.xlane.xlu0 %826
  %v828 = vsel %vm263, %v641, 0.0
  %829 = vadd.xlane.f32.xlu0 %v828
  %v830 = vpop.xlane.xlu0 %829
  %v831 = vsel %vm263, %v643, 0.0
  %832 = vadd.xlane.f32.xlu0 %v831
  %v833 = vpop.xlane.xlu0 %832
  %v834 = vsel %vm263, %v645, 0.0
  %835 = vadd.xlane.f32.xlu0 %v834
  %v836 = vpop.xlane.xlu0 %835
  %v837 = vsel %vm263, %v647, 0.0
  %838 = vadd.xlane.f32.xlu0 %v837
  %v839 = vpop.xlane.xlu0 %838
  %v840 = vrcp.pop %v650
  %v841 = vmul.f32 1.0, %v840
  %v842 = vrcp.pop %v653
  %v843 = vmul.f32 1.0, %v842
  %v844 = vrcp.pop %v656
  %v845 = vmul.f32 1.0, %v844
  %v846 = vrcp.pop %v659
  %v847 = vmul.f32 1.0, %v846
  %v848 = vrcp.pop %v662
  %v849 = vmul.f32 1.0, %v848
  %v850 = vrcp.pop %v665
  %v851 = vmul.f32 1.0, %v850
  %v852 = vrcp.pop %v668
  %v853 = vmul.f32 1.0, %v852
  %v854 = vrcp.pop %v671
  %v855 = vmul.f32 1.0, %v854
  %v856 = vrcp.pop %v674
  %v857 = vmul.f32 1.0, %v856
  %v858 = vrcp.pop %v677
  %v859 = vmul.f32 1.0, %v858
  %v860 = vrcp.pop %v680
  %v861 = vmul.f32 1.0, %v860
  %v862 = vrcp.pop %v683
  %v863 = vmul.f32 1.0, %v862
  %v864 = vrcp.pop %v686
  %v865 = vmul.f32 1.0, %v864
  %v866 = vrcp.pop %v689
  %v867 = vmul.f32 1.0, %v866
  %v868 = vrcp.pop %v692
  %v869 = vmul.f32 1.0, %v868
  %v870 = vrcp.pop %v695
  %v871 = vmul.f32 1.0, %v870
  %v872 = vrcp.pop %v698
  %v873 = vmul.f32 1.0, %v872
  %v874 = vrcp.pop %v701
  %v875 = vmul.f32 1.0, %v874
  %v876 = vrcp.pop %v704
  %v877 = vmul.f32 1.0, %v876
  %v878 = vrcp.pop %v707
  %v879 = vmul.f32 1.0, %v878
  %v880 = vrcp.pop %v710
  %v881 = vmul.f32 1.0, %v880
  %v882 = vrcp.pop %v713
  %v883 = vmul.f32 1.0, %v882
  %v884 = vrcp.pop %v716
  %v885 = vmul.f32 1.0, %v884
  %v886 = vrcp.pop %v719
  %v887 = vmul.f32 1.0, %v886
  %v888 = vrcp.pop %v722
  %v889 = vmul.f32 1.0, %v888
  %v890 = vrcp.pop %v725
  %v891 = vmul.f32 1.0, %v890
  %v892 = vrcp.pop %v728
  %v893 = vmul.f32 1.0, %v892
  %v894 = vrcp.pop %v731
  %v895 = vmul.f32 1.0, %v894
  %v896 = vrcp.pop %v734
  %v897 = vmul.f32 1.0, %v896
  %v898 = vrcp.pop %v737
  %v899 = vmul.f32 1.0, %v898
  %v900 = vrcp.pop %v740
  %v901 = vmul.f32 1.0, %v900
  %v902 = vrcp.pop %v743
  %v903 = vmul.f32 1.0, %v902
  %v904 = vrcp.pop %v746
  %v905 = vmul.f32 1.0, %v904
  %v906 = vrcp.pop %v749
  %v907 = vmul.f32 1.0, %v906
  %v908 = vrcp.pop %v752
  %v909 = vmul.f32 1.0, %v908
  %v910 = vrcp.pop %v755
  %v911 = vmul.f32 1.0, %v910
  %v912 = vrcp.pop %v758
  %v913 = vmul.f32 1.0, %v912
  %v914 = vrcp.pop %v761
  %v915 = vmul.f32 1.0, %v914
  %v916 = vrcp.pop %v764
  %v917 = vmul.f32 1.0, %v916
  %v918 = vrcp.pop %v767
  %v919 = vmul.f32 1.0, %v918
  %v920 = vrcp.pop %v770
  %v921 = vmul.f32 1.0, %v920
  %v922 = vrcp.pop %v773
  %v923 = vmul.f32 1.0, %v922
  %v924 = vrcp.pop %v776
  %v925 = vmul.f32 1.0, %v924
  %v926 = vrcp.pop %v779
  %v927 = vmul.f32 1.0, %v926
  %v928 = vrcp.pop %v782
  %v929 = vmul.f32 1.0, %v928
  %v930 = vrcp.pop %v785
  %v931 = vmul.f32 1.0, %v930
  %v932 = vrcp.pop %v788
  %v933 = vmul.f32 1.0, %v932
  %v934 = vrcp.pop %v791
  %v935 = vmul.f32 1.0, %v934
  %v936 = vrcp.pop %v794
  %v937 = vmul.f32 1.0, %v936
  %v938 = vrcp.pop %v797
  %v939 = vmul.f32 1.0, %v938
  %v940 = vrcp.pop %v800
  %v941 = vmul.f32 1.0, %v940
  %v942 = vrcp.pop %v803
  %v943 = vmul.f32 1.0, %v942
  %v944 = vrcp.pop %v806
  %v945 = vmul.f32 1.0, %v944
  %v946 = vrcp.pop %v809
  %v947 = vmul.f32 1.0, %v946
  %v948 = vrcp.pop %v812
  %v949 = vmul.f32 1.0, %v948
  %v950 = vrcp.pop %v815
  %v951 = vmul.f32 1.0, %v950
  %v952 = vrcp.pop %v818
  %v953 = vmul.f32 1.0, %v952
  %v954 = vrcp.pop %v821
  %v955 = vmul.f32 1.0, %v954
  %v956 = vrcp.pop %v824
  %v957 = vmul.f32 1.0, %v956
  %v958 = vrcp.pop %v827
  %v959 = vmul.f32 1.0, %v958
  %v960 = vrcp.pop %v830
  %v961 = vmul.f32 1.0, %v960
  %v962 = vrcp.pop %v833
  %v963 = vmul.f32 1.0, %v962
  %v964 = vrcp.pop %v836
  %v965 = vmul.f32 1.0, %v964
  %v966 = vrcp.pop %v839
  %v967 = vmul.f32 1.0, %v966
  %vm968 = vcmp.eq.f32.partialorder %v135, %v266
  %vm969 = vcmp.eq.f32.partialorder %v136, %v269
  %vm970 = vcmp.eq.f32.partialorder %v137, %v272
  %vm971 = vcmp.eq.f32.partialorder %v138, %v275
  %vm972 = vcmp.eq.f32.partialorder %v139, %v278
  %vm973 = vcmp.eq.f32.partialorder %v140, %v281
  %vm974 = vcmp.eq.f32.partialorder %v141, %v284
  %vm975 = vcmp.eq.f32.partialorder %v142, %v287
  %vm976 = vcmp.eq.f32.partialorder %v143, %v290
  %vm977 = vcmp.eq.f32.partialorder %v144, %v293
  %vm978 = vcmp.eq.f32.partialorder %v145, %v296
  %vm979 = vcmp.eq.f32.partialorder %v146, %v299
  %vm980 = vcmp.eq.f32.partialorder %v147, %v302
  %vm981 = vcmp.eq.f32.partialorder %v148, %v305
  %vm982 = vcmp.eq.f32.partialorder %v149, %v308
  %vm983 = vcmp.eq.f32.partialorder %v150, %v311
  %vm984 = vcmp.eq.f32.partialorder %v151, %v314
  %vm985 = vcmp.eq.f32.partialorder %v152, %v317
  %vm986 = vcmp.eq.f32.partialorder %v153, %v320
  %vm987 = vcmp.eq.f32.partialorder %v154, %v323
  %vm988 = vcmp.eq.f32.partialorder %v155, %v326
  %vm989 = vcmp.eq.f32.partialorder %v156, %v329
  %vm990 = vcmp.eq.f32.partialorder %v157, %v332
  %vm991 = vcmp.eq.f32.partialorder %v158, %v335
  %vm992 = vcmp.eq.f32.partialorder %v159, %v338
  %vm993 = vcmp.eq.f32.partialorder %v160, %v341
  %vm994 = vcmp.eq.f32.partialorder %v161, %v344
  %vm995 = vcmp.eq.f32.partialorder %v162, %v347
  %vm996 = vcmp.eq.f32.partialorder %v163, %v350
  %vm997 = vcmp.eq.f32.partialorder %v164, %v353
  %vm998 = vcmp.eq.f32.partialorder %v165, %v356
  %vm999 = vcmp.eq.f32.partialorder %v166, %v359
  %vm1000 = vcmp.eq.f32.partialorder %v167, %v362
  %vm1001 = vcmp.eq.f32.partialorder %v168, %v365
  %vm1002 = vcmp.eq.f32.partialorder %v169, %v368
  %vm1003 = vcmp.eq.f32.partialorder %v170, %v371
  %vm1004 = vcmp.eq.f32.partialorder %v171, %v374
  %vm1005 = vcmp.eq.f32.partialorder %v172, %v377
  %vm1006 = vcmp.eq.f32.partialorder %v173, %v380
  %vm1007 = vcmp.eq.f32.partialorder %v174, %v383
  %vm1008 = vcmp.eq.f32.partialorder %v175, %v386
  %vm1009 = vcmp.eq.f32.partialorder %v176, %v389
  %vm1010 = vcmp.eq.f32.partialorder %v177, %v392
  %vm1011 = vcmp.eq.f32.partialorder %v178, %v395
  %vm1012 = vcmp.eq.f32.partialorder %v179, %v398
  %vm1013 = vcmp.eq.f32.partialorder %v180, %v401
  %vm1014 = vcmp.eq.f32.partialorder %v181, %v404
  %vm1015 = vcmp.eq.f32.partialorder %v182, %v407
  %vm1016 = vcmp.eq.f32.partialorder %v183, %v410
  %vm1017 = vcmp.eq.f32.partialorder %v184, %v413
  %vm1018 = vcmp.eq.f32.partialorder %v185, %v416
  %vm1019 = vcmp.eq.f32.partialorder %v186, %v419
  %vm1020 = vcmp.eq.f32.partialorder %v187, %v422
  %vm1021 = vcmp.eq.f32.partialorder %v188, %v425
  %vm1022 = vcmp.eq.f32.partialorder %v189, %v428
  %vm1023 = vcmp.eq.f32.partialorder %v190, %v431
  %vm1024 = vcmp.eq.f32.partialorder %v191, %v434
  %vm1025 = vcmp.eq.f32.partialorder %v192, %v437
  %vm1026 = vcmp.eq.f32.partialorder %v193, %v440
  %vm1027 = vcmp.eq.f32.partialorder %v194, %v443
  %vm1028 = vcmp.eq.f32.partialorder %v195, %v446
  %vm1029 = vcmp.eq.f32.partialorder %v196, %v449
  %vm1030 = vcmp.eq.f32.partialorder %v197, %v452
  %vm1031 = vcmp.eq.f32.partialorder %v198, %v455
  %v1032 = vsel %vm968, %v64, 16
  %v1033 = vsel %vm969, %v64, 16
  %v1034 = vsel %vm970, %v64, 16
  %v1035 = vsel %vm971, %v64, 16
  %v1036 = vsel %vm972, %v64, 16
  %v1037 = vsel %vm973, %v64, 16
  %v1038 = vsel %vm974, %v64, 16
  %v1039 = vsel %vm975, %v64, 16
  %v1040 = vsel %vm976, %v64, 16
  %v1041 = vsel %vm977, %v64, 16
  %v1042 = vsel %vm978, %v64, 16
  %v1043 = vsel %vm979, %v64, 16
  %v1044 = vsel %vm980, %v64, 16
  %v1045 = vsel %vm981, %v64, 16
  %v1046 = vsel %vm982, %v64, 16
  %v1047 = vsel %vm983, %v64, 16
  %v1048 = vsel %vm984, %v64, 16
  %v1049 = vsel %vm985, %v64, 16
  %v1050 = vsel %vm986, %v64, 16
  %v1051 = vsel %vm987, %v64, 16
  %v1052 = vsel %vm988, %v64, 16
  %v1053 = vsel %vm989, %v64, 16
  %v1054 = vsel %vm990, %v64, 16
  %v1055 = vsel %vm991, %v64, 16
  %v1056 = vsel %vm992, %v64, 16
  %v1057 = vsel %vm993, %v64, 16
  %v1058 = vsel %vm994, %v64, 16
  %v1059 = vsel %vm995, %v64, 16
  %v1060 = vsel %vm996, %v64, 16
  %v1061 = vsel %vm997, %v64, 16
  %v1062 = vsel %vm998, %v64, 16
  %v1063 = vsel %vm999, %v64, 16
  %v1064 = vsel %vm1000, %v64, 16
  %v1065 = vsel %vm1001, %v64, 16
  %v1066 = vsel %vm1002, %v64, 16
  %v1067 = vsel %vm1003, %v64, 16
  %v1068 = vsel %vm1004, %v64, 16
  %v1069 = vsel %vm1005, %v64, 16
  %v1070 = vsel %vm1006, %v64, 16
  %v1071 = vsel %vm1007, %v64, 16
  %v1072 = vsel %vm1008, %v64, 16
  %v1073 = vsel %vm1009, %v64, 16
  %v1074 = vsel %vm1010, %v64, 16
  %v1075 = vsel %vm1011, %v64, 16
  %v1076 = vsel %vm1012, %v64, 16
  %v1077 = vsel %vm1013, %v64, 16
  %v1078 = vsel %vm1014, %v64, 16
  %v1079 = vsel %vm1015, %v64, 16
  %v1080 = vsel %vm1016, %v64, 16
  %v1081 = vsel %vm1017, %v64, 16
  %v1082 = vsel %vm1018, %v64, 16
  %v1083 = vsel %vm1019, %v64, 16
  %v1084 = vsel %vm1020, %v64, 16
  %v1085 = vsel %vm1021, %v64, 16
  %v1086 = vsel %vm1022, %v64, 16
  %v1087 = vsel %vm1023, %v64, 16
  %v1088 = vsel %vm1024, %v64, 16
  %v1089 = vsel %vm1025, %v64, 16
  %v1090 = vsel %vm1026, %v64, 16
  %v1091 = vsel %vm1027, %v64, 16
  %v1092 = vsel %vm1028, %v64, 16
  %v1093 = vsel %vm1029, %v64, 16
  %v1094 = vsel %vm1030, %v64, 16
  %v1095 = vsel %vm1031, %v64, 16
  %v1096 = vsel %vm263, %v1032, 2147483647
  %v1097 = vand.u32 %v1096, 65535
  %v1098 = vshra.s32 %v1096, 16
  %v1099 = vcvt.s32.f32 %v1097
  %v1100 = vcvt.s32.f32 %v1098
  %1101 = vmin.xlane.f32.xlu0 %v1100
  %v1102 = vpop.xlane.xlu0 %1101
  %vm1103 = vcmp.eq.f32.partialorder %v1100, %v1102
  %v1104 = vsel %vm1103, %v1099, inf
  %1105 = vmin.xlane.f32.xlu0 %v1104
  %v1106 = vpop.xlane.xlu0 %1105
  %v1107 = vcvt.f32.s32 %v1106
  %v1108 = vcvt.f32.s32 %v1102
  %v1109 = vshll.u32 %v1108, 16
  %v1110 = vadd.s32 %v1109, %v1107
  %v1111 = vsel %vm263, %v1033, 2147483647
  %v1112 = vand.u32 %v1111, 65535
  %v1113 = vshra.s32 %v1111, 16
  %v1114 = vcvt.s32.f32 %v1112
  %v1115 = vcvt.s32.f32 %v1113
  %1116 = vmin.xlane.f32.xlu0 %v1115
  %v1117 = vpop.xlane.xlu0 %1116
  %vm1118 = vcmp.eq.f32.partialorder %v1115, %v1117
  %v1119 = vsel %vm1118, %v1114, inf
  %1120 = vmin.xlane.f32.xlu0 %v1119
  %v1121 = vpop.xlane.xlu0 %1120
  %v1122 = vcvt.f32.s32 %v1121
  %v1123 = vcvt.f32.s32 %v1117
  %v1124 = vshll.u32 %v1123, 16
  %v1125 = vadd.s32 %v1124, %v1122
  %v1126 = vsel %vm263, %v1034, 2147483647
  %v1127 = vand.u32 %v1126, 65535
  %v1128 = vshra.s32 %v1126, 16
  %v1129 = vcvt.s32.f32 %v1127
  %v1130 = vcvt.s32.f32 %v1128
  %1131 = vmin.xlane.f32.xlu0 %v1130
  %v1132 = vpop.xlane.xlu0 %1131
  %vm1133 = vcmp.eq.f32.partialorder %v1130, %v1132
  %v1134 = vsel %vm1133, %v1129, inf
  %1135 = vmin.xlane.f32.xlu0 %v1134
  %v1136 = vpop.xlane.xlu0 %1135
  %v1137 = vcvt.f32.s32 %v1136
  %v1138 = vcvt.f32.s32 %v1132
  %v1139 = vshll.u32 %v1138, 16
  %v1140 = vadd.s32 %v1139, %v1137
  %v1141 = vsel %vm263, %v1035, 2147483647
  %v1142 = vand.u32 %v1141, 65535
  %v1143 = vshra.s32 %v1141, 16
  %v1144 = vcvt.s32.f32 %v1142
  %v1145 = vcvt.s32.f32 %v1143
  %1146 = vmin.xlane.f32.xlu0 %v1145
  %v1147 = vpop.xlane.xlu0 %1146
  %vm1148 = vcmp.eq.f32.partialorder %v1145, %v1147
  %v1149 = vsel %vm1148, %v1144, inf
  %1150 = vmin.xlane.f32.xlu0 %v1149
  %v1151 = vpop.xlane.xlu0 %1150
  %v1152 = vcvt.f32.s32 %v1151
  %v1153 = vcvt.f32.s32 %v1147
  %v1154 = vshll.u32 %v1153, 16
  %v1155 = vadd.s32 %v1154, %v1152
  %v1156 = vsel %vm263, %v1036, 2147483647
  %v1157 = vand.u32 %v1156, 65535
  %v1158 = vshra.s32 %v1156, 16
  %v1159 = vcvt.s32.f32 %v1157
  %v1160 = vcvt.s32.f32 %v1158
  %1161 = vmin.xlane.f32.xlu0 %v1160
  %v1162 = vpop.xlane.xlu0 %1161
  %vm1163 = vcmp.eq.f32.partialorder %v1160, %v1162
  %v1164 = vsel %vm1163, %v1159, inf
  %1165 = vmin.xlane.f32.xlu0 %v1164
  %v1166 = vpop.xlane.xlu0 %1165
  %v1167 = vcvt.f32.s32 %v1166
  %v1168 = vcvt.f32.s32 %v1162
  %v1169 = vshll.u32 %v1168, 16
  %v1170 = vadd.s32 %v1169, %v1167
  %v1171 = vsel %vm263, %v1037, 2147483647
  %v1172 = vand.u32 %v1171, 65535
  %v1173 = vshra.s32 %v1171, 16
  %v1174 = vcvt.s32.f32 %v1172
  %v1175 = vcvt.s32.f32 %v1173
  %1176 = vmin.xlane.f32.xlu0 %v1175
  %v1177 = vpop.xlane.xlu0 %1176
  %vm1178 = vcmp.eq.f32.partialorder %v1175, %v1177
  %v1179 = vsel %vm1178, %v1174, inf
  %1180 = vmin.xlane.f32.xlu0 %v1179
  %v1181 = vpop.xlane.xlu0 %1180
  %v1182 = vcvt.f32.s32 %v1181
  %v1183 = vcvt.f32.s32 %v1177
  %v1184 = vshll.u32 %v1183, 16
  %v1185 = vadd.s32 %v1184, %v1182
  %v1186 = vsel %vm263, %v1038, 2147483647
  %v1187 = vand.u32 %v1186, 65535
  %v1188 = vshra.s32 %v1186, 16
  %v1189 = vcvt.s32.f32 %v1187
  %v1190 = vcvt.s32.f32 %v1188
  %1191 = vmin.xlane.f32.xlu0 %v1190
  %v1192 = vpop.xlane.xlu0 %1191
  %vm1193 = vcmp.eq.f32.partialorder %v1190, %v1192
  %v1194 = vsel %vm1193, %v1189, inf
  %1195 = vmin.xlane.f32.xlu0 %v1194
  %v1196 = vpop.xlane.xlu0 %1195
  %v1197 = vcvt.f32.s32 %v1196
  %v1198 = vcvt.f32.s32 %v1192
  %v1199 = vshll.u32 %v1198, 16
  %v1200 = vadd.s32 %v1199, %v1197
  %v1201 = vsel %vm263, %v1039, 2147483647
  %v1202 = vand.u32 %v1201, 65535
  %v1203 = vshra.s32 %v1201, 16
  %v1204 = vcvt.s32.f32 %v1202
  %v1205 = vcvt.s32.f32 %v1203
  %1206 = vmin.xlane.f32.xlu0 %v1205
  %v1207 = vpop.xlane.xlu0 %1206
  %vm1208 = vcmp.eq.f32.partialorder %v1205, %v1207
  %v1209 = vsel %vm1208, %v1204, inf
  %1210 = vmin.xlane.f32.xlu0 %v1209
  %v1211 = vpop.xlane.xlu0 %1210
  %v1212 = vcvt.f32.s32 %v1211
  %v1213 = vcvt.f32.s32 %v1207
  %v1214 = vshll.u32 %v1213, 16
  %v1215 = vadd.s32 %v1214, %v1212
  %v1216 = vsel %vm263, %v1040, 2147483647
  %v1217 = vand.u32 %v1216, 65535
  %v1218 = vshra.s32 %v1216, 16
  %v1219 = vcvt.s32.f32 %v1217
  %v1220 = vcvt.s32.f32 %v1218
  %1221 = vmin.xlane.f32.xlu0 %v1220
  %v1222 = vpop.xlane.xlu0 %1221
  %vm1223 = vcmp.eq.f32.partialorder %v1220, %v1222
  %v1224 = vsel %vm1223, %v1219, inf
  %1225 = vmin.xlane.f32.xlu0 %v1224
  %v1226 = vpop.xlane.xlu0 %1225
  %v1227 = vcvt.f32.s32 %v1226
  %v1228 = vcvt.f32.s32 %v1222
  %v1229 = vshll.u32 %v1228, 16
  %v1230 = vadd.s32 %v1229, %v1227
  %v1231 = vsel %vm263, %v1041, 2147483647
  %v1232 = vand.u32 %v1231, 65535
  %v1233 = vshra.s32 %v1231, 16
  %v1234 = vcvt.s32.f32 %v1232
  %v1235 = vcvt.s32.f32 %v1233
  %1236 = vmin.xlane.f32.xlu0 %v1235
  %v1237 = vpop.xlane.xlu0 %1236
  %vm1238 = vcmp.eq.f32.partialorder %v1235, %v1237
  %v1239 = vsel %vm1238, %v1234, inf
  %1240 = vmin.xlane.f32.xlu0 %v1239
  %v1241 = vpop.xlane.xlu0 %1240
  %v1242 = vcvt.f32.s32 %v1241
  %v1243 = vcvt.f32.s32 %v1237
  %v1244 = vshll.u32 %v1243, 16
  %v1245 = vadd.s32 %v1244, %v1242
  %v1246 = vsel %vm263, %v1042, 2147483647
  %v1247 = vand.u32 %v1246, 65535
  %v1248 = vshra.s32 %v1246, 16
  %v1249 = vcvt.s32.f32 %v1247
  %v1250 = vcvt.s32.f32 %v1248
  %1251 = vmin.xlane.f32.xlu0 %v1250
  %v1252 = vpop.xlane.xlu0 %1251
  %vm1253 = vcmp.eq.f32.partialorder %v1250, %v1252
  %v1254 = vsel %vm1253, %v1249, inf
  %1255 = vmin.xlane.f32.xlu0 %v1254
  %v1256 = vpop.xlane.xlu0 %1255
  %v1257 = vcvt.f32.s32 %v1256
  %v1258 = vcvt.f32.s32 %v1252
  %v1259 = vshll.u32 %v1258, 16
  %v1260 = vadd.s32 %v1259, %v1257
  %v1261 = vsel %vm263, %v1043, 2147483647
  %v1262 = vand.u32 %v1261, 65535
  %v1263 = vshra.s32 %v1261, 16
  %v1264 = vcvt.s32.f32 %v1262
  %v1265 = vcvt.s32.f32 %v1263
  %1266 = vmin.xlane.f32.xlu0 %v1265
  %v1267 = vpop.xlane.xlu0 %1266
  %vm1268 = vcmp.eq.f32.partialorder %v1265, %v1267
  %v1269 = vsel %vm1268, %v1264, inf
  %1270 = vmin.xlane.f32.xlu0 %v1269
  %v1271 = vpop.xlane.xlu0 %1270
  %v1272 = vcvt.f32.s32 %v1271
  %v1273 = vcvt.f32.s32 %v1267
  %v1274 = vshll.u32 %v1273, 16
  %v1275 = vadd.s32 %v1274, %v1272
  %v1276 = vsel %vm263, %v1044, 2147483647
  %v1277 = vand.u32 %v1276, 65535
  %v1278 = vshra.s32 %v1276, 16
  %v1279 = vcvt.s32.f32 %v1277
  %v1280 = vcvt.s32.f32 %v1278
  %1281 = vmin.xlane.f32.xlu0 %v1280
  %v1282 = vpop.xlane.xlu0 %1281
  %vm1283 = vcmp.eq.f32.partialorder %v1280, %v1282
  %v1284 = vsel %vm1283, %v1279, inf
  %1285 = vmin.xlane.f32.xlu0 %v1284
  %v1286 = vpop.xlane.xlu0 %1285
  %v1287 = vcvt.f32.s32 %v1286
  %v1288 = vcvt.f32.s32 %v1282
  %v1289 = vshll.u32 %v1288, 16
  %v1290 = vadd.s32 %v1289, %v1287
  %v1291 = vsel %vm263, %v1045, 2147483647
  %v1292 = vand.u32 %v1291, 65535
  %v1293 = vshra.s32 %v1291, 16
  %v1294 = vcvt.s32.f32 %v1292
  %v1295 = vcvt.s32.f32 %v1293
  %1296 = vmin.xlane.f32.xlu0 %v1295
  %v1297 = vpop.xlane.xlu0 %1296
  %vm1298 = vcmp.eq.f32.partialorder %v1295, %v1297
  %v1299 = vsel %vm1298, %v1294, inf
  %1300 = vmin.xlane.f32.xlu0 %v1299
  %v1301 = vpop.xlane.xlu0 %1300
  %v1302 = vcvt.f32.s32 %v1301
  %v1303 = vcvt.f32.s32 %v1297
  %v1304 = vshll.u32 %v1303, 16
  %v1305 = vadd.s32 %v1304, %v1302
  %v1306 = vsel %vm263, %v1046, 2147483647
  %v1307 = vand.u32 %v1306, 65535
  %v1308 = vshra.s32 %v1306, 16
  %v1309 = vcvt.s32.f32 %v1307
  %v1310 = vcvt.s32.f32 %v1308
  %1311 = vmin.xlane.f32.xlu0 %v1310
  %v1312 = vpop.xlane.xlu0 %1311
  %vm1313 = vcmp.eq.f32.partialorder %v1310, %v1312
  %v1314 = vsel %vm1313, %v1309, inf
  %1315 = vmin.xlane.f32.xlu0 %v1314
  %v1316 = vpop.xlane.xlu0 %1315
  %v1317 = vcvt.f32.s32 %v1316
  %v1318 = vcvt.f32.s32 %v1312
  %v1319 = vshll.u32 %v1318, 16
  %v1320 = vadd.s32 %v1319, %v1317
  %v1321 = vsel %vm263, %v1047, 2147483647
  %v1322 = vand.u32 %v1321, 65535
  %v1323 = vshra.s32 %v1321, 16
  %v1324 = vcvt.s32.f32 %v1322
  %v1325 = vcvt.s32.f32 %v1323
  %1326 = vmin.xlane.f32.xlu0 %v1325
  %v1327 = vpop.xlane.xlu0 %1326
  %vm1328 = vcmp.eq.f32.partialorder %v1325, %v1327
  %v1329 = vsel %vm1328, %v1324, inf
  %1330 = vmin.xlane.f32.xlu0 %v1329
  %v1331 = vpop.xlane.xlu0 %1330
  %v1332 = vcvt.f32.s32 %v1331
  %v1333 = vcvt.f32.s32 %v1327
  %v1334 = vshll.u32 %v1333, 16
  %v1335 = vadd.s32 %v1334, %v1332
  %v1336 = vsel %vm263, %v1048, 2147483647
  %v1337 = vand.u32 %v1336, 65535
  %v1338 = vshra.s32 %v1336, 16
  %v1339 = vcvt.s32.f32 %v1337
  %v1340 = vcvt.s32.f32 %v1338
  %1341 = vmin.xlane.f32.xlu0 %v1340
  %v1342 = vpop.xlane.xlu0 %1341
  %vm1343 = vcmp.eq.f32.partialorder %v1340, %v1342
  %v1344 = vsel %vm1343, %v1339, inf
  %1345 = vmin.xlane.f32.xlu0 %v1344
  %v1346 = vpop.xlane.xlu0 %1345
  %v1347 = vcvt.f32.s32 %v1346
  %v1348 = vcvt.f32.s32 %v1342
  %v1349 = vshll.u32 %v1348, 16
  %v1350 = vadd.s32 %v1349, %v1347
  %v1351 = vsel %vm263, %v1049, 2147483647
  %v1352 = vand.u32 %v1351, 65535
  %v1353 = vshra.s32 %v1351, 16
  %v1354 = vcvt.s32.f32 %v1352
  %v1355 = vcvt.s32.f32 %v1353
  %1356 = vmin.xlane.f32.xlu0 %v1355
  %v1357 = vpop.xlane.xlu0 %1356
  %vm1358 = vcmp.eq.f32.partialorder %v1355, %v1357
  %v1359 = vsel %vm1358, %v1354, inf
  %1360 = vmin.xlane.f32.xlu0 %v1359
  %v1361 = vpop.xlane.xlu0 %1360
  %v1362 = vcvt.f32.s32 %v1361
  %v1363 = vcvt.f32.s32 %v1357
  %v1364 = vshll.u32 %v1363, 16
  %v1365 = vadd.s32 %v1364, %v1362
  %v1366 = vsel %vm263, %v1050, 2147483647
  %v1367 = vand.u32 %v1366, 65535
  %v1368 = vshra.s32 %v1366, 16
  %v1369 = vcvt.s32.f32 %v1367
  %v1370 = vcvt.s32.f32 %v1368
  %1371 = vmin.xlane.f32.xlu0 %v1370
  %v1372 = vpop.xlane.xlu0 %1371
  %vm1373 = vcmp.eq.f32.partialorder %v1370, %v1372
  %v1374 = vsel %vm1373, %v1369, inf
  %1375 = vmin.xlane.f32.xlu0 %v1374
  %v1376 = vpop.xlane.xlu0 %1375
  %v1377 = vcvt.f32.s32 %v1376
  %v1378 = vcvt.f32.s32 %v1372
  %v1379 = vshll.u32 %v1378, 16
  %v1380 = vadd.s32 %v1379, %v1377
  %v1381 = vsel %vm263, %v1051, 2147483647
  %v1382 = vand.u32 %v1381, 65535
  %v1383 = vshra.s32 %v1381, 16
  %v1384 = vcvt.s32.f32 %v1382
  %v1385 = vcvt.s32.f32 %v1383
  %1386 = vmin.xlane.f32.xlu0 %v1385
  %v1387 = vpop.xlane.xlu0 %1386
  %vm1388 = vcmp.eq.f32.partialorder %v1385, %v1387
  %v1389 = vsel %vm1388, %v1384, inf
  %1390 = vmin.xlane.f32.xlu0 %v1389
  %v1391 = vpop.xlane.xlu0 %1390
  %v1392 = vcvt.f32.s32 %v1391
  %v1393 = vcvt.f32.s32 %v1387
  %v1394 = vshll.u32 %v1393, 16
  %v1395 = vadd.s32 %v1394, %v1392
  %v1396 = vsel %vm263, %v1052, 2147483647
  %v1397 = vand.u32 %v1396, 65535
  %v1398 = vshra.s32 %v1396, 16
  %v1399 = vcvt.s32.f32 %v1397
  %v1400 = vcvt.s32.f32 %v1398
  %1401 = vmin.xlane.f32.xlu0 %v1400
  %v1402 = vpop.xlane.xlu0 %1401
  %vm1403 = vcmp.eq.f32.partialorder %v1400, %v1402
  %v1404 = vsel %vm1403, %v1399, inf
  %1405 = vmin.xlane.f32.xlu0 %v1404
  %v1406 = vpop.xlane.xlu0 %1405
  %v1407 = vcvt.f32.s32 %v1406
  %v1408 = vcvt.f32.s32 %v1402
  %v1409 = vshll.u32 %v1408, 16
  %v1410 = vadd.s32 %v1409, %v1407
  %v1411 = vsel %vm263, %v1053, 2147483647
  %v1412 = vand.u32 %v1411, 65535
  %v1413 = vshra.s32 %v1411, 16
  %v1414 = vcvt.s32.f32 %v1412
  %v1415 = vcvt.s32.f32 %v1413
  %1416 = vmin.xlane.f32.xlu0 %v1415
  %v1417 = vpop.xlane.xlu0 %1416
  %vm1418 = vcmp.eq.f32.partialorder %v1415, %v1417
  %v1419 = vsel %vm1418, %v1414, inf
  %1420 = vmin.xlane.f32.xlu0 %v1419
  %v1421 = vpop.xlane.xlu0 %1420
  %v1422 = vcvt.f32.s32 %v1421
  %v1423 = vcvt.f32.s32 %v1417
  %v1424 = vshll.u32 %v1423, 16
  %v1425 = vadd.s32 %v1424, %v1422
  %v1426 = vsel %vm263, %v1054, 2147483647
  %v1427 = vand.u32 %v1426, 65535
  %v1428 = vshra.s32 %v1426, 16
  %v1429 = vcvt.s32.f32 %v1427
  %v1430 = vcvt.s32.f32 %v1428
  %1431 = vmin.xlane.f32.xlu0 %v1430
  %v1432 = vpop.xlane.xlu0 %1431
  %vm1433 = vcmp.eq.f32.partialorder %v1430, %v1432
  %v1434 = vsel %vm1433, %v1429, inf
  %1435 = vmin.xlane.f32.xlu0 %v1434
  %v1436 = vpop.xlane.xlu0 %1435
  %v1437 = vcvt.f32.s32 %v1436
  %v1438 = vcvt.f32.s32 %v1432
  %v1439 = vshll.u32 %v1438, 16
  %v1440 = vadd.s32 %v1439, %v1437
  %v1441 = vsel %vm263, %v1055, 2147483647
  %v1442 = vand.u32 %v1441, 65535
  %v1443 = vshra.s32 %v1441, 16
  %v1444 = vcvt.s32.f32 %v1442
  %v1445 = vcvt.s32.f32 %v1443
  %1446 = vmin.xlane.f32.xlu0 %v1445
  %v1447 = vpop.xlane.xlu0 %1446
  %vm1448 = vcmp.eq.f32.partialorder %v1445, %v1447
  %v1449 = vsel %vm1448, %v1444, inf
  %1450 = vmin.xlane.f32.xlu0 %v1449
  %v1451 = vpop.xlane.xlu0 %1450
  %v1452 = vcvt.f32.s32 %v1451
  %v1453 = vcvt.f32.s32 %v1447
  %v1454 = vshll.u32 %v1453, 16
  %v1455 = vadd.s32 %v1454, %v1452
  %v1456 = vsel %vm263, %v1056, 2147483647
  %v1457 = vand.u32 %v1456, 65535
  %v1458 = vshra.s32 %v1456, 16
  %v1459 = vcvt.s32.f32 %v1457
  %v1460 = vcvt.s32.f32 %v1458
  %1461 = vmin.xlane.f32.xlu0 %v1460
  %v1462 = vpop.xlane.xlu0 %1461
  %vm1463 = vcmp.eq.f32.partialorder %v1460, %v1462
  %v1464 = vsel %vm1463, %v1459, inf
  %1465 = vmin.xlane.f32.xlu0 %v1464
  %v1466 = vpop.xlane.xlu0 %1465
  %v1467 = vcvt.f32.s32 %v1466
  %v1468 = vcvt.f32.s32 %v1462
  %v1469 = vshll.u32 %v1468, 16
  %v1470 = vadd.s32 %v1469, %v1467
  %v1471 = vsel %vm263, %v1057, 2147483647
  %v1472 = vand.u32 %v1471, 65535
  %v1473 = vshra.s32 %v1471, 16
  %v1474 = vcvt.s32.f32 %v1472
  %v1475 = vcvt.s32.f32 %v1473
  %1476 = vmin.xlane.f32.xlu0 %v1475
  %v1477 = vpop.xlane.xlu0 %1476
  %vm1478 = vcmp.eq.f32.partialorder %v1475, %v1477
  %v1479 = vsel %vm1478, %v1474, inf
  %1480 = vmin.xlane.f32.xlu0 %v1479
  %v1481 = vpop.xlane.xlu0 %1480
  %v1482 = vcvt.f32.s32 %v1481
  %v1483 = vcvt.f32.s32 %v1477
  %v1484 = vshll.u32 %v1483, 16
  %v1485 = vadd.s32 %v1484, %v1482
  %v1486 = vsel %vm263, %v1058, 2147483647
  %v1487 = vand.u32 %v1486, 65535
  %v1488 = vshra.s32 %v1486, 16
  %v1489 = vcvt.s32.f32 %v1487
  %v1490 = vcvt.s32.f32 %v1488
  %1491 = vmin.xlane.f32.xlu0 %v1490
  %v1492 = vpop.xlane.xlu0 %1491
  %vm1493 = vcmp.eq.f32.partialorder %v1490, %v1492
  %v1494 = vsel %vm1493, %v1489, inf
  %1495 = vmin.xlane.f32.xlu0 %v1494
  %v1496 = vpop.xlane.xlu0 %1495
  %v1497 = vcvt.f32.s32 %v1496
  %v1498 = vcvt.f32.s32 %v1492
  %v1499 = vshll.u32 %v1498, 16
  %v1500 = vadd.s32 %v1499, %v1497
  %v1501 = vsel %vm263, %v1059, 2147483647
  %v1502 = vand.u32 %v1501, 65535
  %v1503 = vshra.s32 %v1501, 16
  %v1504 = vcvt.s32.f32 %v1502
  %v1505 = vcvt.s32.f32 %v1503
  %1506 = vmin.xlane.f32.xlu0 %v1505
  %v1507 = vpop.xlane.xlu0 %1506
  %vm1508 = vcmp.eq.f32.partialorder %v1505, %v1507
  %v1509 = vsel %vm1508, %v1504, inf
  %1510 = vmin.xlane.f32.xlu0 %v1509
  %v1511 = vpop.xlane.xlu0 %1510
  %v1512 = vcvt.f32.s32 %v1511
  %v1513 = vcvt.f32.s32 %v1507
  %v1514 = vshll.u32 %v1513, 16
  %v1515 = vadd.s32 %v1514, %v1512
  %v1516 = vsel %vm263, %v1060, 2147483647
  %v1517 = vand.u32 %v1516, 65535
  %v1518 = vshra.s32 %v1516, 16
  %v1519 = vcvt.s32.f32 %v1517
  %v1520 = vcvt.s32.f32 %v1518
  %1521 = vmin.xlane.f32.xlu0 %v1520
  %v1522 = vpop.xlane.xlu0 %1521
  %vm1523 = vcmp.eq.f32.partialorder %v1520, %v1522
  %v1524 = vsel %vm1523, %v1519, inf
  %1525 = vmin.xlane.f32.xlu0 %v1524
  %v1526 = vpop.xlane.xlu0 %1525
  %v1527 = vcvt.f32.s32 %v1526
  %v1528 = vcvt.f32.s32 %v1522
  %v1529 = vshll.u32 %v1528, 16
  %v1530 = vadd.s32 %v1529, %v1527
  %v1531 = vsel %vm263, %v1061, 2147483647
  %v1532 = vand.u32 %v1531, 65535
  %v1533 = vshra.s32 %v1531, 16
  %v1534 = vcvt.s32.f32 %v1532
  %v1535 = vcvt.s32.f32 %v1533
  %1536 = vmin.xlane.f32.xlu0 %v1535
  %v1537 = vpop.xlane.xlu0 %1536
  %vm1538 = vcmp.eq.f32.partialorder %v1535, %v1537
  %v1539 = vsel %vm1538, %v1534, inf
  %1540 = vmin.xlane.f32.xlu0 %v1539
  %v1541 = vpop.xlane.xlu0 %1540
  %v1542 = vcvt.f32.s32 %v1541
  %v1543 = vcvt.f32.s32 %v1537
  %v1544 = vshll.u32 %v1543, 16
  %v1545 = vadd.s32 %v1544, %v1542
  %v1546 = vsel %vm263, %v1062, 2147483647
  %v1547 = vand.u32 %v1546, 65535
  %v1548 = vshra.s32 %v1546, 16
  %v1549 = vcvt.s32.f32 %v1547
  %v1550 = vcvt.s32.f32 %v1548
  %1551 = vmin.xlane.f32.xlu0 %v1550
  %v1552 = vpop.xlane.xlu0 %1551
  %vm1553 = vcmp.eq.f32.partialorder %v1550, %v1552
  %v1554 = vsel %vm1553, %v1549, inf
  %1555 = vmin.xlane.f32.xlu0 %v1554
  %v1556 = vpop.xlane.xlu0 %1555
  %v1557 = vcvt.f32.s32 %v1556
  %v1558 = vcvt.f32.s32 %v1552
  %v1559 = vshll.u32 %v1558, 16
  %v1560 = vadd.s32 %v1559, %v1557
  %v1561 = vsel %vm263, %v1063, 2147483647
  %v1562 = vand.u32 %v1561, 65535
  %v1563 = vshra.s32 %v1561, 16
  %v1564 = vcvt.s32.f32 %v1562
  %v1565 = vcvt.s32.f32 %v1563
  %1566 = vmin.xlane.f32.xlu0 %v1565
  %v1567 = vpop.xlane.xlu0 %1566
  %vm1568 = vcmp.eq.f32.partialorder %v1565, %v1567
  %v1569 = vsel %vm1568, %v1564, inf
  %1570 = vmin.xlane.f32.xlu0 %v1569
  %v1571 = vpop.xlane.xlu0 %1570
  %v1572 = vcvt.f32.s32 %v1571
  %v1573 = vcvt.f32.s32 %v1567
  %v1574 = vshll.u32 %v1573, 16
  %v1575 = vadd.s32 %v1574, %v1572
  %v1576 = vsel %vm263, %v1064, 2147483647
  %v1577 = vand.u32 %v1576, 65535
  %v1578 = vshra.s32 %v1576, 16
  %v1579 = vcvt.s32.f32 %v1577
  %v1580 = vcvt.s32.f32 %v1578
  %1581 = vmin.xlane.f32.xlu0 %v1580
  %v1582 = vpop.xlane.xlu0 %1581
  %vm1583 = vcmp.eq.f32.partialorder %v1580, %v1582
  %v1584 = vsel %vm1583, %v1579, inf
  %1585 = vmin.xlane.f32.xlu0 %v1584
  %v1586 = vpop.xlane.xlu0 %1585
  %v1587 = vcvt.f32.s32 %v1586
  %v1588 = vcvt.f32.s32 %v1582
  %v1589 = vshll.u32 %v1588, 16
  %v1590 = vadd.s32 %v1589, %v1587
  %v1591 = vsel %vm263, %v1065, 2147483647
  %v1592 = vand.u32 %v1591, 65535
  %v1593 = vshra.s32 %v1591, 16
  %v1594 = vcvt.s32.f32 %v1592
  %v1595 = vcvt.s32.f32 %v1593
  %1596 = vmin.xlane.f32.xlu0 %v1595
  %v1597 = vpop.xlane.xlu0 %1596
  %vm1598 = vcmp.eq.f32.partialorder %v1595, %v1597
  %v1599 = vsel %vm1598, %v1594, inf
  %1600 = vmin.xlane.f32.xlu0 %v1599
  %v1601 = vpop.xlane.xlu0 %1600
  %v1602 = vcvt.f32.s32 %v1601
  %v1603 = vcvt.f32.s32 %v1597
  %v1604 = vshll.u32 %v1603, 16
  %v1605 = vadd.s32 %v1604, %v1602
  %v1606 = vsel %vm263, %v1066, 2147483647
  %v1607 = vand.u32 %v1606, 65535
  %v1608 = vshra.s32 %v1606, 16
  %v1609 = vcvt.s32.f32 %v1607
  %v1610 = vcvt.s32.f32 %v1608
  %1611 = vmin.xlane.f32.xlu0 %v1610
  %v1612 = vpop.xlane.xlu0 %1611
  %vm1613 = vcmp.eq.f32.partialorder %v1610, %v1612
  %v1614 = vsel %vm1613, %v1609, inf
  %1615 = vmin.xlane.f32.xlu0 %v1614
  %v1616 = vpop.xlane.xlu0 %1615
  %v1617 = vcvt.f32.s32 %v1616
  %v1618 = vcvt.f32.s32 %v1612
  %v1619 = vshll.u32 %v1618, 16
  %v1620 = vadd.s32 %v1619, %v1617
  %v1621 = vsel %vm263, %v1067, 2147483647
  %v1622 = vand.u32 %v1621, 65535
  %v1623 = vshra.s32 %v1621, 16
  %v1624 = vcvt.s32.f32 %v1622
  %v1625 = vcvt.s32.f32 %v1623
  %1626 = vmin.xlane.f32.xlu0 %v1625
  %v1627 = vpop.xlane.xlu0 %1626
  %vm1628 = vcmp.eq.f32.partialorder %v1625, %v1627
  %v1629 = vsel %vm1628, %v1624, inf
  %1630 = vmin.xlane.f32.xlu0 %v1629
  %v1631 = vpop.xlane.xlu0 %1630
  %v1632 = vcvt.f32.s32 %v1631
  %v1633 = vcvt.f32.s32 %v1627
  %v1634 = vshll.u32 %v1633, 16
  %v1635 = vadd.s32 %v1634, %v1632
  %v1636 = vsel %vm263, %v1068, 2147483647
  %v1637 = vand.u32 %v1636, 65535
  %v1638 = vshra.s32 %v1636, 16
  %v1639 = vcvt.s32.f32 %v1637
  %v1640 = vcvt.s32.f32 %v1638
  %1641 = vmin.xlane.f32.xlu0 %v1640
  %v1642 = vpop.xlane.xlu0 %1641
  %vm1643 = vcmp.eq.f32.partialorder %v1640, %v1642
  %v1644 = vsel %vm1643, %v1639, inf
  %1645 = vmin.xlane.f32.xlu0 %v1644
  %v1646 = vpop.xlane.xlu0 %1645
  %v1647 = vcvt.f32.s32 %v1646
  %v1648 = vcvt.f32.s32 %v1642
  %v1649 = vshll.u32 %v1648, 16
  %v1650 = vadd.s32 %v1649, %v1647
  %v1651 = vsel %vm263, %v1069, 2147483647
  %v1652 = vand.u32 %v1651, 65535
  %v1653 = vshra.s32 %v1651, 16
  %v1654 = vcvt.s32.f32 %v1652
  %v1655 = vcvt.s32.f32 %v1653
  %1656 = vmin.xlane.f32.xlu0 %v1655
  %v1657 = vpop.xlane.xlu0 %1656
  %vm1658 = vcmp.eq.f32.partialorder %v1655, %v1657
  %v1659 = vsel %vm1658, %v1654, inf
  %1660 = vmin.xlane.f32.xlu0 %v1659
  %v1661 = vpop.xlane.xlu0 %1660
  %v1662 = vcvt.f32.s32 %v1661
  %v1663 = vcvt.f32.s32 %v1657
  %v1664 = vshll.u32 %v1663, 16
  %v1665 = vadd.s32 %v1664, %v1662
  %v1666 = vsel %vm263, %v1070, 2147483647
  %v1667 = vand.u32 %v1666, 65535
  %v1668 = vshra.s32 %v1666, 16
  %v1669 = vcvt.s32.f32 %v1667
  %v1670 = vcvt.s32.f32 %v1668
  %1671 = vmin.xlane.f32.xlu0 %v1670
  %v1672 = vpop.xlane.xlu0 %1671
  %vm1673 = vcmp.eq.f32.partialorder %v1670, %v1672
  %v1674 = vsel %vm1673, %v1669, inf
  %1675 = vmin.xlane.f32.xlu0 %v1674
  %v1676 = vpop.xlane.xlu0 %1675
  %v1677 = vcvt.f32.s32 %v1676
  %v1678 = vcvt.f32.s32 %v1672
  %v1679 = vshll.u32 %v1678, 16
  %v1680 = vadd.s32 %v1679, %v1677
  %v1681 = vsel %vm263, %v1071, 2147483647
  %v1682 = vand.u32 %v1681, 65535
  %v1683 = vshra.s32 %v1681, 16
  %v1684 = vcvt.s32.f32 %v1682
  %v1685 = vcvt.s32.f32 %v1683
  %1686 = vmin.xlane.f32.xlu0 %v1685
  %v1687 = vpop.xlane.xlu0 %1686
  %vm1688 = vcmp.eq.f32.partialorder %v1685, %v1687
  %v1689 = vsel %vm1688, %v1684, inf
  %1690 = vmin.xlane.f32.xlu0 %v1689
  %v1691 = vpop.xlane.xlu0 %1690
  %v1692 = vcvt.f32.s32 %v1691
  %v1693 = vcvt.f32.s32 %v1687
  %v1694 = vshll.u32 %v1693, 16
  %v1695 = vadd.s32 %v1694, %v1692
  %v1696 = vsel %vm263, %v1072, 2147483647
  %v1697 = vand.u32 %v1696, 65535
  %v1698 = vshra.s32 %v1696, 16
  %v1699 = vcvt.s32.f32 %v1697
  %v1700 = vcvt.s32.f32 %v1698
  %1701 = vmin.xlane.f32.xlu0 %v1700
  %v1702 = vpop.xlane.xlu0 %1701
  %vm1703 = vcmp.eq.f32.partialorder %v1700, %v1702
  %v1704 = vsel %vm1703, %v1699, inf
  %1705 = vmin.xlane.f32.xlu0 %v1704
  %v1706 = vpop.xlane.xlu0 %1705
  %v1707 = vcvt.f32.s32 %v1706
  %v1708 = vcvt.f32.s32 %v1702
  %v1709 = vshll.u32 %v1708, 16
  %v1710 = vadd.s32 %v1709, %v1707
  %v1711 = vsel %vm263, %v1073, 2147483647
  %v1712 = vand.u32 %v1711, 65535
  %v1713 = vshra.s32 %v1711, 16
  %v1714 = vcvt.s32.f32 %v1712
  %v1715 = vcvt.s32.f32 %v1713
  %1716 = vmin.xlane.f32.xlu0 %v1715
  %v1717 = vpop.xlane.xlu0 %1716
  %vm1718 = vcmp.eq.f32.partialorder %v1715, %v1717
  %v1719 = vsel %vm1718, %v1714, inf
  %1720 = vmin.xlane.f32.xlu0 %v1719
  %v1721 = vpop.xlane.xlu0 %1720
  %v1722 = vcvt.f32.s32 %v1721
  %v1723 = vcvt.f32.s32 %v1717
  %v1724 = vshll.u32 %v1723, 16
  %v1725 = vadd.s32 %v1724, %v1722
  %v1726 = vsel %vm263, %v1074, 2147483647
  %v1727 = vand.u32 %v1726, 65535
  %v1728 = vshra.s32 %v1726, 16
  %v1729 = vcvt.s32.f32 %v1727
  %v1730 = vcvt.s32.f32 %v1728
  %1731 = vmin.xlane.f32.xlu0 %v1730
  %v1732 = vpop.xlane.xlu0 %1731
  %vm1733 = vcmp.eq.f32.partialorder %v1730, %v1732
  %v1734 = vsel %vm1733, %v1729, inf
  %1735 = vmin.xlane.f32.xlu0 %v1734
  %v1736 = vpop.xlane.xlu0 %1735
  %v1737 = vcvt.f32.s32 %v1736
  %v1738 = vcvt.f32.s32 %v1732
  %v1739 = vshll.u32 %v1738, 16
  %v1740 = vadd.s32 %v1739, %v1737
  %v1741 = vsel %vm263, %v1075, 2147483647
  %v1742 = vand.u32 %v1741, 65535
  %v1743 = vshra.s32 %v1741, 16
  %v1744 = vcvt.s32.f32 %v1742
  %v1745 = vcvt.s32.f32 %v1743
  %1746 = vmin.xlane.f32.xlu0 %v1745
  %v1747 = vpop.xlane.xlu0 %1746
  %vm1748 = vcmp.eq.f32.partialorder %v1745, %v1747
  %v1749 = vsel %vm1748, %v1744, inf
  %1750 = vmin.xlane.f32.xlu0 %v1749
  %v1751 = vpop.xlane.xlu0 %1750
  %v1752 = vcvt.f32.s32 %v1751
  %v1753 = vcvt.f32.s32 %v1747
  %v1754 = vshll.u32 %v1753, 16
  %v1755 = vadd.s32 %v1754, %v1752
  %v1756 = vsel %vm263, %v1076, 2147483647
  %v1757 = vand.u32 %v1756, 65535
  %v1758 = vshra.s32 %v1756, 16
  %v1759 = vcvt.s32.f32 %v1757
  %v1760 = vcvt.s32.f32 %v1758
  %1761 = vmin.xlane.f32.xlu0 %v1760
  %v1762 = vpop.xlane.xlu0 %1761
  %vm1763 = vcmp.eq.f32.partialorder %v1760, %v1762
  %v1764 = vsel %vm1763, %v1759, inf
  %1765 = vmin.xlane.f32.xlu0 %v1764
  %v1766 = vpop.xlane.xlu0 %1765
  %v1767 = vcvt.f32.s32 %v1766
  %v1768 = vcvt.f32.s32 %v1762
  %v1769 = vshll.u32 %v1768, 16
  %v1770 = vadd.s32 %v1769, %v1767
  %v1771 = vsel %vm263, %v1077, 2147483647
  %v1772 = vand.u32 %v1771, 65535
  %v1773 = vshra.s32 %v1771, 16
  %v1774 = vcvt.s32.f32 %v1772
  %v1775 = vcvt.s32.f32 %v1773
  %1776 = vmin.xlane.f32.xlu0 %v1775
  %v1777 = vpop.xlane.xlu0 %1776
  %vm1778 = vcmp.eq.f32.partialorder %v1775, %v1777
  %v1779 = vsel %vm1778, %v1774, inf
  %1780 = vmin.xlane.f32.xlu0 %v1779
  %v1781 = vpop.xlane.xlu0 %1780
  %v1782 = vcvt.f32.s32 %v1781
  %v1783 = vcvt.f32.s32 %v1777
  %v1784 = vshll.u32 %v1783, 16
  %v1785 = vadd.s32 %v1784, %v1782
  %v1786 = vsel %vm263, %v1078, 2147483647
  %v1787 = vand.u32 %v1786, 65535
  %v1788 = vshra.s32 %v1786, 16
  %v1789 = vcvt.s32.f32 %v1787
  %v1790 = vcvt.s32.f32 %v1788
  %1791 = vmin.xlane.f32.xlu0 %v1790
  %v1792 = vpop.xlane.xlu0 %1791
  %vm1793 = vcmp.eq.f32.partialorder %v1790, %v1792
  %v1794 = vsel %vm1793, %v1789, inf
  %1795 = vmin.xlane.f32.xlu0 %v1794
  %v1796 = vpop.xlane.xlu0 %1795
  %v1797 = vcvt.f32.s32 %v1796
  %v1798 = vcvt.f32.s32 %v1792
  %v1799 = vshll.u32 %v1798, 16
  %v1800 = vadd.s32 %v1799, %v1797
  %v1801 = vsel %vm263, %v1079, 2147483647
  %v1802 = vand.u32 %v1801, 65535
  %v1803 = vshra.s32 %v1801, 16
  %v1804 = vcvt.s32.f32 %v1802
  %v1805 = vcvt.s32.f32 %v1803
  %1806 = vmin.xlane.f32.xlu0 %v1805
  %v1807 = vpop.xlane.xlu0 %1806
  %vm1808 = vcmp.eq.f32.partialorder %v1805, %v1807
  %v1809 = vsel %vm1808, %v1804, inf
  %1810 = vmin.xlane.f32.xlu0 %v1809
  %v1811 = vpop.xlane.xlu0 %1810
  %v1812 = vcvt.f32.s32 %v1811
  %v1813 = vcvt.f32.s32 %v1807
  %v1814 = vshll.u32 %v1813, 16
  %v1815 = vadd.s32 %v1814, %v1812
  %v1816 = vsel %vm263, %v1080, 2147483647
  %v1817 = vand.u32 %v1816, 65535
  %v1818 = vshra.s32 %v1816, 16
  %v1819 = vcvt.s32.f32 %v1817
  %v1820 = vcvt.s32.f32 %v1818
  %1821 = vmin.xlane.f32.xlu0 %v1820
  %v1822 = vpop.xlane.xlu0 %1821
  %vm1823 = vcmp.eq.f32.partialorder %v1820, %v1822
  %v1824 = vsel %vm1823, %v1819, inf
  %1825 = vmin.xlane.f32.xlu0 %v1824
  %v1826 = vpop.xlane.xlu0 %1825
  %v1827 = vcvt.f32.s32 %v1826
  %v1828 = vcvt.f32.s32 %v1822
  %v1829 = vshll.u32 %v1828, 16
  %v1830 = vadd.s32 %v1829, %v1827
  %v1831 = vsel %vm263, %v1081, 2147483647
  %v1832 = vand.u32 %v1831, 65535
  %v1833 = vshra.s32 %v1831, 16
  %v1834 = vcvt.s32.f32 %v1832
  %v1835 = vcvt.s32.f32 %v1833
  %1836 = vmin.xlane.f32.xlu0 %v1835
  %v1837 = vpop.xlane.xlu0 %1836
  %vm1838 = vcmp.eq.f32.partialorder %v1835, %v1837
  %v1839 = vsel %vm1838, %v1834, inf
  %1840 = vmin.xlane.f32.xlu0 %v1839
  %v1841 = vpop.xlane.xlu0 %1840
  %v1842 = vcvt.f32.s32 %v1841
  %v1843 = vcvt.f32.s32 %v1837
  %v1844 = vshll.u32 %v1843, 16
  %v1845 = vadd.s32 %v1844, %v1842
  %v1846 = vsel %vm263, %v1082, 2147483647
  %v1847 = vand.u32 %v1846, 65535
  %v1848 = vshra.s32 %v1846, 16
  %v1849 = vcvt.s32.f32 %v1847
  %v1850 = vcvt.s32.f32 %v1848
  %1851 = vmin.xlane.f32.xlu0 %v1850
  %v1852 = vpop.xlane.xlu0 %1851
  %vm1853 = vcmp.eq.f32.partialorder %v1850, %v1852
  %v1854 = vsel %vm1853, %v1849, inf
  %1855 = vmin.xlane.f32.xlu0 %v1854
  %v1856 = vpop.xlane.xlu0 %1855
  %v1857 = vcvt.f32.s32 %v1856
  %v1858 = vcvt.f32.s32 %v1852
  %v1859 = vshll.u32 %v1858, 16
  %v1860 = vadd.s32 %v1859, %v1857
  %v1861 = vsel %vm263, %v1083, 2147483647
  %v1862 = vand.u32 %v1861, 65535
  %v1863 = vshra.s32 %v1861, 16
  %v1864 = vcvt.s32.f32 %v1862
  %v1865 = vcvt.s32.f32 %v1863
  %1866 = vmin.xlane.f32.xlu0 %v1865
  %v1867 = vpop.xlane.xlu0 %1866
  %vm1868 = vcmp.eq.f32.partialorder %v1865, %v1867
  %v1869 = vsel %vm1868, %v1864, inf
  %1870 = vmin.xlane.f32.xlu0 %v1869
  %v1871 = vpop.xlane.xlu0 %1870
  %v1872 = vcvt.f32.s32 %v1871
  %v1873 = vcvt.f32.s32 %v1867
  %v1874 = vshll.u32 %v1873, 16
  %v1875 = vadd.s32 %v1874, %v1872
  %v1876 = vsel %vm263, %v1084, 2147483647
  %v1877 = vand.u32 %v1876, 65535
  %v1878 = vshra.s32 %v1876, 16
  %v1879 = vcvt.s32.f32 %v1877
  %v1880 = vcvt.s32.f32 %v1878
  %1881 = vmin.xlane.f32.xlu0 %v1880
  %v1882 = vpop.xlane.xlu0 %1881
  %vm1883 = vcmp.eq.f32.partialorder %v1880, %v1882
  %v1884 = vsel %vm1883, %v1879, inf
  %1885 = vmin.xlane.f32.xlu0 %v1884
  %v1886 = vpop.xlane.xlu0 %1885
  %v1887 = vcvt.f32.s32 %v1886
  %v1888 = vcvt.f32.s32 %v1882
  %v1889 = vshll.u32 %v1888, 16
  %v1890 = vadd.s32 %v1889, %v1887
  %v1891 = vsel %vm263, %v1085, 2147483647
  %v1892 = vand.u32 %v1891, 65535
  %v1893 = vshra.s32 %v1891, 16
  %v1894 = vcvt.s32.f32 %v1892
  %v1895 = vcvt.s32.f32 %v1893
  %1896 = vmin.xlane.f32.xlu0 %v1895
  %v1897 = vpop.xlane.xlu0 %1896
  %vm1898 = vcmp.eq.f32.partialorder %v1895, %v1897
  %v1899 = vsel %vm1898, %v1894, inf
  %1900 = vmin.xlane.f32.xlu0 %v1899
  %v1901 = vpop.xlane.xlu0 %1900
  %v1902 = vcvt.f32.s32 %v1901
  %v1903 = vcvt.f32.s32 %v1897
  %v1904 = vshll.u32 %v1903, 16
  %v1905 = vadd.s32 %v1904, %v1902
  %v1906 = vsel %vm263, %v1086, 2147483647
  %v1907 = vand.u32 %v1906, 65535
  %v1908 = vshra.s32 %v1906, 16
  %v1909 = vcvt.s32.f32 %v1907
  %v1910 = vcvt.s32.f32 %v1908
  %1911 = vmin.xlane.f32.xlu0 %v1910
  %v1912 = vpop.xlane.xlu0 %1911
  %vm1913 = vcmp.eq.f32.partialorder %v1910, %v1912
  %v1914 = vsel %vm1913, %v1909, inf
  %1915 = vmin.xlane.f32.xlu0 %v1914
  %v1916 = vpop.xlane.xlu0 %1915
  %v1917 = vcvt.f32.s32 %v1916
  %v1918 = vcvt.f32.s32 %v1912
  %v1919 = vshll.u32 %v1918, 16
  %v1920 = vadd.s32 %v1919, %v1917
  %v1921 = vsel %vm263, %v1087, 2147483647
  %v1922 = vand.u32 %v1921, 65535
  %v1923 = vshra.s32 %v1921, 16
  %v1924 = vcvt.s32.f32 %v1922
  %v1925 = vcvt.s32.f32 %v1923
  %1926 = vmin.xlane.f32.xlu0 %v1925
  %v1927 = vpop.xlane.xlu0 %1926
  %vm1928 = vcmp.eq.f32.partialorder %v1925, %v1927
  %v1929 = vsel %vm1928, %v1924, inf
  %1930 = vmin.xlane.f32.xlu0 %v1929
  %v1931 = vpop.xlane.xlu0 %1930
  %v1932 = vcvt.f32.s32 %v1931
  %v1933 = vcvt.f32.s32 %v1927
  %v1934 = vshll.u32 %v1933, 16
  %v1935 = vadd.s32 %v1934, %v1932
  %v1936 = vsel %vm263, %v1088, 2147483647
  %v1937 = vand.u32 %v1936, 65535
  %v1938 = vshra.s32 %v1936, 16
  %v1939 = vcvt.s32.f32 %v1937
  %v1940 = vcvt.s32.f32 %v1938
  %1941 = vmin.xlane.f32.xlu0 %v1940
  %v1942 = vpop.xlane.xlu0 %1941
  %vm1943 = vcmp.eq.f32.partialorder %v1940, %v1942
  %v1944 = vsel %vm1943, %v1939, inf
  %1945 = vmin.xlane.f32.xlu0 %v1944
  %v1946 = vpop.xlane.xlu0 %1945
  %v1947 = vcvt.f32.s32 %v1946
  %v1948 = vcvt.f32.s32 %v1942
  %v1949 = vshll.u32 %v1948, 16
  %v1950 = vadd.s32 %v1949, %v1947
  %v1951 = vsel %vm263, %v1089, 2147483647
  %v1952 = vand.u32 %v1951, 65535
  %v1953 = vshra.s32 %v1951, 16
  %v1954 = vcvt.s32.f32 %v1952
  %v1955 = vcvt.s32.f32 %v1953
  %1956 = vmin.xlane.f32.xlu0 %v1955
  %v1957 = vpop.xlane.xlu0 %1956
  %vm1958 = vcmp.eq.f32.partialorder %v1955, %v1957
  %v1959 = vsel %vm1958, %v1954, inf
  %1960 = vmin.xlane.f32.xlu0 %v1959
  %v1961 = vpop.xlane.xlu0 %1960
  %v1962 = vcvt.f32.s32 %v1961
  %v1963 = vcvt.f32.s32 %v1957
  %v1964 = vshll.u32 %v1963, 16
  %v1965 = vadd.s32 %v1964, %v1962
  %v1966 = vsel %vm263, %v1090, 2147483647
  %v1967 = vand.u32 %v1966, 65535
  %v1968 = vshra.s32 %v1966, 16
  %v1969 = vcvt.s32.f32 %v1967
  %v1970 = vcvt.s32.f32 %v1968
  %1971 = vmin.xlane.f32.xlu0 %v1970
  %v1972 = vpop.xlane.xlu0 %1971
  %vm1973 = vcmp.eq.f32.partialorder %v1970, %v1972
  %v1974 = vsel %vm1973, %v1969, inf
  %1975 = vmin.xlane.f32.xlu0 %v1974
  %v1976 = vpop.xlane.xlu0 %1975
  %v1977 = vcvt.f32.s32 %v1976
  %v1978 = vcvt.f32.s32 %v1972
  %v1979 = vshll.u32 %v1978, 16
  %v1980 = vadd.s32 %v1979, %v1977
  %v1981 = vsel %vm263, %v1091, 2147483647
  %v1982 = vand.u32 %v1981, 65535
  %v1983 = vshra.s32 %v1981, 16
  %v1984 = vcvt.s32.f32 %v1982
  %v1985 = vcvt.s32.f32 %v1983
  %1986 = vmin.xlane.f32.xlu0 %v1985
  %v1987 = vpop.xlane.xlu0 %1986
  %vm1988 = vcmp.eq.f32.partialorder %v1985, %v1987
  %v1989 = vsel %vm1988, %v1984, inf
  %1990 = vmin.xlane.f32.xlu0 %v1989
  %v1991 = vpop.xlane.xlu0 %1990
  %v1992 = vcvt.f32.s32 %v1991
  %v1993 = vcvt.f32.s32 %v1987
  %v1994 = vshll.u32 %v1993, 16
  %v1995 = vadd.s32 %v1994, %v1992
  %v1996 = vsel %vm263, %v1092, 2147483647
  %v1997 = vand.u32 %v1996, 65535
  %v1998 = vshra.s32 %v1996, 16
  %v1999 = vcvt.s32.f32 %v1997
  %v2000 = vcvt.s32.f32 %v1998
  %2001 = vmin.xlane.f32.xlu0 %v2000
  %v2002 = vpop.xlane.xlu0 %2001
  %vm2003 = vcmp.eq.f32.partialorder %v2000, %v2002
  %v2004 = vsel %vm2003, %v1999, inf
  %2005 = vmin.xlane.f32.xlu0 %v2004
  %v2006 = vpop.xlane.xlu0 %2005
  %v2007 = vcvt.f32.s32 %v2006
  %v2008 = vcvt.f32.s32 %v2002
  %v2009 = vshll.u32 %v2008, 16
  %v2010 = vadd.s32 %v2009, %v2007
  %v2011 = vsel %vm263, %v1093, 2147483647
  %v2012 = vand.u32 %v2011, 65535
  %v2013 = vshra.s32 %v2011, 16
  %v2014 = vcvt.s32.f32 %v2012
  %v2015 = vcvt.s32.f32 %v2013
  %2016 = vmin.xlane.f32.xlu0 %v2015
  %v2017 = vpop.xlane.xlu0 %2016
  %vm2018 = vcmp.eq.f32.partialorder %v2015, %v2017
  %v2019 = vsel %vm2018, %v2014, inf
  %2020 = vmin.xlane.f32.xlu0 %v2019
  %v2021 = vpop.xlane.xlu0 %2020
  %v2022 = vcvt.f32.s32 %v2021
  %v2023 = vcvt.f32.s32 %v2017
  %v2024 = vshll.u32 %v2023, 16
  %v2025 = vadd.s32 %v2024, %v2022
  %v2026 = vsel %vm263, %v1094, 2147483647
  %v2027 = vand.u32 %v2026, 65535
  %v2028 = vshra.s32 %v2026, 16
  %v2029 = vcvt.s32.f32 %v2027
  %v2030 = vcvt.s32.f32 %v2028
  %2031 = vmin.xlane.f32.xlu0 %v2030
  %v2032 = vpop.xlane.xlu0 %2031
  %vm2033 = vcmp.eq.f32.partialorder %v2030, %v2032
  %v2034 = vsel %vm2033, %v2029, inf
  %2035 = vmin.xlane.f32.xlu0 %v2034
  %v2036 = vpop.xlane.xlu0 %2035
  %v2037 = vcvt.f32.s32 %v2036
  %v2038 = vcvt.f32.s32 %v2032
  %v2039 = vshll.u32 %v2038, 16
  %v2040 = vadd.s32 %v2039, %v2037
  %v2041 = vsel %vm263, %v1095, 2147483647
  %v2042 = vand.u32 %v2041, 65535
  %v2043 = vshra.s32 %v2041, 16
  %v2044 = vcvt.s32.f32 %v2042
  %v2045 = vcvt.s32.f32 %v2043
  %2046 = vmin.xlane.f32.xlu0 %v2045
  %v2047 = vpop.xlane.xlu0 %2046
  %vm2048 = vcmp.eq.f32.partialorder %v2045, %v2047
  %v2049 = vsel %vm2048, %v2044, inf
  %2050 = vmin.xlane.f32.xlu0 %v2049
  %v2051 = vpop.xlane.xlu0 %2050
  %v2052 = vcvt.f32.s32 %v2051
  %v2053 = vcvt.f32.s32 %v2047
  %v2054 = vshll.u32 %v2053, 16
  %v2055 = vadd.s32 %v2054, %v2052
  %vm2056 = vcmp.eq.s32.totalorder %v1110, %v199
  %vm2057 = vcmp.eq.s32.totalorder %v1125, %v200
  %vm2058 = vcmp.eq.s32.totalorder %v1140, %v201
  %vm2059 = vcmp.eq.s32.totalorder %v1155, %v202
  %vm2060 = vcmp.eq.s32.totalorder %v1170, %v203
  %vm2061 = vcmp.eq.s32.totalorder %v1185, %v204
  %vm2062 = vcmp.eq.s32.totalorder %v1200, %v205
  %vm2063 = vcmp.eq.s32.totalorder %v1215, %v206
  %vm2064 = vcmp.eq.s32.totalorder %v1230, %v207
  %vm2065 = vcmp.eq.s32.totalorder %v1245, %v208
  %vm2066 = vcmp.eq.s32.totalorder %v1260, %v209
  %vm2067 = vcmp.eq.s32.totalorder %v1275, %v210
  %vm2068 = vcmp.eq.s32.totalorder %v1290, %v211
  %vm2069 = vcmp.eq.s32.totalorder %v1305, %v212
  %vm2070 = vcmp.eq.s32.totalorder %v1320, %v213
  %vm2071 = vcmp.eq.s32.totalorder %v1335, %v214
  %vm2072 = vcmp.eq.s32.totalorder %v1350, %v215
  %vm2073 = vcmp.eq.s32.totalorder %v1365, %v216
  %vm2074 = vcmp.eq.s32.totalorder %v1380, %v217
  %vm2075 = vcmp.eq.s32.totalorder %v1395, %v218
  %vm2076 = vcmp.eq.s32.totalorder %v1410, %v219
  %vm2077 = vcmp.eq.s32.totalorder %v1425, %v220
  %vm2078 = vcmp.eq.s32.totalorder %v1440, %v221
  %vm2079 = vcmp.eq.s32.totalorder %v1455, %v222
  %vm2080 = vcmp.eq.s32.totalorder %v1470, %v223
  %vm2081 = vcmp.eq.s32.totalorder %v1485, %v224
  %vm2082 = vcmp.eq.s32.totalorder %v1500, %v225
  %vm2083 = vcmp.eq.s32.totalorder %v1515, %v226
  %vm2084 = vcmp.eq.s32.totalorder %v1530, %v227
  %vm2085 = vcmp.eq.s32.totalorder %v1545, %v228
  %vm2086 = vcmp.eq.s32.totalorder %v1560, %v229
  %vm2087 = vcmp.eq.s32.totalorder %v1575, %v230
  %vm2088 = vcmp.eq.s32.totalorder %v1590, %v231
  %vm2089 = vcmp.eq.s32.totalorder %v1605, %v232
  %vm2090 = vcmp.eq.s32.totalorder %v1620, %v233
  %vm2091 = vcmp.eq.s32.totalorder %v1635, %v234
  %vm2092 = vcmp.eq.s32.totalorder %v1650, %v235
  %vm2093 = vcmp.eq.s32.totalorder %v1665, %v236
  %vm2094 = vcmp.eq.s32.totalorder %v1680, %v237
  %vm2095 = vcmp.eq.s32.totalorder %v1695, %v238
  %vm2096 = vcmp.eq.s32.totalorder %v1710, %v239
  %vm2097 = vcmp.eq.s32.totalorder %v1725, %v240
  %vm2098 = vcmp.eq.s32.totalorder %v1740, %v241
  %vm2099 = vcmp.eq.s32.totalorder %v1755, %v242
  %vm2100 = vcmp.eq.s32.totalorder %v1770, %v243
  %vm2101 = vcmp.eq.s32.totalorder %v1785, %v244
  %vm2102 = vcmp.eq.s32.totalorder %v1800, %v245
  %vm2103 = vcmp.eq.s32.totalorder %v1815, %v246
  %vm2104 = vcmp.eq.s32.totalorder %v1830, %v247
  %vm2105 = vcmp.eq.s32.totalorder %v1845, %v248
  %vm2106 = vcmp.eq.s32.totalorder %v1860, %v249
  %vm2107 = vcmp.eq.s32.totalorder %v1875, %v250
  %vm2108 = vcmp.eq.s32.totalorder %v1890, %v251
  %vm2109 = vcmp.eq.s32.totalorder %v1905, %v252
  %vm2110 = vcmp.eq.s32.totalorder %v1920, %v253
  %vm2111 = vcmp.eq.s32.totalorder %v1935, %v254
  %vm2112 = vcmp.eq.s32.totalorder %v1950, %v255
  %vm2113 = vcmp.eq.s32.totalorder %v1965, %v256
  %vm2114 = vcmp.eq.s32.totalorder %v1980, %v257
  %vm2115 = vcmp.eq.s32.totalorder %v1995, %v258
  %vm2116 = vcmp.eq.s32.totalorder %v2010, %v259
  %vm2117 = vcmp.eq.s32.totalorder %v2025, %v260
  %vm2118 = vcmp.eq.s32.totalorder %v2040, %v261
  %vm2119 = vcmp.eq.s32.totalorder %v2055, %v262
  %v2120 = vsel %vm2056, 1, 0
  %v2121 = vsel %vm2057, 1, 0
  %v2122 = vsel %vm2058, 1, 0
  %v2123 = vsel %vm2059, 1, 0
  %v2124 = vsel %vm2060, 1, 0
  %v2125 = vsel %vm2061, 1, 0
  %v2126 = vsel %vm2062, 1, 0
  %v2127 = vsel %vm2063, 1, 0
  %v2128 = vsel %vm2064, 1, 0
  %v2129 = vsel %vm2065, 1, 0
  %v2130 = vsel %vm2066, 1, 0
  %v2131 = vsel %vm2067, 1, 0
  %v2132 = vsel %vm2068, 1, 0
  %v2133 = vsel %vm2069, 1, 0
  %v2134 = vsel %vm2070, 1, 0
  %v2135 = vsel %vm2071, 1, 0
  %v2136 = vsel %vm2072, 1, 0
  %v2137 = vsel %vm2073, 1, 0
  %v2138 = vsel %vm2074, 1, 0
  %v2139 = vsel %vm2075, 1, 0
  %v2140 = vsel %vm2076, 1, 0
  %v2141 = vsel %vm2077, 1, 0
  %v2142 = vsel %vm2078, 1, 0
  %v2143 = vsel %vm2079, 1, 0
  %v2144 = vsel %vm2080, 1, 0
  %v2145 = vsel %vm2081, 1, 0
  %v2146 = vsel %vm2082, 1, 0
  %v2147 = vsel %vm2083, 1, 0
  %v2148 = vsel %vm2084, 1, 0
  %v2149 = vsel %vm2085, 1, 0
  %v2150 = vsel %vm2086, 1, 0
  %v2151 = vsel %vm2087, 1, 0
  %v2152 = vsel %vm2088, 1, 0
  %v2153 = vsel %vm2089, 1, 0
  %v2154 = vsel %vm2090, 1, 0
  %v2155 = vsel %vm2091, 1, 0
  %v2156 = vsel %vm2092, 1, 0
  %v2157 = vsel %vm2093, 1, 0
  %v2158 = vsel %vm2094, 1, 0
  %v2159 = vsel %vm2095, 1, 0
  %v2160 = vsel %vm2096, 1, 0
  %v2161 = vsel %vm2097, 1, 0
  %v2162 = vsel %vm2098, 1, 0
  %v2163 = vsel %vm2099, 1, 0
  %v2164 = vsel %vm2100, 1, 0
  %v2165 = vsel %vm2101, 1, 0
  %v2166 = vsel %vm2102, 1, 0
  %v2167 = vsel %vm2103, 1, 0
  %v2168 = vsel %vm2104, 1, 0
  %v2169 = vsel %vm2105, 1, 0
  %v2170 = vsel %vm2106, 1, 0
  %v2171 = vsel %vm2107, 1, 0
  %v2172 = vsel %vm2108, 1, 0
  %v2173 = vsel %vm2109, 1, 0
  %v2174 = vsel %vm2110, 1, 0
  %v2175 = vsel %vm2111, 1, 0
  %v2176 = vsel %vm2112, 1, 0
  %v2177 = vsel %vm2113, 1, 0
  %v2178 = vsel %vm2114, 1, 0
  %v2179 = vsel %vm2115, 1, 0
  %v2180 = vsel %vm2116, 1, 0
  %v2181 = vsel %vm2117, 1, 0
  %v2182 = vsel %vm2118, 1, 0
  %v2183 = vsel %vm2119, 1, 0
  %v2184 = vcvt.s32.f32 %v2120
  %v2185 = vcvt.s32.f32 %v2121
  %v2186 = vcvt.s32.f32 %v2122
  %v2187 = vcvt.s32.f32 %v2123
  %v2188 = vcvt.s32.f32 %v2124
  %v2189 = vcvt.s32.f32 %v2125
  %v2190 = vcvt.s32.f32 %v2126
  %v2191 = vcvt.s32.f32 %v2127
  %v2192 = vcvt.s32.f32 %v2128
  %v2193 = vcvt.s32.f32 %v2129
  %v2194 = vcvt.s32.f32 %v2130
  %v2195 = vcvt.s32.f32 %v2131
  %v2196 = vcvt.s32.f32 %v2132
  %v2197 = vcvt.s32.f32 %v2133
  %v2198 = vcvt.s32.f32 %v2134
  %v2199 = vcvt.s32.f32 %v2135
  %v2200 = vcvt.s32.f32 %v2136
  %v2201 = vcvt.s32.f32 %v2137
  %v2202 = vcvt.s32.f32 %v2138
  %v2203 = vcvt.s32.f32 %v2139
  %v2204 = vcvt.s32.f32 %v2140
  %v2205 = vcvt.s32.f32 %v2141
  %v2206 = vcvt.s32.f32 %v2142
  %v2207 = vcvt.s32.f32 %v2143
  %v2208 = vcvt.s32.f32 %v2144
  %v2209 = vcvt.s32.f32 %v2145
  %v2210 = vcvt.s32.f32 %v2146
  %v2211 = vcvt.s32.f32 %v2147
  %v2212 = vcvt.s32.f32 %v2148
  %v2213 = vcvt.s32.f32 %v2149
  %v2214 = vcvt.s32.f32 %v2150
  %v2215 = vcvt.s32.f32 %v2151
  %v2216 = vcvt.s32.f32 %v2152
  %v2217 = vcvt.s32.f32 %v2153
  %v2218 = vcvt.s32.f32 %v2154
  %v2219 = vcvt.s32.f32 %v2155
  %v2220 = vcvt.s32.f32 %v2156
  %v2221 = vcvt.s32.f32 %v2157
  %v2222 = vcvt.s32.f32 %v2158
  %v2223 = vcvt.s32.f32 %v2159
  %v2224 = vcvt.s32.f32 %v2160
  %v2225 = vcvt.s32.f32 %v2161
  %v2226 = vcvt.s32.f32 %v2162
  %v2227 = vcvt.s32.f32 %v2163
  %v2228 = vcvt.s32.f32 %v2164
  %v2229 = vcvt.s32.f32 %v2165
  %v2230 = vcvt.s32.f32 %v2166
  %v2231 = vcvt.s32.f32 %v2167
  %v2232 = vcvt.s32.f32 %v2168
  %v2233 = vcvt.s32.f32 %v2169
  %v2234 = vcvt.s32.f32 %v2170
  %v2235 = vcvt.s32.f32 %v2171
  %v2236 = vcvt.s32.f32 %v2172
  %v2237 = vcvt.s32.f32 %v2173
  %v2238 = vcvt.s32.f32 %v2174
  %v2239 = vcvt.s32.f32 %v2175
  %v2240 = vcvt.s32.f32 %v2176
  %v2241 = vcvt.s32.f32 %v2177
  %v2242 = vcvt.s32.f32 %v2178
  %v2243 = vcvt.s32.f32 %v2179
  %v2244 = vcvt.s32.f32 %v2180
  %v2245 = vcvt.s32.f32 %v2181
  %v2246 = vcvt.s32.f32 %v2182
  %v2247 = vcvt.s32.f32 %v2183
  %v2248 = vstv %s62
  %v2249 = vadd.s32 %v2248, %v66
  %v2250 = vadd.s32 %v2248, %v67
  %v2251 = vadd.s32 %v2248, %v68
  %v2252 = vadd.s32 %v2248, %v69
  %v2253 = vadd.s32 %v2248, %v70
  %v2254 = vadd.s32 %v2248, %v71
  %v2255 = vadd.s32 %v2248, %v72
  %v2256 = vadd.s32 %v2248, %v73
  %v2257 = vadd.s32 %v2248, %v74
  %v2258 = vadd.s32 %v2248, %v75
  %v2259 = vadd.s32 %v2248, %v76
  %v2260 = vadd.s32 %v2248, %v77
  %v2261 = vadd.s32 %v2248, %v78
  %v2262 = vadd.s32 %v2248, %v79
  %v2263 = vadd.s32 %v2248, %v80
  %v2264 = vadd.s32 %v2248, %v81
  %v2265 = vadd.s32 %v2248, %v82
  %v2266 = vadd.s32 %v2248, %v83
  %v2267 = vadd.s32 %v2248, %v84
  %v2268 = vadd.s32 %v2248, %v85
  %v2269 = vadd.s32 %v2248, %v86
  %v2270 = vadd.s32 %v2248, %v87
  %v2271 = vadd.s32 %v2248, %v88
  %v2272 = vadd.s32 %v2248, %v89
  %v2273 = vadd.s32 %v2248, %v90
  %v2274 = vadd.s32 %v2248, %v91
  %v2275 = vadd.s32 %v2248, %v92
  %v2276 = vadd.s32 %v2248, %v93
  %v2277 = vadd.s32 %v2248, %v94
  %v2278 = vadd.s32 %v2248, %v95
  %v2279 = vadd.s32 %v2248, %v96
  %v2280 = vadd.s32 %v2248, %v97
  %v2281 = vadd.s32 %v2248, %v98
  %v2282 = vadd.s32 %v2248, %v99
  %v2283 = vadd.s32 %v2248, %v100
  %v2284 = vadd.s32 %v2248, %v101
  %v2285 = vadd.s32 %v2248, %v102
  %v2286 = vadd.s32 %v2248, %v103
  %v2287 = vadd.s32 %v2248, %v104
  %v2288 = vadd.s32 %v2248, %v105
  %v2289 = vadd.s32 %v2248, %v106
  %v2290 = vadd.s32 %v2248, %v107
  %v2291 = vadd.s32 %v2248, %v108
  %v2292 = vadd.s32 %v2248, %v109
  %v2293 = vadd.s32 %v2248, %v110
  %v2294 = vadd.s32 %v2248, %v111
  %v2295 = vadd.s32 %v2248, %v112
  %v2296 = vadd.s32 %v2248, %v113
  %v2297 = vadd.s32 %v2248, %v114
  %v2298 = vadd.s32 %v2248, %v115
  %v2299 = vadd.s32 %v2248, %v116
  %v2300 = vadd.s32 %v2248, %v117
  %v2301 = vadd.s32 %v2248, %v118
  %v2302 = vadd.s32 %v2248, %v119
  %v2303 = vadd.s32 %v2248, %v120
  %v2304 = vadd.s32 %v2248, %v121
  %v2305 = vadd.s32 %v2248, %v122
  %v2306 = vadd.s32 %v2248, %v123
  %v2307 = vadd.s32 %v2248, %v124
  %v2308 = vadd.s32 %v2248, %v125
  %v2309 = vadd.s32 %v2248, %v126
  %v2310 = vadd.s32 %v2248, %v127
  %v2311 = vadd.s32 %v2248, %v128
  %v2312 = vadd.s32 %v2248, %v129
  %vm2313 = vcmp.lt.s32.totalorder %v2249, 100
  %vm2314 = vcmp.lt.s32.totalorder %v2250, 100
  %vm2315 = vcmp.lt.s32.totalorder %v2251, 100
  %vm2316 = vcmp.lt.s32.totalorder %v2252, 100
  %vm2317 = vcmp.lt.s32.totalorder %v2253, 100
  %vm2318 = vcmp.lt.s32.totalorder %v2254, 100
  %vm2319 = vcmp.lt.s32.totalorder %v2255, 100
  %vm2320 = vcmp.lt.s32.totalorder %v2256, 100
  %vm2321 = vcmp.lt.s32.totalorder %v2257, 100
  %vm2322 = vcmp.lt.s32.totalorder %v2258, 100
  %vm2323 = vcmp.lt.s32.totalorder %v2259, 100
  %vm2324 = vcmp.lt.s32.totalorder %v2260, 100
  %vm2325 = vcmp.lt.s32.totalorder %v2261, 100
  %vm2326 = vcmp.lt.s32.totalorder %v2262, 100
  %vm2327 = vcmp.lt.s32.totalorder %v2263, 100
  %vm2328 = vcmp.lt.s32.totalorder %v2264, 100
  %vm2329 = vcmp.lt.s32.totalorder %v2265, 100
  %vm2330 = vcmp.lt.s32.totalorder %v2266, 100
  %vm2331 = vcmp.lt.s32.totalorder %v2267, 100
  %vm2332 = vcmp.lt.s32.totalorder %v2268, 100
  %vm2333 = vcmp.lt.s32.totalorder %v2269, 100
  %vm2334 = vcmp.lt.s32.totalorder %v2270, 100
  %vm2335 = vcmp.lt.s32.totalorder %v2271, 100
  %vm2336 = vcmp.lt.s32.totalorder %v2272, 100
  %vm2337 = vcmp.lt.s32.totalorder %v2273, 100
  %vm2338 = vcmp.lt.s32.totalorder %v2274, 100
  %vm2339 = vcmp.lt.s32.totalorder %v2275, 100
  %vm2340 = vcmp.lt.s32.totalorder %v2276, 100
  %vm2341 = vcmp.lt.s32.totalorder %v2277, 100
  %vm2342 = vcmp.lt.s32.totalorder %v2278, 100
  %vm2343 = vcmp.lt.s32.totalorder %v2279, 100
  %vm2344 = vcmp.lt.s32.totalorder %v2280, 100
  %vm2345 = vcmp.lt.s32.totalorder %v2281, 100
  %vm2346 = vcmp.lt.s32.totalorder %v2282, 100
  %vm2347 = vcmp.lt.s32.totalorder %v2283, 100
  %vm2348 = vcmp.lt.s32.totalorder %v2284, 100
  %vm2349 = vcmp.lt.s32.totalorder %v2285, 100
  %vm2350 = vcmp.lt.s32.totalorder %v2286, 100
  %vm2351 = vcmp.lt.s32.totalorder %v2287, 100
  %vm2352 = vcmp.lt.s32.totalorder %v2288, 100
  %vm2353 = vcmp.lt.s32.totalorder %v2289, 100
  %vm2354 = vcmp.lt.s32.totalorder %v2290, 100
  %vm2355 = vcmp.lt.s32.totalorder %v2291, 100
  %vm2356 = vcmp.lt.s32.totalorder %v2292, 100
  %vm2357 = vcmp.lt.s32.totalorder %v2293, 100
  %vm2358 = vcmp.lt.s32.totalorder %v2294, 100
  %vm2359 = vcmp.lt.s32.totalorder %v2295, 100
  %vm2360 = vcmp.lt.s32.totalorder %v2296, 100
  %vm2361 = vcmp.lt.s32.totalorder %v2297, 100
  %vm2362 = vcmp.lt.s32.totalorder %v2298, 100
  %vm2363 = vcmp.lt.s32.totalorder %v2299, 100
  %vm2364 = vcmp.lt.s32.totalorder %v2300, 100
  %vm2365 = vcmp.lt.s32.totalorder %v2301, 100
  %vm2366 = vcmp.lt.s32.totalorder %v2302, 100
  %vm2367 = vcmp.lt.s32.totalorder %v2303, 100
  %vm2368 = vcmp.lt.s32.totalorder %v2304, 100
  %vm2369 = vcmp.lt.s32.totalorder %v2305, 100
  %vm2370 = vcmp.lt.s32.totalorder %v2306, 100
  %vm2371 = vcmp.lt.s32.totalorder %v2307, 100
  %vm2372 = vcmp.lt.s32.totalorder %v2308, 100
  %vm2373 = vcmp.lt.s32.totalorder %v2309, 100
  %vm2374 = vcmp.lt.s32.totalorder %v2310, 100
  %vm2375 = vcmp.lt.s32.totalorder %v2311, 100
  %vm2376 = vcmp.lt.s32.totalorder %v2312, 100
  %v2377 = vsel %vm2313, %v841, -1.0
  %v2378 = vsel %vm2314, %v843, -1.0
  %v2379 = vsel %vm2315, %v845, -1.0
  %v2380 = vsel %vm2316, %v847, -1.0
  %v2381 = vsel %vm2317, %v849, -1.0
  %v2382 = vsel %vm2318, %v851, -1.0
  %v2383 = vsel %vm2319, %v853, -1.0
  %v2384 = vsel %vm2320, %v855, -1.0
  %v2385 = vsel %vm2321, %v857, -1.0
  %v2386 = vsel %vm2322, %v859, -1.0
  %v2387 = vsel %vm2323, %v861, -1.0
  %v2388 = vsel %vm2324, %v863, -1.0
  %v2389 = vsel %vm2325, %v865, -1.0
  %v2390 = vsel %vm2326, %v867, -1.0
  %v2391 = vsel %vm2327, %v869, -1.0
  %v2392 = vsel %vm2328, %v871, -1.0
  %v2393 = vsel %vm2329, %v873, -1.0
  %v2394 = vsel %vm2330, %v875, -1.0
  %v2395 = vsel %vm2331, %v877, -1.0
  %v2396 = vsel %vm2332, %v879, -1.0
  %v2397 = vsel %vm2333, %v881, -1.0
  %v2398 = vsel %vm2334, %v883, -1.0
  %v2399 = vsel %vm2335, %v885, -1.0
  %v2400 = vsel %vm2336, %v887, -1.0
  %v2401 = vsel %vm2337, %v889, -1.0
  %v2402 = vsel %vm2338, %v891, -1.0
  %v2403 = vsel %vm2339, %v893, -1.0
  %v2404 = vsel %vm2340, %v895, -1.0
  %v2405 = vsel %vm2341, %v897, -1.0
  %v2406 = vsel %vm2342, %v899, -1.0
  %v2407 = vsel %vm2343, %v901, -1.0
  %v2408 = vsel %vm2344, %v903, -1.0
  %v2409 = vsel %vm2345, %v905, -1.0
  %v2410 = vsel %vm2346, %v907, -1.0
  %v2411 = vsel %vm2347, %v909, -1.0
  %v2412 = vsel %vm2348, %v911, -1.0
  %v2413 = vsel %vm2349, %v913, -1.0
  %v2414 = vsel %vm2350, %v915, -1.0
  %v2415 = vsel %vm2351, %v917, -1.0
  %v2416 = vsel %vm2352, %v919, -1.0
  %v2417 = vsel %vm2353, %v921, -1.0
  %v2418 = vsel %vm2354, %v923, -1.0
  %v2419 = vsel %vm2355, %v925, -1.0
  %v2420 = vsel %vm2356, %v927, -1.0
  %v2421 = vsel %vm2357, %v929, -1.0
  %v2422 = vsel %vm2358, %v931, -1.0
  %v2423 = vsel %vm2359, %v933, -1.0
  %v2424 = vsel %vm2360, %v935, -1.0
  %v2425 = vsel %vm2361, %v937, -1.0
  %v2426 = vsel %vm2362, %v939, -1.0
  %v2427 = vsel %vm2363, %v941, -1.0
  %v2428 = vsel %vm2364, %v943, -1.0
  %v2429 = vsel %vm2365, %v945, -1.0
  %v2430 = vsel %vm2366, %v947, -1.0
  %v2431 = vsel %vm2367, %v949, -1.0
  %v2432 = vsel %vm2368, %v951, -1.0
  %v2433 = vsel %vm2369, %v953, -1.0
  %v2434 = vsel %vm2370, %v955, -1.0
  %v2435 = vsel %vm2371, %v957, -1.0
  %v2436 = vsel %vm2372, %v959, -1.0
  %v2437 = vsel %vm2373, %v961, -1.0
  %v2438 = vsel %vm2374, %v963, -1.0
  %v2439 = vsel %vm2375, %v965, -1.0
  %v2440 = vsel %vm2376, %v967, -1.0
  %vm2441 = vcmp.gt.f32.partialorder %v2377, %v132
  %vm2442 = vcmp.gt.f32.partialorder %v2378, %v132
  %vm2443 = vcmp.gt.f32.partialorder %v2379, %v132
  %vm2444 = vcmp.gt.f32.partialorder %v2380, %v132
  %vm2445 = vcmp.gt.f32.partialorder %v2381, %v132
  %vm2446 = vcmp.gt.f32.partialorder %v2382, %v132
  %vm2447 = vcmp.gt.f32.partialorder %v2383, %v132
  %vm2448 = vcmp.gt.f32.partialorder %v2384, %v132
  %vm2449 = vcmp.gt.f32.partialorder %v2385, %v132
  %vm2450 = vcmp.gt.f32.partialorder %v2386, %v132
  %vm2451 = vcmp.gt.f32.partialorder %v2387, %v132
  %vm2452 = vcmp.gt.f32.partialorder %v2388, %v132
  %vm2453 = vcmp.gt.f32.partialorder %v2389, %v132
  %vm2454 = vcmp.gt.f32.partialorder %v2390, %v132
  %vm2455 = vcmp.gt.f32.partialorder %v2391, %v132
  %vm2456 = vcmp.gt.f32.partialorder %v2392, %v132
  %vm2457 = vcmp.gt.f32.partialorder %v2393, %v132
  %vm2458 = vcmp.gt.f32.partialorder %v2394, %v132
  %vm2459 = vcmp.gt.f32.partialorder %v2395, %v132
  %vm2460 = vcmp.gt.f32.partialorder %v2396, %v132
  %vm2461 = vcmp.gt.f32.partialorder %v2397, %v132
  %vm2462 = vcmp.gt.f32.partialorder %v2398, %v132
  %vm2463 = vcmp.gt.f32.partialorder %v2399, %v132
  %vm2464 = vcmp.gt.f32.partialorder %v2400, %v132
  %vm2465 = vcmp.gt.f32.partialorder %v2401, %v132
  %vm2466 = vcmp.gt.f32.partialorder %v2402, %v132
  %vm2467 = vcmp.gt.f32.partialorder %v2403, %v132
  %vm2468 = vcmp.gt.f32.partialorder %v2404, %v132
  %vm2469 = vcmp.gt.f32.partialorder %v2405, %v132
  %vm2470 = vcmp.gt.f32.partialorder %v2406, %v132
  %vm2471 = vcmp.gt.f32.partialorder %v2407, %v132
  %vm2472 = vcmp.gt.f32.partialorder %v2408, %v132
  %vm2473 = vcmp.gt.f32.partialorder %v2409, %v132
  %vm2474 = vcmp.gt.f32.partialorder %v2410, %v132
  %vm2475 = vcmp.gt.f32.partialorder %v2411, %v132
  %vm2476 = vcmp.gt.f32.partialorder %v2412, %v132
  %vm2477 = vcmp.gt.f32.partialorder %v2413, %v132
  %vm2478 = vcmp.gt.f32.partialorder %v2414, %v132
  %vm2479 = vcmp.gt.f32.partialorder %v2415, %v132
  %vm2480 = vcmp.gt.f32.partialorder %v2416, %v132
  %vm2481 = vcmp.gt.f32.partialorder %v2417, %v132
  %vm2482 = vcmp.gt.f32.partialorder %v2418, %v132
  %vm2483 = vcmp.gt.f32.partialorder %v2419, %v132
  %vm2484 = vcmp.gt.f32.partialorder %v2420, %v132
  %vm2485 = vcmp.gt.f32.partialorder %v2421, %v132
  %vm2486 = vcmp.gt.f32.partialorder %v2422, %v132
  %vm2487 = vcmp.gt.f32.partialorder %v2423, %v132
  %vm2488 = vcmp.gt.f32.partialorder %v2424, %v132
  %vm2489 = vcmp.gt.f32.partialorder %v2425, %v132
  %vm2490 = vcmp.gt.f32.partialorder %v2426, %v132
  %vm2491 = vcmp.gt.f32.partialorder %v2427, %v132
  %vm2492 = vcmp.gt.f32.partialorder %v2428, %v132
  %vm2493 = vcmp.gt.f32.partialorder %v2429, %v132
  %vm2494 = vcmp.gt.f32.partialorder %v2430, %v132
  %vm2495 = vcmp.gt.f32.partialorder %v2431, %v132
  %vm2496 = vcmp.gt.f32.partialorder %v2432, %v132
  %vm2497 = vcmp.gt.f32.partialorder %v2433, %v132
  %vm2498 = vcmp.gt.f32.partialorder %v2434, %v132
  %vm2499 = vcmp.gt.f32.partialorder %v2435, %v132
  %vm2500 = vcmp.gt.f32.partialorder %v2436, %v132
  %vm2501 = vcmp.gt.f32.partialorder %v2437, %v132
  %vm2502 = vcmp.gt.f32.partialorder %v2438, %v132
  %vm2503 = vcmp.gt.f32.partialorder %v2439, %v132
  %vm2504 = vcmp.gt.f32.partialorder %v2440, %v132
  %vm2505 = vcmp.le.f32.partialorder %v2377, %v134
  %vm2506 = vcmp.le.f32.partialorder %v2378, %v134
  %vm2507 = vcmp.le.f32.partialorder %v2379, %v134
  %vm2508 = vcmp.le.f32.partialorder %v2380, %v134
  %vm2509 = vcmp.le.f32.partialorder %v2381, %v134
  %vm2510 = vcmp.le.f32.partialorder %v2382, %v134
  %vm2511 = vcmp.le.f32.partialorder %v2383, %v134
  %vm2512 = vcmp.le.f32.partialorder %v2384, %v134
  %vm2513 = vcmp.le.f32.partialorder %v2385, %v134
  %vm2514 = vcmp.le.f32.partialorder %v2386, %v134
  %vm2515 = vcmp.le.f32.partialorder %v2387, %v134
  %vm2516 = vcmp.le.f32.partialorder %v2388, %v134
  %vm2517 = vcmp.le.f32.partialorder %v2389, %v134
  %vm2518 = vcmp.le.f32.partialorder %v2390, %v134
  %vm2519 = vcmp.le.f32.partialorder %v2391, %v134
  %vm2520 = vcmp.le.f32.partialorder %v2392, %v134
  %vm2521 = vcmp.le.f32.partialorder %v2393, %v134
  %vm2522 = vcmp.le.f32.partialorder %v2394, %v134
  %vm2523 = vcmp.le.f32.partialorder %v2395, %v134
  %vm2524 = vcmp.le.f32.partialorder %v2396, %v134
  %vm2525 = vcmp.le.f32.partialorder %v2397, %v134
  %vm2526 = vcmp.le.f32.partialorder %v2398, %v134
  %vm2527 = vcmp.le.f32.partialorder %v2399, %v134
  %vm2528 = vcmp.le.f32.partialorder %v2400, %v134
  %vm2529 = vcmp.le.f32.partialorder %v2401, %v134
  %vm2530 = vcmp.le.f32.partialorder %v2402, %v134
  %vm2531 = vcmp.le.f32.partialorder %v2403, %v134
  %vm2532 = vcmp.le.f32.partialorder %v2404, %v134
  %vm2533 = vcmp.le.f32.partialorder %v2405, %v134
  %vm2534 = vcmp.le.f32.partialorder %v2406, %v134
  %vm2535 = vcmp.le.f32.partialorder %v2407, %v134
  %vm2536 = vcmp.le.f32.partialorder %v2408, %v134
  %vm2537 = vcmp.le.f32.partialorder %v2409, %v134
  %vm2538 = vcmp.le.f32.partialorder %v2410, %v134
  %vm2539 = vcmp.le.f32.partialorder %v2411, %v134
  %vm2540 = vcmp.le.f32.partialorder %v2412, %v134
  %vm2541 = vcmp.le.f32.partialorder %v2413, %v134
  %vm2542 = vcmp.le.f32.partialorder %v2414, %v134
  %vm2543 = vcmp.le.f32.partialorder %v2415, %v134
  %vm2544 = vcmp.le.f32.partialorder %v2416, %v134
  %vm2545 = vcmp.le.f32.partialorder %v2417, %v134
  %vm2546 = vcmp.le.f32.partialorder %v2418, %v134
  %vm2547 = vcmp.le.f32.partialorder %v2419, %v134
  %vm2548 = vcmp.le.f32.partialorder %v2420, %v134
  %vm2549 = vcmp.le.f32.partialorder %v2421, %v134
  %vm2550 = vcmp.le.f32.partialorder %v2422, %v134
  %vm2551 = vcmp.le.f32.partialorder %v2423, %v134
  %vm2552 = vcmp.le.f32.partialorder %v2424, %v134
  %vm2553 = vcmp.le.f32.partialorder %v2425, %v134
  %vm2554 = vcmp.le.f32.partialorder %v2426, %v134
  %vm2555 = vcmp.le.f32.partialorder %v2427, %v134
  %vm2556 = vcmp.le.f32.partialorder %v2428, %v134
  %vm2557 = vcmp.le.f32.partialorder %v2429, %v134
  %vm2558 = vcmp.le.f32.partialorder %v2430, %v134
  %vm2559 = vcmp.le.f32.partialorder %v2431, %v134
  %vm2560 = vcmp.le.f32.partialorder %v2432, %v134
  %vm2561 = vcmp.le.f32.partialorder %v2433, %v134
  %vm2562 = vcmp.le.f32.partialorder %v2434, %v134
  %vm2563 = vcmp.le.f32.partialorder %v2435, %v134
  %vm2564 = vcmp.le.f32.partialorder %v2436, %v134
  %vm2565 = vcmp.le.f32.partialorder %v2437, %v134
  %vm2566 = vcmp.le.f32.partialorder %v2438, %v134
  %vm2567 = vcmp.le.f32.partialorder %v2439, %v134
  %vm2568 = vcmp.le.f32.partialorder %v2440, %v134
  %vm2569 = vmand %vm2441, %vm2505
  %vm2570 = vmand %vm2442, %vm2506
  %vm2571 = vmand %vm2443, %vm2507
  %vm2572 = vmand %vm2444, %vm2508
  %vm2573 = vmand %vm2445, %vm2509
  %vm2574 = vmand %vm2446, %vm2510
  %vm2575 = vmand %vm2447, %vm2511
  %vm2576 = vmand %vm2448, %vm2512
  %vm2577 = vmand %vm2449, %vm2513
  %vm2578 = vmand %vm2450, %vm2514
  %vm2579 = vmand %vm2451, %vm2515
  %vm2580 = vmand %vm2452, %vm2516
  %vm2581 = vmand %vm2453, %vm2517
  %vm2582 = vmand %vm2454, %vm2518
  %vm2583 = vmand %vm2455, %vm2519
  %vm2584 = vmand %vm2456, %vm2520
  %vm2585 = vmand %vm2457, %vm2521
  %vm2586 = vmand %vm2458, %vm2522
  %vm2587 = vmand %vm2459, %vm2523
  %vm2588 = vmand %vm2460, %vm2524
  %vm2589 = vmand %vm2461, %vm2525
  %vm2590 = vmand %vm2462, %vm2526
  %vm2591 = vmand %vm2463, %vm2527
  %vm2592 = vmand %vm2464, %vm2528
  %vm2593 = vmand %vm2465, %vm2529
  %vm2594 = vmand %vm2466, %vm2530
  %vm2595 = vmand %vm2467, %vm2531
  %vm2596 = vmand %vm2468, %vm2532
  %vm2597 = vmand %vm2469, %vm2533
  %vm2598 = vmand %vm2470, %vm2534
  %vm2599 = vmand %vm2471, %vm2535
  %vm2600 = vmand %vm2472, %vm2536
  %vm2601 = vmand %vm2473, %vm2537
  %vm2602 = vmand %vm2474, %vm2538
  %vm2603 = vmand %vm2475, %vm2539
  %vm2604 = vmand %vm2476, %vm2540
  %vm2605 = vmand %vm2477, %vm2541
  %vm2606 = vmand %vm2478, %vm2542
  %vm2607 = vmand %vm2479, %vm2543
  %vm2608 = vmand %vm2480, %vm2544
  %vm2609 = vmand %vm2481, %vm2545
  %vm2610 = vmand %vm2482, %vm2546
  %vm2611 = vmand %vm2483, %vm2547
  %vm2612 = vmand %vm2484, %vm2548
  %vm2613 = vmand %vm2485, %vm2549
  %vm2614 = vmand %vm2486, %vm2550
  %vm2615 = vmand %vm2487, %vm2551
  %vm2616 = vmand %vm2488, %vm2552
  %vm2617 = vmand %vm2489, %vm2553
  %vm2618 = vmand %vm2490, %vm2554
  %vm2619 = vmand %vm2491, %vm2555
  %vm2620 = vmand %vm2492, %vm2556
  %vm2621 = vmand %vm2493, %vm2557
  %vm2622 = vmand %vm2494, %vm2558
  %vm2623 = vmand %vm2495, %vm2559
  %vm2624 = vmand %vm2496, %vm2560
  %vm2625 = vmand %vm2497, %vm2561
  %vm2626 = vmand %vm2498, %vm2562
  %vm2627 = vmand %vm2499, %vm2563
  %vm2628 = vmand %vm2500, %vm2564
  %vm2629 = vmand %vm2501, %vm2565
  %vm2630 = vmand %vm2502, %vm2566
  %vm2631 = vmand %vm2503, %vm2567
  %vm2632 = vmand %vm2504, %vm2568
  %v2633 = vsel %vm2569, 1, 0
  %v2634 = vsel %vm2570, 1, 0
  %v2635 = vsel %vm2571, 1, 0
  %v2636 = vsel %vm2572, 1, 0
  %v2637 = vsel %vm2573, 1, 0
  %v2638 = vsel %vm2574, 1, 0
  %v2639 = vsel %vm2575, 1, 0
  %v2640 = vsel %vm2576, 1, 0
  %v2641 = vsel %vm2577, 1, 0
  %v2642 = vsel %vm2578, 1, 0
  %v2643 = vsel %vm2579, 1, 0
  %v2644 = vsel %vm2580, 1, 0
  %v2645 = vsel %vm2581, 1, 0
  %v2646 = vsel %vm2582, 1, 0
  %v2647 = vsel %vm2583, 1, 0
  %v2648 = vsel %vm2584, 1, 0
  %v2649 = vsel %vm2585, 1, 0
  %v2650 = vsel %vm2586, 1, 0
  %v2651 = vsel %vm2587, 1, 0
  %v2652 = vsel %vm2588, 1, 0
  %v2653 = vsel %vm2589, 1, 0
  %v2654 = vsel %vm2590, 1, 0
  %v2655 = vsel %vm2591, 1, 0
  %v2656 = vsel %vm2592, 1, 0
  %v2657 = vsel %vm2593, 1, 0
  %v2658 = vsel %vm2594, 1, 0
  %v2659 = vsel %vm2595, 1, 0
  %v2660 = vsel %vm2596, 1, 0
  %v2661 = vsel %vm2597, 1, 0
  %v2662 = vsel %vm2598, 1, 0
  %v2663 = vsel %vm2599, 1, 0
  %v2664 = vsel %vm2600, 1, 0
  %v2665 = vsel %vm2601, 1, 0
  %v2666 = vsel %vm2602, 1, 0
  %v2667 = vsel %vm2603, 1, 0
  %v2668 = vsel %vm2604, 1, 0
  %v2669 = vsel %vm2605, 1, 0
  %v2670 = vsel %vm2606, 1, 0
  %v2671 = vsel %vm2607, 1, 0
  %v2672 = vsel %vm2608, 1, 0
  %v2673 = vsel %vm2609, 1, 0
  %v2674 = vsel %vm2610, 1, 0
  %v2675 = vsel %vm2611, 1, 0
  %v2676 = vsel %vm2612, 1, 0
  %v2677 = vsel %vm2613, 1, 0
  %v2678 = vsel %vm2614, 1, 0
  %v2679 = vsel %vm2615, 1, 0
  %v2680 = vsel %vm2616, 1, 0
  %v2681 = vsel %vm2617, 1, 0
  %v2682 = vsel %vm2618, 1, 0
  %v2683 = vsel %vm2619, 1, 0
  %v2684 = vsel %vm2620, 1, 0
  %v2685 = vsel %vm2621, 1, 0
  %v2686 = vsel %vm2622, 1, 0
  %v2687 = vsel %vm2623, 1, 0
  %v2688 = vsel %vm2624, 1, 0
  %v2689 = vsel %vm2625, 1, 0
  %v2690 = vsel %vm2626, 1, 0
  %v2691 = vsel %vm2627, 1, 0
  %v2692 = vsel %vm2628, 1, 0
  %v2693 = vsel %vm2629, 1, 0
  %v2694 = vsel %vm2630, 1, 0
  %v2695 = vsel %vm2631, 1, 0
  %v2696 = vsel %vm2632, 1, 0
  %v2697 = vcvt.s32.f32 %v2633
  %v2698 = vcvt.s32.f32 %v2634
  %v2699 = vcvt.s32.f32 %v2635
  %v2700 = vcvt.s32.f32 %v2636
  %v2701 = vcvt.s32.f32 %v2637
  %v2702 = vcvt.s32.f32 %v2638
  %v2703 = vcvt.s32.f32 %v2639
  %v2704 = vcvt.s32.f32 %v2640
  %v2705 = vcvt.s32.f32 %v2641
  %v2706 = vcvt.s32.f32 %v2642
  %v2707 = vcvt.s32.f32 %v2643
  %v2708 = vcvt.s32.f32 %v2644
  %v2709 = vcvt.s32.f32 %v2645
  %v2710 = vcvt.s32.f32 %v2646
  %v2711 = vcvt.s32.f32 %v2647
  %v2712 = vcvt.s32.f32 %v2648
  %v2713 = vcvt.s32.f32 %v2649
  %v2714 = vcvt.s32.f32 %v2650
  %v2715 = vcvt.s32.f32 %v2651
  %v2716 = vcvt.s32.f32 %v2652
  %v2717 = vcvt.s32.f32 %v2653
  %v2718 = vcvt.s32.f32 %v2654
  %v2719 = vcvt.s32.f32 %v2655
  %v2720 = vcvt.s32.f32 %v2656
  %v2721 = vcvt.s32.f32 %v2657
  %v2722 = vcvt.s32.f32 %v2658
  %v2723 = vcvt.s32.f32 %v2659
  %v2724 = vcvt.s32.f32 %v2660
  %v2725 = vcvt.s32.f32 %v2661
  %v2726 = vcvt.s32.f32 %v2662
  %v2727 = vcvt.s32.f32 %v2663
  %v2728 = vcvt.s32.f32 %v2664
  %v2729 = vcvt.s32.f32 %v2665
  %v2730 = vcvt.s32.f32 %v2666
  %v2731 = vcvt.s32.f32 %v2667
  %v2732 = vcvt.s32.f32 %v2668
  %v2733 = vcvt.s32.f32 %v2669
  %v2734 = vcvt.s32.f32 %v2670
  %v2735 = vcvt.s32.f32 %v2671
  %v2736 = vcvt.s32.f32 %v2672
  %v2737 = vcvt.s32.f32 %v2673
  %v2738 = vcvt.s32.f32 %v2674
  %v2739 = vcvt.s32.f32 %v2675
  %v2740 = vcvt.s32.f32 %v2676
  %v2741 = vcvt.s32.f32 %v2677
  %v2742 = vcvt.s32.f32 %v2678
  %v2743 = vcvt.s32.f32 %v2679
  %v2744 = vcvt.s32.f32 %v2680
  %v2745 = vcvt.s32.f32 %v2681
  %v2746 = vcvt.s32.f32 %v2682
  %v2747 = vcvt.s32.f32 %v2683
  %v2748 = vcvt.s32.f32 %v2684
  %v2749 = vcvt.s32.f32 %v2685
  %v2750 = vcvt.s32.f32 %v2686
  %v2751 = vcvt.s32.f32 %v2687
  %v2752 = vcvt.s32.f32 %v2688
  %v2753 = vcvt.s32.f32 %v2689
  %v2754 = vcvt.s32.f32 %v2690
  %v2755 = vcvt.s32.f32 %v2691
  %v2756 = vcvt.s32.f32 %v2692
  %v2757 = vcvt.s32.f32 %v2693
  %v2758 = vcvt.s32.f32 %v2694
  %v2759 = vcvt.s32.f32 %v2695
  %v2760 = vcvt.s32.f32 %v2696
  %2825 = vrot.lane.b32.xlu0 %v2184, 1
  %v2826 = vpop.permute.xlu0 %2825
  %2827 = vrot.lane.b32.xlu0 %v2185, 1
  %v2828 = vpop.permute.xlu0 %2827
  %2829 = vrot.lane.b32.xlu0 %v2186, 1
  %v2830 = vpop.permute.xlu0 %2829
  %2831 = vrot.lane.b32.xlu0 %v2187, 1
  %v2832 = vpop.permute.xlu0 %2831
  %2833 = vrot.lane.b32.xlu0 %v2188, 1
  %v2834 = vpop.permute.xlu0 %2833
  %2835 = vrot.lane.b32.xlu0 %v2189, 1
  %v2836 = vpop.permute.xlu0 %2835
  %2837 = vrot.lane.b32.xlu0 %v2190, 1
  %v2838 = vpop.permute.xlu0 %2837
  %2839 = vrot.lane.b32.xlu0 %v2191, 1
  %v2840 = vpop.permute.xlu0 %2839
  %2841 = vrot.lane.b32.xlu0 %v2192, 1
  %v2842 = vpop.permute.xlu0 %2841
  %2843 = vrot.lane.b32.xlu0 %v2193, 1
  %v2844 = vpop.permute.xlu0 %2843
  %2845 = vrot.lane.b32.xlu0 %v2194, 1
  %v2846 = vpop.permute.xlu0 %2845
  %2847 = vrot.lane.b32.xlu0 %v2195, 1
  %v2848 = vpop.permute.xlu0 %2847
  %2849 = vrot.lane.b32.xlu0 %v2196, 1
  %v2850 = vpop.permute.xlu0 %2849
  %2851 = vrot.lane.b32.xlu0 %v2197, 1
  %v2852 = vpop.permute.xlu0 %2851
  %2853 = vrot.lane.b32.xlu0 %v2198, 1
  %v2854 = vpop.permute.xlu0 %2853
  %2855 = vrot.lane.b32.xlu0 %v2199, 1
  %v2856 = vpop.permute.xlu0 %2855
  %2857 = vrot.lane.b32.xlu0 %v2200, 1
  %v2858 = vpop.permute.xlu0 %2857
  %2859 = vrot.lane.b32.xlu0 %v2201, 1
  %v2860 = vpop.permute.xlu0 %2859
  %2861 = vrot.lane.b32.xlu0 %v2202, 1
  %v2862 = vpop.permute.xlu0 %2861
  %2863 = vrot.lane.b32.xlu0 %v2203, 1
  %v2864 = vpop.permute.xlu0 %2863
  %2865 = vrot.lane.b32.xlu0 %v2204, 1
  %v2866 = vpop.permute.xlu0 %2865
  %2867 = vrot.lane.b32.xlu0 %v2205, 1
  %v2868 = vpop.permute.xlu0 %2867
  %2869 = vrot.lane.b32.xlu0 %v2206, 1
  %v2870 = vpop.permute.xlu0 %2869
  %2871 = vrot.lane.b32.xlu0 %v2207, 1
  %v2872 = vpop.permute.xlu0 %2871
  %2873 = vrot.lane.b32.xlu0 %v2208, 1
  %v2874 = vpop.permute.xlu0 %2873
  %2875 = vrot.lane.b32.xlu0 %v2209, 1
  %v2876 = vpop.permute.xlu0 %2875
  %2877 = vrot.lane.b32.xlu0 %v2210, 1
  %v2878 = vpop.permute.xlu0 %2877
  %2879 = vrot.lane.b32.xlu0 %v2211, 1
  %v2880 = vpop.permute.xlu0 %2879
  %2881 = vrot.lane.b32.xlu0 %v2212, 1
  %v2882 = vpop.permute.xlu0 %2881
  %2883 = vrot.lane.b32.xlu0 %v2213, 1
  %v2884 = vpop.permute.xlu0 %2883
  %2885 = vrot.lane.b32.xlu0 %v2214, 1
  %v2886 = vpop.permute.xlu0 %2885
  %2887 = vrot.lane.b32.xlu0 %v2215, 1
  %v2888 = vpop.permute.xlu0 %2887
  %2889 = vrot.lane.b32.xlu0 %v2216, 1
  %v2890 = vpop.permute.xlu0 %2889
  %2891 = vrot.lane.b32.xlu0 %v2217, 1
  %v2892 = vpop.permute.xlu0 %2891
  %2893 = vrot.lane.b32.xlu0 %v2218, 1
  %v2894 = vpop.permute.xlu0 %2893
  %2895 = vrot.lane.b32.xlu0 %v2219, 1
  %v2896 = vpop.permute.xlu0 %2895
  %2897 = vrot.lane.b32.xlu0 %v2220, 1
  %v2898 = vpop.permute.xlu0 %2897
  %2899 = vrot.lane.b32.xlu0 %v2221, 1
  %v2900 = vpop.permute.xlu0 %2899
  %2901 = vrot.lane.b32.xlu0 %v2222, 1
  %v2902 = vpop.permute.xlu0 %2901
  %2903 = vrot.lane.b32.xlu0 %v2223, 1
  %v2904 = vpop.permute.xlu0 %2903
  %2905 = vrot.lane.b32.xlu0 %v2224, 1
  %v2906 = vpop.permute.xlu0 %2905
  %2907 = vrot.lane.b32.xlu0 %v2225, 1
  %v2908 = vpop.permute.xlu0 %2907
  %2909 = vrot.lane.b32.xlu0 %v2226, 1
  %v2910 = vpop.permute.xlu0 %2909
  %2911 = vrot.lane.b32.xlu0 %v2227, 1
  %v2912 = vpop.permute.xlu0 %2911
  %2913 = vrot.lane.b32.xlu0 %v2228, 1
  %v2914 = vpop.permute.xlu0 %2913
  %2915 = vrot.lane.b32.xlu0 %v2229, 1
  %v2916 = vpop.permute.xlu0 %2915
  %2917 = vrot.lane.b32.xlu0 %v2230, 1
  %v2918 = vpop.permute.xlu0 %2917
  %2919 = vrot.lane.b32.xlu0 %v2231, 1
  %v2920 = vpop.permute.xlu0 %2919
  %2921 = vrot.lane.b32.xlu0 %v2232, 1
  %v2922 = vpop.permute.xlu0 %2921
  %2923 = vrot.lane.b32.xlu0 %v2233, 1
  %v2924 = vpop.permute.xlu0 %2923
  %2925 = vrot.lane.b32.xlu0 %v2234, 1
  %v2926 = vpop.permute.xlu0 %2925
  %2927 = vrot.lane.b32.xlu0 %v2235, 1
  %v2928 = vpop.permute.xlu0 %2927
  %2929 = vrot.lane.b32.xlu0 %v2236, 1
  %v2930 = vpop.permute.xlu0 %2929
  %2931 = vrot.lane.b32.xlu0 %v2237, 1
  %v2932 = vpop.permute.xlu0 %2931
  %2933 = vrot.lane.b32.xlu0 %v2238, 1
  %v2934 = vpop.permute.xlu0 %2933
  %2935 = vrot.lane.b32.xlu0 %v2239, 1
  %v2936 = vpop.permute.xlu0 %2935
  %2937 = vrot.lane.b32.xlu0 %v2240, 1
  %v2938 = vpop.permute.xlu0 %2937
  %2939 = vrot.lane.b32.xlu0 %v2241, 1
  %v2940 = vpop.permute.xlu0 %2939
  %2941 = vrot.lane.b32.xlu0 %v2242, 1
  %v2942 = vpop.permute.xlu0 %2941
  %2943 = vrot.lane.b32.xlu0 %v2243, 1
  %v2944 = vpop.permute.xlu0 %2943
  %2945 = vrot.lane.b32.xlu0 %v2244, 1
  %v2946 = vpop.permute.xlu0 %2945
  %2947 = vrot.lane.b32.xlu0 %v2245, 1
  %v2948 = vpop.permute.xlu0 %2947
  %2949 = vrot.lane.b32.xlu0 %v2246, 1
  %v2950 = vpop.permute.xlu0 %2949
  %2951 = vrot.lane.b32.xlu0 %v2247, 1
  %v2952 = vpop.permute.xlu0 %2951
  %vm3017 = vcmask 7168
  %v3018 = vsel %vm3017, 1.0, %v2826
  %v3019 = vsel %vm3017, 1.0, %v2828
  %v3020 = vsel %vm3017, 1.0, %v2830
  %v3021 = vsel %vm3017, 1.0, %v2832
  %v3022 = vsel %vm3017, 1.0, %v2834
  %v3023 = vsel %vm3017, 1.0, %v2836
  %v3024 = vsel %vm3017, 1.0, %v2838
  %v3025 = vsel %vm3017, 1.0, %v2840
  %v3026 = vsel %vm3017, 1.0, %v2842
  %v3027 = vsel %vm3017, 1.0, %v2844
  %v3028 = vsel %vm3017, 1.0, %v2846
  %v3029 = vsel %vm3017, 1.0, %v2848
  %v3030 = vsel %vm3017, 1.0, %v2850
  %v3031 = vsel %vm3017, 1.0, %v2852
  %v3032 = vsel %vm3017, 1.0, %v2854
  %v3033 = vsel %vm3017, 1.0, %v2856
  %v3034 = vsel %vm3017, 1.0, %v2858
  %v3035 = vsel %vm3017, 1.0, %v2860
  %v3036 = vsel %vm3017, 1.0, %v2862
  %v3037 = vsel %vm3017, 1.0, %v2864
  %v3038 = vsel %vm3017, 1.0, %v2866
  %v3039 = vsel %vm3017, 1.0, %v2868
  %v3040 = vsel %vm3017, 1.0, %v2870
  %v3041 = vsel %vm3017, 1.0, %v2872
  %v3042 = vsel %vm3017, 1.0, %v2874
  %v3043 = vsel %vm3017, 1.0, %v2876
  %v3044 = vsel %vm3017, 1.0, %v2878
  %v3045 = vsel %vm3017, 1.0, %v2880
  %v3046 = vsel %vm3017, 1.0, %v2882
  %v3047 = vsel %vm3017, 1.0, %v2884
  %v3048 = vsel %vm3017, 1.0, %v2886
  %v3049 = vsel %vm3017, 1.0, %v2888
  %v3050 = vsel %vm3017, 1.0, %v2890
  %v3051 = vsel %vm3017, 1.0, %v2892
  %v3052 = vsel %vm3017, 1.0, %v2894
  %v3053 = vsel %vm3017, 1.0, %v2896
  %v3054 = vsel %vm3017, 1.0, %v2898
  %v3055 = vsel %vm3017, 1.0, %v2900
  %v3056 = vsel %vm3017, 1.0, %v2902
  %v3057 = vsel %vm3017, 1.0, %v2904
  %v3058 = vsel %vm3017, 1.0, %v2906
  %v3059 = vsel %vm3017, 1.0, %v2908
  %v3060 = vsel %vm3017, 1.0, %v2910
  %v3061 = vsel %vm3017, 1.0, %v2912
  %v3062 = vsel %vm3017, 1.0, %v2914
  %v3063 = vsel %vm3017, 1.0, %v2916
  %v3064 = vsel %vm3017, 1.0, %v2918
  %v3065 = vsel %vm3017, 1.0, %v2920
  %v3066 = vsel %vm3017, 1.0, %v2922
  %v3067 = vsel %vm3017, 1.0, %v2924
  %v3068 = vsel %vm3017, 1.0, %v2926
  %v3069 = vsel %vm3017, 1.0, %v2928
  %v3070 = vsel %vm3017, 1.0, %v2930
  %v3071 = vsel %vm3017, 1.0, %v2932
  %v3072 = vsel %vm3017, 1.0, %v2934
  %v3073 = vsel %vm3017, 1.0, %v2936
  %v3074 = vsel %vm3017, 1.0, %v2938
  %v3075 = vsel %vm3017, 1.0, %v2940
  %v3076 = vsel %vm3017, 1.0, %v2942
  %v3077 = vsel %vm3017, 1.0, %v2944
  %v3078 = vsel %vm3017, 1.0, %v2946
  %v3079 = vsel %vm3017, 1.0, %v2948
  %v3080 = vsel %vm3017, 1.0, %v2950
  %v3081 = vsel %vm3017, 1.0, %v2952
  %3082 = vxpose.xlu0.b32.start [1/16] %v3018, 128
  %3083 = vxpose.xlu0.b32.cont [2/16] %v3019, 128
  %3084 = vxpose.xlu0.b32.cont [3/16] %v3020, 128
  %3085 = vxpose.xlu0.b32.cont [4/16] %v3021, 128
  %3086 = vxpose.xlu0.b32.cont [5/16] %v3022, 128
  %3087 = vxpose.xlu0.b32.cont [6/16] %v3023, 128
  %3088 = vxpose.xlu0.b32.cont [7/16] %v3024, 128
  %3089 = vxpose.xlu0.b32.cont [8/16] %v3025, 128
  %3090 = vxpose.xlu0.b32.cont [9/16] %v3026, 128
  %3091 = vxpose.xlu0.b32.cont [10/16] %v3027, 128
  %3092 = vxpose.xlu0.b32.cont [11/16] %v3028, 128
  %3093 = vxpose.xlu0.b32.cont [12/16] %v3029, 128
  %3094 = vxpose.xlu0.b32.cont [13/16] %v3030, 128
  %3095 = vxpose.xlu0.b32.cont [14/16] %v3031, 128
  %3096 = vxpose.xlu0.b32.cont [15/16] %v3032, 128
  %3097 = vxpose.xlu0.b32.end [16/16] %v3033, 128
  %v3098 = vpop.trf.xlu0
  %v3099 = vpop.trf.xlu0
  %v3100 = vpop.trf.xlu0
  %v3101 = vpop.trf.xlu0
  %v3102 = vpop.trf.xlu0
  %v3103 = vpop.trf.xlu0
  %v3104 = vpop.trf.xlu0
  %v3105 = vpop.trf.xlu0
  %v3106 = vpop.trf.xlu0
  %v3107 = vpop.trf.xlu0
  %v3108 = vpop.trf.xlu0
  %v3109 = vpop.trf.xlu0
  %v3110 = vpop.trf.xlu0
  %v3111 = vpop.trf.xlu0
  %v3112 = vpop.trf.xlu0
  %v3113 = vpop.trf.xlu0
  %3114 = vxpose.xlu0.b32.start [1/16] %v3034, 128
  %3115 = vxpose.xlu0.b32.cont [2/16] %v3035, 128
  %3116 = vxpose.xlu0.b32.cont [3/16] %v3036, 128
  %3117 = vxpose.xlu0.b32.cont [4/16] %v3037, 128
  %3118 = vxpose.xlu0.b32.cont [5/16] %v3038, 128
  %3119 = vxpose.xlu0.b32.cont [6/16] %v3039, 128
  %3120 = vxpose.xlu0.b32.cont [7/16] %v3040, 128
  %3121 = vxpose.xlu0.b32.cont [8/16] %v3041, 128
  %3122 = vxpose.xlu0.b32.cont [9/16] %v3042, 128
  %3123 = vxpose.xlu0.b32.cont [10/16] %v3043, 128
  %3124 = vxpose.xlu0.b32.cont [11/16] %v3044, 128
  %3125 = vxpose.xlu0.b32.cont [12/16] %v3045, 128
  %3126 = vxpose.xlu0.b32.cont [13/16] %v3046, 128
  %3127 = vxpose.xlu0.b32.cont [14/16] %v3047, 128
  %3128 = vxpose.xlu0.b32.cont [15/16] %v3048, 128
  %3129 = vxpose.xlu0.b32.end [16/16] %v3049, 128
  %v3130 = vpop.trf.xlu0
  %v3131 = vpop.trf.xlu0
  %v3132 = vpop.trf.xlu0
  %v3133 = vpop.trf.xlu0
  %v3134 = vpop.trf.xlu0
  %v3135 = vpop.trf.xlu0
  %v3136 = vpop.trf.xlu0
  %v3137 = vpop.trf.xlu0
  %v3138 = vpop.trf.xlu0
  %v3139 = vpop.trf.xlu0
  %v3140 = vpop.trf.xlu0
  %v3141 = vpop.trf.xlu0
  %v3142 = vpop.trf.xlu0
  %v3143 = vpop.trf.xlu0
  %v3144 = vpop.trf.xlu0
  %v3145 = vpop.trf.xlu0
  %3146 = vxpose.xlu0.b32.start [1/16] %v3050, 128
  %3147 = vxpose.xlu0.b32.cont [2/16] %v3051, 128
  %3148 = vxpose.xlu0.b32.cont [3/16] %v3052, 128
  %3149 = vxpose.xlu0.b32.cont [4/16] %v3053, 128
  %3150 = vxpose.xlu0.b32.cont [5/16] %v3054, 128
  %3151 = vxpose.xlu0.b32.cont [6/16] %v3055, 128
  %3152 = vxpose.xlu0.b32.cont [7/16] %v3056, 128
  %3153 = vxpose.xlu0.b32.cont [8/16] %v3057, 128
  %3154 = vxpose.xlu0.b32.cont [9/16] %v3058, 128
  %3155 = vxpose.xlu0.b32.cont [10/16] %v3059, 128
  %3156 = vxpose.xlu0.b32.cont [11/16] %v3060, 128
  %3157 = vxpose.xlu0.b32.cont [12/16] %v3061, 128
  %3158 = vxpose.xlu0.b32.cont [13/16] %v3062, 128
  %3159 = vxpose.xlu0.b32.cont [14/16] %v3063, 128
  %3160 = vxpose.xlu0.b32.cont [15/16] %v3064, 128
  %3161 = vxpose.xlu0.b32.end [16/16] %v3065, 128
  %v3162 = vpop.trf.xlu0
  %v3163 = vpop.trf.xlu0
  %v3164 = vpop.trf.xlu0
  %v3165 = vpop.trf.xlu0
  %v3166 = vpop.trf.xlu0
  %v3167 = vpop.trf.xlu0
  %v3168 = vpop.trf.xlu0
  %v3169 = vpop.trf.xlu0
  %v3170 = vpop.trf.xlu0
  %v3171 = vpop.trf.xlu0
  %v3172 = vpop.trf.xlu0
  %v3173 = vpop.trf.xlu0
  %v3174 = vpop.trf.xlu0
  %v3175 = vpop.trf.xlu0
  %v3176 = vpop.trf.xlu0
  %v3177 = vpop.trf.xlu0
  %3178 = vxpose.xlu0.b32.start [1/16] %v3066, 128
  %3179 = vxpose.xlu0.b32.cont [2/16] %v3067, 128
  %3180 = vxpose.xlu0.b32.cont [3/16] %v3068, 128
  %3181 = vxpose.xlu0.b32.cont [4/16] %v3069, 128
  %3182 = vxpose.xlu0.b32.cont [5/16] %v3070, 128
  %3183 = vxpose.xlu0.b32.cont [6/16] %v3071, 128
  %3184 = vxpose.xlu0.b32.cont [7/16] %v3072, 128
  %3185 = vxpose.xlu0.b32.cont [8/16] %v3073, 128
  %3186 = vxpose.xlu0.b32.cont [9/16] %v3074, 128
  %3187 = vxpose.xlu0.b32.cont [10/16] %v3075, 128
  %3188 = vxpose.xlu0.b32.cont [11/16] %v3076, 128
  %3189 = vxpose.xlu0.b32.cont [12/16] %v3077, 128
  %3190 = vxpose.xlu0.b32.cont [13/16] %v3078, 128
  %3191 = vxpose.xlu0.b32.cont [14/16] %v3079, 128
  %3192 = vxpose.xlu0.b32.cont [15/16] %v3080, 128
  %3193 = vxpose.xlu0.b32.end [16/16] %v3081, 128
  %v3194 = vpop.trf.xlu0
  %v3195 = vpop.trf.xlu0
  %v3196 = vpop.trf.xlu0
  %v3197 = vpop.trf.xlu0
  %v3198 = vpop.trf.xlu0
  %v3199 = vpop.trf.xlu0
  %v3200 = vpop.trf.xlu0
  %v3201 = vpop.trf.xlu0
  %v3202 = vpop.trf.xlu0
  %v3203 = vpop.trf.xlu0
  %v3204 = vpop.trf.xlu0
  %v3205 = vpop.trf.xlu0
  %v3206 = vpop.trf.xlu0
  %v3207 = vpop.trf.xlu0
  %v3208 = vpop.trf.xlu0
  %v3209 = vpop.trf.xlu0
  %3210 = vmatprep.subr.mxu0 0.0
  %3211 = vmatpush1.msra.mxu0 %v2697
  %3212 = vmatprep.subr.mxu0 0.0
  %3213 = vmatpush1.msra.mxu0 %v2698
  %3214 = vmatprep.subr.mxu0 0.0
  %3215 = vmatpush1.msra.mxu0 %v2699
  %3216 = vmatprep.subr.mxu0 0.0
  %3217 = vmatpush1.msra.mxu0 %v2700
  %3218 = vmatprep.subr.mxu0 0.0
  %3219 = vmatpush1.msra.mxu0 %v2701
  %3220 = vmatprep.subr.mxu0 0.0
  %3221 = vmatpush1.msra.mxu0 %v2702
  %3222 = vmatprep.subr.mxu0 0.0
  %3223 = vmatpush1.msra.mxu0 %v2703
  %3224 = vmatprep.subr.mxu0 0.0
  %3225 = vmatpush1.msra.mxu0 %v2704
  %3226 = vmatprep.subr.mxu0 0.0
  %3227 = vmatpush1.msra.mxu0 %v2705
  %3228 = vmatprep.subr.mxu0 0.0
  %3229 = vmatpush1.msra.mxu0 %v2706
  %3230 = vmatprep.subr.mxu0 0.0
  %3231 = vmatpush1.msra.mxu0 %v2707
  %3232 = vmatprep.subr.mxu0 0.0
  %3233 = vmatpush1.msra.mxu0 %v2708
  %3234 = vmatprep.subr.mxu0 0.0
  %3235 = vmatpush1.msra.mxu0 %v2709
  %3236 = vmatprep.subr.mxu0 0.0
  %3237 = vmatpush1.msra.mxu0 %v2710
  %3238 = vmatprep.subr.mxu0 0.0
  %3239 = vmatpush1.msra.mxu0 %v2711
  %3240 = vmatprep.subr.mxu0 0.0
  %3241 = vmatpush1.msra.mxu0 %v2712
  %3242 = vmatprep.subr.mxu0 0.0
  %3243 = vmatpush1.msra.mxu0 %v2713
  %3244 = vmatprep.subr.mxu0 0.0
  %3245 = vmatpush1.msra.mxu0 %v2714
  %3246 = vmatprep.subr.mxu0 0.0
  %3247 = vmatpush1.msra.mxu0 %v2715
  %3248 = vmatprep.subr.mxu0 0.0
  %3249 = vmatpush1.msra.mxu0 %v2716
  %3250 = vmatprep.subr.mxu0 0.0
  %3251 = vmatpush1.msra.mxu0 %v2717
  %3252 = vmatprep.subr.mxu0 0.0
  %3253 = vmatpush1.msra.mxu0 %v2718
  %3254 = vmatprep.subr.mxu0 0.0
  %3255 = vmatpush1.msra.mxu0 %v2719
  %3256 = vmatprep.subr.mxu0 0.0
  %3257 = vmatpush1.msra.mxu0 %v2720
  %3258 = vmatprep.subr.mxu0 0.0
  %3259 = vmatpush1.msra.mxu0 %v2721
  %3260 = vmatprep.subr.mxu0 0.0
  %3261 = vmatpush1.msra.mxu0 %v2722
  %3262 = vmatprep.subr.mxu0 0.0
  %3263 = vmatpush1.msra.mxu0 %v2723
  %3264 = vmatprep.subr.mxu0 0.0
  %3265 = vmatpush1.msra.mxu0 %v2724
  %3266 = vmatprep.subr.mxu0 0.0
  %3267 = vmatpush1.msra.mxu0 %v2725
  %3268 = vmatprep.subr.mxu0 0.0
  %3269 = vmatpush1.msra.mxu0 %v2726
  %3270 = vmatprep.subr.mxu0 0.0
  %3271 = vmatpush1.msra.mxu0 %v2727
  %3272 = vmatprep.subr.mxu0 0.0
  %3273 = vmatpush1.msra.mxu0 %v2728
  %3274 = vmatprep.mubr.f32.mxu0 %v3130
  %3275 = vmatmul.mubr.f32.gmra.mrb[0].mxu0 %v3098
  %v3276 = vpop.f32.mrb[0].mxu0
  %v3277 = vadd.f32 0.0, %v3276
  %v3278 = vpop.f32.mrb[0].mxu0
  %3279 = vdwg.mxu0
  %3280 = vmatprep.subr.mxu0 0.0
  %3281 = vmatpush1.msra.mxu0 %v2729
  %3282 = vmatprep.subr.mxu0 0.0
  %3283 = vmatpush1.msra.mxu0 %v2730
  %3284 = vmatprep.subr.mxu0 0.0
  %3285 = vmatpush1.msra.mxu0 %v2731
  %3286 = vmatprep.subr.mxu0 0.0
  %3287 = vmatpush1.msra.mxu0 %v2732
  %3288 = vmatprep.subr.mxu0 0.0
  %3289 = vmatpush1.msra.mxu0 %v2733
  %3290 = vmatprep.subr.mxu0 0.0
  %3291 = vmatpush1.msra.mxu0 %v2734
  %3292 = vmatprep.subr.mxu0 0.0
  %3293 = vmatpush1.msra.mxu0 %v2735
  %3294 = vmatprep.subr.mxu0 0.0
  %3295 = vmatpush1.msra.mxu0 %v2736
  %3296 = vmatprep.subr.mxu0 0.0
  %3297 = vmatpush1.msra.mxu0 %v2737
  %3298 = vmatprep.subr.mxu0 0.0
  %3299 = vmatpush1.msra.mxu0 %v2738
  %3300 = vmatprep.subr.mxu0 0.0
  %3301 = vmatpush1.msra.mxu0 %v2739
  %3302 = vmatprep.subr.mxu0 0.0
  %3303 = vmatpush1.msra.mxu0 %v2740
  %3304 = vmatprep.subr.mxu0 0.0
  %3305 = vmatpush1.msra.mxu0 %v2741
  %3306 = vmatprep.subr.mxu0 0.0
  %3307 = vmatpush1.msra.mxu0 %v2742
  %3308 = vmatprep.subr.mxu0 0.0
  %3309 = vmatpush1.msra.mxu0 %v2743
  %3310 = vmatprep.subr.mxu0 0.0
  %3311 = vmatpush1.msra.mxu0 %v2744
  %3312 = vmatprep.subr.mxu0 0.0
  %3313 = vmatpush1.msra.mxu0 %v2745
  %3314 = vmatprep.subr.mxu0 0.0
  %3315 = vmatpush1.msra.mxu0 %v2746
  %3316 = vmatprep.subr.mxu0 0.0
  %3317 = vmatpush1.msra.mxu0 %v2747
  %3318 = vmatprep.subr.mxu0 0.0
  %3319 = vmatpush1.msra.mxu0 %v2748
  %3320 = vmatprep.subr.mxu0 0.0
  %3321 = vmatpush1.msra.mxu0 %v2749
  %3322 = vmatprep.subr.mxu0 0.0
  %3323 = vmatpush1.msra.mxu0 %v2750
  %3324 = vmatprep.subr.mxu0 0.0
  %3325 = vmatpush1.msra.mxu0 %v2751
  %3326 = vmatprep.subr.mxu0 0.0
  %3327 = vmatpush1.msra.mxu0 %v2752
  %3328 = vmatprep.subr.mxu0 0.0
  %3329 = vmatpush1.msra.mxu0 %v2753
  %3330 = vmatprep.subr.mxu0 0.0
  %3331 = vmatpush1.msra.mxu0 %v2754
  %3332 = vmatprep.subr.mxu0 0.0
  %3333 = vmatpush1.msra.mxu0 %v2755
  %3334 = vmatprep.subr.mxu0 0.0
  %3335 = vmatpush1.msra.mxu0 %v2756
  %3336 = vmatprep.subr.mxu0 0.0
  %3337 = vmatpush1.msra.mxu0 %v2757
  %3338 = vmatprep.subr.mxu0 0.0
  %3339 = vmatpush1.msra.mxu0 %v2758
  %3340 = vmatprep.subr.mxu0 0.0
  %3341 = vmatpush1.msra.mxu0 %v2759
  %3342 = vmatprep.subr.mxu0 0.0
  %3343 = vmatpush1.msra.mxu0 %v2760
  %3344 = vmatprep.mubr.f32.mxu0 %v3194
  %3345 = vmatmul.mubr.f32.gmra.mrb[0].mxu0 %v3162
  %v3346 = vpop.f32.mrb[0].mxu0
  %v3347 = vadd.f32 %v3277, %v3346
  %v3348 = vpop.f32.mrb[0].mxu0
  %3349 = vdwg.mxu0
  %v3350 = vmul.f32 %v2697, %v2377
  %v3351 = vmul.f32 %v2698, %v2378
  %v3352 = vmul.f32 %v2699, %v2379
  %v3353 = vmul.f32 %v2700, %v2380
  %v3354 = vmul.f32 %v2701, %v2381
  %v3355 = vmul.f32 %v2702, %v2382
  %v3356 = vmul.f32 %v2703, %v2383
  %v3357 = vmul.f32 %v2704, %v2384
  %v3358 = vmul.f32 %v2705, %v2385
  %v3359 = vmul.f32 %v2706, %v2386
  %v3360 = vmul.f32 %v2707, %v2387
  %v3361 = vmul.f32 %v2708, %v2388
  %v3362 = vmul.f32 %v2709, %v2389
  %v3363 = vmul.f32 %v2710, %v2390
  %v3364 = vmul.f32 %v2711, %v2391
  %v3365 = vmul.f32 %v2712, %v2392
  %v3366 = vmul.f32 %v2713, %v2393
  %v3367 = vmul.f32 %v2714, %v2394
  %v3368 = vmul.f32 %v2715, %v2395
  %v3369 = vmul.f32 %v2716, %v2396
  %v3370 = vmul.f32 %v2717, %v2397
  %v3371 = vmul.f32 %v2718, %v2398
  %v3372 = vmul.f32 %v2719, %v2399
  %v3373 = vmul.f32 %v2720, %v2400
  %v3374 = vmul.f32 %v2721, %v2401
  %v3375 = vmul.f32 %v2722, %v2402
  %v3376 = vmul.f32 %v2723, %v2403
  %v3377 = vmul.f32 %v2724, %v2404
  %v3378 = vmul.f32 %v2725, %v2405
  %v3379 = vmul.f32 %v2726, %v2406
  %v3380 = vmul.f32 %v2727, %v2407
  %v3381 = vmul.f32 %v2728, %v2408
  %v3382 = vmul.f32 %v2729, %v2409
  %v3383 = vmul.f32 %v2730, %v2410
  %v3384 = vmul.f32 %v2731, %v2411
  %v3385 = vmul.f32 %v2732, %v2412
  %v3386 = vmul.f32 %v2733, %v2413
  %v3387 = vmul.f32 %v2734, %v2414
  %v3388 = vmul.f32 %v2735, %v2415
  %v3389 = vmul.f32 %v2736, %v2416
  %v3390 = vmul.f32 %v2737, %v2417
  %v3391 = vmul.f32 %v2738, %v2418
  %v3392 = vmul.f32 %v2739, %v2419
  %v3393 = vmul.f32 %v2740, %v2420
  %v3394 = vmul.f32 %v2741, %v2421
  %v3395 = vmul.f32 %v2742, %v2422
  %v3396 = vmul.f32 %v2743, %v2423
  %v3397 = vmul.f32 %v2744, %v2424
  %v3398 = vmul.f32 %v2745, %v2425
  %v3399 = vmul.f32 %v2746, %v2426
  %v3400 = vmul.f32 %v2747, %v2427
  %v3401 = vmul.f32 %v2748, %v2428
  %v3402 = vmul.f32 %v2749, %v2429
  %v3403 = vmul.f32 %v2750, %v2430
  %v3404 = vmul.f32 %v2751, %v2431
  %v3405 = vmul.f32 %v2752, %v2432
  %v3406 = vmul.f32 %v2753, %v2433
  %v3407 = vmul.f32 %v2754, %v2434
  %v3408 = vmul.f32 %v2755, %v2435
  %v3409 = vmul.f32 %v2756, %v2436
  %v3410 = vmul.f32 %v2757, %v2437
  %v3411 = vmul.f32 %v2758, %v2438
  %v3412 = vmul.f32 %v2759, %v2439
  %v3413 = vmul.f32 %v2760, %v2440
  %vm3414 = vcmask 121856
  %v3415 = vsel %vm3414, %v3350, 0.0
  %v3416 = vsel %vm3414, %v3351, 0.0
  %v3417 = vadd.f32 %v3415, %v3416
  %v3418 = vsel %vm3414, %v3352, 0.0
  %v3419 = vadd.f32 %v3417, %v3418
  %v3420 = vsel %vm3414, %v3353, 0.0
  %v3421 = vadd.f32 %v3419, %v3420
  %v3422 = vsel %vm3414, %v3354, 0.0
  %v3423 = vadd.f32 %v3421, %v3422
  %v3424 = vsel %vm3414, %v3355, 0.0
  %v3425 = vadd.f32 %v3423, %v3424
  %v3426 = vsel %vm3414, %v3356, 0.0
  %v3427 = vadd.f32 %v3425, %v3426
  %v3428 = vsel %vm3414, %v3357, 0.0
  %v3429 = vadd.f32 %v3427, %v3428
  %v3430 = vsel %vm3414, %v3358, 0.0
  %v3431 = vadd.f32 %v3429, %v3430
  %v3432 = vsel %vm3414, %v3359, 0.0
  %v3433 = vadd.f32 %v3431, %v3432
  %v3434 = vsel %vm3414, %v3360, 0.0
  %v3435 = vadd.f32 %v3433, %v3434
  %v3436 = vsel %vm3414, %v3361, 0.0
  %v3437 = vadd.f32 %v3435, %v3436
  %v3438 = vsel %vm3414, %v3362, 0.0
  %v3439 = vadd.f32 %v3437, %v3438
  %v3440 = vsel %vm3414, %v3363, 0.0
  %v3441 = vadd.f32 %v3439, %v3440
  %v3442 = vsel %vm3414, %v3364, 0.0
  %v3443 = vadd.f32 %v3441, %v3442
  %v3444 = vsel %vm3414, %v3365, 0.0
  %v3445 = vadd.f32 %v3443, %v3444
  %v3446 = vsel %vm3414, %v3366, 0.0
  %v3447 = vadd.f32 %v3445, %v3446
  %v3448 = vsel %vm3414, %v3367, 0.0
  %v3449 = vadd.f32 %v3447, %v3448
  %v3450 = vsel %vm3414, %v3368, 0.0
  %v3451 = vadd.f32 %v3449, %v3450
  %v3452 = vsel %vm3414, %v3369, 0.0
  %v3453 = vadd.f32 %v3451, %v3452
  %v3454 = vsel %vm3414, %v3370, 0.0
  %v3455 = vadd.f32 %v3453, %v3454
  %v3456 = vsel %vm3414, %v3371, 0.0
  %v3457 = vadd.f32 %v3455, %v3456
  %v3458 = vsel %vm3414, %v3372, 0.0
  %v3459 = vadd.f32 %v3457, %v3458
  %v3460 = vsel %vm3414, %v3373, 0.0
  %v3461 = vadd.f32 %v3459, %v3460
  %v3462 = vsel %vm3414, %v3374, 0.0
  %v3463 = vadd.f32 %v3461, %v3462
  %v3464 = vsel %vm3414, %v3375, 0.0
  %v3465 = vadd.f32 %v3463, %v3464
  %v3466 = vsel %vm3414, %v3376, 0.0
  %v3467 = vadd.f32 %v3465, %v3466
  %v3468 = vsel %vm3414, %v3377, 0.0
  %v3469 = vadd.f32 %v3467, %v3468
  %v3470 = vsel %vm3414, %v3378, 0.0
  %v3471 = vadd.f32 %v3469, %v3470
  %v3472 = vsel %vm3414, %v3379, 0.0
  %v3473 = vadd.f32 %v3471, %v3472
  %v3474 = vsel %vm3414, %v3380, 0.0
  %v3475 = vadd.f32 %v3473, %v3474
  %v3476 = vsel %vm3414, %v3381, 0.0
  %v3477 = vadd.f32 %v3475, %v3476
  %v3478 = vsel %vm3414, %v3382, 0.0
  %v3479 = vadd.f32 %v3477, %v3478
  %v3480 = vsel %vm3414, %v3383, 0.0
  %v3481 = vadd.f32 %v3479, %v3480
  %v3482 = vsel %vm3414, %v3384, 0.0
  %v3483 = vadd.f32 %v3481, %v3482
  %v3484 = vsel %vm3414, %v3385, 0.0
  %v3485 = vadd.f32 %v3483, %v3484
  %v3486 = vsel %vm3414, %v3386, 0.0
  %v3487 = vadd.f32 %v3485, %v3486
  %v3488 = vsel %vm3414, %v3387, 0.0
  %v3489 = vadd.f32 %v3487, %v3488
  %v3490 = vsel %vm3414, %v3388, 0.0
  %v3491 = vadd.f32 %v3489, %v3490
  %v3492 = vsel %vm3414, %v3389, 0.0
  %v3493 = vadd.f32 %v3491, %v3492
  %v3494 = vsel %vm3414, %v3390, 0.0
  %v3495 = vadd.f32 %v3493, %v3494
  %v3496 = vsel %vm3414, %v3391, 0.0
  %v3497 = vadd.f32 %v3495, %v3496
  %v3498 = vsel %vm3414, %v3392, 0.0
  %v3499 = vadd.f32 %v3497, %v3498
  %v3500 = vsel %vm3414, %v3393, 0.0
  %v3501 = vadd.f32 %v3499, %v3500
  %v3502 = vsel %vm3414, %v3394, 0.0
  %v3503 = vadd.f32 %v3501, %v3502
  %v3504 = vsel %vm3414, %v3395, 0.0
  %v3505 = vadd.f32 %v3503, %v3504
  %v3506 = vsel %vm3414, %v3396, 0.0
  %v3507 = vadd.f32 %v3505, %v3506
  %v3508 = vsel %vm3414, %v3397, 0.0
  %v3509 = vadd.f32 %v3507, %v3508
  %v3510 = vsel %vm3414, %v3398, 0.0
  %v3511 = vadd.f32 %v3509, %v3510
  %v3512 = vsel %vm3414, %v3399, 0.0
  %v3513 = vadd.f32 %v3511, %v3512
  %v3514 = vsel %vm3414, %v3400, 0.0
  %v3515 = vadd.f32 %v3513, %v3514
  %v3516 = vsel %vm3414, %v3401, 0.0
  %v3517 = vadd.f32 %v3515, %v3516
  %v3518 = vsel %vm3414, %v3402, 0.0
  %v3519 = vadd.f32 %v3517, %v3518
  %v3520 = vsel %vm3414, %v3403, 0.0
  %v3521 = vadd.f32 %v3519, %v3520
  %v3522 = vsel %vm3414, %v3404, 0.0
  %v3523 = vadd.f32 %v3521, %v3522
  %v3524 = vsel %vm3414, %v3405, 0.0
  %v3525 = vadd.f32 %v3523, %v3524
  %v3526 = vsel %vm3414, %v3406, 0.0
  %v3527 = vadd.f32 %v3525, %v3526
  %v3528 = vsel %vm3414, %v3407, 0.0
  %v3529 = vadd.f32 %v3527, %v3528
  %v3530 = vsel %vm3414, %v3408, 0.0
  %v3531 = vadd.f32 %v3529, %v3530
  %v3532 = vsel %vm3414, %v3409, 0.0
  %v3533 = vadd.f32 %v3531, %v3532
  %v3534 = vsel %vm3414, %v3410, 0.0
  %v3535 = vadd.f32 %v3533, %v3534
  %v3536 = vsel %vm3414, %v3411, 0.0
  %v3537 = vadd.f32 %v3535, %v3536
  %v3538 = vsel %vm3414, %v3412, 0.0
  %v3539 = vadd.f32 %v3537, %v3538
  %v3540 = vsel %vm3414, %v3413, 0.0
  %v3541 = vadd.f32 %v3539, %v3540
  %v3542 = vrot.slane %v3541, 4
  %v3543 = vadd.f32 %v3541, %v3542
  %v3544 = vrot.slane %v3543, 2
  %v3545 = vadd.f32 %v3543, %v3544
  %v3546 = vrot.slane %v3545, 1
  %v3547 = vadd.f32 %v3545, %v3546
  %v3548 = vadd.f32 %v3547, 0.0
  %v3549 = vld [vmem:[%s2] sm:$0x3]
  %v3550 = vadd.f32 %v3549, %v3347
  %vm3551 = vcmask 115712
  %3552 = vst.msk [vmem:[%s2] sm:$0x3] %vm3551, %v3550
  %v3553 = vld [vmem:[%s2 + $0x2] sm:$0x1]
  %v3554 = vadd.f32 %v3553, %v3548
  %vm3555 = vcmask 114688
  %3556 = vst.msk [vmem:[%s2 + $0x2] sm:$0x1] %vm3555, %v3554
  // Predicated region
  $region14: #{tpu_custom_call.1} parent=0 // pred_check
    _
  $region15: #{tpu_custom_call.1} parent=0 // pred_check_branch
    %3558 = sbr.rel (0) target = $region17
  $region16: #{tpu_custom_call.1} parent=0 // pred_region
    _
  $region17: #{tpu_custom_call.1} parent=0 // pred_fallthru
    _
  // Predicated region
  $region18: #{tpu_custom_call.1} parent=0 // pred_check
    _
  $region19: #{tpu_custom_call.1} parent=0 // pred_check_branch
    %3560 = sbr.rel (0) target = $region21
  $region20: #{tpu_custom_call.1} parent=0 // pred_region
    _
  $region21: #{tpu_custom_call.1} parent=0 // pred_fallthru
    _

// kernel: tpu_custom_call.1
$region0: #{tpu_custom_call.1}
  #allocation0 [shape = 'u32[]', space=smem, size = 0x4, offset = 0x4, fixed_abs, tag = 'smem constant byte address 0x4 - core index']
  #allocation1 [shape = 'u32[144,128]{1,0:T(1,128)}', space=vmem, size = 0x12000, scoped, tag = 'internal scratch']
  %s0 = inlined_call_operand.vmem [shape: f32[512,16], index: 0, kind: input, shape index: {}]
  %s1 = inlined_call_operand.vmem [shape: s32[512,1], index: 1, kind: input, shape index: {}]
  %s2 = inlined_call_operand.vmem [shape: f32[1,3,15], index: 2, kind: output, shape index: {}]
  %s3 = sld [smem:[#allocation0]]
  $region22: #{tpu_custom_call.1} parent=0
    _
  %s5 = ssub.s32 1, %s3
  %s6 = scalar_select 0, %s5, %s3
  // Predicated region
  $region2: #{tpu_custom_call.1} parent=0 // pred_check
    _
  $region3: #{tpu_custom_call.1} parent=0 // pred_check_branch
    %8 = sbr.rel (0) target = $region5
  $region4: #{tpu_custom_call.1} parent=0 // pred_region
    %s9 = sadd.s32 0, 0
    %s10 = smul.u32 64, %s9
    %p11 = scmp.lt.s32.totalorder %s10, 63
    %s12 = scalar_select %p11, %s10, 63
    %s13 = smul.addr %s12, 8
    %s14 = scalar_lea.vmem %s0, %s13
    %s15 = sadd.s32 0, 0
    %s16 = smul.u32 64, %s15
  $region5: #{tpu_custom_call.1} parent=0 // pred_fallthru
    _
  // Predicated region
  $region6: #{tpu_custom_call.1} parent=0 // pred_check
    _
  $region7: #{tpu_custom_call.1} parent=0 // pred_check_branch
    %18 = sbr.rel (0) target = $region9
  $region8: #{tpu_custom_call.1} parent=0 // pred_region
    %s19 = sadd.s32 0, 0
    %s20 = smul.u32 64, %s19
    %p21 = scmp.lt.s32.totalorder %s20, 63
    %s22 = scalar_select %p21, %s20, 63
    %s23 = smul.addr %s22, 8
    %s24 = scalar_lea.vmem %s1, %s23
    %s25 = sadd.s32 0, 0
    %s26 = smul.u32 64, %s25
  $region9: #{tpu_custom_call.1} parent=0 // pred_fallthru
    _
  %s27 = sadd.s32 0, 0
  %s28 = smul.u32 64, %s27
  %p29 = scmp.lt.s32.totalorder %s28, 63
  %s30 = scalar_select %p29, %s28, 63
  %s31 = smul.addr %s30, 8
  %s32 = scalar_lea.vmem %s0, %s31
  %s33 = sadd.s32 0, 0
  %s34 = smul.u32 64, %s33
  %p35 = scmp.lt.s32.totalorder %s34, 63
  %s36 = scalar_select %p35, %s34, 63
  %s37 = smul.addr %s36, 8
  %s38 = scalar_lea.vmem %s1, %s37
  %s39 = sadd.s32 0, 0
  %s40 = smul.u32 64, %s39
  %p41 = scmp.lt.s32.totalorder %s40, 63
  %s42 = scalar_select %p41, %s40, 63
  %s43 = smul.addr %s42, 8
  %s44 = scalar_lea.vmem %s0, %s43
  %s45 = sadd.s32 0, 0
  %s46 = smul.u32 64, %s45
  %s47 = sadd.s32 0, 0
  %s48 = smul.u32 64, %s47
  %p49 = scmp.lt.s32.totalorder %s48, 63
  %s50 = scalar_select %p49, %s48, 63
  %s51 = smul.addr %s50, 8
  %s52 = scalar_lea.vmem %s1, %s51
  %s53 = sadd.s32 0, 0
  %s54 = smul.u32 64, %s53
  %p55 = scmp.eq.s32.totalorder 0, 0
  // Predicated region
  $region10: #{tpu_custom_call.1} parent=0 // pred_check
    %p56 = pneg %p55
  $region11: #{tpu_custom_call.1} parent=0 // pred_check_branch
    %58 = sbr.rel (%p56) target = $region13
  $region12: #{tpu_custom_call.1} parent=0 // pred_region
    %vm59 = vcmask 116736
    %60 = vst.msk [vmem:[%s2] sm:$0x7] %vm59, 0.0
  $region13: #{tpu_custom_call.1} parent=0 // pred_fallthru
    _
  %s61 = sadd.s32 0, 0
  %s62 = smul.u32 %s61, 512
  %v63 = vlaneseq
  %v64 = vand.u32 %v63, 127
  %v65 = vlaneseq
  %v66 = vshrl.u32 %v65, 7
  %v67 = vadd.s32 %v66, 8
  %v68 = vadd.s32 %v66, 16
  %v69 = vadd.s32 %v66, 24
  %v70 = vadd.s32 %v66, 32
  %v71 = vadd.s32 %v66, 40
  %v72 = vadd.s32 %v66, 48
  %v73 = vadd.s32 %v66, 56
  %v74 = vadd.s32 %v66, 64
  %v75 = vadd.s32 %v66, 72
  %v76 = vadd.s32 %v66, 80
  %v77 = vadd.s32 %v66, 88
  %v78 = vadd.s32 %v66, 96
  %v79 = vadd.s32 %v66, 104
  %v80 = vadd.s32 %v66, 112
  %v81 = vadd.s32 %v66, 120
  %v82 = vadd.s32 %v66, 128
  %v83 = vadd.s32 %v66, 136
  %v84 = vadd.s32 %v66, 144
  %v85 = vadd.s32 %v66, 152
  %v86 = vadd.s32 %v66, 160
  %v87 = vadd.s32 %v66, 168
  %v88 = vadd.s32 %v66, 176
  %v89 = vadd.s32 %v66, 184
  %v90 = vadd.s32 %v66, 192
  %v91 = vadd.s32 %v66, 200
  %v92 = vadd.s32 %v66, 208
  %v93 = vadd.s32 %v66, 216
  %v94 = vadd.s32 %v66, 224
  %v95 = vadd.s32 %v66, 232
  %v96 = vadd.s32 %v66, 240
  %v97 = vadd.s32 %v66, 248
  %v98 = vadd.s32 %v66, 256
  %v99 = vadd.s32 %v66, 264
  %v100 = vadd.s32 %v66, 272
  %v101 = vadd.s32 %v66, 280
  %v102 = vadd.s32 %v66, 288
  %v103 = vadd.s32 %v66, 296
  %v104 = vadd.s32 %v66, 304
  %v105 = vadd.s32 %v66, 312
  %v106 = vadd.s32 %v66, 320
  %v107 = vadd.s32 %v66, 328
  %v108 = vadd.s32 %v66, 336
  %v109 = vadd.s32 %v66, 344
  %v110 = vadd.s32 %v66, 352
  %v111 = vadd.s32 %v66, 360
  %v112 = vadd.s32 %v66, 368
  %v113 = vadd.s32 %v66, 376
  %v114 = vadd.s32 %v66, 384
  %v115 = vadd.s32 %v66, 392
  %v116 = vadd.s32 %v66, 400
  %v117 = vadd.s32 %v66, 408
  %v118 = vadd.s32 %v66, 416
  %v119 = vadd.s32 %v66, 424
  %v120 = vadd.s32 %v66, 432
  %v121 = vadd.s32 %v66, 440
  %v122 = vadd.s32 %v66, 448
  %v123 = vadd.s32 %v66, 456
  %v124 = vadd.s32 %v66, 464
  %v125 = vadd.s32 %v66, 472
  %v126 = vadd.s32 %v66, 480
  %v127 = vadd.s32 %v66, 488
  %v128 = vadd.s32 %v66, 496
  %v129 = vadd.s32 %v66, 504
  %v130 = vcvt.s32.f32 %v64
  %v131 = vrcp.pop 15.0
  %v132 = vmul.f32 %v130, %v131
  %v133 = vadd.f32 %v130, 1.0
  %v134 = vmul.f32 %v133, %v131
  %v135 = vld [vmem:[%s44] sm:$0xff]
  %v136 = vld [vmem:[%s44 + $0x8] sm:$0xff]
  %v137 = vld [vmem:[%s44 + $0x10] sm:$0xff]
  %v138 = vld [vmem:[%s44 + $0x18] sm:$0xff]
  %v139 = vld [vmem:[%s44 + $0x20] sm:$0xff]
  %v140 = vld [vmem:[%s44 + $0x28] sm:$0xff]
  %v141 = vld [vmem:[%s44 + $0x30] sm:$0xff]
  %v142 = vld [vmem:[%s44 + $0x38] sm:$0xff]
  %v143 = vld [vmem:[%s44 + $0x40] sm:$0xff]
  %v144 = vld [vmem:[%s44 + $0x48] sm:$0xff]
  %v145 = vld [vmem:[%s44 + $0x50] sm:$0xff]
  %v146 = vld [vmem:[%s44 + $0x58] sm:$0xff]
  %v147 = vld [vmem:[%s44 + $0x60] sm:$0xff]
  %v148 = vld [vmem:[%s44 + $0x68] sm:$0xff]
  %v149 = vld [vmem:[%s44 + $0x70] sm:$0xff]
  %v150 = vld [vmem:[%s44 + $0x78] sm:$0xff]
  %v151 = vld [vmem:[%s44 + $0x80] sm:$0xff]
  %v152 = vld [vmem:[%s44 + $0x88] sm:$0xff]
  %v153 = vld [vmem:[%s44 + $0x90] sm:$0xff]
  %v154 = vld [vmem:[%s44 + $0x98] sm:$0xff]
  %v155 = vld [vmem:[%s44 + $0xa0] sm:$0xff]
  %v156 = vld [vmem:[%s44 + $0xa8] sm:$0xff]
  %v157 = vld [vmem:[%s44 + $0xb0] sm:$0xff]
  %v158 = vld [vmem:[%s44 + $0xb8] sm:$0xff]
  %v159 = vld [vmem:[%s44 + $0xc0] sm:$0xff]
  %v160 = vld [vmem:[%s44 + $0xc8] sm:$0xff]
  %v161 = vld [vmem:[%s44 + $0xd0] sm:$0xff]
  %v162 = vld [vmem:[%s44 + $0xd8] sm:$0xff]
  %v163 = vld [vmem:[%s44 + $0xe0] sm:$0xff]
  %v164 = vld [vmem:[%s44 + $0xe8] sm:$0xff]
  %v165 = vld [vmem:[%s44 + $0xf0] sm:$0xff]
  %v166 = vld [vmem:[%s44 + $0xf8] sm:$0xff]
  %v167 = vld [vmem:[%s44 + $0x100] sm:$0xff]
  %v168 = vld [vmem:[%s44 + $0x108] sm:$0xff]
  %v169 = vld [vmem:[%s44 + $0x110] sm:$0xff]
  %v170 = vld [vmem:[%s44 + $0x118] sm:$0xff]
  %v171 = vld [vmem:[%s44 + $0x120] sm:$0xff]
  %v172 = vld [vmem:[%s44 + $0x128] sm:$0xff]
  %v173 = vld [vmem:[%s44 + $0x130] sm:$0xff]
  %v174 = vld [vmem:[%s44 + $0x138] sm:$0xff]
  %v175 = vld [vmem:[%s44 + $0x140] sm:$0xff]
  %v176 = vld [vmem:[%s44 + $0x148] sm:$0xff]
  %v177 = vld [vmem:[%s44 + $0x150] sm:$0xff]
  %v178 = vld [vmem:[%s44 + $0x158] sm:$0xff]
  %v179 = vld [vmem:[%s44 + $0x160] sm:$0xff]
  %v180 = vld [vmem:[%s44 + $0x168] sm:$0xff]
  %v181 = vld [vmem:[%s44 + $0x170] sm:$0xff]
  %v182 = vld [vmem:[%s44 + $0x178] sm:$0xff]
  %v183 = vld [vmem:[%s44 + $0x180] sm:$0xff]
  %v184 = vld [vmem:[%s44 + $0x188] sm:$0xff]
  %v185 = vld [vmem:[%s44 + $0x190] sm:$0xff]
  %v186 = vld [vmem:[%s44 + $0x198] sm:$0xff]
  %v187 = vld [vmem:[%s44 + $0x1a0] sm:$0xff]
  %v188 = vld [vmem:[%s44 + $0x1a8] sm:$0xff]
  %v189 = vld [vmem:[%s44 + $0x1b0] sm:$0xff]
  %v190 = vld [vmem:[%s44 + $0x1b8] sm:$0xff]
  %v191 = vld [vmem:[%s44 + $0x1c0] sm:$0xff]
  %v192 = vld [vmem:[%s44 + $0x1c8] sm:$0xff]
  %v193 = vld [vmem:[%s44 + $0x1d0] sm:$0xff]
  %v194 = vld [vmem:[%s44 + $0x1d8] sm:$0xff]
  %v195 = vld [vmem:[%s44 + $0x1e0] sm:$0xff]
  %v196 = vld [vmem:[%s44 + $0x1e8] sm:$0xff]
  %v197 = vld [vmem:[%s44 + $0x1f0] sm:$0xff]
  %v198 = vld [vmem:[%s44 + $0x1f8] sm:$0xff]
  %v199 = vld [vmem:[%s52] sm:$0xff]
  %v200 = vld [vmem:[%s52 + $0x8] sm:$0xff]
  %v201 = vld [vmem:[%s52 + $0x10] sm:$0xff]
  %v202 = vld [vmem:[%s52 + $0x18] sm:$0xff]
  %v203 = vld [vmem:[%s52 + $0x20] sm:$0xff]
  %v204 = vld [vmem:[%s52 + $0x28] sm:$0xff]
  %v205 = vld [vmem:[%s52 + $0x30] sm:$0xff]
  %v206 = vld [vmem:[%s52 + $0x38] sm:$0xff]
  %v207 = vld [vmem:[%s52 + $0x40] sm:$0xff]
  %v208 = vld [vmem:[%s52 + $0x48] sm:$0xff]
  %v209 = vld [vmem:[%s52 + $0x50] sm:$0xff]
  %v210 = vld [vmem:[%s52 + $0x58] sm:$0xff]
  %v211 = vld [vmem:[%s52 + $0x60] sm:$0xff]
  %v212 = vld [vmem:[%s52 + $0x68] sm:$0xff]
  %v213 = vld [vmem:[%s52 + $0x70] sm:$0xff]
  %v214 = vld [vmem:[%s52 + $0x78] sm:$0xff]
  %v215 = vld [vmem:[%s52 + $0x80] sm:$0xff]
  %v216 = vld [vmem:[%s52 + $0x88] sm:$0xff]
  %v217 = vld [vmem:[%s52 + $0x90] sm:$0xff]
  %v218 = vld [vmem:[%s52 + $0x98] sm:$0xff]
  %v219 = vld [vmem:[%s52 + $0xa0] sm:$0xff]
  %v220 = vld [vmem:[%s52 + $0xa8] sm:$0xff]
  %v221 = vld [vmem:[%s52 + $0xb0] sm:$0xff]
  %v222 = vld [vmem:[%s52 + $0xb8] sm:$0xff]
  %v223 = vld [vmem:[%s52 + $0xc0] sm:$0xff]
  %v224 = vld [vmem:[%s52 + $0xc8] sm:$0xff]
  %v225 = vld [vmem:[%s52 + $0xd0] sm:$0xff]
  %v226 = vld [vmem:[%s52 + $0xd8] sm:$0xff]
  %v227 = vld [vmem:[%s52 + $0xe0] sm:$0xff]
  %v228 = vld [vmem:[%s52 + $0xe8] sm:$0xff]
  %v229 = vld [vmem:[%s52 + $0xf0] sm:$0xff]
  %v230 = vld [vmem:[%s52 + $0xf8] sm:$0xff]
  %v231 = vld [vmem:[%s52 + $0x100] sm:$0xff]
  %v232 = vld [vmem:[%s52 + $0x108] sm:$0xff]
  %v233 = vld [vmem:[%s52 + $0x110] sm:$0xff]
  %v234 = vld [vmem:[%s52 + $0x118] sm:$0xff]
  %v235 = vld [vmem:[%s52 + $0x120] sm:$0xff]
  %v236 = vld [vmem:[%s52 + $0x128] sm:$0xff]
  %v237 = vld [vmem:[%s52 + $0x130] sm:$0xff]
  %v238 = vld [vmem:[%s52 + $0x138] sm:$0xff]
  %v239 = vld [vmem:[%s52 + $0x140] sm:$0xff]
  %v240 = vld [vmem:[%s52 + $0x148] sm:$0xff]
  %v241 = vld [vmem:[%s52 + $0x150] sm:$0xff]
  %v242 = vld [vmem:[%s52 + $0x158] sm:$0xff]
  %v243 = vld [vmem:[%s52 + $0x160] sm:$0xff]
  %v244 = vld [vmem:[%s52 + $0x168] sm:$0xff]
  %v245 = vld [vmem:[%s52 + $0x170] sm:$0xff]
  %v246 = vld [vmem:[%s52 + $0x178] sm:$0xff]
  %v247 = vld [vmem:[%s52 + $0x180] sm:$0xff]
  %v248 = vld [vmem:[%s52 + $0x188] sm:$0xff]
  %v249 = vld [vmem:[%s52 + $0x190] sm:$0xff]
  %v250 = vld [vmem:[%s52 + $0x198] sm:$0xff]
  %v251 = vld [vmem:[%s52 + $0x1a0] sm:$0xff]
  %v252 = vld [vmem:[%s52 + $0x1a8] sm:$0xff]
  %v253 = vld [vmem:[%s52 + $0x1b0] sm:$0xff]
  %v254 = vld [vmem:[%s52 + $0x1b8] sm:$0xff]
  %v255 = vld [vmem:[%s52 + $0x1c0] sm:$0xff]
  %v256 = vld [vmem:[%s52 + $0x1c8] sm:$0xff]
  %v257 = vld [vmem:[%s52 + $0x1d0] sm:$0xff]
  %v258 = vld [vmem:[%s52 + $0x1d8] sm:$0xff]
  %v259 = vld [vmem:[%s52 + $0x1e0] sm:$0xff]
  %v260 = vld [vmem:[%s52 + $0x1e8] sm:$0xff]
  %v261 = vld [vmem:[%s52 + $0x1f0] sm:$0xff]
  %v262 = vld [vmem:[%s52 + $0x1f8] sm:$0xff]
  %vm263 = vcmask 130048
  %v264 = vsel %vm263, %v135, -inf
  %265 = vmax.xlane.f32.xlu0 %v264
  %v266 = vpop.xlane.xlu0 %265
  %v267 = vsel %vm263, %v136, -inf
  %268 = vmax.xlane.f32.xlu0 %v267
  %v269 = vpop.xlane.xlu0 %268
  %v270 = vsel %vm263, %v137, -inf
  %271 = vmax.xlane.f32.xlu0 %v270
  %v272 = vpop.xlane.xlu0 %271
  %v273 = vsel %vm263, %v138, -inf
  %274 = vmax.xlane.f32.xlu0 %v273
  %v275 = vpop.xlane.xlu0 %274
  %v276 = vsel %vm263, %v139, -inf
  %277 = vmax.xlane.f32.xlu0 %v276
  %v278 = vpop.xlane.xlu0 %277
  %v279 = vsel %vm263, %v140, -inf
  %280 = vmax.xlane.f32.xlu0 %v279
  %v281 = vpop.xlane.xlu0 %280
  %v282 = vsel %vm263, %v141, -inf
  %283 = vmax.xlane.f32.xlu0 %v282
  %v284 = vpop.xlane.xlu0 %283
  %v285 = vsel %vm263, %v142, -inf
  %286 = vmax.xlane.f32.xlu0 %v285
  %v287 = vpop.xlane.xlu0 %286
  %v288 = vsel %vm263, %v143, -inf
  %289 = vmax.xlane.f32.xlu0 %v288
  %v290 = vpop.xlane.xlu0 %289
  %v291 = vsel %vm263, %v144, -inf
  %292 = vmax.xlane.f32.xlu0 %v291
  %v293 = vpop.xlane.xlu0 %292
  %v294 = vsel %vm263, %v145, -inf
  %295 = vmax.xlane.f32.xlu0 %v294
  %v296 = vpop.xlane.xlu0 %295
  %v297 = vsel %vm263, %v146, -inf
  %298 = vmax.xlane.f32.xlu0 %v297
  %v299 = vpop.xlane.xlu0 %298
  %v300 = vsel %vm263, %v147, -inf
  %301 = vmax.xlane.f32.xlu0 %v300
  %v302 = vpop.xlane.xlu0 %301
  %v303 = vsel %vm263, %v148, -inf
  %304 = vmax.xlane.f32.xlu0 %v303
  %v305 = vpop.xlane.xlu0 %304
  %v306 = vsel %vm263, %v149, -inf
  %307 = vmax.xlane.f32.xlu0 %v306
  %v308 = vpop.xlane.xlu0 %307
  %v309 = vsel %vm263, %v150, -inf
  %310 = vmax.xlane.f32.xlu0 %v309
  %v311 = vpop.xlane.xlu0 %310
  %v312 = vsel %vm263, %v151, -inf
  %313 = vmax.xlane.f32.xlu0 %v312
  %v314 = vpop.xlane.xlu0 %313
  %v315 = vsel %vm263, %v152, -inf
  %316 = vmax.xlane.f32.xlu0 %v315
  %v317 = vpop.xlane.xlu0 %316
  %v318 = vsel %vm263, %v153, -inf
  %319 = vmax.xlane.f32.xlu0 %v318
  %v320 = vpop.xlane.xlu0 %319
  %v321 = vsel %vm263, %v154, -inf
  %322 = vmax.xlane.f32.xlu0 %v321
  %v323 = vpop.xlane.xlu0 %322
  %v324 = vsel %vm263, %v155, -inf
  %325 = vmax.xlane.f32.xlu0 %v324
  %v326 = vpop.xlane.xlu0 %325
  %v327 = vsel %vm263, %v156, -inf
  %328 = vmax.xlane.f32.xlu0 %v327
  %v329 = vpop.xlane.xlu0 %328
  %v330 = vsel %vm263, %v157, -inf
  %331 = vmax.xlane.f32.xlu0 %v330
  %v332 = vpop.xlane.xlu0 %331
  %v333 = vsel %vm263, %v158, -inf
  %334 = vmax.xlane.f32.xlu0 %v333
  %v335 = vpop.xlane.xlu0 %334
  %v336 = vsel %vm263, %v159, -inf
  %337 = vmax.xlane.f32.xlu0 %v336
  %v338 = vpop.xlane.xlu0 %337
  %v339 = vsel %vm263, %v160, -inf
  %340 = vmax.xlane.f32.xlu0 %v339
  %v341 = vpop.xlane.xlu0 %340
  %v342 = vsel %vm263, %v161, -inf
  %343 = vmax.xlane.f32.xlu0 %v342
  %v344 = vpop.xlane.xlu0 %343
  %v345 = vsel %vm263, %v162, -inf
  %346 = vmax.xlane.f32.xlu0 %v345
  %v347 = vpop.xlane.xlu0 %346
  %v348 = vsel %vm263, %v163, -inf
  %349 = vmax.xlane.f32.xlu0 %v348
  %v350 = vpop.xlane.xlu0 %349
  %v351 = vsel %vm263, %v164, -inf
  %352 = vmax.xlane.f32.xlu0 %v351
  %v353 = vpop.xlane.xlu0 %352
  %v354 = vsel %vm263, %v165, -inf
  %355 = vmax.xlane.f32.xlu0 %v354
  %v356 = vpop.xlane.xlu0 %355
  %v357 = vsel %vm263, %v166, -inf
  %358 = vmax.xlane.f32.xlu0 %v357
  %v359 = vpop.xlane.xlu0 %358
  %v360 = vsel %vm263, %v167, -inf
  %361 = vmax.xlane.f32.xlu0 %v360
  %v362 = vpop.xlane.xlu0 %361
  %v363 = vsel %vm263, %v168, -inf
  %364 = vmax.xlane.f32.xlu0 %v363
  %v365 = vpop.xlane.xlu0 %364
  %v366 = vsel %vm263, %v169, -inf
  %367 = vmax.xlane.f32.xlu0 %v366
  %v368 = vpop.xlane.xlu0 %367
  %v369 = vsel %vm263, %v170, -inf
  %370 = vmax.xlane.f32.xlu0 %v369
  %v371 = vpop.xlane.xlu0 %370
  %v372 = vsel %vm263, %v171, -inf
  %373 = vmax.xlane.f32.xlu0 %v372
  %v374 = vpop.xlane.xlu0 %373
  %v375 = vsel %vm263, %v172, -inf
  %376 = vmax.xlane.f32.xlu0 %v375
  %v377 = vpop.xlane.xlu0 %376
  %v378 = vsel %vm263, %v173, -inf
  %379 = vmax.xlane.f32.xlu0 %v378
  %v380 = vpop.xlane.xlu0 %379
  %v381 = vsel %vm263, %v174, -inf
  %382 = vmax.xlane.f32.xlu0 %v381
  %v383 = vpop.xlane.xlu0 %382
  %v384 = vsel %vm263, %v175, -inf
  %385 = vmax.xlane.f32.xlu0 %v384
  %v386 = vpop.xlane.xlu0 %385
  %v387 = vsel %vm263, %v176, -inf
  %388 = vmax.xlane.f32.xlu0 %v387
  %v389 = vpop.xlane.xlu0 %388
  %v390 = vsel %vm263, %v177, -inf
  %391 = vmax.xlane.f32.xlu0 %v390
  %v392 = vpop.xlane.xlu0 %391
  %v393 = vsel %vm263, %v178, -inf
  %394 = vmax.xlane.f32.xlu0 %v393
  %v395 = vpop.xlane.xlu0 %394
  %v396 = vsel %vm263, %v179, -inf
  %397 = vmax.xlane.f32.xlu0 %v396
  %v398 = vpop.xlane.xlu0 %397
  %v399 = vsel %vm263, %v180, -inf
  %400 = vmax.xlane.f32.xlu0 %v399
  %v401 = vpop.xlane.xlu0 %400
  %v402 = vsel %vm263, %v181, -inf
  %403 = vmax.xlane.f32.xlu0 %v402
  %v404 = vpop.xlane.xlu0 %403
  %v405 = vsel %vm263, %v182, -inf
  %406 = vmax.xlane.f32.xlu0 %v405
  %v407 = vpop.xlane.xlu0 %406
  %v408 = vsel %vm263, %v183, -inf
  %409 = vmax.xlane.f32.xlu0 %v408
  %v410 = vpop.xlane.xlu0 %409
  %v411 = vsel %vm263, %v184, -inf
  %412 = vmax.xlane.f32.xlu0 %v411
  %v413 = vpop.xlane.xlu0 %412
  %v414 = vsel %vm263, %v185, -inf
  %415 = vmax.xlane.f32.xlu0 %v414
  %v416 = vpop.xlane.xlu0 %415
  %v417 = vsel %vm263, %v186, -inf
  %418 = vmax.xlane.f32.xlu0 %v417
  %v419 = vpop.xlane.xlu0 %418
  %v420 = vsel %vm263, %v187, -inf
  %421 = vmax.xlane.f32.xlu0 %v420
  %v422 = vpop.xlane.xlu0 %421
  %v423 = vsel %vm263, %v188, -inf
  %424 = vmax.xlane.f32.xlu0 %v423
  %v425 = vpop.xlane.xlu0 %424
  %v426 = vsel %vm263, %v189, -inf
  %427 = vmax.xlane.f32.xlu0 %v426
  %v428 = vpop.xlane.xlu0 %427
  %v429 = vsel %vm263, %v190, -inf
  %430 = vmax.xlane.f32.xlu0 %v429
  %v431 = vpop.xlane.xlu0 %430
  %v432 = vsel %vm263, %v191, -inf
  %433 = vmax.xlane.f32.xlu0 %v432
  %v434 = vpop.xlane.xlu0 %433
  %v435 = vsel %vm263, %v192, -inf
  %436 = vmax.xlane.f32.xlu0 %v435
  %v437 = vpop.xlane.xlu0 %436
  %v438 = vsel %vm263, %v193, -inf
  %439 = vmax.xlane.f32.xlu0 %v438
  %v440 = vpop.xlane.xlu0 %439
  %v441 = vsel %vm263, %v194, -inf
  %442 = vmax.xlane.f32.xlu0 %v441
  %v443 = vpop.xlane.xlu0 %442
  %v444 = vsel %vm263, %v195, -inf
  %445 = vmax.xlane.f32.xlu0 %v444
  %v446 = vpop.xlane.xlu0 %445
  %v447 = vsel %vm263, %v196, -inf
  %448 = vmax.xlane.f32.xlu0 %v447
  %v449 = vpop.xlane.xlu0 %448
  %v450 = vsel %vm263, %v197, -inf
  %451 = vmax.xlane.f32.xlu0 %v450
  %v452 = vpop.xlane.xlu0 %451
  %v453 = vsel %vm263, %v198, -inf
  %454 = vmax.xlane.f32.xlu0 %v453
  %v455 = vpop.xlane.xlu0 %454
  %v456 = vsub.f32 %v135, %v266
  %v457 = vsub.f32 %v136, %v269
  %v458 = vsub.f32 %v137, %v272
  %v459 = vsub.f32 %v138, %v275
  %v460 = vsub.f32 %v139, %v278
  %v461 = vsub.f32 %v140, %v281
  %v462 = vsub.f32 %v141, %v284
  %v463 = vsub.f32 %v142, %v287
  %v464 = vsub.f32 %v143, %v290
  %v465 = vsub.f32 %v144, %v293
  %v466 = vsub.f32 %v145, %v296
  %v467 = vsub.f32 %v146, %v299
  %v468 = vsub.f32 %v147, %v302
  %v469 = vsub.f32 %v148, %v305
  %v470 = vsub.f32 %v149, %v308
  %v471 = vsub.f32 %v150, %v311
  %v472 = vsub.f32 %v151, %v314
  %v473 = vsub.f32 %v152, %v317
  %v474 = vsub.f32 %v153, %v320
  %v475 = vsub.f32 %v154, %v323
  %v476 = vsub.f32 %v155, %v326
  %v477 = vsub.f32 %v156, %v329
  %v478 = vsub.f32 %v157, %v332
  %v479 = vsub.f32 %v158, %v335
  %v480 = vsub.f32 %v159, %v338
  %v481 = vsub.f32 %v160, %v341
  %v482 = vsub.f32 %v161, %v344
  %v483 = vsub.f32 %v162, %v347
  %v484 = vsub.f32 %v163, %v350
  %v485 = vsub.f32 %v164, %v353
  %v486 = vsub.f32 %v165, %v356
  %v487 = vsub.f32 %v166, %v359
  %v488 = vsub.f32 %v167, %v362
  %v489 = vsub.f32 %v168, %v365
  %v490 = vsub.f32 %v169, %v368
  %v491 = vsub.f32 %v170, %v371
  %v492 = vsub.f32 %v171, %v374
  %v493 = vsub.f32 %v172, %v377
  %v494 = vsub.f32 %v173, %v380
  %v495 = vsub.f32 %v174, %v383
  %v496 = vsub.f32 %v175, %v386
  %v497 = vsub.f32 %v176, %v389
  %v498 = vsub.f32 %v177, %v392
  %v499 = vsub.f32 %v178, %v395
  %v500 = vsub.f32 %v179, %v398
  %v501 = vsub.f32 %v180, %v401
  %v502 = vsub.f32 %v181, %v404
  %v503 = vsub.f32 %v182, %v407
  %v504 = vsub.f32 %v183, %v410
  %v505 = vsub.f32 %v184, %v413
  %v506 = vsub.f32 %v185, %v416
  %v507 = vsub.f32 %v186, %v419
  %v508 = vsub.f32 %v187, %v422
  %v509 = vsub.f32 %v188, %v425
  %v510 = vsub.f32 %v189, %v428
  %v511 = vsub.f32 %v190, %v431
  %v512 = vsub.f32 %v191, %v434
  %v513 = vsub.f32 %v192, %v437
  %v514 = vsub.f32 %v193, %v440
  %v515 = vsub.f32 %v194, %v443
  %v516 = vsub.f32 %v195, %v446
  %v517 = vsub.f32 %v196, %v449
  %v518 = vsub.f32 %v197, %v452
  %v519 = vsub.f32 %v198, %v455
  %v520 = vmul.f32 %v456, 1.442695
  %v521 = vpow.pop %v520
  %v522 = vmul.f32 %v457, 1.442695
  %v523 = vpow.pop %v522
  %v524 = vmul.f32 %v458, 1.442695
  %v525 = vpow.pop %v524
  %v526 = vmul.f32 %v459, 1.442695
  %v527 = vpow.pop %v526
  %v528 = vmul.f32 %v460, 1.442695
  %v529 = vpow.pop %v528
  %v530 = vmul.f32 %v461, 1.442695
  %v531 = vpow.pop %v530
  %v532 = vmul.f32 %v462, 1.442695
  %v533 = vpow.pop %v532
  %v534 = vmul.f32 %v463, 1.442695
  %v535 = vpow.pop %v534
  %v536 = vmul.f32 %v464, 1.442695
  %v537 = vpow.pop %v536
  %v538 = vmul.f32 %v465, 1.442695
  %v539 = vpow.pop %v538
  %v540 = vmul.f32 %v466, 1.442695
  %v541 = vpow.pop %v540
  %v542 = vmul.f32 %v467, 1.442695
  %v543 = vpow.pop %v542
  %v544 = vmul.f32 %v468, 1.442695
  %v545 = vpow.pop %v544
  %v546 = vmul.f32 %v469, 1.442695
  %v547 = vpow.pop %v546
  %v548 = vmul.f32 %v470, 1.442695
  %v549 = vpow.pop %v548
  %v550 = vmul.f32 %v471, 1.442695
  %v551 = vpow.pop %v550
  %v552 = vmul.f32 %v472, 1.442695
  %v553 = vpow.pop %v552
  %v554 = vmul.f32 %v473, 1.442695
  %v555 = vpow.pop %v554
  %v556 = vmul.f32 %v474, 1.442695
  %v557 = vpow.pop %v556
  %v558 = vmul.f32 %v475, 1.442695
  %v559 = vpow.pop %v558
  %v560 = vmul.f32 %v476, 1.442695
  %v561 = vpow.pop %v560
  %v562 = vmul.f32 %v477, 1.442695
  %v563 = vpow.pop %v562
  %v564 = vmul.f32 %v478, 1.442695
  %v565 = vpow.pop %v564
  %v566 = vmul.f32 %v479, 1.442695
  %v567 = vpow.pop %v566
  %v568 = vmul.f32 %v480, 1.442695
  %v569 = vpow.pop %v568
  %v570 = vmul.f32 %v481, 1.442695
  %v571 = vpow.pop %v570
  %v572 = vmul.f32 %v482, 1.442695
  %v573 = vpow.pop %v572
  %v574 = vmul.f32 %v483, 1.442695
  %v575 = vpow.pop %v574
  %v576 = vmul.f32 %v484, 1.442695
  %v577 = vpow.pop %v576
  %v578 = vmul.f32 %v485, 1.442695
  %v579 = vpow.pop %v578
  %v580 = vmul.f32 %v486, 1.442695
  %v581 = vpow.pop %v580
  %v582 = vmul.f32 %v487, 1.442695
  %v583 = vpow.pop %v582
  %v584 = vmul.f32 %v488, 1.442695
  %v585 = vpow.pop %v584
  %v586 = vmul.f32 %v489, 1.442695
  %v587 = vpow.pop %v586
  %v588 = vmul.f32 %v490, 1.442695
  %v589 = vpow.pop %v588
  %v590 = vmul.f32 %v491, 1.442695
  %v591 = vpow.pop %v590
  %v592 = vmul.f32 %v492, 1.442695
  %v593 = vpow.pop %v592
  %v594 = vmul.f32 %v493, 1.442695
  %v595 = vpow.pop %v594
  %v596 = vmul.f32 %v494, 1.442695
  %v597 = vpow.pop %v596
  %v598 = vmul.f32 %v495, 1.442695
  %v599 = vpow.pop %v598
  %v600 = vmul.f32 %v496, 1.442695
  %v601 = vpow.pop %v600
  %v602 = vmul.f32 %v497, 1.442695
  %v603 = vpow.pop %v602
  %v604 = vmul.f32 %v498, 1.442695
  %v605 = vpow.pop %v604
  %v606 = vmul.f32 %v499, 1.442695
  %v607 = vpow.pop %v606
  %v608 = vmul.f32 %v500, 1.442695
  %v609 = vpow.pop %v608
  %v610 = vmul.f32 %v501, 1.442695
  %v611 = vpow.pop %v610
  %v612 = vmul.f32 %v502, 1.442695
  %v613 = vpow.pop %v612
  %v614 = vmul.f32 %v503, 1.442695
  %v615 = vpow.pop %v614
  %v616 = vmul.f32 %v504, 1.442695
  %v617 = vpow.pop %v616
  %v618 = vmul.f32 %v505, 1.442695
  %v619 = vpow.pop %v618
  %v620 = vmul.f32 %v506, 1.442695
  %v621 = vpow.pop %v620
  %v622 = vmul.f32 %v507, 1.442695
  %v623 = vpow.pop %v622
  %v624 = vmul.f32 %v508, 1.442695
  %v625 = vpow.pop %v624
  %v626 = vmul.f32 %v509, 1.442695
  %v627 = vpow.pop %v626
  %v628 = vmul.f32 %v510, 1.442695
  %v629 = vpow.pop %v628
  %v630 = vmul.f32 %v511, 1.442695
  %v631 = vpow.pop %v630
  %v632 = vmul.f32 %v512, 1.442695
  %v633 = vpow.pop %v632
  %v634 = vmul.f32 %v513, 1.442695
  %v635 = vpow.pop %v634
  %v636 = vmul.f32 %v514, 1.442695
  %v637 = vpow.pop %v636
  %v638 = vmul.f32 %v515, 1.442695
  %v639 = vpow.pop %v638
  %v640 = vmul.f32 %v516, 1.442695
  %v641 = vpow.pop %v640
  %v642 = vmul.f32 %v517, 1.442695
  %v643 = vpow.pop %v642
  %v644 = vmul.f32 %v518, 1.442695
  %v645 = vpow.pop %v644
  %v646 = vmul.f32 %v519, 1.442695
  %v647 = vpow.pop %v646
  %v648 = vsel %vm263, %v521, 0.0
  %649 = vadd.xlane.f32.xlu0 %v648
  %v650 = vpop.xlane.xlu0 %649
  %v651 = vsel %vm263, %v523, 0.0
  %652 = vadd.xlane.f32.xlu0 %v651
  %v653 = vpop.xlane.xlu0 %652
  %v654 = vsel %vm263, %v525, 0.0
  %655 = vadd.xlane.f32.xlu0 %v654
  %v656 = vpop.xlane.xlu0 %655
  %v657 = vsel %vm263, %v527, 0.0
  %658 = vadd.xlane.f32.xlu0 %v657
  %v659 = vpop.xlane.xlu0 %658
  %v660 = vsel %vm263, %v529, 0.0
  %661 = vadd.xlane.f32.xlu0 %v660
  %v662 = vpop.xlane.xlu0 %661
  %v663 = vsel %vm263, %v531, 0.0
  %664 = vadd.xlane.f32.xlu0 %v663
  %v665 = vpop.xlane.xlu0 %664
  %v666 = vsel %vm263, %v533, 0.0
  %667 = vadd.xlane.f32.xlu0 %v666
  %v668 = vpop.xlane.xlu0 %667
  %v669 = vsel %vm263, %v535, 0.0
  %670 = vadd.xlane.f32.xlu0 %v669
  %v671 = vpop.xlane.xlu0 %670
  %v672 = vsel %vm263, %v537, 0.0
  %673 = vadd.xlane.f32.xlu0 %v672
  %v674 = vpop.xlane.xlu0 %673
  %v675 = vsel %vm263, %v539, 0.0
  %676 = vadd.xlane.f32.xlu0 %v675
  %v677 = vpop.xlane.xlu0 %676
  %v678 = vsel %vm263, %v541, 0.0
  %679 = vadd.xlane.f32.xlu0 %v678
  %v680 = vpop.xlane.xlu0 %679
  %v681 = vsel %vm263, %v543, 0.0
  %682 = vadd.xlane.f32.xlu0 %v681
  %v683 = vpop.xlane.xlu0 %682
  %v684 = vsel %vm263, %v545, 0.0
  %685 = vadd.xlane.f32.xlu0 %v684
  %v686 = vpop.xlane.xlu0 %685
  %v687 = vsel %vm263, %v547, 0.0
  %688 = vadd.xlane.f32.xlu0 %v687
  %v689 = vpop.xlane.xlu0 %688
  %v690 = vsel %vm263, %v549, 0.0
  %691 = vadd.xlane.f32.xlu0 %v690
  %v692 = vpop.xlane.xlu0 %691
  %v693 = vsel %vm263, %v551, 0.0
  %694 = vadd.xlane.f32.xlu0 %v693
  %v695 = vpop.xlane.xlu0 %694
  %v696 = vsel %vm263, %v553, 0.0
  %697 = vadd.xlane.f32.xlu0 %v696
  %v698 = vpop.xlane.xlu0 %697
  %v699 = vsel %vm263, %v555, 0.0
  %700 = vadd.xlane.f32.xlu0 %v699
  %v701 = vpop.xlane.xlu0 %700
  %v702 = vsel %vm263, %v557, 0.0
  %703 = vadd.xlane.f32.xlu0 %v702
  %v704 = vpop.xlane.xlu0 %703
  %v705 = vsel %vm263, %v559, 0.0
  %706 = vadd.xlane.f32.xlu0 %v705
  %v707 = vpop.xlane.xlu0 %706
  %v708 = vsel %vm263, %v561, 0.0
  %709 = vadd.xlane.f32.xlu0 %v708
  %v710 = vpop.xlane.xlu0 %709
  %v711 = vsel %vm263, %v563, 0.0
  %712 = vadd.xlane.f32.xlu0 %v711
  %v713 = vpop.xlane.xlu0 %712
  %v714 = vsel %vm263, %v565, 0.0
  %715 = vadd.xlane.f32.xlu0 %v714
  %v716 = vpop.xlane.xlu0 %715
  %v717 = vsel %vm263, %v567, 0.0
  %718 = vadd.xlane.f32.xlu0 %v717
  %v719 = vpop.xlane.xlu0 %718
  %v720 = vsel %vm263, %v569, 0.0
  %721 = vadd.xlane.f32.xlu0 %v720
  %v722 = vpop.xlane.xlu0 %721
  %v723 = vsel %vm263, %v571, 0.0
  %724 = vadd.xlane.f32.xlu0 %v723
  %v725 = vpop.xlane.xlu0 %724
  %v726 = vsel %vm263, %v573, 0.0
  %727 = vadd.xlane.f32.xlu0 %v726
  %v728 = vpop.xlane.xlu0 %727
  %v729 = vsel %vm263, %v575, 0.0
  %730 = vadd.xlane.f32.xlu0 %v729
  %v731 = vpop.xlane.xlu0 %730
  %v732 = vsel %vm263, %v577, 0.0
  %733 = vadd.xlane.f32.xlu0 %v732
  %v734 = vpop.xlane.xlu0 %733
  %v735 = vsel %vm263, %v579, 0.0
  %736 = vadd.xlane.f32.xlu0 %v735
  %v737 = vpop.xlane.xlu0 %736
  %v738 = vsel %vm263, %v581, 0.0
  %739 = vadd.xlane.f32.xlu0 %v738
  %v740 = vpop.xlane.xlu0 %739
  %v741 = vsel %vm263, %v583, 0.0
  %742 = vadd.xlane.f32.xlu0 %v741
  %v743 = vpop.xlane.xlu0 %742
  %v744 = vsel %vm263, %v585, 0.0
  %745 = vadd.xlane.f32.xlu0 %v744
  %v746 = vpop.xlane.xlu0 %745
  %v747 = vsel %vm263, %v587, 0.0
  %748 = vadd.xlane.f32.xlu0 %v747
  %v749 = vpop.xlane.xlu0 %748
  %v750 = vsel %vm263, %v589, 0.0
  %751 = vadd.xlane.f32.xlu0 %v750
  %v752 = vpop.xlane.xlu0 %751
  %v753 = vsel %vm263, %v591, 0.0
  %754 = vadd.xlane.f32.xlu0 %v753
  %v755 = vpop.xlane.xlu0 %754
  %v756 = vsel %vm263, %v593, 0.0
  %757 = vadd.xlane.f32.xlu0 %v756
  %v758 = vpop.xlane.xlu0 %757
  %v759 = vsel %vm263, %v595, 0.0
  %760 = vadd.xlane.f32.xlu0 %v759
  %v761 = vpop.xlane.xlu0 %760
  %v762 = vsel %vm263, %v597, 0.0
  %763 = vadd.xlane.f32.xlu0 %v762
  %v764 = vpop.xlane.xlu0 %763
  %v765 = vsel %vm263, %v599, 0.0
  %766 = vadd.xlane.f32.xlu0 %v765
  %v767 = vpop.xlane.xlu0 %766
  %v768 = vsel %vm263, %v601, 0.0
  %769 = vadd.xlane.f32.xlu0 %v768
  %v770 = vpop.xlane.xlu0 %769
  %v771 = vsel %vm263, %v603, 0.0
  %772 = vadd.xlane.f32.xlu0 %v771
  %v773 = vpop.xlane.xlu0 %772
  %v774 = vsel %vm263, %v605, 0.0
  %775 = vadd.xlane.f32.xlu0 %v774
  %v776 = vpop.xlane.xlu0 %775
  %v777 = vsel %vm263, %v607, 0.0
  %778 = vadd.xlane.f32.xlu0 %v777
  %v779 = vpop.xlane.xlu0 %778
  %v780 = vsel %vm263, %v609, 0.0
  %781 = vadd.xlane.f32.xlu0 %v780
  %v782 = vpop.xlane.xlu0 %781
  %v783 = vsel %vm263, %v611, 0.0
  %784 = vadd.xlane.f32.xlu0 %v783
  %v785 = vpop.xlane.xlu0 %784
  %v786 = vsel %vm263, %v613, 0.0
  %787 = vadd.xlane.f32.xlu0 %v786
  %v788 = vpop.xlane.xlu0 %787
  %v789 = vsel %vm263, %v615, 0.0
  %790 = vadd.xlane.f32.xlu0 %v789
  %v791 = vpop.xlane.xlu0 %790
  %v792 = vsel %vm263, %v617, 0.0
  %793 = vadd.xlane.f32.xlu0 %v792
  %v794 = vpop.xlane.xlu0 %793
  %v795 = vsel %vm263, %v619, 0.0
  %796 = vadd.xlane.f32.xlu0 %v795
  %v797 = vpop.xlane.xlu0 %796
  %v798 = vsel %vm263, %v621, 0.0
  %799 = vadd.xlane.f32.xlu0 %v798
  %v800 = vpop.xlane.xlu0 %799
  %v801 = vsel %vm263, %v623, 0.0
  %802 = vadd.xlane.f32.xlu0 %v801
  %v803 = vpop.xlane.xlu0 %802
  %v804 = vsel %vm263, %v625, 0.0
  %805 = vadd.xlane.f32.xlu0 %v804
  %v806 = vpop.xlane.xlu0 %805
  %v807 = vsel %vm263, %v627, 0.0
  %808 = vadd.xlane.f32.xlu0 %v807
  %v809 = vpop.xlane.xlu0 %808
  %v810 = vsel %vm263, %v629, 0.0
  %811 = vadd.xlane.f32.xlu0 %v810
  %v812 = vpop.xlane.xlu0 %811
  %v813 = vsel %vm263, %v631, 0.0
  %814 = vadd.xlane.f32.xlu0 %v813
  %v815 = vpop.xlane.xlu0 %814
  %v816 = vsel %vm263, %v633, 0.0
  %817 = vadd.xlane.f32.xlu0 %v816
  %v818 = vpop.xlane.xlu0 %817
  %v819 = vsel %vm263, %v635, 0.0
  %820 = vadd.xlane.f32.xlu0 %v819
  %v821 = vpop.xlane.xlu0 %820
  %v822 = vsel %vm263, %v637, 0.0
  %823 = vadd.xlane.f32.xlu0 %v822
  %v824 = vpop.xlane.xlu0 %823
  %v825 = vsel %vm263, %v639, 0.0
  %826 = vadd.xlane.f32.xlu0 %v825
  %v827 = vpop.xlane.xlu0 %826
  %v828 = vsel %vm263, %v641, 0.0
  %829 = vadd.xlane.f32.xlu0 %v828
  %v830 = vpop.xlane.xlu0 %829
  %v831 = vsel %vm263, %v643, 0.0
  %832 = vadd.xlane.f32.xlu0 %v831
  %v833 = vpop.xlane.xlu0 %832
  %v834 = vsel %vm263, %v645, 0.0
  %835 = vadd.xlane.f32.xlu0 %v834
  %v836 = vpop.xlane.xlu0 %835
  %v837 = vsel %vm263, %v647, 0.0
  %838 = vadd.xlane.f32.xlu0 %v837
  %v839 = vpop.xlane.xlu0 %838
  %v840 = vrcp.pop %v650
  %v841 = vmul.f32 1.0, %v840
  %v842 = vrcp.pop %v653
  %v843 = vmul.f32 1.0, %v842
  %v844 = vrcp.pop %v656
  %v845 = vmul.f32 1.0, %v844
  %v846 = vrcp.pop %v659
  %v847 = vmul.f32 1.0, %v846
  %v848 = vrcp.pop %v662
  %v849 = vmul.f32 1.0, %v848
  %v850 = vrcp.pop %v665
  %v851 = vmul.f32 1.0, %v850
  %v852 = vrcp.pop %v668
  %v853 = vmul.f32 1.0, %v852
  %v854 = vrcp.pop %v671
  %v855 = vmul.f32 1.0, %v854
  %v856 = vrcp.pop %v674
  %v857 = vmul.f32 1.0, %v856
  %v858 = vrcp.pop %v677
  %v859 = vmul.f32 1.0, %v858
  %v860 = vrcp.pop %v680
  %v861 = vmul.f32 1.0, %v860
  %v862 = vrcp.pop %v683
  %v863 = vmul.f32 1.0, %v862
  %v864 = vrcp.pop %v686
  %v865 = vmul.f32 1.0, %v864
  %v866 = vrcp.pop %v689
  %v867 = vmul.f32 1.0, %v866
  %v868 = vrcp.pop %v692
  %v869 = vmul.f32 1.0, %v868
  %v870 = vrcp.pop %v695
  %v871 = vmul.f32 1.0, %v870
  %v872 = vrcp.pop %v698
  %v873 = vmul.f32 1.0, %v872
  %v874 = vrcp.pop %v701
  %v875 = vmul.f32 1.0, %v874
  %v876 = vrcp.pop %v704
  %v877 = vmul.f32 1.0, %v876
  %v878 = vrcp.pop %v707
  %v879 = vmul.f32 1.0, %v878
  %v880 = vrcp.pop %v710
  %v881 = vmul.f32 1.0, %v880
  %v882 = vrcp.pop %v713
  %v883 = vmul.f32 1.0, %v882
  %v884 = vrcp.pop %v716
  %v885 = vmul.f32 1.0, %v884
  %v886 = vrcp.pop %v719
  %v887 = vmul.f32 1.0, %v886
  %v888 = vrcp.pop %v722
  %v889 = vmul.f32 1.0, %v888
  %v890 = vrcp.pop %v725
  %v891 = vmul.f32 1.0, %v890
  %v892 = vrcp.pop %v728
  %v893 = vmul.f32 1.0, %v892
  %v894 = vrcp.pop %v731
  %v895 = vmul.f32 1.0, %v894
  %v896 = vrcp.pop %v734
  %v897 = vmul.f32 1.0, %v896
  %v898 = vrcp.pop %v737
  %v899 = vmul.f32 1.0, %v898
  %v900 = vrcp.pop %v740
  %v901 = vmul.f32 1.0, %v900
  %v902 = vrcp.pop %v743
  %v903 = vmul.f32 1.0, %v902
  %v904 = vrcp.pop %v746
  %v905 = vmul.f32 1.0, %v904
  %v906 = vrcp.pop %v749
  %v907 = vmul.f32 1.0, %v906
  %v908 = vrcp.pop %v752
  %v909 = vmul.f32 1.0, %v908
  %v910 = vrcp.pop %v755
  %v911 = vmul.f32 1.0, %v910
  %v912 = vrcp.pop %v758
  %v913 = vmul.f32 1.0, %v912
  %v914 = vrcp.pop %v761
  %v915 = vmul.f32 1.0, %v914
  %v916 = vrcp.pop %v764
  %v917 = vmul.f32 1.0, %v916
  %v918 = vrcp.pop %v767
  %v919 = vmul.f32 1.0, %v918
  %v920 = vrcp.pop %v770
  %v921 = vmul.f32 1.0, %v920
  %v922 = vrcp.pop %v773
  %v923 = vmul.f32 1.0, %v922
  %v924 = vrcp.pop %v776
  %v925 = vmul.f32 1.0, %v924
  %v926 = vrcp.pop %v779
  %v927 = vmul.f32 1.0, %v926
  %v928 = vrcp.pop %v782
  %v929 = vmul.f32 1.0, %v928
  %v930 = vrcp.pop %v785
  %v931 = vmul.f32 1.0, %v930
  %v932 = vrcp.pop %v788
  %v933 = vmul.f32 1.0, %v932
  %v934 = vrcp.pop %v791
  %v935 = vmul.f32 1.0, %v934
  %v936 = vrcp.pop %v794
  %v937 = vmul.f32 1.0, %v936
  %v938 = vrcp.pop %v797
  %v939 = vmul.f32 1.0, %v938
  %v940 = vrcp.pop %v800
  %v941 = vmul.f32 1.0, %v940
  %v942 = vrcp.pop %v803
  %v943 = vmul.f32 1.0, %v942
  %v944 = vrcp.pop %v806
  %v945 = vmul.f32 1.0, %v944
  %v946 = vrcp.pop %v809
  %v947 = vmul.f32 1.0, %v946
  %v948 = vrcp.pop %v812
  %v949 = vmul.f32 1.0, %v948
  %v950 = vrcp.pop %v815
  %v951 = vmul.f32 1.0, %v950
  %v952 = vrcp.pop %v818
  %v953 = vmul.f32 1.0, %v952
  %v954 = vrcp.pop %v821
  %v955 = vmul.f32 1.0, %v954
  %v956 = vrcp.pop %v824
  %v957 = vmul.f32 1.0, %v956
  %v958 = vrcp.pop %v827
  %v959 = vmul.f32 1.0, %v958
  %v960 = vrcp.pop %v830
  %v961 = vmul.f32 1.0, %v960
  %v962 = vrcp.pop %v833
  %v963 = vmul.f32 1.0, %v962
  %v964 = vrcp.pop %v836
  %v965 = vmul.f32 1.0, %v964
  %v966 = vrcp.pop %v839
  %v967 = vmul.f32 1.0, %v966
  %vm968 = vcmp.eq.f32.partialorder %v135, %v266
  %vm969 = vcmp.eq.f32.partialorder %v136, %v269
  %vm970 = vcmp.eq.f32.partialorder %v137, %v272
  %vm971 = vcmp.eq.f32.partialorder %v138, %v275
  %vm972 = vcmp.eq.f32.partialorder %v139, %v278
  %vm973 = vcmp.eq.f32.partialorder %v140, %v281
  %vm974 = vcmp.eq.f32.partialorder %v141, %v284
  %vm975 = vcmp.eq.f32.partialorder %v142, %v287
  %vm976 = vcmp.eq.f32.partialorder %v143, %v290
  %vm977 = vcmp.eq.f32.partialorder %v144, %v293
  %vm978 = vcmp.eq.f32.partialorder %v145, %v296
  %vm979 = vcmp.eq.f32.partialorder %v146, %v299
  %vm980 = vcmp.eq.f32.partialorder %v147, %v302
  %vm981 = vcmp.eq.f32.partialorder %v148, %v305
  %vm982 = vcmp.eq.f32.partialorder %v149, %v308
  %vm983 = vcmp.eq.f32.partialorder %v150, %v311
  %vm984 = vcmp.eq.f32.partialorder %v151, %v314
  %vm985 = vcmp.eq.f32.partialorder %v152, %v317
  %vm986 = vcmp.eq.f32.partialorder %v153, %v320
  %vm987 = vcmp.eq.f32.partialorder %v154, %v323
  %vm988 = vcmp.eq.f32.partialorder %v155, %v326
  %vm989 = vcmp.eq.f32.partialorder %v156, %v329
  %vm990 = vcmp.eq.f32.partialorder %v157, %v332
  %vm991 = vcmp.eq.f32.partialorder %v158, %v335
  %vm992 = vcmp.eq.f32.partialorder %v159, %v338
  %vm993 = vcmp.eq.f32.partialorder %v160, %v341
  %vm994 = vcmp.eq.f32.partialorder %v161, %v344
  %vm995 = vcmp.eq.f32.partialorder %v162, %v347
  %vm996 = vcmp.eq.f32.partialorder %v163, %v350
  %vm997 = vcmp.eq.f32.partialorder %v164, %v353
  %vm998 = vcmp.eq.f32.partialorder %v165, %v356
  %vm999 = vcmp.eq.f32.partialorder %v166, %v359
  %vm1000 = vcmp.eq.f32.partialorder %v167, %v362
  %vm1001 = vcmp.eq.f32.partialorder %v168, %v365
  %vm1002 = vcmp.eq.f32.partialorder %v169, %v368
  %vm1003 = vcmp.eq.f32.partialorder %v170, %v371
  %vm1004 = vcmp.eq.f32.partialorder %v171, %v374
  %vm1005 = vcmp.eq.f32.partialorder %v172, %v377
  %vm1006 = vcmp.eq.f32.partialorder %v173, %v380
  %vm1007 = vcmp.eq.f32.partialorder %v174, %v383
  %vm1008 = vcmp.eq.f32.partialorder %v175, %v386
  %vm1009 = vcmp.eq.f32.partialorder %v176, %v389
  %vm1010 = vcmp.eq.f32.partialorder %v177, %v392
  %vm1011 = vcmp.eq.f32.partialorder %v178, %v395
  %vm1012 = vcmp.eq.f32.partialorder %v179, %v398
  %vm1013 = vcmp.eq.f32.partialorder %v180, %v401
  %vm1014 = vcmp.eq.f32.partialorder %v181, %v404
  %vm1015 = vcmp.eq.f32.partialorder %v182, %v407
  %vm1016 = vcmp.eq.f32.partialorder %v183, %v410
  %vm1017 = vcmp.eq.f32.partialorder %v184, %v413
  %vm1018 = vcmp.eq.f32.partialorder %v185, %v416
  %vm1019 = vcmp.eq.f32.partialorder %v186, %v419
  %vm1020 = vcmp.eq.f32.partialorder %v187, %v422
  %vm1021 = vcmp.eq.f32.partialorder %v188, %v425
  %vm1022 = vcmp.eq.f32.partialorder %v189, %v428
  %vm1023 = vcmp.eq.f32.partialorder %v190, %v431
  %vm1024 = vcmp.eq.f32.partialorder %v191, %v434
  %vm1025 = vcmp.eq.f32.partialorder %v192, %v437
  %vm1026 = vcmp.eq.f32.partialorder %v193, %v440
  %vm1027 = vcmp.eq.f32.partialorder %v194, %v443
  %vm1028 = vcmp.eq.f32.partialorder %v195, %v446
  %vm1029 = vcmp.eq.f32.partialorder %v196, %v449
  %vm1030 = vcmp.eq.f32.partialorder %v197, %v452
  %vm1031 = vcmp.eq.f32.partialorder %v198, %v455
  %v1032 = vsel %vm968, %v64, 16
  %v1033 = vsel %vm969, %v64, 16
  %v1034 = vsel %vm970, %v64, 16
  %v1035 = vsel %vm971, %v64, 16
  %v1036 = vsel %vm972, %v64, 16
  %v1037 = vsel %vm973, %v64, 16
  %v1038 = vsel %vm974, %v64, 16
  %v1039 = vsel %vm975, %v64, 16
  %v1040 = vsel %vm976, %v64, 16
  %v1041 = vsel %vm977, %v64, 16
  %v1042 = vsel %vm978, %v64, 16
  %v1043 = vsel %vm979, %v64, 16
  %v1044 = vsel %vm980, %v64, 16
  %v1045 = vsel %vm981, %v64, 16
  %v1046 = vsel %vm982, %v64, 16
  %v1047 = vsel %vm983, %v64, 16
  %v1048 = vsel %vm984, %v64, 16
  %v1049 = vsel %vm985, %v64, 16
  %v1050 = vsel %vm986, %v64, 16
  %v1051 = vsel %vm987, %v64, 16
  %v1052 = vsel %vm988, %v64, 16
  %v1053 = vsel %vm989, %v64, 16
  %v1054 = vsel %vm990, %v64, 16
  %v1055 = vsel %vm991, %v64, 16
  %v1056 = vsel %vm992, %v64, 16
  %v1057 = vsel %vm993, %v64, 16
  %v1058 = vsel %vm994, %v64, 16
  %v1059 = vsel %vm995, %v64, 16
  %v1060 = vsel %vm996, %v64, 16
  %v1061 = vsel %vm997, %v64, 16
  %v1062 = vsel %vm998, %v64, 16
  %v1063 = vsel %vm999, %v64, 16
  %v1064 = vsel %vm1000, %v64, 16
  %v1065 = vsel %vm1001, %v64, 16
  %v1066 = vsel %vm1002, %v64, 16
  %v1067 = vsel %vm1003, %v64, 16
  %v1068 = vsel %vm1004, %v64, 16
  %v1069 = vsel %vm1005, %v64, 16
  %v1070 = vsel %vm1006, %v64, 16
  %v1071 = vsel %vm1007, %v64, 16
  %v1072 = vsel %vm1008, %v64, 16
  %v1073 = vsel %vm1009, %v64, 16
  %v1074 = vsel %vm1010, %v64, 16
  %v1075 = vsel %vm1011, %v64, 16
  %v1076 = vsel %vm1012, %v64, 16
  %v1077 = vsel %vm1013, %v64, 16
  %v1078 = vsel %vm1014, %v64, 16
  %v1079 = vsel %vm1015, %v64, 16
  %v1080 = vsel %vm1016, %v64, 16
  %v1081 = vsel %vm1017, %v64, 16
  %v1082 = vsel %vm1018, %v64, 16
  %v1083 = vsel %vm1019, %v64, 16
  %v1084 = vsel %vm1020, %v64, 16
  %v1085 = vsel %vm1021, %v64, 16
  %v1086 = vsel %vm1022, %v64, 16
  %v1087 = vsel %vm1023, %v64, 16
  %v1088 = vsel %vm1024, %v64, 16
  %v1089 = vsel %vm1025, %v64, 16
  %v1090 = vsel %vm1026, %v64, 16
  %v1091 = vsel %vm1027, %v64, 16
  %v1092 = vsel %vm1028, %v64, 16
  %v1093 = vsel %vm1029, %v64, 16
  %v1094 = vsel %vm1030, %v64, 16
  %v1095 = vsel %vm1031, %v64, 16
  %v1096 = vsel %vm263, %v1032, 2147483647
  %v1097 = vand.u32 %v1096, 65535
  %v1098 = vshra.s32 %v1096, 16
  %v1099 = vcvt.s32.f32 %v1097
  %v1100 = vcvt.s32.f32 %v1098
  %1101 = vmin.xlane.f32.xlu0 %v1100
  %v1102 = vpop.xlane.xlu0 %1101
  %vm1103 = vcmp.eq.f32.partialorder %v1100, %v1102
  %v1104 = vsel %vm1103, %v1099, inf
  %1105 = vmin.xlane.f32.xlu0 %v1104
  %v1106 = vpop.xlane.xlu0 %1105
  %v1107 = vcvt.f32.s32 %v1106
  %v1108 = vcvt.f32.s32 %v1102
  %v1109 = vshll.u32 %v1108, 16
  %v1110 = vadd.s32 %v1109, %v1107
  %v1111 = vsel %vm263, %v1033, 2147483647
  %v1112 = vand.u32 %v1111, 65535
  %v1113 = vshra.s32 %v1111, 16
  %v1114 = vcvt.s32.f32 %v1112
  %v1115 = vcvt.s32.f32 %v1113
  %1116 = vmin.xlane.f32.xlu0 %v1115
  %v1117 = vpop.xlane.xlu0 %1116
  %vm1118 = vcmp.eq.f32.partialorder %v1115, %v1117
  %v1119 = vsel %vm1118, %v1114, inf
  %1120 = vmin.xlane.f32.xlu0 %v1119
  %v1121 = vpop.xlane.xlu0 %1120
  %v1122 = vcvt.f32.s32 %v1121
  %v1123 = vcvt.f32.s32 %v1117
  %v1124 = vshll.u32 %v1123, 16
  %v1125 = vadd.s32 %v1124, %v1122
  %v1126 = vsel %vm263, %v1034, 2147483647
  %v1127 = vand.u32 %v1126, 65535
  %v1128 = vshra.s32 %v1126, 16
  %v1129 = vcvt.s32.f32 %v1127
  %v1130 = vcvt.s32.f32 %v1128
  %1131 = vmin.xlane.f32.xlu0 %v1130
  %v1132 = vpop.xlane.xlu0 %1131
  %vm1133 = vcmp.eq.f32.partialorder %v1130, %v1132
  %v1134 = vsel %vm1133, %v1129, inf
  %1135 = vmin.xlane.f32.xlu0 %v1134
  %v1136 = vpop.xlane.xlu0 %1135
  %v1137 = vcvt.f32.s32 %v1136
  %v1138 = vcvt.f32.s32 %v1132
  %v1139 = vshll.u32 %v1138, 16
  %v1140 = vadd.s32 %v1139, %v1137
  %v1141 = vsel %vm263, %v1035, 2147483647
  %v1142 = vand.u32 %v1141, 65535
  %v1143 = vshra.s32 %v1141, 16
  %v1144 = vcvt.s32.f32 %v1142
  %v1145 = vcvt.s32.f32 %v1143
  %1146 = vmin.xlane.f32.xlu0 %v1145
  %v1147 = vpop.xlane.xlu0 %1146
  %vm1148 = vcmp.eq.f32.partialorder %v1145, %v1147
  %v1149 = vsel %vm1148, %v1144, inf
  %1150 = vmin.xlane.f32.xlu0 %v1149
  %v1151 = vpop.xlane.xlu0 %1150
  %v1152 = vcvt.f32.s32 %v1151
  %v1153 = vcvt.f32.s32 %v1147
  %v1154 = vshll.u32 %v1153, 16
  %v1155 = vadd.s32 %v1154, %v1152
  %v1156 = vsel %vm263, %v1036, 2147483647
  %v1157 = vand.u32 %v1156, 65535
  %v1158 = vshra.s32 %v1156, 16
  %v1159 = vcvt.s32.f32 %v1157
  %v1160 = vcvt.s32.f32 %v1158
  %1161 = vmin.xlane.f32.xlu0 %v1160
  %v1162 = vpop.xlane.xlu0 %1161
  %vm1163 = vcmp.eq.f32.partialorder %v1160, %v1162
  %v1164 = vsel %vm1163, %v1159, inf
  %1165 = vmin.xlane.f32.xlu0 %v1164
  %v1166 = vpop.xlane.xlu0 %1165
  %v1167 = vcvt.f32.s32 %v1166
  %v1168 = vcvt.f32.s32 %v1162
  %v1169 = vshll.u32 %v1168, 16
  %v1170 = vadd.s32 %v1169, %v1167
  %v1171 = vsel %vm263, %v1037, 2147483647
  %v1172 = vand.u32 %v1171, 65535
  %v1173 = vshra.s32 %v1171, 16
  %v1174 = vcvt.s32.f32 %v1172
  %v1175 = vcvt.s32.f32 %v1173
  %1176 = vmin.xlane.f32.xlu0 %v1175
  %v1177 = vpop.xlane.xlu0 %1176
  %vm1178 = vcmp.eq.f32.partialorder %v1175, %v1177
  %v1179 = vsel %vm1178, %v1174, inf
  %1180 = vmin.xlane.f32.xlu0 %v1179
  %v1181 = vpop.xlane.xlu0 %1180
  %v1182 = vcvt.f32.s32 %v1181
  %v1183 = vcvt.f32.s32 %v1177
  %v1184 = vshll.u32 %v1183, 16
  %v1185 = vadd.s32 %v1184, %v1182
  %v1186 = vsel %vm263, %v1038, 2147483647
  %v1187 = vand.u32 %v1186, 65535
  %v1188 = vshra.s32 %v1186, 16
  %v1189 = vcvt.s32.f32 %v1187
  %v1190 = vcvt.s32.f32 %v1188
  %1191 = vmin.xlane.f32.xlu0 %v1190
  %v1192 = vpop.xlane.xlu0 %1191
  %vm1193 = vcmp.eq.f32.partialorder %v1190, %v1192
  %v1194 = vsel %vm1193, %v1189, inf
  %1195 = vmin.xlane.f32.xlu0 %v1194
  %v1196 = vpop.xlane.xlu0 %1195
  %v1197 = vcvt.f32.s32 %v1196
  %v1198 = vcvt.f32.s32 %v1192
  %v1199 = vshll.u32 %v1198, 16
  %v1200 = vadd.s32 %v1199, %v1197
  %v1201 = vsel %vm263, %v1039, 2147483647
  %v1202 = vand.u32 %v1201, 65535
  %v1203 = vshra.s32 %v1201, 16
  %v1204 = vcvt.s32.f32 %v1202
  %v1205 = vcvt.s32.f32 %v1203
  %1206 = vmin.xlane.f32.xlu0 %v1205
  %v1207 = vpop.xlane.xlu0 %1206
  %vm1208 = vcmp.eq.f32.partialorder %v1205, %v1207
  %v1209 = vsel %vm1208, %v1204, inf
  %1210 = vmin.xlane.f32.xlu0 %v1209
  %v1211 = vpop.xlane.xlu0 %1210
  %v1212 = vcvt.f32.s32 %v1211
  %v1213 = vcvt.f32.s32 %v1207
  %v1214 = vshll.u32 %v1213, 16
  %v1215 = vadd.s32 %v1214, %v1212
  %v1216 = vsel %vm263, %v1040, 2147483647
  %v1217 = vand.u32 %v1216, 65535
  %v1218 = vshra.s32 %v1216, 16
  %v1219 = vcvt.s32.f32 %v1217
  %v1220 = vcvt.s32.f32 %v1218
  %1221 = vmin.xlane.f32.xlu0 %v1220
  %v1222 = vpop.xlane.xlu0 %1221
  %vm1223 = vcmp.eq.f32.partialorder %v1220, %v1222
  %v1224 = vsel %vm1223, %v1219, inf
  %1225 = vmin.xlane.f32.xlu0 %v1224
  %v1226 = vpop.xlane.xlu0 %1225
  %v1227 = vcvt.f32.s32 %v1226
  %v1228 = vcvt.f32.s32 %v1222
  %v1229 = vshll.u32 %v1228, 16
  %v1230 = vadd.s32 %v1229, %v1227
  %v1231 = vsel %vm263, %v1041, 2147483647
  %v1232 = vand.u32 %v1231, 65535
  %v1233 = vshra.s32 %v1231, 16
  %v1234 = vcvt.s32.f32 %v1232
  %v1235 = vcvt.s32.f32 %v1233
  %1236 = vmin.xlane.f32.xlu0 %v1235
  %v1237 = vpop.xlane.xlu0 %1236
  %vm1238 = vcmp.eq.f32.partialorder %v1235, %v1237
  %v1239 = vsel %vm1238, %v1234, inf
  %1240 = vmin.xlane.f32.xlu0 %v1239
  %v1241 = vpop.xlane.xlu0 %1240
  %v1242 = vcvt.f32.s32 %v1241
  %v1243 = vcvt.f32.s32 %v1237
  %v1244 = vshll.u32 %v1243, 16
  %v1245 = vadd.s32 %v1244, %v1242
  %v1246 = vsel %vm263, %v1042, 2147483647
  %v1247 = vand.u32 %v1246, 65535
  %v1248 = vshra.s32 %v1246, 16
  %v1249 = vcvt.s32.f32 %v1247
  %v1250 = vcvt.s32.f32 %v1248
  %1251 = vmin.xlane.f32.xlu0 %v1250
  %v1252 = vpop.xlane.xlu0 %1251
  %vm1253 = vcmp.eq.f32.partialorder %v1250, %v1252
  %v1254 = vsel %vm1253, %v1249, inf
  %1255 = vmin.xlane.f32.xlu0 %v1254
  %v1256 = vpop.xlane.xlu0 %1255
  %v1257 = vcvt.f32.s32 %v1256
  %v1258 = vcvt.f32.s32 %v1252
  %v1259 = vshll.u32 %v1258, 16
  %v1260 = vadd.s32 %v1259, %v1257
  %v1261 = vsel %vm263, %v1043, 2147483647
  %v1262 = vand.u32 %v1261, 65535
  %v1263 = vshra.s32 %v1261, 16
  %v1264 = vcvt.s32.f32 %v1262
  %v1265 = vcvt.s32.f32 %v1263
  %1266 = vmin.xlane.f32.xlu0 %v1265
  %v1267 = vpop.xlane.xlu0 %1266
  %vm1268 = vcmp.eq.f32.partialorder %v1265, %v1267
  %v1269 = vsel %vm1268, %v1264, inf
  %1270 = vmin.xlane.f32.xlu0 %v1269
  %v1271 = vpop.xlane.xlu0 %1270
  %v1272 = vcvt.f32.s32 %v1271
  %v1273 = vcvt.f32.s32 %v1267
  %v1274 = vshll.u32 %v1273, 16
  %v1275 = vadd.s32 %v1274, %v1272
  %v1276 = vsel %vm263, %v1044, 2147483647
  %v1277 = vand.u32 %v1276, 65535
  %v1278 = vshra.s32 %v1276, 16
  %v1279 = vcvt.s32.f32 %v1277
  %v1280 = vcvt.s32.f32 %v1278
  %1281 = vmin.xlane.f32.xlu0 %v1280
  %v1282 = vpop.xlane.xlu0 %1281
  %vm1283 = vcmp.eq.f32.partialorder %v1280, %v1282
  %v1284 = vsel %vm1283, %v1279, inf
  %1285 = vmin.xlane.f32.xlu0 %v1284
  %v1286 = vpop.xlane.xlu0 %1285
  %v1287 = vcvt.f32.s32 %v1286
  %v1288 = vcvt.f32.s32 %v1282
  %v1289 = vshll.u32 %v1288, 16
  %v1290 = vadd.s32 %v1289, %v1287
  %v1291 = vsel %vm263, %v1045, 2147483647
  %v1292 = vand.u32 %v1291, 65535
  %v1293 = vshra.s32 %v1291, 16
  %v1294 = vcvt.s32.f32 %v1292
  %v1295 = vcvt.s32.f32 %v1293
  %1296 = vmin.xlane.f32.xlu0 %v1295
  %v1297 = vpop.xlane.xlu0 %1296
  %vm1298 = vcmp.eq.f32.partialorder %v1295, %v1297
  %v1299 = vsel %vm1298, %v1294, inf
  %1300 = vmin.xlane.f32.xlu0 %v1299
  %v1301 = vpop.xlane.xlu0 %1300
  %v1302 = vcvt.f32.s32 %v1301
  %v1303 = vcvt.f32.s32 %v1297
  %v1304 = vshll.u32 %v1303, 16
  %v1305 = vadd.s32 %v1304, %v1302
  %v1306 = vsel %vm263, %v1046, 2147483647
  %v1307 = vand.u32 %v1306, 65535
  %v1308 = vshra.s32 %v1306, 16
  %v1309 = vcvt.s32.f32 %v1307
  %v1310 = vcvt.s32.f32 %v1308
  %1311 = vmin.xlane.f32.xlu0 %v1310
  %v1312 = vpop.xlane.xlu0 %1311
  %vm1313 = vcmp.eq.f32.partialorder %v1310, %v1312
  %v1314 = vsel %vm1313, %v1309, inf
  %1315 = vmin.xlane.f32.xlu0 %v1314
  %v1316 = vpop.xlane.xlu0 %1315
  %v1317 = vcvt.f32.s32 %v1316
  %v1318 = vcvt.f32.s32 %v1312
  %v1319 = vshll.u32 %v1318, 16
  %v1320 = vadd.s32 %v1319, %v1317
  %v1321 = vsel %vm263, %v1047, 2147483647
  %v1322 = vand.u32 %v1321, 65535
  %v1323 = vshra.s32 %v1321, 16
  %v1324 = vcvt.s32.f32 %v1322
  %v1325 = vcvt.s32.f32 %v1323
  %1326 = vmin.xlane.f32.xlu0 %v1325
  %v1327 = vpop.xlane.xlu0 %1326
  %vm1328 = vcmp.eq.f32.partialorder %v1325, %v1327
  %v1329 = vsel %vm1328, %v1324, inf
  %1330 = vmin.xlane.f32.xlu0 %v1329
  %v1331 = vpop.xlane.xlu0 %1330
  %v1332 = vcvt.f32.s32 %v1331
  %v1333 = vcvt.f32.s32 %v1327
  %v1334 = vshll.u32 %v1333, 16
  %v1335 = vadd.s32 %v1334, %v1332
  %v1336 = vsel %vm263, %v1048, 2147483647
  %v1337 = vand.u32 %v1336, 65535
  %v1338 = vshra.s32 %v1336, 16
  %v1339 = vcvt.s32.f32 %v1337
  %v1340 = vcvt.s32.f32 %v1338
  %1341 = vmin.xlane.f32.xlu0 %v1340
  %v1342 = vpop.xlane.xlu0 %1341
  %vm1343 = vcmp.eq.f32.partialorder %v1340, %v1342
  %v1344 = vsel %vm1343, %v1339, inf
  %1345 = vmin.xlane.f32.xlu0 %v1344
  %v1346 = vpop.xlane.xlu0 %1345
  %v1347 = vcvt.f32.s32 %v1346
  %v1348 = vcvt.f32.s32 %v1342
  %v1349 = vshll.u32 %v1348, 16
  %v1350 = vadd.s32 %v1349, %v1347
  %v1351 = vsel %vm263, %v1049, 2147483647
  %v1352 = vand.u32 %v1351, 65535
  %v1353 = vshra.s32 %v1351, 16
  %v1354 = vcvt.s32.f32 %v1352
  %v1355 = vcvt.s32.f32 %v1353
  %1356 = vmin.xlane.f32.xlu0 %v1355
  %v1357 = vpop.xlane.xlu0 %1356
  %vm1358 = vcmp.eq.f32.partialorder %v1355, %v1357
  %v1359 = vsel %vm1358, %v1354, inf
  %1360 = vmin.xlane.f32.xlu0 %v1359
  %v1361 = vpop.xlane.xlu0 %1360
  %v1362 = vcvt.f32.s32 %v1361
  %v1363 = vcvt.f32.s32 %v1357
  %v1364 = vshll.u32 %v1363, 16
  %v1365 = vadd.s32 %v1364, %v1362
  %v1366 = vsel %vm263, %v1050, 2147483647
  %v1367 = vand.u32 %v1366, 65535
  %v1368 = vshra.s32 %v1366, 16
  %v1369 = vcvt.s32.f32 %v1367
  %v1370 = vcvt.s32.f32 %v1368
  %1371 = vmin.xlane.f32.xlu0 %v1370
  %v1372 = vpop.xlane.xlu0 %1371
  %vm1373 = vcmp.eq.f32.partialorder %v1370, %v1372
  %v1374 = vsel %vm1373, %v1369, inf
  %1375 = vmin.xlane.f32.xlu0 %v1374
  %v1376 = vpop.xlane.xlu0 %1375
  %v1377 = vcvt.f32.s32 %v1376
  %v1378 = vcvt.f32.s32 %v1372
  %v1379 = vshll.u32 %v1378, 16
  %v1380 = vadd.s32 %v1379, %v1377
  %v1381 = vsel %vm263, %v1051, 2147483647
  %v1382 = vand.u32 %v1381, 65535
  %v1383 = vshra.s32 %v1381, 16
  %v1384 = vcvt.s32.f32 %v1382
  %v1385 = vcvt.s32.f32 %v1383
  %1386 = vmin.xlane.f32.xlu0 %v1385
  %v1387 = vpop.xlane.xlu0 %1386
  %vm1388 = vcmp.eq.f32.partialorder %v1385, %v1387
  %v1389 = vsel %vm1388, %v1384, inf
  %1390 = vmin.xlane.f32.xlu0 %v1389
  %v1391 = vpop.xlane.xlu0 %1390
  %v1392 = vcvt.f32.s32 %v1391
  %v1393 = vcvt.f32.s32 %v1387
  %v1394 = vshll.u32 %v1393, 16
  %v1395 = vadd.s32 %v1394, %v1392
  %v1396 = vsel %vm263, %v1052, 2147483647
  %v1397 = vand.u32 %v1396, 65535
  %v1398 = vshra.s32 %v1396, 16
  %v1399 = vcvt.s32.f32 %v1397
  %v1400 = vcvt.s32.f32 %v1398
  %1401 = vmin.xlane.f32.xlu0 %v1400
  %v1402 = vpop.xlane.xlu0 %1401
  %vm1403 = vcmp.eq.f32.partialorder %v1400, %v1402
  %v1404 = vsel %vm1403, %v1399, inf
  %1405 = vmin.xlane.f32.xlu0 %v1404
  %v1406 = vpop.xlane.xlu0 %1405
  %v1407 = vcvt.f32.s32 %v1406
  %v1408 = vcvt.f32.s32 %v1402
  %v1409 = vshll.u32 %v1408, 16
  %v1410 = vadd.s32 %v1409, %v1407
  %v1411 = vsel %vm263, %v1053, 2147483647
  %v1412 = vand.u32 %v1411, 65535
  %v1413 = vshra.s32 %v1411, 16
  %v1414 = vcvt.s32.f32 %v1412
  %v1415 = vcvt.s32.f32 %v1413
  %1416 = vmin.xlane.f32.xlu0 %v1415
  %v1417 = vpop.xlane.xlu0 %1416
  %vm1418 = vcmp.eq.f32.partialorder %v1415, %v1417
  %v1419 = vsel %vm1418, %v1414, inf
  %1420 = vmin.xlane.f32.xlu0 %v1419
  %v1421 = vpop.xlane.xlu0 %1420
  %v1422 = vcvt.f32.s32 %v1421
  %v1423 = vcvt.f32.s32 %v1417
  %v1424 = vshll.u32 %v1423, 16
  %v1425 = vadd.s32 %v1424, %v1422
  %v1426 = vsel %vm263, %v1054, 2147483647
  %v1427 = vand.u32 %v1426, 65535
  %v1428 = vshra.s32 %v1426, 16
  %v1429 = vcvt.s32.f32 %v1427
  %v1430 = vcvt.s32.f32 %v1428
  %1431 = vmin.xlane.f32.xlu0 %v1430
  %v1432 = vpop.xlane.xlu0 %1431
  %vm1433 = vcmp.eq.f32.partialorder %v1430, %v1432
  %v1434 = vsel %vm1433, %v1429, inf
  %1435 = vmin.xlane.f32.xlu0 %v1434
  %v1436 = vpop.xlane.xlu0 %1435
  %v1437 = vcvt.f32.s32 %v1436
  %v1438 = vcvt.f32.s32 %v1432
  %v1439 = vshll.u32 %v1438, 16
  %v1440 = vadd.s32 %v1439, %v1437
  %v1441 = vsel %vm263, %v1055, 2147483647
  %v1442 = vand.u32 %v1441, 65535
  %v1443 = vshra.s32 %v1441, 16
  %v1444 = vcvt.s32.f32 %v1442
  %v1445 = vcvt.s32.f32 %v1443
  %1446 = vmin.xlane.f32.xlu0 %v1445
  %v1447 = vpop.xlane.xlu0 %1446
  %vm1448 = vcmp.eq.f32.partialorder %v1445, %v1447
  %v1449 = vsel %vm1448, %v1444, inf
  %1450 = vmin.xlane.f32.xlu0 %v1449
  %v1451 = vpop.xlane.xlu0 %1450
  %v1452 = vcvt.f32.s32 %v1451
  %v1453 = vcvt.f32.s32 %v1447
  %v1454 = vshll.u32 %v1453, 16
  %v1455 = vadd.s32 %v1454, %v1452
  %v1456 = vsel %vm263, %v1056, 2147483647
  %v1457 = vand.u32 %v1456, 65535
  %v1458 = vshra.s32 %v1456, 16
  %v1459 = vcvt.s32.f32 %v1457
  %v1460 = vcvt.s32.f32 %v1458
  %1461 = vmin.xlane.f32.xlu0 %v1460
  %v1462 = vpop.xlane.xlu0 %1461
  %vm1463 = vcmp.eq.f32.partialorder %v1460, %v1462
  %v1464 = vsel %vm1463, %v1459, inf
  %1465 = vmin.xlane.f32.xlu0 %v1464
  %v1466 = vpop.xlane.xlu0 %1465
  %v1467 = vcvt.f32.s32 %v1466
  %v1468 = vcvt.f32.s32 %v1462
  %v1469 = vshll.u32 %v1468, 16
  %v1470 = vadd.s32 %v1469, %v1467
  %v1471 = vsel %vm263, %v1057, 2147483647
  %v1472 = vand.u32 %v1471, 65535
  %v1473 = vshra.s32 %v1471, 16
  %v1474 = vcvt.s32.f32 %v1472
  %v1475 = vcvt.s32.f32 %v1473
  %1476 = vmin.xlane.f32.xlu0 %v1475
  %v1477 = vpop.xlane.xlu0 %1476
  %vm1478 = vcmp.eq.f32.partialorder %v1475, %v1477
  %v1479 = vsel %vm1478, %v1474, inf
  %1480 = vmin.xlane.f32.xlu0 %v1479
  %v1481 = vpop.xlane.xlu0 %1480
  %v1482 = vcvt.f32.s32 %v1481
  %v1483 = vcvt.f32.s32 %v1477
  %v1484 = vshll.u32 %v1483, 16
  %v1485 = vadd.s32 %v1484, %v1482
  %v1486 = vsel %vm263, %v1058, 2147483647
  %v1487 = vand.u32 %v1486, 65535
  %v1488 = vshra.s32 %v1486, 16
  %v1489 = vcvt.s32.f32 %v1487
  %v1490 = vcvt.s32.f32 %v1488
  %1491 = vmin.xlane.f32.xlu0 %v1490
  %v1492 = vpop.xlane.xlu0 %1491
  %vm1493 = vcmp.eq.f32.partialorder %v1490, %v1492
  %v1494 = vsel %vm1493, %v1489, inf
  %1495 = vmin.xlane.f32.xlu0 %v1494
  %v1496 = vpop.xlane.xlu0 %1495
  %v1497 = vcvt.f32.s32 %v1496
  %v1498 = vcvt.f32.s32 %v1492
  %v1499 = vshll.u32 %v1498, 16
  %v1500 = vadd.s32 %v1499, %v1497
  %v1501 = vsel %vm263, %v1059, 2147483647
  %v1502 = vand.u32 %v1501, 65535
  %v1503 = vshra.s32 %v1501, 16
  %v1504 = vcvt.s32.f32 %v1502
  %v1505 = vcvt.s32.f32 %v1503
  %1506 = vmin.xlane.f32.xlu0 %v1505
  %v1507 = vpop.xlane.xlu0 %1506
  %vm1508 = vcmp.eq.f32.partialorder %v1505, %v1507
  %v1509 = vsel %vm1508, %v1504, inf
  %1510 = vmin.xlane.f32.xlu0 %v1509
  %v1511 = vpop.xlane.xlu0 %1510
  %v1512 = vcvt.f32.s32 %v1511
  %v1513 = vcvt.f32.s32 %v1507
  %v1514 = vshll.u32 %v1513, 16
  %v1515 = vadd.s32 %v1514, %v1512
  %v1516 = vsel %vm263, %v1060, 2147483647
  %v1517 = vand.u32 %v1516, 65535
  %v1518 = vshra.s32 %v1516, 16
  %v1519 = vcvt.s32.f32 %v1517
  %v1520 = vcvt.s32.f32 %v1518
  %1521 = vmin.xlane.f32.xlu0 %v1520
  %v1522 = vpop.xlane.xlu0 %1521
  %vm1523 = vcmp.eq.f32.partialorder %v1520, %v1522
  %v1524 = vsel %vm1523, %v1519, inf
  %1525 = vmin.xlane.f32.xlu0 %v1524
  %v1526 = vpop.xlane.xlu0 %1525
  %v1527 = vcvt.f32.s32 %v1526
  %v1528 = vcvt.f32.s32 %v1522
  %v1529 = vshll.u32 %v1528, 16
  %v1530 = vadd.s32 %v1529, %v1527
  %v1531 = vsel %vm263, %v1061, 2147483647
  %v1532 = vand.u32 %v1531, 65535
  %v1533 = vshra.s32 %v1531, 16
  %v1534 = vcvt.s32.f32 %v1532
  %v1535 = vcvt.s32.f32 %v1533
  %1536 = vmin.xlane.f32.xlu0 %v1535
  %v1537 = vpop.xlane.xlu0 %1536
  %vm1538 = vcmp.eq.f32.partialorder %v1535, %v1537
  %v1539 = vsel %vm1538, %v1534, inf
  %1540 = vmin.xlane.f32.xlu0 %v1539
  %v1541 = vpop.xlane.xlu0 %1540
  %v1542 = vcvt.f32.s32 %v1541
  %v1543 = vcvt.f32.s32 %v1537
  %v1544 = vshll.u32 %v1543, 16
  %v1545 = vadd.s32 %v1544, %v1542
  %v1546 = vsel %vm263, %v1062, 2147483647
  %v1547 = vand.u32 %v1546, 65535
  %v1548 = vshra.s32 %v1546, 16
  %v1549 = vcvt.s32.f32 %v1547
  %v1550 = vcvt.s32.f32 %v1548
  %1551 = vmin.xlane.f32.xlu0 %v1550
  %v1552 = vpop.xlane.xlu0 %1551
  %vm1553 = vcmp.eq.f32.partialorder %v1550, %v1552
  %v1554 = vsel %vm1553, %v1549, inf
  %1555 = vmin.xlane.f32.xlu0 %v1554
  %v1556 = vpop.xlane.xlu0 %1555
  %v1557 = vcvt.f32.s32 %v1556
  %v1558 = vcvt.f32.s32 %v1552
  %v1559 = vshll.u32 %v1558, 16
  %v1560 = vadd.s32 %v1559, %v1557
  %v1561 = vsel %vm263, %v1063, 2147483647
  %v1562 = vand.u32 %v1561, 65535
  %v1563 = vshra.s32 %v1561, 16
  %v1564 = vcvt.s32.f32 %v1562
  %v1565 = vcvt.s32.f32 %v1563
  %1566 = vmin.xlane.f32.xlu0 %v1565
  %v1567 = vpop.xlane.xlu0 %1566
  %vm1568 = vcmp.eq.f32.partialorder %v1565, %v1567
  %v1569 = vsel %vm1568, %v1564, inf
  %1570 = vmin.xlane.f32.xlu0 %v1569
  %v1571 = vpop.xlane.xlu0 %1570
  %v1572 = vcvt.f32.s32 %v1571
  %v1573 = vcvt.f32.s32 %v1567
  %v1574 = vshll.u32 %v1573, 16
  %v1575 = vadd.s32 %v1574, %v1572
  %v1576 = vsel %vm263, %v1064, 2147483647
  %v1577 = vand.u32 %v1576, 65535
  %v1578 = vshra.s32 %v1576, 16
  %v1579 = vcvt.s32.f32 %v1577
  %v1580 = vcvt.s32.f32 %v1578
  %1581 = vmin.xlane.f32.xlu0 %v1580
  %v1582 = vpop.xlane.xlu0 %1581
  %vm1583 = vcmp.eq.f32.partialorder %v1580, %v1582
  %v1584 = vsel %vm1583, %v1579, inf
  %1585 = vmin.xlane.f32.xlu0 %v1584
  %v1586 = vpop.xlane.xlu0 %1585
  %v1587 = vcvt.f32.s32 %v1586
  %v1588 = vcvt.f32.s32 %v1582
  %v1589 = vshll.u32 %v1588, 16
  %v1590 = vadd.s32 %v1589, %v1587
  %v1591 = vsel %vm263, %v1065, 2147483647
  %v1592 = vand.u32 %v1591, 65535
  %v1593 = vshra.s32 %v1591, 16
  %v1594 = vcvt.s32.f32 %v1592
  %v1595 = vcvt.s32.f32 %v1593
  %1596 = vmin.xlane.f32.xlu0 %v1595
  %v1597 = vpop.xlane.xlu0 %1596
  %vm1598 = vcmp.eq.f32.partialorder %v1595, %v1597
  %v1599 = vsel %vm1598, %v1594, inf
  %1600 = vmin.xlane.f32.xlu0 %v1599
  %v1601 = vpop.xlane.xlu0 %1600
  %v1602 = vcvt.f32.s32 %v1601
  %v1603 = vcvt.f32.s32 %v1597
  %v1604 = vshll.u32 %v1603, 16
  %v1605 = vadd.s32 %v1604, %v1602
  %v1606 = vsel %vm263, %v1066, 2147483647
  %v1607 = vand.u32 %v1606, 65535
  %v1608 = vshra.s32 %v1606, 16
  %v1609 = vcvt.s32.f32 %v1607
  %v1610 = vcvt.s32.f32 %v1608
  %1611 = vmin.xlane.f32.xlu0 %v1610
  %v1612 = vpop.xlane.xlu0 %1611
  %vm1613 = vcmp.eq.f32.partialorder %v1610, %v1612
  %v1614 = vsel %vm1613, %v1609, inf
  %1615 = vmin.xlane.f32.xlu0 %v1614
  %v1616 = vpop.xlane.xlu0 %1615
  %v1617 = vcvt.f32.s32 %v1616
  %v1618 = vcvt.f32.s32 %v1612
  %v1619 = vshll.u32 %v1618, 16
  %v1620 = vadd.s32 %v1619, %v1617
  %v1621 = vsel %vm263, %v1067, 2147483647
  %v1622 = vand.u32 %v1621, 65535
  %v1623 = vshra.s32 %v1621, 16
  %v1624 = vcvt.s32.f32 %v1622
  %v1625 = vcvt.s32.f32 %v1623
  %1626 = vmin.xlane.f32.xlu0 %v1625
  %v1627 = vpop.xlane.xlu0 %1626
  %vm1628 = vcmp.eq.f32.partialorder %v1625, %v1627
  %v1629 = vsel %vm1628, %v1624, inf
  %1630 = vmin.xlane.f32.xlu0 %v1629
  %v1631 = vpop.xlane.xlu0 %1630
  %v1632 = vcvt.f32.s32 %v1631
  %v1633 = vcvt.f32.s32 %v1627
  %v1634 = vshll.u32 %v1633, 16
  %v1635 = vadd.s32 %v1634, %v1632
  %v1636 = vsel %vm263, %v1068, 2147483647
  %v1637 = vand.u32 %v1636, 65535
  %v1638 = vshra.s32 %v1636, 16
  %v1639 = vcvt.s32.f32 %v1637
  %v1640 = vcvt.s32.f32 %v1638
  %1641 = vmin.xlane.f32.xlu0 %v1640
  %v1642 = vpop.xlane.xlu0 %1641
  %vm1643 = vcmp.eq.f32.partialorder %v1640, %v1642
  %v1644 = vsel %vm1643, %v1639, inf
  %1645 = vmin.xlane.f32.xlu0 %v1644
  %v1646 = vpop.xlane.xlu0 %1645
  %v1647 = vcvt.f32.s32 %v1646
  %v1648 = vcvt.f32.s32 %v1642
  %v1649 = vshll.u32 %v1648, 16
  %v1650 = vadd.s32 %v1649, %v1647
  %v1651 = vsel %vm263, %v1069, 2147483647
  %v1652 = vand.u32 %v1651, 65535
  %v1653 = vshra.s32 %v1651, 16
  %v1654 = vcvt.s32.f32 %v1652
  %v1655 = vcvt.s32.f32 %v1653
  %1656 = vmin.xlane.f32.xlu0 %v1655
  %v1657 = vpop.xlane.xlu0 %1656
  %vm1658 = vcmp.eq.f32.partialorder %v1655, %v1657
  %v1659 = vsel %vm1658, %v1654, inf
  %1660 = vmin.xlane.f32.xlu0 %v1659
  %v1661 = vpop.xlane.xlu0 %1660
  %v1662 = vcvt.f32.s32 %v1661
  %v1663 = vcvt.f32.s32 %v1657
  %v1664 = vshll.u32 %v1663, 16
  %v1665 = vadd.s32 %v1664, %v1662
  %v1666 = vsel %vm263, %v1070, 2147483647
  %v1667 = vand.u32 %v1666, 65535
  %v1668 = vshra.s32 %v1666, 16
  %v1669 = vcvt.s32.f32 %v1667
  %v1670 = vcvt.s32.f32 %v1668
  %1671 = vmin.xlane.f32.xlu0 %v1670
  %v1672 = vpop.xlane.xlu0 %1671
  %vm1673 = vcmp.eq.f32.partialorder %v1670, %v1672
  %v1674 = vsel %vm1673, %v1669, inf
  %1675 = vmin.xlane.f32.xlu0 %v1674
  %v1676 = vpop.xlane.xlu0 %1675
  %v1677 = vcvt.f32.s32 %v1676
  %v1678 = vcvt.f32.s32 %v1672
  %v1679 = vshll.u32 %v1678, 16
  %v1680 = vadd.s32 %v1679, %v1677
  %v1681 = vsel %vm263, %v1071, 2147483647
  %v1682 = vand.u32 %v1681, 65535
  %v1683 = vshra.s32 %v1681, 16
  %v1684 = vcvt.s32.f32 %v1682
  %v1685 = vcvt.s32.f32 %v1683
  %1686 = vmin.xlane.f32.xlu0 %v1685
  %v1687 = vpop.xlane.xlu0 %1686
  %vm1688 = vcmp.eq.f32.partialorder %v1685, %v1687
  %v1689 = vsel %vm1688, %v1684, inf
  %1690 = vmin.xlane.f32.xlu0 %v1689
  %v1691 = vpop.xlane.xlu0 %1690
  %v1692 = vcvt.f32.s32 %v1691
  %v1693 = vcvt.f32.s32 %v1687
  %v1694 = vshll.u32 %v1693, 16
  %v1695 = vadd.s32 %v1694, %v1692
  %v1696 = vsel %vm263, %v1072, 2147483647
  %v1697 = vand.u32 %v1696, 65535
  %v1698 = vshra.s32 %v1696, 16
  %v1699 = vcvt.s32.f32 %v1697
  %v1700 = vcvt.s32.f32 %v1698
  %1701 = vmin.xlane.f32.xlu0 %v1700
  %v1702 = vpop.xlane.xlu0 %1701
  %vm1703 = vcmp.eq.f32.partialorder %v1700, %v1702
  %v1704 = vsel %vm1703, %v1699, inf
  %1705 = vmin.xlane.f32.xlu0 %v1704
  %v1706 = vpop.xlane.xlu0 %1705
  %v1707 = vcvt.f32.s32 %v1706
  %v1708 = vcvt.f32.s32 %v1702
  %v1709 = vshll.u32 %v1708, 16
  %v1710 = vadd.s32 %v1709, %v1707
  %v1711 = vsel %vm263, %v1073, 2147483647
  %v1712 = vand.u32 %v1711, 65535
  %v1713 = vshra.s32 %v1711, 16
  %v1714 = vcvt.s32.f32 %v1712
  %v1715 = vcvt.s32.f32 %v1713
  %1716 = vmin.xlane.f32.xlu0 %v1715
  %v1717 = vpop.xlane.xlu0 %1716
  %vm1718 = vcmp.eq.f32.partialorder %v1715, %v1717
  %v1719 = vsel %vm1718, %v1714, inf
  %1720 = vmin.xlane.f32.xlu0 %v1719
  %v1721 = vpop.xlane.xlu0 %1720
  %v1722 = vcvt.f32.s32 %v1721
  %v1723 = vcvt.f32.s32 %v1717
  %v1724 = vshll.u32 %v1723, 16
  %v1725 = vadd.s32 %v1724, %v1722
  %v1726 = vsel %vm263, %v1074, 2147483647
  %v1727 = vand.u32 %v1726, 65535
  %v1728 = vshra.s32 %v1726, 16
  %v1729 = vcvt.s32.f32 %v1727
  %v1730 = vcvt.s32.f32 %v1728
  %1731 = vmin.xlane.f32.xlu0 %v1730
  %v1732 = vpop.xlane.xlu0 %1731
  %vm1733 = vcmp.eq.f32.partialorder %v1730, %v1732
  %v1734 = vsel %vm1733, %v1729, inf
  %1735 = vmin.xlane.f32.xlu0 %v1734
  %v1736 = vpop.xlane.xlu0 %1735
  %v1737 = vcvt.f32.s32 %v1736
  %v1738 = vcvt.f32.s32 %v1732
  %v1739 = vshll.u32 %v1738, 16
  %v1740 = vadd.s32 %v1739, %v1737
  %v1741 = vsel %vm263, %v1075, 2147483647
  %v1742 = vand.u32 %v1741, 65535
  %v1743 = vshra.s32 %v1741, 16
  %v1744 = vcvt.s32.f32 %v1742
  %v1745 = vcvt.s32.f32 %v1743
  %1746 = vmin.xlane.f32.xlu0 %v1745
  %v1747 = vpop.xlane.xlu0 %1746
  %vm1748 = vcmp.eq.f32.partialorder %v1745, %v1747
  %v1749 = vsel %vm1748, %v1744, inf
  %1750 = vmin.xlane.f32.xlu0 %v1749
  %v1751 = vpop.xlane.xlu0 %1750
  %v1752 = vcvt.f32.s32 %v1751
  %v1753 = vcvt.f32.s32 %v1747
  %v1754 = vshll.u32 %v1753, 16
  %v1755 = vadd.s32 %v1754, %v1752
  %v1756 = vsel %vm263, %v1076, 2147483647
  %v1757 = vand.u32 %v1756, 65535
  %v1758 = vshra.s32 %v1756, 16
  %v1759 = vcvt.s32.f32 %v1757
  %v1760 = vcvt.s32.f32 %v1758
  %1761 = vmin.xlane.f32.xlu0 %v1760
  %v1762 = vpop.xlane.xlu0 %1761
  %vm1763 = vcmp.eq.f32.partialorder %v1760, %v1762
  %v1764 = vsel %vm1763, %v1759, inf
  %1765 = vmin.xlane.f32.xlu0 %v1764
  %v1766 = vpop.xlane.xlu0 %1765
  %v1767 = vcvt.f32.s32 %v1766
  %v1768 = vcvt.f32.s32 %v1762
  %v1769 = vshll.u32 %v1768, 16
  %v1770 = vadd.s32 %v1769, %v1767
  %v1771 = vsel %vm263, %v1077, 2147483647
  %v1772 = vand.u32 %v1771, 65535
  %v1773 = vshra.s32 %v1771, 16
  %v1774 = vcvt.s32.f32 %v1772
  %v1775 = vcvt.s32.f32 %v1773
  %1776 = vmin.xlane.f32.xlu0 %v1775
  %v1777 = vpop.xlane.xlu0 %1776
  %vm1778 = vcmp.eq.f32.partialorder %v1775, %v1777
  %v1779 = vsel %vm1778, %v1774, inf
  %1780 = vmin.xlane.f32.xlu0 %v1779
  %v1781 = vpop.xlane.xlu0 %1780
  %v1782 = vcvt.f32.s32 %v1781
  %v1783 = vcvt.f32.s32 %v1777
  %v1784 = vshll.u32 %v1783, 16
  %v1785 = vadd.s32 %v1784, %v1782
  %v1786 = vsel %vm263, %v1078, 2147483647
  %v1787 = vand.u32 %v1786, 65535
  %v1788 = vshra.s32 %v1786, 16
  %v1789 = vcvt.s32.f32 %v1787
  %v1790 = vcvt.s32.f32 %v1788
  %1791 = vmin.xlane.f32.xlu0 %v1790
  %v1792 = vpop.xlane.xlu0 %1791
  %vm1793 = vcmp.eq.f32.partialorder %v1790, %v1792
  %v1794 = vsel %vm1793, %v1789, inf
  %1795 = vmin.xlane.f32.xlu0 %v1794
  %v1796 = vpop.xlane.xlu0 %1795
  %v1797 = vcvt.f32.s32 %v1796
  %v1798 = vcvt.f32.s32 %v1792
  %v1799 = vshll.u32 %v1798, 16
  %v1800 = vadd.s32 %v1799, %v1797
  %v1801 = vsel %vm263, %v1079, 2147483647
  %v1802 = vand.u32 %v1801, 65535
  %v1803 = vshra.s32 %v1801, 16
  %v1804 = vcvt.s32.f32 %v1802
  %v1805 = vcvt.s32.f32 %v1803
  %1806 = vmin.xlane.f32.xlu0 %v1805
  %v1807 = vpop.xlane.xlu0 %1806
  %vm1808 = vcmp.eq.f32.partialorder %v1805, %v1807
  %v1809 = vsel %vm1808, %v1804, inf
  %1810 = vmin.xlane.f32.xlu0 %v1809
  %v1811 = vpop.xlane.xlu0 %1810
  %v1812 = vcvt.f32.s32 %v1811
  %v1813 = vcvt.f32.s32 %v1807
  %v1814 = vshll.u32 %v1813, 16
  %v1815 = vadd.s32 %v1814, %v1812
  %v1816 = vsel %vm263, %v1080, 2147483647
  %v1817 = vand.u32 %v1816, 65535
  %v1818 = vshra.s32 %v1816, 16
  %v1819 = vcvt.s32.f32 %v1817
  %v1820 = vcvt.s32.f32 %v1818
  %1821 = vmin.xlane.f32.xlu0 %v1820
  %v1822 = vpop.xlane.xlu0 %1821
  %vm1823 = vcmp.eq.f32.partialorder %v1820, %v1822
  %v1824 = vsel %vm1823, %v1819, inf
  %1825 = vmin.xlane.f32.xlu0 %v1824
  %v1826 = vpop.xlane.xlu0 %1825
  %v1827 = vcvt.f32.s32 %v1826
  %v1828 = vcvt.f32.s32 %v1822
  %v1829 = vshll.u32 %v1828, 16
  %v1830 = vadd.s32 %v1829, %v1827
  %v1831 = vsel %vm263, %v1081, 2147483647
  %v1832 = vand.u32 %v1831, 65535
  %v1833 = vshra.s32 %v1831, 16
  %v1834 = vcvt.s32.f32 %v1832
  %v1835 = vcvt.s32.f32 %v1833
  %1836 = vmin.xlane.f32.xlu0 %v1835
  %v1837 = vpop.xlane.xlu0 %1836
  %vm1838 = vcmp.eq.f32.partialorder %v1835, %v1837
  %v1839 = vsel %vm1838, %v1834, inf
  %1840 = vmin.xlane.f32.xlu0 %v1839
  %v1841 = vpop.xlane.xlu0 %1840
  %v1842 = vcvt.f32.s32 %v1841
  %v1843 = vcvt.f32.s32 %v1837
  %v1844 = vshll.u32 %v1843, 16
  %v1845 = vadd.s32 %v1844, %v1842
  %v1846 = vsel %vm263, %v1082, 2147483647
  %v1847 = vand.u32 %v1846, 65535
  %v1848 = vshra.s32 %v1846, 16
  %v1849 = vcvt.s32.f32 %v1847
  %v1850 = vcvt.s32.f32 %v1848
  %1851 = vmin.xlane.f32.xlu0 %v1850
  %v1852 = vpop.xlane.xlu0 %1851
  %vm1853 = vcmp.eq.f32.partialorder %v1850, %v1852
  %v1854 = vsel %vm1853, %v1849, inf
  %1855 = vmin.xlane.f32.xlu0 %v1854
  %v1856 = vpop.xlane.xlu0 %1855
  %v1857 = vcvt.f32.s32 %v1856
  %v1858 = vcvt.f32.s32 %v1852
  %v1859 = vshll.u32 %v1858, 16
  %v1860 = vadd.s32 %v1859, %v1857
  %v1861 = vsel %vm263, %v1083, 2147483647
  %v1862 = vand.u32 %v1861, 65535
  %v1863 = vshra.s32 %v1861, 16
  %v1864 = vcvt.s32.f32 %v1862
  %v1865 = vcvt.s32.f32 %v1863
  %1866 = vmin.xlane.f32.xlu0 %v1865
  %v1867 = vpop.xlane.xlu0 %1866
  %vm1868 = vcmp.eq.f32.partialorder %v1865, %v1867
  %v1869 = vsel %vm1868, %v1864, inf
  %1870 = vmin.xlane.f32.xlu0 %v1869
  %v1871 = vpop.xlane.xlu0 %1870
  %v1872 = vcvt.f32.s32 %v1871
  %v1873 = vcvt.f32.s32 %v1867
  %v1874 = vshll.u32 %v1873, 16
  %v1875 = vadd.s32 %v1874, %v1872
  %v1876 = vsel %vm263, %v1084, 2147483647
  %v1877 = vand.u32 %v1876, 65535
  %v1878 = vshra.s32 %v1876, 16
  %v1879 = vcvt.s32.f32 %v1877
  %v1880 = vcvt.s32.f32 %v1878
  %1881 = vmin.xlane.f32.xlu0 %v1880
  %v1882 = vpop.xlane.xlu0 %1881
  %vm1883 = vcmp.eq.f32.partialorder %v1880, %v1882
  %v1884 = vsel %vm1883, %v1879, inf
  %1885 = vmin.xlane.f32.xlu0 %v1884
  %v1886 = vpop.xlane.xlu0 %1885
  %v1887 = vcvt.f32.s32 %v1886
  %v1888 = vcvt.f32.s32 %v1882
  %v1889 = vshll.u32 %v1888, 16
  %v1890 = vadd.s32 %v1889, %v1887
  %v1891 = vsel %vm263, %v1085, 2147483647
  %v1892 = vand.u32 %v1891, 65535
  %v1893 = vshra.s32 %v1891, 16
  %v1894 = vcvt.s32.f32 %v1892
  %v1895 = vcvt.s32.f32 %v1893
  %1896 = vmin.xlane.f32.xlu0 %v1895
  %v1897 = vpop.xlane.xlu0 %1896
  %vm1898 = vcmp.eq.f32.partialorder %v1895, %v1897
  %v1899 = vsel %vm1898, %v1894, inf
  %1900 = vmin.xlane.f32.xlu0 %v1899
  %v1901 = vpop.xlane.xlu0 %1900
  %v1902 = vcvt.f32.s32 %v1901
  %v1903 = vcvt.f32.s32 %v1897
  %v1904 = vshll.u32 %v1903, 16
  %v1905 = vadd.s32 %v1904, %v1902
  %v1906 = vsel %vm263, %v1086, 2147483647
  %v1907 = vand.u32 %v1906, 65535
  %v1908 = vshra.s32 %v1906, 16
  %v1909 = vcvt.s32.f32 %v1907
  %v1910 = vcvt.s32.f32 %v1908
  %1911 = vmin.xlane.f32.xlu0 %v1910
  %v1912 = vpop.xlane.xlu0 %1911
  %vm1913 = vcmp.eq.f32.partialorder %v1910, %v1912
  %v1914 = vsel %vm1913, %v1909, inf
  %1915 = vmin.xlane.f32.xlu0 %v1914
  %v1916 = vpop.xlane.xlu0 %1915
  %v1917 = vcvt.f32.s32 %v1916
  %v1918 = vcvt.f32.s32 %v1912
  %v1919 = vshll.u32 %v1918, 16
  %v1920 = vadd.s32 %v1919, %v1917
  %v1921 = vsel %vm263, %v1087, 2147483647
  %v1922 = vand.u32 %v1921, 65535
  %v1923 = vshra.s32 %v1921, 16
  %v1924 = vcvt.s32.f32 %v1922
  %v1925 = vcvt.s32.f32 %v1923
  %1926 = vmin.xlane.f32.xlu0 %v1925
  %v1927 = vpop.xlane.xlu0 %1926
  %vm1928 = vcmp.eq.f32.partialorder %v1925, %v1927
  %v1929 = vsel %vm1928, %v1924, inf
  %1930 = vmin.xlane.f32.xlu0 %v1929
  %v1931 = vpop.xlane.xlu0 %1930
  %v1932 = vcvt.f32.s32 %v1931
  %v1933 = vcvt.f32.s32 %v1927
  %v1934 = vshll.u32 %v1933, 16
  %v1935 = vadd.s32 %v1934, %v1932
  %v1936 = vsel %vm263, %v1088, 2147483647
  %v1937 = vand.u32 %v1936, 65535
  %v1938 = vshra.s32 %v1936, 16
  %v1939 = vcvt.s32.f32 %v1937
  %v1940 = vcvt.s32.f32 %v1938
  %1941 = vmin.xlane.f32.xlu0 %v1940
  %v1942 = vpop.xlane.xlu0 %1941
  %vm1943 = vcmp.eq.f32.partialorder %v1940, %v1942
  %v1944 = vsel %vm1943, %v1939, inf
  %1945 = vmin.xlane.f32.xlu0 %v1944
  %v1946 = vpop.xlane.xlu0 %1945
  %v1947 = vcvt.f32.s32 %v1946
  %v1948 = vcvt.f32.s32 %v1942
  %v1949 = vshll.u32 %v1948, 16
  %v1950 = vadd.s32 %v1949, %v1947
  %v1951 = vsel %vm263, %v1089, 2147483647
  %v1952 = vand.u32 %v1951, 65535
  %v1953 = vshra.s32 %v1951, 16
  %v1954 = vcvt.s32.f32 %v1952
  %v1955 = vcvt.s32.f32 %v1953
  %1956 = vmin.xlane.f32.xlu0 %v1955
  %v1957 = vpop.xlane.xlu0 %1956
  %vm1958 = vcmp.eq.f32.partialorder %v1955, %v1957
  %v1959 = vsel %vm1958, %v1954, inf
  %1960 = vmin.xlane.f32.xlu0 %v1959
  %v1961 = vpop.xlane.xlu0 %1960
  %v1962 = vcvt.f32.s32 %v1961
  %v1963 = vcvt.f32.s32 %v1957
  %v1964 = vshll.u32 %v1963, 16
  %v1965 = vadd.s32 %v1964, %v1962
  %v1966 = vsel %vm263, %v1090, 2147483647
  %v1967 = vand.u32 %v1966, 65535
  %v1968 = vshra.s32 %v1966, 16
  %v1969 = vcvt.s32.f32 %v1967
  %v1970 = vcvt.s32.f32 %v1968
  %1971 = vmin.xlane.f32.xlu0 %v1970
  %v1972 = vpop.xlane.xlu0 %1971
  %vm1973 = vcmp.eq.f32.partialorder %v1970, %v1972
  %v1974 = vsel %vm1973, %v1969, inf
  %1975 = vmin.xlane.f32.xlu0 %v1974
  %v1976 = vpop.xlane.xlu0 %1975
  %v1977 = vcvt.f32.s32 %v1976
  %v1978 = vcvt.f32.s32 %v1972
  %v1979 = vshll.u32 %v1978, 16
  %v1980 = vadd.s32 %v1979, %v1977
  %v1981 = vsel %vm263, %v1091, 2147483647
  %v1982 = vand.u32 %v1981, 65535
  %v1983 = vshra.s32 %v1981, 16
  %v1984 = vcvt.s32.f32 %v1982
  %v1985 = vcvt.s32.f32 %v1983
  %1986 = vmin.xlane.f32.xlu0 %v1985
  %v1987 = vpop.xlane.xlu0 %1986
  %vm1988 = vcmp.eq.f32.partialorder %v1985, %v1987
  %v1989 = vsel %vm1988, %v1984, inf
  %1990 = vmin.xlane.f32.xlu0 %v1989
  %v1991 = vpop.xlane.xlu0 %1990
  %v1992 = vcvt.f32.s32 %v1991
  %v1993 = vcvt.f32.s32 %v1987
  %v1994 = vshll.u32 %v1993, 16
  %v1995 = vadd.s32 %v1994, %v1992
  %v1996 = vsel %vm263, %v1092, 2147483647
  %v1997 = vand.u32 %v1996, 65535
  %v1998 = vshra.s32 %v1996, 16
  %v1999 = vcvt.s32.f32 %v1997
  %v2000 = vcvt.s32.f32 %v1998
  %2001 = vmin.xlane.f32.xlu0 %v2000
  %v2002 = vpop.xlane.xlu0 %2001
  %vm2003 = vcmp.eq.f32.partialorder %v2000, %v2002
  %v2004 = vsel %vm2003, %v1999, inf
  %2005 = vmin.xlane.f32.xlu0 %v2004
  %v2006 = vpop.xlane.xlu0 %2005
  %v2007 = vcvt.f32.s32 %v2006
  %v2008 = vcvt.f32.s32 %v2002
  %v2009 = vshll.u32 %v2008, 16
  %v2010 = vadd.s32 %v2009, %v2007
  %v2011 = vsel %vm263, %v1093, 2147483647
  %v2012 = vand.u32 %v2011, 65535
  %v2013 = vshra.s32 %v2011, 16
  %v2014 = vcvt.s32.f32 %v2012
  %v2015 = vcvt.s32.f32 %v2013
  %2016 = vmin.xlane.f32.xlu0 %v2015
  %v2017 = vpop.xlane.xlu0 %2016
  %vm2018 = vcmp.eq.f32.partialorder %v2015, %v2017
  %v2019 = vsel %vm2018, %v2014, inf
  %2020 = vmin.xlane.f32.xlu0 %v2019
  %v2021 = vpop.xlane.xlu0 %2020
  %v2022 = vcvt.f32.s32 %v2021
  %v2023 = vcvt.f32.s32 %v2017
  %v2024 = vshll.u32 %v2023, 16
  %v2025 = vadd.s32 %v2024, %v2022
  %v2026 = vsel %vm263, %v1094, 2147483647
  %v2027 = vand.u32 %v2026, 65535
  %v2028 = vshra.s32 %v2026, 16
  %v2029 = vcvt.s32.f32 %v2027
  %v2030 = vcvt.s32.f32 %v2028
  %2031 = vmin.xlane.f32.xlu0 %v2030
  %v2032 = vpop.xlane.xlu0 %2031
  %vm2033 = vcmp.eq.f32.partialorder %v2030, %v2032
  %v2034 = vsel %vm2033, %v2029, inf
  %2035 = vmin.xlane.f32.xlu0 %v2034
  %v2036 = vpop.xlane.xlu0 %2035
  %v2037 = vcvt.f32.s32 %v2036
  %v2038 = vcvt.f32.s32 %v2032
  %v2039 = vshll.u32 %v2038, 16
  %v2040 = vadd.s32 %v2039, %v2037
  %v2041 = vsel %vm263, %v1095, 2147483647
  %v2042 = vand.u32 %v2041, 65535
  %v2043 = vshra.s32 %v2041, 16
  %v2044 = vcvt.s32.f32 %v2042
  %v2045 = vcvt.s32.f32 %v2043
  %2046 = vmin.xlane.f32.xlu0 %v2045
  %v2047 = vpop.xlane.xlu0 %2046
  %vm2048 = vcmp.eq.f32.partialorder %v2045, %v2047
  %v2049 = vsel %vm2048, %v2044, inf
  %2050 = vmin.xlane.f32.xlu0 %v2049
  %v2051 = vpop.xlane.xlu0 %2050
  %v2052 = vcvt.f32.s32 %v2051
  %v2053 = vcvt.f32.s32 %v2047
  %v2054 = vshll.u32 %v2053, 16
  %v2055 = vadd.s32 %v2054, %v2052
  %vm2056 = vcmp.eq.s32.totalorder %v1110, %v199
  %vm2057 = vcmp.eq.s32.totalorder %v1125, %v200
  %vm2058 = vcmp.eq.s32.totalorder %v1140, %v201
  %vm2059 = vcmp.eq.s32.totalorder %v1155, %v202
  %vm2060 = vcmp.eq.s32.totalorder %v1170, %v203
  %vm2061 = vcmp.eq.s32.totalorder %v1185, %v204
  %vm2062 = vcmp.eq.s32.totalorder %v1200, %v205
  %vm2063 = vcmp.eq.s32.totalorder %v1215, %v206
  %vm2064 = vcmp.eq.s32.totalorder %v1230, %v207
  %vm2065 = vcmp.eq.s32.totalorder %v1245, %v208
  %vm2066 = vcmp.eq.s32.totalorder %v1260, %v209
  %vm2067 = vcmp.eq.s32.totalorder %v1275, %v210
  %vm2068 = vcmp.eq.s32.totalorder %v1290, %v211
  %vm2069 = vcmp.eq.s32.totalorder %v1305, %v212
  %vm2070 = vcmp.eq.s32.totalorder %v1320, %v213
  %vm2071 = vcmp.eq.s32.totalorder %v1335, %v214
  %vm2072 = vcmp.eq.s32.totalorder %v1350, %v215
  %vm2073 = vcmp.eq.s32.totalorder %v1365, %v216
  %vm2074 = vcmp.eq.s32.totalorder %v1380, %v217
  %vm2075 = vcmp.eq.s32.totalorder %v1395, %v218
  %vm2076 = vcmp.eq.s32.totalorder %v1410, %v219
  %vm2077 = vcmp.eq.s32.totalorder %v1425, %v220
  %vm2078 = vcmp.eq.s32.totalorder %v1440, %v221
  %vm2079 = vcmp.eq.s32.totalorder %v1455, %v222
  %vm2080 = vcmp.eq.s32.totalorder %v1470, %v223
  %vm2081 = vcmp.eq.s32.totalorder %v1485, %v224
  %vm2082 = vcmp.eq.s32.totalorder %v1500, %v225
  %vm2083 = vcmp.eq.s32.totalorder %v1515, %v226
  %vm2084 = vcmp.eq.s32.totalorder %v1530, %v227
  %vm2085 = vcmp.eq.s32.totalorder %v1545, %v228
  %vm2086 = vcmp.eq.s32.totalorder %v1560, %v229
  %vm2087 = vcmp.eq.s32.totalorder %v1575, %v230
  %vm2088 = vcmp.eq.s32.totalorder %v1590, %v231
  %vm2089 = vcmp.eq.s32.totalorder %v1605, %v232
  %vm2090 = vcmp.eq.s32.totalorder %v1620, %v233
  %vm2091 = vcmp.eq.s32.totalorder %v1635, %v234
  %vm2092 = vcmp.eq.s32.totalorder %v1650, %v235
  %vm2093 = vcmp.eq.s32.totalorder %v1665, %v236
  %vm2094 = vcmp.eq.s32.totalorder %v1680, %v237
  %vm2095 = vcmp.eq.s32.totalorder %v1695, %v238
  %vm2096 = vcmp.eq.s32.totalorder %v1710, %v239
  %vm2097 = vcmp.eq.s32.totalorder %v1725, %v240
  %vm2098 = vcmp.eq.s32.totalorder %v1740, %v241
  %vm2099 = vcmp.eq.s32.totalorder %v1755, %v242
  %vm2100 = vcmp.eq.s32.totalorder %v1770, %v243
  %vm2101 = vcmp.eq.s32.totalorder %v1785, %v244
  %vm2102 = vcmp.eq.s32.totalorder %v1800, %v245
  %vm2103 = vcmp.eq.s32.totalorder %v1815, %v246
  %vm2104 = vcmp.eq.s32.totalorder %v1830, %v247
  %vm2105 = vcmp.eq.s32.totalorder %v1845, %v248
  %vm2106 = vcmp.eq.s32.totalorder %v1860, %v249
  %vm2107 = vcmp.eq.s32.totalorder %v1875, %v250
  %vm2108 = vcmp.eq.s32.totalorder %v1890, %v251
  %vm2109 = vcmp.eq.s32.totalorder %v1905, %v252
  %vm2110 = vcmp.eq.s32.totalorder %v1920, %v253
  %vm2111 = vcmp.eq.s32.totalorder %v1935, %v254
  %vm2112 = vcmp.eq.s32.totalorder %v1950, %v255
  %vm2113 = vcmp.eq.s32.totalorder %v1965, %v256
  %vm2114 = vcmp.eq.s32.totalorder %v1980, %v257
  %vm2115 = vcmp.eq.s32.totalorder %v1995, %v258
  %vm2116 = vcmp.eq.s32.totalorder %v2010, %v259
  %vm2117 = vcmp.eq.s32.totalorder %v2025, %v260
  %vm2118 = vcmp.eq.s32.totalorder %v2040, %v261
  %vm2119 = vcmp.eq.s32.totalorder %v2055, %v262
  %v2120 = vsel %vm2056, 1, 0
  %v2121 = vsel %vm2057, 1, 0
  %v2122 = vsel %vm2058, 1, 0
  %v2123 = vsel %vm2059, 1, 0
  %v2124 = vsel %vm2060, 1, 0
  %v2125 = vsel %vm2061, 1, 0
  %v2126 = vsel %vm2062, 1, 0
  %v2127 = vsel %vm2063, 1, 0
  %v2128 = vsel %vm2064, 1, 0
  %v2129 = vsel %vm2065, 1, 0
  %v2130 = vsel %vm2066, 1, 0
  %v2131 = vsel %vm2067, 1, 0
  %v2132 = vsel %vm2068, 1, 0
  %v2133 = vsel %vm2069, 1, 0
  %v2134 = vsel %vm2070, 1, 0
  %v2135 = vsel %vm2071, 1, 0
  %v2136 = vsel %vm2072, 1, 0
  %v2137 = vsel %vm2073, 1, 0
  %v2138 = vsel %vm2074, 1, 0
  %v2139 = vsel %vm2075, 1, 0
  %v2140 = vsel %vm2076, 1, 0
  %v2141 = vsel %vm2077, 1, 0
  %v2142 = vsel %vm2078, 1, 0
  %v2143 = vsel %vm2079, 1, 0
  %v2144 = vsel %vm2080, 1, 0
  %v2145 = vsel %vm2081, 1, 0
  %v2146 = vsel %vm2082, 1, 0
  %v2147 = vsel %vm2083, 1, 0
  %v2148 = vsel %vm2084, 1, 0
  %v2149 = vsel %vm2085, 1, 0
  %v2150 = vsel %vm2086, 1, 0
  %v2151 = vsel %vm2087, 1, 0
  %v2152 = vsel %vm2088, 1, 0
  %v2153 = vsel %vm2089, 1, 0
  %v2154 = vsel %vm2090, 1, 0
  %v2155 = vsel %vm2091, 1, 0
  %v2156 = vsel %vm2092, 1, 0
  %v2157 = vsel %vm2093, 1, 0
  %v2158 = vsel %vm2094, 1, 0
  %v2159 = vsel %vm2095, 1, 0
  %v2160 = vsel %vm2096, 1, 0
  %v2161 = vsel %vm2097, 1, 0
  %v2162 = vsel %vm2098, 1, 0
  %v2163 = vsel %vm2099, 1, 0
  %v2164 = vsel %vm2100, 1, 0
  %v2165 = vsel %vm2101, 1, 0
  %v2166 = vsel %vm2102, 1, 0
  %v2167 = vsel %vm2103, 1, 0
  %v2168 = vsel %vm2104, 1, 0
  %v2169 = vsel %vm2105, 1, 0
  %v2170 = vsel %vm2106, 1, 0
  %v2171 = vsel %vm2107, 1, 0
  %v2172 = vsel %vm2108, 1, 0
  %v2173 = vsel %vm2109, 1, 0
  %v2174 = vsel %vm2110, 1, 0
  %v2175 = vsel %vm2111, 1, 0
  %v2176 = vsel %vm2112, 1, 0
  %v2177 = vsel %vm2113, 1, 0
  %v2178 = vsel %vm2114, 1, 0
  %v2179 = vsel %vm2115, 1, 0
  %v2180 = vsel %vm2116, 1, 0
  %v2181 = vsel %vm2117, 1, 0
  %v2182 = vsel %vm2118, 1, 0
  %v2183 = vsel %vm2119, 1, 0
  %v2184 = vcvt.s32.f32 %v2120
  %v2185 = vcvt.s32.f32 %v2121
  %v2186 = vcvt.s32.f32 %v2122
  %v2187 = vcvt.s32.f32 %v2123
  %v2188 = vcvt.s32.f32 %v2124
  %v2189 = vcvt.s32.f32 %v2125
  %v2190 = vcvt.s32.f32 %v2126
  %v2191 = vcvt.s32.f32 %v2127
  %v2192 = vcvt.s32.f32 %v2128
  %v2193 = vcvt.s32.f32 %v2129
  %v2194 = vcvt.s32.f32 %v2130
  %v2195 = vcvt.s32.f32 %v2131
  %v2196 = vcvt.s32.f32 %v2132
  %v2197 = vcvt.s32.f32 %v2133
  %v2198 = vcvt.s32.f32 %v2134
  %v2199 = vcvt.s32.f32 %v2135
  %v2200 = vcvt.s32.f32 %v2136
  %v2201 = vcvt.s32.f32 %v2137
  %v2202 = vcvt.s32.f32 %v2138
  %v2203 = vcvt.s32.f32 %v2139
  %v2204 = vcvt.s32.f32 %v2140
  %v2205 = vcvt.s32.f32 %v2141
  %v2206 = vcvt.s32.f32 %v2142
  %v2207 = vcvt.s32.f32 %v2143
  %v2208 = vcvt.s32.f32 %v2144
  %v2209 = vcvt.s32.f32 %v2145
  %v2210 = vcvt.s32.f32 %v2146
  %v2211 = vcvt.s32.f32 %v2147
  %v2212 = vcvt.s32.f32 %v2148
  %v2213 = vcvt.s32.f32 %v2149
  %v2214 = vcvt.s32.f32 %v2150
  %v2215 = vcvt.s32.f32 %v2151
  %v2216 = vcvt.s32.f32 %v2152
  %v2217 = vcvt.s32.f32 %v2153
  %v2218 = vcvt.s32.f32 %v2154
  %v2219 = vcvt.s32.f32 %v2155
  %v2220 = vcvt.s32.f32 %v2156
  %v2221 = vcvt.s32.f32 %v2157
  %v2222 = vcvt.s32.f32 %v2158
  %v2223 = vcvt.s32.f32 %v2159
  %v2224 = vcvt.s32.f32 %v2160
  %v2225 = vcvt.s32.f32 %v2161
  %v2226 = vcvt.s32.f32 %v2162
  %v2227 = vcvt.s32.f32 %v2163
  %v2228 = vcvt.s32.f32 %v2164
  %v2229 = vcvt.s32.f32 %v2165
  %v2230 = vcvt.s32.f32 %v2166
  %v2231 = vcvt.s32.f32 %v2167
  %v2232 = vcvt.s32.f32 %v2168
  %v2233 = vcvt.s32.f32 %v2169
  %v2234 = vcvt.s32.f32 %v2170
  %v2235 = vcvt.s32.f32 %v2171
  %v2236 = vcvt.s32.f32 %v2172
  %v2237 = vcvt.s32.f32 %v2173
  %v2238 = vcvt.s32.f32 %v2174
  %v2239 = vcvt.s32.f32 %v2175
  %v2240 = vcvt.s32.f32 %v2176
  %v2241 = vcvt.s32.f32 %v2177
  %v2242 = vcvt.s32.f32 %v2178
  %v2243 = vcvt.s32.f32 %v2179
  %v2244 = vcvt.s32.f32 %v2180
  %v2245 = vcvt.s32.f32 %v2181
  %v2246 = vcvt.s32.f32 %v2182
  %v2247 = vcvt.s32.f32 %v2183
  %v2248 = vstv %s62
  %v2249 = vadd.s32 %v2248, %v66
  %v2250 = vadd.s32 %v2248, %v67
  %v2251 = vadd.s32 %v2248, %v68
  %v2252 = vadd.s32 %v2248, %v69
  %v2253 = vadd.s32 %v2248, %v70
  %v2254 = vadd.s32 %v2248, %v71
  %v2255 = vadd.s32 %v2248, %v72
  %v2256 = vadd.s32 %v2248, %v73
  %v2257 = vadd.s32 %v2248, %v74
  %v2258 = vadd.s32 %v2248, %v75
  %v2259 = vadd.s32 %v2248, %v76
  %v2260 = vadd.s32 %v2248, %v77
  %v2261 = vadd.s32 %v2248, %v78
  %v2262 = vadd.s32 %v2248, %v79
  %v2263 = vadd.s32 %v2248, %v80
  %v2264 = vadd.s32 %v2248, %v81
  %v2265 = vadd.s32 %v2248, %v82
  %v2266 = vadd.s32 %v2248, %v83
  %v2267 = vadd.s32 %v2248, %v84
  %v2268 = vadd.s32 %v2248, %v85
  %v2269 = vadd.s32 %v2248, %v86
  %v2270 = vadd.s32 %v2248, %v87
  %v2271 = vadd.s32 %v2248, %v88
  %v2272 = vadd.s32 %v2248, %v89
  %v2273 = vadd.s32 %v2248, %v90
  %v2274 = vadd.s32 %v2248, %v91
  %v2275 = vadd.s32 %v2248, %v92
  %v2276 = vadd.s32 %v2248, %v93
  %v2277 = vadd.s32 %v2248, %v94
  %v2278 = vadd.s32 %v2248, %v95
  %v2279 = vadd.s32 %v2248, %v96
  %v2280 = vadd.s32 %v2248, %v97
  %v2281 = vadd.s32 %v2248, %v98
  %v2282 = vadd.s32 %v2248, %v99
  %v2283 = vadd.s32 %v2248, %v100
  %v2284 = vadd.s32 %v2248, %v101
  %v2285 = vadd.s32 %v2248, %v102
  %v2286 = vadd.s32 %v2248, %v103
  %v2287 = vadd.s32 %v2248, %v104
  %v2288 = vadd.s32 %v2248, %v105
  %v2289 = vadd.s32 %v2248, %v106
  %v2290 = vadd.s32 %v2248, %v107
  %v2291 = vadd.s32 %v2248, %v108
  %v2292 = vadd.s32 %v2248, %v109
  %v2293 = vadd.s32 %v2248, %v110
  %v2294 = vadd.s32 %v2248, %v111
  %v2295 = vadd.s32 %v2248, %v112
  %v2296 = vadd.s32 %v2248, %v113
  %v2297 = vadd.s32 %v2248, %v114
  %v2298 = vadd.s32 %v2248, %v115
  %v2299 = vadd.s32 %v2248, %v116
  %v2300 = vadd.s32 %v2248, %v117
  %v2301 = vadd.s32 %v2248, %v118
  %v2302 = vadd.s32 %v2248, %v119
  %v2303 = vadd.s32 %v2248, %v120
  %v2304 = vadd.s32 %v2248, %v121
  %v2305 = vadd.s32 %v2248, %v122
  %v2306 = vadd.s32 %v2248, %v123
  %v2307 = vadd.s32 %v2248, %v124
  %v2308 = vadd.s32 %v2248, %v125
  %v2309 = vadd.s32 %v2248, %v126
  %v2310 = vadd.s32 %v2248, %v127
  %v2311 = vadd.s32 %v2248, %v128
  %v2312 = vadd.s32 %v2248, %v129
  %vm2313 = vcmp.lt.s32.totalorder %v2249, 100
  %vm2314 = vcmp.lt.s32.totalorder %v2250, 100
  %vm2315 = vcmp.lt.s32.totalorder %v2251, 100
  %vm2316 = vcmp.lt.s32.totalorder %v2252, 100
  %vm2317 = vcmp.lt.s32.totalorder %v2253, 100
  %vm2318 = vcmp.lt.s32.totalorder %v2254, 100
  %vm2319 = vcmp.lt.s32.totalorder %v2255, 100
  %vm2320 = vcmp.lt.s32.totalorder %v2256, 100
  %vm2321 = vcmp.lt.s32.totalorder %v2257, 100
  %vm2322 = vcmp.lt.s32.totalorder %v2258, 100
  %vm2323 = vcmp.lt.s32.totalorder %v2259, 100
  %vm2324 = vcmp.lt.s32.totalorder %v2260, 100
  %vm2325 = vcmp.lt.s32.totalorder %v2261, 100
  %vm2326 = vcmp.lt.s32.totalorder %v2262, 100
  %vm2327 = vcmp.lt.s32.totalorder %v2263, 100
  %vm2328 = vcmp.lt.s32.totalorder %v2264, 100
  %vm2329 = vcmp.lt.s32.totalorder %v2265, 100
  %vm2330 = vcmp.lt.s32.totalorder %v2266, 100
  %vm2331 = vcmp.lt.s32.totalorder %v2267, 100
  %vm2332 = vcmp.lt.s32.totalorder %v2268, 100
  %vm2333 = vcmp.lt.s32.totalorder %v2269, 100
  %vm2334 = vcmp.lt.s32.totalorder %v2270, 100
  %vm2335 = vcmp.lt.s32.totalorder %v2271, 100
  %vm2336 = vcmp.lt.s32.totalorder %v2272, 100
  %vm2337 = vcmp.lt.s32.totalorder %v2273, 100
  %vm2338 = vcmp.lt.s32.totalorder %v2274, 100
  %vm2339 = vcmp.lt.s32.totalorder %v2275, 100
  %vm2340 = vcmp.lt.s32.totalorder %v2276, 100
  %vm2341 = vcmp.lt.s32.totalorder %v2277, 100
  %vm2342 = vcmp.lt.s32.totalorder %v2278, 100
  %vm2343 = vcmp.lt.s32.totalorder %v2279, 100
  %vm2344 = vcmp.lt.s32.totalorder %v2280, 100
  %vm2345 = vcmp.lt.s32.totalorder %v2281, 100
  %vm2346 = vcmp.lt.s32.totalorder %v2282, 100
  %vm2347 = vcmp.lt.s32.totalorder %v2283, 100
  %vm2348 = vcmp.lt.s32.totalorder %v2284, 100
  %vm2349 = vcmp.lt.s32.totalorder %v2285, 100
  %vm2350 = vcmp.lt.s32.totalorder %v2286, 100
  %vm2351 = vcmp.lt.s32.totalorder %v2287, 100
  %vm2352 = vcmp.lt.s32.totalorder %v2288, 100
  %vm2353 = vcmp.lt.s32.totalorder %v2289, 100
  %vm2354 = vcmp.lt.s32.totalorder %v2290, 100
  %vm2355 = vcmp.lt.s32.totalorder %v2291, 100
  %vm2356 = vcmp.lt.s32.totalorder %v2292, 100
  %vm2357 = vcmp.lt.s32.totalorder %v2293, 100
  %vm2358 = vcmp.lt.s32.totalorder %v2294, 100
  %vm2359 = vcmp.lt.s32.totalorder %v2295, 100
  %vm2360 = vcmp.lt.s32.totalorder %v2296, 100
  %vm2361 = vcmp.lt.s32.totalorder %v2297, 100
  %vm2362 = vcmp.lt.s32.totalorder %v2298, 100
  %vm2363 = vcmp.lt.s32.totalorder %v2299, 100
  %vm2364 = vcmp.lt.s32.totalorder %v2300, 100
  %vm2365 = vcmp.lt.s32.totalorder %v2301, 100
  %vm2366 = vcmp.lt.s32.totalorder %v2302, 100
  %vm2367 = vcmp.lt.s32.totalorder %v2303, 100
  %vm2368 = vcmp.lt.s32.totalorder %v2304, 100
  %vm2369 = vcmp.lt.s32.totalorder %v2305, 100
  %vm2370 = vcmp.lt.s32.totalorder %v2306, 100
  %vm2371 = vcmp.lt.s32.totalorder %v2307, 100
  %vm2372 = vcmp.lt.s32.totalorder %v2308, 100
  %vm2373 = vcmp.lt.s32.totalorder %v2309, 100
  %vm2374 = vcmp.lt.s32.totalorder %v2310, 100
  %vm2375 = vcmp.lt.s32.totalorder %v2311, 100
  %vm2376 = vcmp.lt.s32.totalorder %v2312, 100
  %v2377 = vsel %vm2313, %v841, -1.0
  %v2378 = vsel %vm2314, %v843, -1.0
  %v2379 = vsel %vm2315, %v845, -1.0
  %v2380 = vsel %vm2316, %v847, -1.0
  %v2381 = vsel %vm2317, %v849, -1.0
  %v2382 = vsel %vm2318, %v851, -1.0
  %v2383 = vsel %vm2319, %v853, -1.0
  %v2384 = vsel %vm2320, %v855, -1.0
  %v2385 = vsel %vm2321, %v857, -1.0
  %v2386 = vsel %vm2322, %v859, -1.0
  %v2387 = vsel %vm2323, %v861, -1.0
  %v2388 = vsel %vm2324, %v863, -1.0
  %v2389 = vsel %vm2325, %v865, -1.0
  %v2390 = vsel %vm2326, %v867, -1.0
  %v2391 = vsel %vm2327, %v869, -1.0
  %v2392 = vsel %vm2328, %v871, -1.0
  %v2393 = vsel %vm2329, %v873, -1.0
  %v2394 = vsel %vm2330, %v875, -1.0
  %v2395 = vsel %vm2331, %v877, -1.0
  %v2396 = vsel %vm2332, %v879, -1.0
  %v2397 = vsel %vm2333, %v881, -1.0
  %v2398 = vsel %vm2334, %v883, -1.0
  %v2399 = vsel %vm2335, %v885, -1.0
  %v2400 = vsel %vm2336, %v887, -1.0
  %v2401 = vsel %vm2337, %v889, -1.0
  %v2402 = vsel %vm2338, %v891, -1.0
  %v2403 = vsel %vm2339, %v893, -1.0
  %v2404 = vsel %vm2340, %v895, -1.0
  %v2405 = vsel %vm2341, %v897, -1.0
  %v2406 = vsel %vm2342, %v899, -1.0
  %v2407 = vsel %vm2343, %v901, -1.0
  %v2408 = vsel %vm2344, %v903, -1.0
  %v2409 = vsel %vm2345, %v905, -1.0
  %v2410 = vsel %vm2346, %v907, -1.0
  %v2411 = vsel %vm2347, %v909, -1.0
  %v2412 = vsel %vm2348, %v911, -1.0
  %v2413 = vsel %vm2349, %v913, -1.0
  %v2414 = vsel %vm2350, %v915, -1.0
  %v2415 = vsel %vm2351, %v917, -1.0
  %v2416 = vsel %vm2352, %v919, -1.0
  %v2417 = vsel %vm2353, %v921, -1.0
  %v2418 = vsel %vm2354, %v923, -1.0
  %v2419 = vsel %vm2355, %v925, -1.0
  %v2420 = vsel %vm2356, %v927, -1.0
  %v2421 = vsel %vm2357, %v929, -1.0
  %v2422 = vsel %vm2358, %v931, -1.0
  %v2423 = vsel %vm2359, %v933, -1.0
  %v2424 = vsel %vm2360, %v935, -1.0
  %v2425 = vsel %vm2361, %v937, -1.0
  %v2426 = vsel %vm2362, %v939, -1.0
  %v2427 = vsel %vm2363, %v941, -1.0
  %v2428 = vsel %vm2364, %v943, -1.0
  %v2429 = vsel %vm2365, %v945, -1.0
  %v2430 = vsel %vm2366, %v947, -1.0
  %v2431 = vsel %vm2367, %v949, -1.0
  %v2432 = vsel %vm2368, %v951, -1.0
  %v2433 = vsel %vm2369, %v953, -1.0
  %v2434 = vsel %vm2370, %v955, -1.0
  %v2435 = vsel %vm2371, %v957, -1.0
  %v2436 = vsel %vm2372, %v959, -1.0
  %v2437 = vsel %vm2373, %v961, -1.0
  %v2438 = vsel %vm2374, %v963, -1.0
  %v2439 = vsel %vm2375, %v965, -1.0
  %v2440 = vsel %vm2376, %v967, -1.0
  %vm2441 = vcmp.gt.f32.partialorder %v2377, %v132
  %vm2442 = vcmp.gt.f32.partialorder %v2378, %v132
  %vm2443 = vcmp.gt.f32.partialorder %v2379, %v132
  %vm2444 = vcmp.gt.f32.partialorder %v2380, %v132
  %vm2445 = vcmp.gt.f32.partialorder %v2381, %v132
  %vm2446 = vcmp.gt.f32.partialorder %v2382, %v132
  %vm2447 = vcmp.gt.f32.partialorder %v2383, %v132
  %vm2448 = vcmp.gt.f32.partialorder %v2384, %v132
  %vm2449 = vcmp.gt.f32.partialorder %v2385, %v132
  %vm2450 = vcmp.gt.f32.partialorder %v2386, %v132
  %vm2451 = vcmp.gt.f32.partialorder %v2387, %v132
  %vm2452 = vcmp.gt.f32.partialorder %v2388, %v132
  %vm2453 = vcmp.gt.f32.partialorder %v2389, %v132
  %vm2454 = vcmp.gt.f32.partialorder %v2390, %v132
  %vm2455 = vcmp.gt.f32.partialorder %v2391, %v132
  %vm2456 = vcmp.gt.f32.partialorder %v2392, %v132
  %vm2457 = vcmp.gt.f32.partialorder %v2393, %v132
  %vm2458 = vcmp.gt.f32.partialorder %v2394, %v132
  %vm2459 = vcmp.gt.f32.partialorder %v2395, %v132
  %vm2460 = vcmp.gt.f32.partialorder %v2396, %v132
  %vm2461 = vcmp.gt.f32.partialorder %v2397, %v132
  %vm2462 = vcmp.gt.f32.partialorder %v2398, %v132
  %vm2463 = vcmp.gt.f32.partialorder %v2399, %v132
  %vm2464 = vcmp.gt.f32.partialorder %v2400, %v132
  %vm2465 = vcmp.gt.f32.partialorder %v2401, %v132
  %vm2466 = vcmp.gt.f32.partialorder %v2402, %v132
  %vm2467 = vcmp.gt.f32.partialorder %v2403, %v132
  %vm2468 = vcmp.gt.f32.partialorder %v2404, %v132
  %vm2469 = vcmp.gt.f32.partialorder %v2405, %v132
  %vm2470 = vcmp.gt.f32.partialorder %v2406, %v132
  %vm2471 = vcmp.gt.f32.partialorder %v2407, %v132
  %vm2472 = vcmp.gt.f32.partialorder %v2408, %v132
  %vm2473 = vcmp.gt.f32.partialorder %v2409, %v132
  %vm2474 = vcmp.gt.f32.partialorder %v2410, %v132
  %vm2475 = vcmp.gt.f32.partialorder %v2411, %v132
  %vm2476 = vcmp.gt.f32.partialorder %v2412, %v132
  %vm2477 = vcmp.gt.f32.partialorder %v2413, %v132
  %vm2478 = vcmp.gt.f32.partialorder %v2414, %v132
  %vm2479 = vcmp.gt.f32.partialorder %v2415, %v132
  %vm2480 = vcmp.gt.f32.partialorder %v2416, %v132
  %vm2481 = vcmp.gt.f32.partialorder %v2417, %v132
  %vm2482 = vcmp.gt.f32.partialorder %v2418, %v132
  %vm2483 = vcmp.gt.f32.partialorder %v2419, %v132
  %vm2484 = vcmp.gt.f32.partialorder %v2420, %v132
  %vm2485 = vcmp.gt.f32.partialorder %v2421, %v132
  %vm2486 = vcmp.gt.f32.partialorder %v2422, %v132
  %vm2487 = vcmp.gt.f32.partialorder %v2423, %v132
  %vm2488 = vcmp.gt.f32.partialorder %v2424, %v132
  %vm2489 = vcmp.gt.f32.partialorder %v2425, %v132
  %vm2490 = vcmp.gt.f32.partialorder %v2426, %v132
  %vm2491 = vcmp.gt.f32.partialorder %v2427, %v132
  %vm2492 = vcmp.gt.f32.partialorder %v2428, %v132
  %vm2493 = vcmp.gt.f32.partialorder %v2429, %v132
  %vm2494 = vcmp.gt.f32.partialorder %v2430, %v132
  %vm2495 = vcmp.gt.f32.partialorder %v2431, %v132
  %vm2496 = vcmp.gt.f32.partialorder %v2432, %v132
  %vm2497 = vcmp.gt.f32.partialorder %v2433, %v132
  %vm2498 = vcmp.gt.f32.partialorder %v2434, %v132
  %vm2499 = vcmp.gt.f32.partialorder %v2435, %v132
  %vm2500 = vcmp.gt.f32.partialorder %v2436, %v132
  %vm2501 = vcmp.gt.f32.partialorder %v2437, %v132
  %vm2502 = vcmp.gt.f32.partialorder %v2438, %v132
  %vm2503 = vcmp.gt.f32.partialorder %v2439, %v132
  %vm2504 = vcmp.gt.f32.partialorder %v2440, %v132
  %vm2505 = vcmp.le.f32.partialorder %v2377, %v134
  %vm2506 = vcmp.le.f32.partialorder %v2378, %v134
  %vm2507 = vcmp.le.f32.partialorder %v2379, %v134
  %vm2508 = vcmp.le.f32.partialorder %v2380, %v134
  %vm2509 = vcmp.le.f32.partialorder %v2381, %v134
  %vm2510 = vcmp.le.f32.partialorder %v2382, %v134
  %vm2511 = vcmp.le.f32.partialorder %v2383, %v134
  %vm2512 = vcmp.le.f32.partialorder %v2384, %v134
  %vm2513 = vcmp.le.f32.partialorder %v2385, %v134
  %vm2514 = vcmp.le.f32.partialorder %v2386, %v134
  %vm2515 = vcmp.le.f32.partialorder %v2387, %v134
  %vm2516 = vcmp.le.f32.partialorder %v2388, %v134
  %vm2517 = vcmp.le.f32.partialorder %v2389, %v134
  %vm2518 = vcmp.le.f32.partialorder %v2390, %v134
  %vm2519 = vcmp.le.f32.partialorder %v2391, %v134
  %vm2520 = vcmp.le.f32.partialorder %v2392, %v134
  %vm2521 = vcmp.le.f32.partialorder %v2393, %v134
  %vm2522 = vcmp.le.f32.partialorder %v2394, %v134
  %vm2523 = vcmp.le.f32.partialorder %v2395, %v134
  %vm2524 = vcmp.le.f32.partialorder %v2396, %v134
  %vm2525 = vcmp.le.f32.partialorder %v2397, %v134
  %vm2526 = vcmp.le.f32.partialorder %v2398, %v134
  %vm2527 = vcmp.le.f32.partialorder %v2399, %v134
  %vm2528 = vcmp.le.f32.partialorder %v2400, %v134
  %vm2529 = vcmp.le.f32.partialorder %v2401, %v134
  %vm2530 = vcmp.le.f32.partialorder %v2402, %v134
  %vm2531 = vcmp.le.f32.partialorder %v2403, %v134
  %vm2532 = vcmp.le.f32.partialorder %v2404, %v134
  %vm2533 = vcmp.le.f32.partialorder %v2405, %v134
  %vm2534 = vcmp.le.f32.partialorder %v2406, %v134
  %vm2535 = vcmp.le.f32.partialorder %v2407, %v134
  %vm2536 = vcmp.le.f32.partialorder %v2408, %v134
  %vm2537 = vcmp.le.f32.partialorder %v2409, %v134
  %vm2538 = vcmp.le.f32.partialorder %v2410, %v134
  %vm2539 = vcmp.le.f32.partialorder %v2411, %v134
  %vm2540 = vcmp.le.f32.partialorder %v2412, %v134
  %vm2541 = vcmp.le.f32.partialorder %v2413, %v134
  %vm2542 = vcmp.le.f32.partialorder %v2414, %v134
  %vm2543 = vcmp.le.f32.partialorder %v2415, %v134
  %vm2544 = vcmp.le.f32.partialorder %v2416, %v134
  %vm2545 = vcmp.le.f32.partialorder %v2417, %v134
  %vm2546 = vcmp.le.f32.partialorder %v2418, %v134
  %vm2547 = vcmp.le.f32.partialorder %v2419, %v134
  %vm2548 = vcmp.le.f32.partialorder %v2420, %v134
  %vm2549 = vcmp.le.f32.partialorder %v2421, %v134
  %vm2550 = vcmp.le.f32.partialorder %v2422, %v134
  %vm2551 = vcmp.le.f32.partialorder %v2423, %v134
  %vm2552 = vcmp.le.f32.partialorder %v2424, %v134
  %vm2553 = vcmp.le.f32.partialorder %v2425, %v134
  %vm2554 = vcmp.le.f32.partialorder %v2426, %v134
  %vm2555 = vcmp.le.f32.partialorder %v2427, %v134
  %vm2556 = vcmp.le.f32.partialorder %v2428, %v134
  %vm2557 = vcmp.le.f32.partialorder %v2429, %v134
  %vm2558 = vcmp.le.f32.partialorder %v2430, %v134
  %vm2559 = vcmp.le.f32.partialorder %v2431, %v134
  %vm2560 = vcmp.le.f32.partialorder %v2432, %v134
  %vm2561 = vcmp.le.f32.partialorder %v2433, %v134
  %vm2562 = vcmp.le.f32.partialorder %v2434, %v134
  %vm2563 = vcmp.le.f32.partialorder %v2435, %v134
  %vm2564 = vcmp.le.f32.partialorder %v2436, %v134
  %vm2565 = vcmp.le.f32.partialorder %v2437, %v134
  %vm2566 = vcmp.le.f32.partialorder %v2438, %v134
  %vm2567 = vcmp.le.f32.partialorder %v2439, %v134
  %vm2568 = vcmp.le.f32.partialorder %v2440, %v134
  %vm2569 = vmand %vm2441, %vm2505
  %vm2570 = vmand %vm2442, %vm2506
  %vm2571 = vmand %vm2443, %vm2507
  %vm2572 = vmand %vm2444, %vm2508
  %vm2573 = vmand %vm2445, %vm2509
  %vm2574 = vmand %vm2446, %vm2510
  %vm2575 = vmand %vm2447, %vm2511
  %vm2576 = vmand %vm2448, %vm2512
  %vm2577 = vmand %vm2449, %vm2513
  %vm2578 = vmand %vm2450, %vm2514
  %vm2579 = vmand %vm2451, %vm2515
  %vm2580 = vmand %vm2452, %vm2516
  %vm2581 = vmand %vm2453, %vm2517
  %vm2582 = vmand %vm2454, %vm2518
  %vm2583 = vmand %vm2455, %vm2519
  %vm2584 = vmand %vm2456, %vm2520
  %vm2585 = vmand %vm2457, %vm2521
  %vm2586 = vmand %vm2458, %vm2522
  %vm2587 = vmand %vm2459, %vm2523
  %vm2588 = vmand %vm2460, %vm2524
  %vm2589 = vmand %vm2461, %vm2525
  %vm2590 = vmand %vm2462, %vm2526
  %vm2591 = vmand %vm2463, %vm2527
  %vm2592 = vmand %vm2464, %vm2528
  %vm2593 = vmand %vm2465, %vm2529
  %vm2594 = vmand %vm2466, %vm2530
  %vm2595 = vmand %vm2467, %vm2531
  %vm2596 = vmand %vm2468, %vm2532
  %vm2597 = vmand %vm2469, %vm2533
  %vm2598 = vmand %vm2470, %vm2534
  %vm2599 = vmand %vm2471, %vm2535
  %vm2600 = vmand %vm2472, %vm2536
  %vm2601 = vmand %vm2473, %vm2537
  %vm2602 = vmand %vm2474, %vm2538
  %vm2603 = vmand %vm2475, %vm2539
  %vm2604 = vmand %vm2476, %vm2540
  %vm2605 = vmand %vm2477, %vm2541
  %vm2606 = vmand %vm2478, %vm2542
  %vm2607 = vmand %vm2479, %vm2543
  %vm2608 = vmand %vm2480, %vm2544
  %vm2609 = vmand %vm2481, %vm2545
  %vm2610 = vmand %vm2482, %vm2546
  %vm2611 = vmand %vm2483, %vm2547
  %vm2612 = vmand %vm2484, %vm2548
  %vm2613 = vmand %vm2485, %vm2549
  %vm2614 = vmand %vm2486, %vm2550
  %vm2615 = vmand %vm2487, %vm2551
  %vm2616 = vmand %vm2488, %vm2552
  %vm2617 = vmand %vm2489, %vm2553
  %vm2618 = vmand %vm2490, %vm2554
  %vm2619 = vmand %vm2491, %vm2555
  %vm2620 = vmand %vm2492, %vm2556
  %vm2621 = vmand %vm2493, %vm2557
  %vm2622 = vmand %vm2494, %vm2558
  %vm2623 = vmand %vm2495, %vm2559
  %vm2624 = vmand %vm2496, %vm2560
  %vm2625 = vmand %vm2497, %vm2561
  %vm2626 = vmand %vm2498, %vm2562
  %vm2627 = vmand %vm2499, %vm2563
  %vm2628 = vmand %vm2500, %vm2564
  %vm2629 = vmand %vm2501, %vm2565
  %vm2630 = vmand %vm2502, %vm2566
  %vm2631 = vmand %vm2503, %vm2567
  %vm2632 = vmand %vm2504, %vm2568
  %v2633 = vsel %vm2569, 1, 0
  %v2634 = vsel %vm2570, 1, 0
  %v2635 = vsel %vm2571, 1, 0
  %v2636 = vsel %vm2572, 1, 0
  %v2637 = vsel %vm2573, 1, 0
  %v2638 = vsel %vm2574, 1, 0
  %v2639 = vsel %vm2575, 1, 0
  %v2640 = vsel %vm2576, 1, 0
  %v2641 = vsel %vm2577, 1, 0
  %v2642 = vsel %vm2578, 1, 0
  %v2643 = vsel %vm2579, 1, 0
  %v2644 = vsel %vm2580, 1, 0
  %v2645 = vsel %vm2581, 1, 0
  %v2646 = vsel %vm2582, 1, 0
  %v2647 = vsel %vm2583, 1, 0
  %v2648 = vsel %vm2584, 1, 0
  %v2649 = vsel %vm2585, 1, 0
  %v2650 = vsel %vm2586, 1, 0
  %v2651 = vsel %vm2587, 1, 0
  %v2652 = vsel %vm2588, 1, 0
  %v2653 = vsel %vm2589, 1, 0
  %v2654 = vsel %vm2590, 1, 0
  %v2655 = vsel %vm2591, 1, 0
  %v2656 = vsel %vm2592, 1, 0
  %v2657 = vsel %vm2593, 1, 0
  %v2658 = vsel %vm2594, 1, 0
  %v2659 = vsel %vm2595, 1, 0
  %v2660 = vsel %vm2596, 1, 0
  %v2661 = vsel %vm2597, 1, 0
  %v2662 = vsel %vm2598, 1, 0
  %v2663 = vsel %vm2599, 1, 0
  %v2664 = vsel %vm2600, 1, 0
  %v2665 = vsel %vm2601, 1, 0
  %v2666 = vsel %vm2602, 1, 0
  %v2667 = vsel %vm2603, 1, 0
  %v2668 = vsel %vm2604, 1, 0
  %v2669 = vsel %vm2605, 1, 0
  %v2670 = vsel %vm2606, 1, 0
  %v2671 = vsel %vm2607, 1, 0
  %v2672 = vsel %vm2608, 1, 0
  %v2673 = vsel %vm2609, 1, 0
  %v2674 = vsel %vm2610, 1, 0
  %v2675 = vsel %vm2611, 1, 0
  %v2676 = vsel %vm2612, 1, 0
  %v2677 = vsel %vm2613, 1, 0
  %v2678 = vsel %vm2614, 1, 0
  %v2679 = vsel %vm2615, 1, 0
  %v2680 = vsel %vm2616, 1, 0
  %v2681 = vsel %vm2617, 1, 0
  %v2682 = vsel %vm2618, 1, 0
  %v2683 = vsel %vm2619, 1, 0
  %v2684 = vsel %vm2620, 1, 0
  %v2685 = vsel %vm2621, 1, 0
  %v2686 = vsel %vm2622, 1, 0
  %v2687 = vsel %vm2623, 1, 0
  %v2688 = vsel %vm2624, 1, 0
  %v2689 = vsel %vm2625, 1, 0
  %v2690 = vsel %vm2626, 1, 0
  %v2691 = vsel %vm2627, 1, 0
  %v2692 = vsel %vm2628, 1, 0
  %v2693 = vsel %vm2629, 1, 0
  %v2694 = vsel %vm2630, 1, 0
  %v2695 = vsel %vm2631, 1, 0
  %v2696 = vsel %vm2632, 1, 0
  %v2697 = vcvt.s32.f32 %v2633
  %v2698 = vcvt.s32.f32 %v2634
  %v2699 = vcvt.s32.f32 %v2635
  %v2700 = vcvt.s32.f32 %v2636
  %v2701 = vcvt.s32.f32 %v2637
  %v2702 = vcvt.s32.f32 %v2638
  %v2703 = vcvt.s32.f32 %v2639
  %v2704 = vcvt.s32.f32 %v2640
  %v2705 = vcvt.s32.f32 %v2641
  %v2706 = vcvt.s32.f32 %v2642
  %v2707 = vcvt.s32.f32 %v2643
  %v2708 = vcvt.s32.f32 %v2644
  %v2709 = vcvt.s32.f32 %v2645
  %v2710 = vcvt.s32.f32 %v2646
  %v2711 = vcvt.s32.f32 %v2647
  %v2712 = vcvt.s32.f32 %v2648
  %v2713 = vcvt.s32.f32 %v2649
  %v2714 = vcvt.s32.f32 %v2650
  %v2715 = vcvt.s32.f32 %v2651
  %v2716 = vcvt.s32.f32 %v2652
  %v2717 = vcvt.s32.f32 %v2653
  %v2718 = vcvt.s32.f32 %v2654
  %v2719 = vcvt.s32.f32 %v2655
  %v2720 = vcvt.s32.f32 %v2656
  %v2721 = vcvt.s32.f32 %v2657
  %v2722 = vcvt.s32.f32 %v2658
  %v2723 = vcvt.s32.f32 %v2659
  %v2724 = vcvt.s32.f32 %v2660
  %v2725 = vcvt.s32.f32 %v2661
  %v2726 = vcvt.s32.f32 %v2662
  %v2727 = vcvt.s32.f32 %v2663
  %v2728 = vcvt.s32.f32 %v2664
  %v2729 = vcvt.s32.f32 %v2665
  %v2730 = vcvt.s32.f32 %v2666
  %v2731 = vcvt.s32.f32 %v2667
  %v2732 = vcvt.s32.f32 %v2668
  %v2733 = vcvt.s32.f32 %v2669
  %v2734 = vcvt.s32.f32 %v2670
  %v2735 = vcvt.s32.f32 %v2671
  %v2736 = vcvt.s32.f32 %v2672
  %v2737 = vcvt.s32.f32 %v2673
  %v2738 = vcvt.s32.f32 %v2674
  %v2739 = vcvt.s32.f32 %v2675
  %v2740 = vcvt.s32.f32 %v2676
  %v2741 = vcvt.s32.f32 %v2677
  %v2742 = vcvt.s32.f32 %v2678
  %v2743 = vcvt.s32.f32 %v2679
  %v2744 = vcvt.s32.f32 %v2680
  %v2745 = vcvt.s32.f32 %v2681
  %v2746 = vcvt.s32.f32 %v2682
  %v2747 = vcvt.s32.f32 %v2683
  %v2748 = vcvt.s32.f32 %v2684
  %v2749 = vcvt.s32.f32 %v2685
  %v2750 = vcvt.s32.f32 %v2686
  %v2751 = vcvt.s32.f32 %v2687
  %v2752 = vcvt.s32.f32 %v2688
  %v2753 = vcvt.s32.f32 %v2689
  %v2754 = vcvt.s32.f32 %v2690
  %v2755 = vcvt.s32.f32 %v2691
  %v2756 = vcvt.s32.f32 %v2692
  %v2757 = vcvt.s32.f32 %v2693
  %v2758 = vcvt.s32.f32 %v2694
  %v2759 = vcvt.s32.f32 %v2695
  %v2760 = vcvt.s32.f32 %v2696
  %vm2761 = vcmask 121856
  %v2762 = vsel %vm2761, %v2697, 0.0
  %v2763 = vsel %vm2761, %v2698, 0.0
  %v2764 = vadd.f32 %v2762, %v2763
  %v2765 = vsel %vm2761, %v2699, 0.0
  %v2766 = vadd.f32 %v2764, %v2765
  %v2767 = vsel %vm2761, %v2700, 0.0
  %v2768 = vadd.f32 %v2766, %v2767
  %v2769 = vsel %vm2761, %v2701, 0.0
  %v2770 = vadd.f32 %v2768, %v2769
  %v2771 = vsel %vm2761, %v2702, 0.0
  %v2772 = vadd.f32 %v2770, %v2771
  %v2773 = vsel %vm2761, %v2703, 0.0
  %v2774 = vadd.f32 %v2772, %v2773
  %v2775 = vsel %vm2761, %v2704, 0.0
  %v2776 = vadd.f32 %v2774, %v2775
  %v2777 = vsel %vm2761, %v2705, 0.0
  %v2778 = vadd.f32 %v2776, %v2777
  %v2779 = vsel %vm2761, %v2706, 0.0
  %v2780 = vadd.f32 %v2778, %v2779
  %v2781 = vsel %vm2761, %v2707, 0.0
  %v2782 = vadd.f32 %v2780, %v2781
  %v2783 = vsel %vm2761, %v2708, 0.0
  %v2784 = vadd.f32 %v2782, %v2783
  %v2785 = vsel %vm2761, %v2709, 0.0
  %v2786 = vadd.f32 %v2784, %v2785
  %v2787 = vsel %vm2761, %v2710, 0.0
  %v2788 = vadd.f32 %v2786, %v2787
  %v2789 = vsel %vm2761, %v2711, 0.0
  %v2790 = vadd.f32 %v2788, %v2789
  %v2791 = vsel %vm2761, %v2712, 0.0
  %v2792 = vadd.f32 %v2790, %v2791
  %v2793 = vsel %vm2761, %v2713, 0.0
  %v2794 = vadd.f32 %v2792, %v2793
  %v2795 = vsel %vm2761, %v2714, 0.0
  %v2796 = vadd.f32 %v2794, %v2795
  %v2797 = vsel %vm2761, %v2715, 0.0
  %v2798 = vadd.f32 %v2796, %v2797
  %v2799 = vsel %vm2761, %v2716, 0.0
  %v2800 = vadd.f32 %v2798, %v2799
  %v2801 = vsel %vm2761, %v2717, 0.0
  %v2802 = vadd.f32 %v2800, %v2801
  %v2803 = vsel %vm2761, %v2718, 0.0
  %v2804 = vadd.f32 %v2802, %v2803
  %v2805 = vsel %vm2761, %v2719, 0.0
  %v2806 = vadd.f32 %v2804, %v2805
  %v2807 = vsel %vm2761, %v2720, 0.0
  %v2808 = vadd.f32 %v2806, %v2807
  %v2809 = vsel %vm2761, %v2721, 0.0
  %v2810 = vadd.f32 %v2808, %v2809
  %v2811 = vsel %vm2761, %v2722, 0.0
  %v2812 = vadd.f32 %v2810, %v2811
  %v2813 = vsel %vm2761, %v2723, 0.0
  %v2814 = vadd.f32 %v2812, %v2813
  %v2815 = vsel %vm2761, %v2724, 0.0
  %v2816 = vadd.f32 %v2814, %v2815
  %v2817 = vsel %vm2761, %v2725, 0.0
  %v2818 = vadd.f32 %v2816, %v2817
  %v2819 = vsel %vm2761, %v2726, 0.0
  %v2820 = vadd.f32 %v2818, %v2819
  %v2821 = vsel %vm2761, %v2727, 0.0
  %v2822 = vadd.f32 %v2820, %v2821
  %v2823 = vsel %vm2761, %v2728, 0.0
  %v2824 = vadd.f32 %v2822, %v2823
  %v2825 = vsel %vm2761, %v2729, 0.0
  %v2826 = vadd.f32 %v2824, %v2825
  %v2827 = vsel %vm2761, %v2730, 0.0
  %v2828 = vadd.f32 %v2826, %v2827
  %v2829 = vsel %vm2761, %v2731, 0.0
  %v2830 = vadd.f32 %v2828, %v2829
  %v2831 = vsel %vm2761, %v2732, 0.0
  %v2832 = vadd.f32 %v2830, %v2831
  %v2833 = vsel %vm2761, %v2733, 0.0
  %v2834 = vadd.f32 %v2832, %v2833
  %v2835 = vsel %vm2761, %v2734, 0.0
  %v2836 = vadd.f32 %v2834, %v2835
  %v2837 = vsel %vm2761, %v2735, 0.0
  %v2838 = vadd.f32 %v2836, %v2837
  %v2839 = vsel %vm2761, %v2736, 0.0
  %v2840 = vadd.f32 %v2838, %v2839
  %v2841 = vsel %vm2761, %v2737, 0.0
  %v2842 = vadd.f32 %v2840, %v2841
  %v2843 = vsel %vm2761, %v2738, 0.0
  %v2844 = vadd.f32 %v2842, %v2843
  %v2845 = vsel %vm2761, %v2739, 0.0
  %v2846 = vadd.f32 %v2844, %v2845
  %v2847 = vsel %vm2761, %v2740, 0.0
  %v2848 = vadd.f32 %v2846, %v2847
  %v2849 = vsel %vm2761, %v2741, 0.0
  %v2850 = vadd.f32 %v2848, %v2849
  %v2851 = vsel %vm2761, %v2742, 0.0
  %v2852 = vadd.f32 %v2850, %v2851
  %v2853 = vsel %vm2761, %v2743, 0.0
  %v2854 = vadd.f32 %v2852, %v2853
  %v2855 = vsel %vm2761, %v2744, 0.0
  %v2856 = vadd.f32 %v2854, %v2855
  %v2857 = vsel %vm2761, %v2745, 0.0
  %v2858 = vadd.f32 %v2856, %v2857
  %v2859 = vsel %vm2761, %v2746, 0.0
  %v2860 = vadd.f32 %v2858, %v2859
  %v2861 = vsel %vm2761, %v2747, 0.0
  %v2862 = vadd.f32 %v2860, %v2861
  %v2863 = vsel %vm2761, %v2748, 0.0
  %v2864 = vadd.f32 %v2862, %v2863
  %v2865 = vsel %vm2761, %v2749, 0.0
  %v2866 = vadd.f32 %v2864, %v2865
  %v2867 = vsel %vm2761, %v2750, 0.0
  %v2868 = vadd.f32 %v2866, %v2867
  %v2869 = vsel %vm2761, %v2751, 0.0
  %v2870 = vadd.f32 %v2868, %v2869
  %v2871 = vsel %vm2761, %v2752, 0.0
  %v2872 = vadd.f32 %v2870, %v2871
  %v2873 = vsel %vm2761, %v2753, 0.0
  %v2874 = vadd.f32 %v2872, %v2873
  %v2875 = vsel %vm2761, %v2754, 0.0
  %v2876 = vadd.f32 %v2874, %v2875
  %v2877 = vsel %vm2761, %v2755, 0.0
  %v2878 = vadd.f32 %v2876, %v2877
  %v2879 = vsel %vm2761, %v2756, 0.0
  %v2880 = vadd.f32 %v2878, %v2879
  %v2881 = vsel %vm2761, %v2757, 0.0
  %v2882 = vadd.f32 %v2880, %v2881
  %v2883 = vsel %vm2761, %v2758, 0.0
  %v2884 = vadd.f32 %v2882, %v2883
  %v2885 = vsel %vm2761, %v2759, 0.0
  %v2886 = vadd.f32 %v2884, %v2885
  %v2887 = vsel %vm2761, %v2760, 0.0
  %v2888 = vadd.f32 %v2886, %v2887
  %v2889 = vrot.slane %v2888, 4
  %v2890 = vadd.f32 %v2888, %v2889
  %v2891 = vrot.slane %v2890, 2
  %v2892 = vadd.f32 %v2890, %v2891
  %v2893 = vrot.slane %v2892, 1
  %v2894 = vadd.f32 %v2892, %v2893
  %v2895 = vadd.f32 %v2894, 0.0
  %2897 = vset.pattern.permute.xlu0 0
  %2898 = vperm.xlu0 %2897, %v2184
  %v2899 = vpop.permute.xlu0 %2898
  %2902 = vset.pattern.permute.xlu0 0
  %2903 = vperm.xlu0 %2902, %v2185
  %v2904 = vpop.permute.xlu0 %2903
  %2907 = vset.pattern.permute.xlu0 0
  %2908 = vperm.xlu0 %2907, %v2186
  %v2909 = vpop.permute.xlu0 %2908
  %2912 = vset.pattern.permute.xlu0 0
  %2913 = vperm.xlu0 %2912, %v2187
  %v2914 = vpop.permute.xlu0 %2913
  %2917 = vset.pattern.permute.xlu0 0
  %2918 = vperm.xlu0 %2917, %v2188
  %v2919 = vpop.permute.xlu0 %2918
  %2922 = vset.pattern.permute.xlu0 0
  %2923 = vperm.xlu0 %2922, %v2189
  %v2924 = vpop.permute.xlu0 %2923
  %2927 = vset.pattern.permute.xlu0 0
  %2928 = vperm.xlu0 %2927, %v2190
  %v2929 = vpop.permute.xlu0 %2928
  %2932 = vset.pattern.permute.xlu0 0
  %2933 = vperm.xlu0 %2932, %v2191
  %v2934 = vpop.permute.xlu0 %2933
  %2937 = vset.pattern.permute.xlu0 0
  %2938 = vperm.xlu0 %2937, %v2192
  %v2939 = vpop.permute.xlu0 %2938
  %2942 = vset.pattern.permute.xlu0 0
  %2943 = vperm.xlu0 %2942, %v2193
  %v2944 = vpop.permute.xlu0 %2943
  %2947 = vset.pattern.permute.xlu0 0
  %2948 = vperm.xlu0 %2947, %v2194
  %v2949 = vpop.permute.xlu0 %2948
  %2952 = vset.pattern.permute.xlu0 0
  %2953 = vperm.xlu0 %2952, %v2195
  %v2954 = vpop.permute.xlu0 %2953
  %2957 = vset.pattern.permute.xlu0 0
  %2958 = vperm.xlu0 %2957, %v2196
  %v2959 = vpop.permute.xlu0 %2958
  %2962 = vset.pattern.permute.xlu0 0
  %2963 = vperm.xlu0 %2962, %v2197
  %v2964 = vpop.permute.xlu0 %2963
  %2967 = vset.pattern.permute.xlu0 0
  %2968 = vperm.xlu0 %2967, %v2198
  %v2969 = vpop.permute.xlu0 %2968
  %2972 = vset.pattern.permute.xlu0 0
  %2973 = vperm.xlu0 %2972, %v2199
  %v2974 = vpop.permute.xlu0 %2973
  %2977 = vset.pattern.permute.xlu0 0
  %2978 = vperm.xlu0 %2977, %v2200
  %v2979 = vpop.permute.xlu0 %2978
  %2982 = vset.pattern.permute.xlu0 0
  %2983 = vperm.xlu0 %2982, %v2201
  %v2984 = vpop.permute.xlu0 %2983
  %2987 = vset.pattern.permute.xlu0 0
  %2988 = vperm.xlu0 %2987, %v2202
  %v2989 = vpop.permute.xlu0 %2988
  %2992 = vset.pattern.permute.xlu0 0
  %2993 = vperm.xlu0 %2992, %v2203
  %v2994 = vpop.permute.xlu0 %2993
  %2997 = vset.pattern.permute.xlu0 0
  %2998 = vperm.xlu0 %2997, %v2204
  %v2999 = vpop.permute.xlu0 %2998
  %3002 = vset.pattern.permute.xlu0 0
  %3003 = vperm.xlu0 %3002, %v2205
  %v3004 = vpop.permute.xlu0 %3003
  %3007 = vset.pattern.permute.xlu0 0
  %3008 = vperm.xlu0 %3007, %v2206
  %v3009 = vpop.permute.xlu0 %3008
  %3012 = vset.pattern.permute.xlu0 0
  %3013 = vperm.xlu0 %3012, %v2207
  %v3014 = vpop.permute.xlu0 %3013
  %3017 = vset.pattern.permute.xlu0 0
  %3018 = vperm.xlu0 %3017, %v2208
  %v3019 = vpop.permute.xlu0 %3018
  %3022 = vset.pattern.permute.xlu0 0
  %3023 = vperm.xlu0 %3022, %v2209
  %v3024 = vpop.permute.xlu0 %3023
  %3027 = vset.pattern.permute.xlu0 0
  %3028 = vperm.xlu0 %3027, %v2210
  %v3029 = vpop.permute.xlu0 %3028
  %3032 = vset.pattern.permute.xlu0 0
  %3033 = vperm.xlu0 %3032, %v2211
  %v3034 = vpop.permute.xlu0 %3033
  %3037 = vset.pattern.permute.xlu0 0
  %3038 = vperm.xlu0 %3037, %v2212
  %v3039 = vpop.permute.xlu0 %3038
  %3042 = vset.pattern.permute.xlu0 0
  %3043 = vperm.xlu0 %3042, %v2213
  %v3044 = vpop.permute.xlu0 %3043
  %3047 = vset.pattern.permute.xlu0 0
  %3048 = vperm.xlu0 %3047, %v2214
  %v3049 = vpop.permute.xlu0 %3048
  %3052 = vset.pattern.permute.xlu0 0
  %3053 = vperm.xlu0 %3052, %v2215
  %v3054 = vpop.permute.xlu0 %3053
  %3057 = vset.pattern.permute.xlu0 0
  %3058 = vperm.xlu0 %3057, %v2216
  %v3059 = vpop.permute.xlu0 %3058
  %3062 = vset.pattern.permute.xlu0 0
  %3063 = vperm.xlu0 %3062, %v2217
  %v3064 = vpop.permute.xlu0 %3063
  %3067 = vset.pattern.permute.xlu0 0
  %3068 = vperm.xlu0 %3067, %v2218
  %v3069 = vpop.permute.xlu0 %3068
  %3072 = vset.pattern.permute.xlu0 0
  %3073 = vperm.xlu0 %3072, %v2219
  %v3074 = vpop.permute.xlu0 %3073
  %3077 = vset.pattern.permute.xlu0 0
  %3078 = vperm.xlu0 %3077, %v2220
  %v3079 = vpop.permute.xlu0 %3078
  %3082 = vset.pattern.permute.xlu0 0
  %3083 = vperm.xlu0 %3082, %v2221
  %v3084 = vpop.permute.xlu0 %3083
  %3087 = vset.pattern.permute.xlu0 0
  %3088 = vperm.xlu0 %3087, %v2222
  %v3089 = vpop.permute.xlu0 %3088
  %3092 = vset.pattern.permute.xlu0 0
  %3093 = vperm.xlu0 %3092, %v2223
  %v3094 = vpop.permute.xlu0 %3093
  %3097 = vset.pattern.permute.xlu0 0
  %3098 = vperm.xlu0 %3097, %v2224
  %v3099 = vpop.permute.xlu0 %3098
  %3102 = vset.pattern.permute.xlu0 0
  %3103 = vperm.xlu0 %3102, %v2225
  %v3104 = vpop.permute.xlu0 %3103
  %3107 = vset.pattern.permute.xlu0 0
  %3108 = vperm.xlu0 %3107, %v2226
  %v3109 = vpop.permute.xlu0 %3108
  %3112 = vset.pattern.permute.xlu0 0
  %3113 = vperm.xlu0 %3112, %v2227
  %v3114 = vpop.permute.xlu0 %3113
  %3117 = vset.pattern.permute.xlu0 0
  %3118 = vperm.xlu0 %3117, %v2228
  %v3119 = vpop.permute.xlu0 %3118
  %3122 = vset.pattern.permute.xlu0 0
  %3123 = vperm.xlu0 %3122, %v2229
  %v3124 = vpop.permute.xlu0 %3123
  %3127 = vset.pattern.permute.xlu0 0
  %3128 = vperm.xlu0 %3127, %v2230
  %v3129 = vpop.permute.xlu0 %3128
  %3132 = vset.pattern.permute.xlu0 0
  %3133 = vperm.xlu0 %3132, %v2231
  %v3134 = vpop.permute.xlu0 %3133
  %3137 = vset.pattern.permute.xlu0 0
  %3138 = vperm.xlu0 %3137, %v2232
  %v3139 = vpop.permute.xlu0 %3138
  %3142 = vset.pattern.permute.xlu0 0
  %3143 = vperm.xlu0 %3142, %v2233
  %v3144 = vpop.permute.xlu0 %3143
  %3147 = vset.pattern.permute.xlu0 0
  %3148 = vperm.xlu0 %3147, %v2234
  %v3149 = vpop.permute.xlu0 %3148
  %3152 = vset.pattern.permute.xlu0 0
  %3153 = vperm.xlu0 %3152, %v2235
  %v3154 = vpop.permute.xlu0 %3153
  %3157 = vset.pattern.permute.xlu0 0
  %3158 = vperm.xlu0 %3157, %v2236
  %v3159 = vpop.permute.xlu0 %3158
  %3162 = vset.pattern.permute.xlu0 0
  %3163 = vperm.xlu0 %3162, %v2237
  %v3164 = vpop.permute.xlu0 %3163
  %3167 = vset.pattern.permute.xlu0 0
  %3168 = vperm.xlu0 %3167, %v2238
  %v3169 = vpop.permute.xlu0 %3168
  %3172 = vset.pattern.permute.xlu0 0
  %3173 = vperm.xlu0 %3172, %v2239
  %v3174 = vpop.permute.xlu0 %3173
  %3177 = vset.pattern.permute.xlu0 0
  %3178 = vperm.xlu0 %3177, %v2240
  %v3179 = vpop.permute.xlu0 %3178
  %3182 = vset.pattern.permute.xlu0 0
  %3183 = vperm.xlu0 %3182, %v2241
  %v3184 = vpop.permute.xlu0 %3183
  %3187 = vset.pattern.permute.xlu0 0
  %3188 = vperm.xlu0 %3187, %v2242
  %v3189 = vpop.permute.xlu0 %3188
  %3192 = vset.pattern.permute.xlu0 0
  %3193 = vperm.xlu0 %3192, %v2243
  %v3194 = vpop.permute.xlu0 %3193
  %3197 = vset.pattern.permute.xlu0 0
  %3198 = vperm.xlu0 %3197, %v2244
  %v3199 = vpop.permute.xlu0 %3198
  %3202 = vset.pattern.permute.xlu0 0
  %3203 = vperm.xlu0 %3202, %v2245
  %v3204 = vpop.permute.xlu0 %3203
  %3207 = vset.pattern.permute.xlu0 0
  %3208 = vperm.xlu0 %3207, %v2246
  %v3209 = vpop.permute.xlu0 %3208
  %3212 = vset.pattern.permute.xlu0 0
  %3213 = vperm.xlu0 %3212, %v2247
  %v3214 = vpop.permute.xlu0 %3213
  %v3216 = vmul.f32 %v2697, %v2899
  %v3217 = vmul.f32 %v2698, %v2904
  %v3218 = vmul.f32 %v2699, %v2909
  %v3219 = vmul.f32 %v2700, %v2914
  %v3220 = vmul.f32 %v2701, %v2919
  %v3221 = vmul.f32 %v2702, %v2924
  %v3222 = vmul.f32 %v2703, %v2929
  %v3223 = vmul.f32 %v2704, %v2934
  %v3224 = vmul.f32 %v2705, %v2939
  %v3225 = vmul.f32 %v2706, %v2944
  %v3226 = vmul.f32 %v2707, %v2949
  %v3227 = vmul.f32 %v2708, %v2954
  %v3228 = vmul.f32 %v2709, %v2959
  %v3229 = vmul.f32 %v2710, %v2964
  %v3230 = vmul.f32 %v2711, %v2969
  %v3231 = vmul.f32 %v2712, %v2974
  %v3232 = vmul.f32 %v2713, %v2979
  %v3233 = vmul.f32 %v2714, %v2984
  %v3234 = vmul.f32 %v2715, %v2989
  %v3235 = vmul.f32 %v2716, %v2994
  %v3236 = vmul.f32 %v2717, %v2999
  %v3237 = vmul.f32 %v2718, %v3004
  %v3238 = vmul.f32 %v2719, %v3009
  %v3239 = vmul.f32 %v2720, %v3014
  %v3240 = vmul.f32 %v2721, %v3019
  %v3241 = vmul.f32 %v2722, %v3024
  %v3242 = vmul.f32 %v2723, %v3029
  %v3243 = vmul.f32 %v2724, %v3034
  %v3244 = vmul.f32 %v2725, %v3039
  %v3245 = vmul.f32 %v2726, %v3044
  %v3246 = vmul.f32 %v2727, %v3049
  %v3247 = vmul.f32 %v2728, %v3054
  %v3248 = vmul.f32 %v2729, %v3059
  %v3249 = vmul.f32 %v2730, %v3064
  %v3250 = vmul.f32 %v2731, %v3069
  %v3251 = vmul.f32 %v2732, %v3074
  %v3252 = vmul.f32 %v2733, %v3079
  %v3253 = vmul.f32 %v2734, %v3084
  %v3254 = vmul.f32 %v2735, %v3089
  %v3255 = vmul.f32 %v2736, %v3094
  %v3256 = vmul.f32 %v2737, %v3099
  %v3257 = vmul.f32 %v2738, %v3104
  %v3258 = vmul.f32 %v2739, %v3109
  %v3259 = vmul.f32 %v2740, %v3114
  %v3260 = vmul.f32 %v2741, %v3119
  %v3261 = vmul.f32 %v2742, %v3124
  %v3262 = vmul.f32 %v2743, %v3129
  %v3263 = vmul.f32 %v2744, %v3134
  %v3264 = vmul.f32 %v2745, %v3139
  %v3265 = vmul.f32 %v2746, %v3144
  %v3266 = vmul.f32 %v2747, %v3149
  %v3267 = vmul.f32 %v2748, %v3154
  %v3268 = vmul.f32 %v2749, %v3159
  %v3269 = vmul.f32 %v2750, %v3164
  %v3270 = vmul.f32 %v2751, %v3169
  %v3271 = vmul.f32 %v2752, %v3174
  %v3272 = vmul.f32 %v2753, %v3179
  %v3273 = vmul.f32 %v2754, %v3184
  %v3274 = vmul.f32 %v2755, %v3189
  %v3275 = vmul.f32 %v2756, %v3194
  %v3276 = vmul.f32 %v2757, %v3199
  %v3277 = vmul.f32 %v2758, %v3204
  %v3278 = vmul.f32 %v2759, %v3209
  %v3279 = vmul.f32 %v2760, %v3214
  %v3280 = vsel %vm2761, %v3216, 0.0
  %v3281 = vsel %vm2761, %v3217, 0.0
  %v3282 = vadd.f32 %v3280, %v3281
  %v3283 = vsel %vm2761, %v3218, 0.0
  %v3284 = vadd.f32 %v3282, %v3283
  %v3285 = vsel %vm2761, %v3219, 0.0
  %v3286 = vadd.f32 %v3284, %v3285
  %v3287 = vsel %vm2761, %v3220, 0.0
  %v3288 = vadd.f32 %v3286, %v3287
  %v3289 = vsel %vm2761, %v3221, 0.0
  %v3290 = vadd.f32 %v3288, %v3289
  %v3291 = vsel %vm2761, %v3222, 0.0
  %v3292 = vadd.f32 %v3290, %v3291
  %v3293 = vsel %vm2761, %v3223, 0.0
  %v3294 = vadd.f32 %v3292, %v3293
  %v3295 = vsel %vm2761, %v3224, 0.0
  %v3296 = vadd.f32 %v3294, %v3295
  %v3297 = vsel %vm2761, %v3225, 0.0
  %v3298 = vadd.f32 %v3296, %v3297
  %v3299 = vsel %vm2761, %v3226, 0.0
  %v3300 = vadd.f32 %v3298, %v3299
  %v3301 = vsel %vm2761, %v3227, 0.0
  %v3302 = vadd.f32 %v3300, %v3301
  %v3303 = vsel %vm2761, %v3228, 0.0
  %v3304 = vadd.f32 %v3302, %v3303
  %v3305 = vsel %vm2761, %v3229, 0.0
  %v3306 = vadd.f32 %v3304, %v3305
  %v3307 = vsel %vm2761, %v3230, 0.0
  %v3308 = vadd.f32 %v3306, %v3307
  %v3309 = vsel %vm2761, %v3231, 0.0
  %v3310 = vadd.f32 %v3308, %v3309
  %v3311 = vsel %vm2761, %v3232, 0.0
  %v3312 = vadd.f32 %v3310, %v3311
  %v3313 = vsel %vm2761, %v3233, 0.0
  %v3314 = vadd.f32 %v3312, %v3313
  %v3315 = vsel %vm2761, %v3234, 0.0
  %v3316 = vadd.f32 %v3314, %v3315
  %v3317 = vsel %vm2761, %v3235, 0.0
  %v3318 = vadd.f32 %v3316, %v3317
  %v3319 = vsel %vm2761, %v3236, 0.0
  %v3320 = vadd.f32 %v3318, %v3319
  %v3321 = vsel %vm2761, %v3237, 0.0
  %v3322 = vadd.f32 %v3320, %v3321
  %v3323 = vsel %vm2761, %v3238, 0.0
  %v3324 = vadd.f32 %v3322, %v3323
  %v3325 = vsel %vm2761, %v3239, 0.0
  %v3326 = vadd.f32 %v3324, %v3325
  %v3327 = vsel %vm2761, %v3240, 0.0
  %v3328 = vadd.f32 %v3326, %v3327
  %v3329 = vsel %vm2761, %v3241, 0.0
  %v3330 = vadd.f32 %v3328, %v3329
  %v3331 = vsel %vm2761, %v3242, 0.0
  %v3332 = vadd.f32 %v3330, %v3331
  %v3333 = vsel %vm2761, %v3243, 0.0
  %v3334 = vadd.f32 %v3332, %v3333
  %v3335 = vsel %vm2761, %v3244, 0.0
  %v3336 = vadd.f32 %v3334, %v3335
  %v3337 = vsel %vm2761, %v3245, 0.0
  %v3338 = vadd.f32 %v3336, %v3337
  %v3339 = vsel %vm2761, %v3246, 0.0
  %v3340 = vadd.f32 %v3338, %v3339
  %v3341 = vsel %vm2761, %v3247, 0.0
  %v3342 = vadd.f32 %v3340, %v3341
  %v3343 = vsel %vm2761, %v3248, 0.0
  %v3344 = vadd.f32 %v3342, %v3343
  %v3345 = vsel %vm2761, %v3249, 0.0
  %v3346 = vadd.f32 %v3344, %v3345
  %v3347 = vsel %vm2761, %v3250, 0.0
  %v3348 = vadd.f32 %v3346, %v3347
  %v3349 = vsel %vm2761, %v3251, 0.0
  %v3350 = vadd.f32 %v3348, %v3349
  %v3351 = vsel %vm2761, %v3252, 0.0
  %v3352 = vadd.f32 %v3350, %v3351
  %v3353 = vsel %vm2761, %v3253, 0.0
  %v3354 = vadd.f32 %v3352, %v3353
  %v3355 = vsel %vm2761, %v3254, 0.0
  %v3356 = vadd.f32 %v3354, %v3355
  %v3357 = vsel %vm2761, %v3255, 0.0
  %v3358 = vadd.f32 %v3356, %v3357
  %v3359 = vsel %vm2761, %v3256, 0.0
  %v3360 = vadd.f32 %v3358, %v3359
  %v3361 = vsel %vm2761, %v3257, 0.0
  %v3362 = vadd.f32 %v3360, %v3361
  %v3363 = vsel %vm2761, %v3258, 0.0
  %v3364 = vadd.f32 %v3362, %v3363
  %v3365 = vsel %vm2761, %v3259, 0.0
  %v3366 = vadd.f32 %v3364, %v3365
  %v3367 = vsel %vm2761, %v3260, 0.0
  %v3368 = vadd.f32 %v3366, %v3367
  %v3369 = vsel %vm2761, %v3261, 0.0
  %v3370 = vadd.f32 %v3368, %v3369
  %v3371 = vsel %vm2761, %v3262, 0.0
  %v3372 = vadd.f32 %v3370, %v3371
  %v3373 = vsel %vm2761, %v3263, 0.0
  %v3374 = vadd.f32 %v3372, %v3373
  %v3375 = vsel %vm2761, %v3264, 0.0
  %v3376 = vadd.f32 %v3374, %v3375
  %v3377 = vsel %vm2761, %v3265, 0.0
  %v3378 = vadd.f32 %v3376, %v3377
  %v3379 = vsel %vm2761, %v3266, 0.0
  %v3380 = vadd.f32 %v3378, %v3379
  %v3381 = vsel %vm2761, %v3267, 0.0
  %v3382 = vadd.f32 %v3380, %v3381
  %v3383 = vsel %vm2761, %v3268, 0.0
  %v3384 = vadd.f32 %v3382, %v3383
  %v3385 = vsel %vm2761, %v3269, 0.0
  %v3386 = vadd.f32 %v3384, %v3385
  %v3387 = vsel %vm2761, %v3270, 0.0
  %v3388 = vadd.f32 %v3386, %v3387
  %v3389 = vsel %vm2761, %v3271, 0.0
  %v3390 = vadd.f32 %v3388, %v3389
  %v3391 = vsel %vm2761, %v3272, 0.0
  %v3392 = vadd.f32 %v3390, %v3391
  %v3393 = vsel %vm2761, %v3273, 0.0
  %v3394 = vadd.f32 %v3392, %v3393
  %v3395 = vsel %vm2761, %v3274, 0.0
  %v3396 = vadd.f32 %v3394, %v3395
  %v3397 = vsel %vm2761, %v3275, 0.0
  %v3398 = vadd.f32 %v3396, %v3397
  %v3399 = vsel %vm2761, %v3276, 0.0
  %v3400 = vadd.f32 %v3398, %v3399
  %v3401 = vsel %vm2761, %v3277, 0.0
  %v3402 = vadd.f32 %v3400, %v3401
  %v3403 = vsel %vm2761, %v3278, 0.0
  %v3404 = vadd.f32 %v3402, %v3403
  %v3405 = vsel %vm2761, %v3279, 0.0
  %v3406 = vadd.f32 %v3404, %v3405
  %v3407 = vrot.slane %v3406, 4
  %v3408 = vadd.f32 %v3406, %v3407
  %v3409 = vrot.slane %v3408, 2
  %v3410 = vadd.f32 %v3408, %v3409
  %v3411 = vrot.slane %v3410, 1
  %v3412 = vadd.f32 %v3410, %v3411
  %v3413 = vadd.f32 %v3412, 0.0
  %v3414 = vmul.f32 %v2697, %v2377
  %v3415 = vmul.f32 %v2698, %v2378
  %v3416 = vmul.f32 %v2699, %v2379
  %v3417 = vmul.f32 %v2700, %v2380
  %v3418 = vmul.f32 %v2701, %v2381
  %v3419 = vmul.f32 %v2702, %v2382
  %v3420 = vmul.f32 %v2703, %v2383
  %v3421 = vmul.f32 %v2704, %v2384
  %v3422 = vmul.f32 %v2705, %v2385
  %v3423 = vmul.f32 %v2706, %v2386
  %v3424 = vmul.f32 %v2707, %v2387
  %v3425 = vmul.f32 %v2708, %v2388
  %v3426 = vmul.f32 %v2709, %v2389
  %v3427 = vmul.f32 %v2710, %v2390
  %v3428 = vmul.f32 %v2711, %v2391
  %v3429 = vmul.f32 %v2712, %v2392
  %v3430 = vmul.f32 %v2713, %v2393
  %v3431 = vmul.f32 %v2714, %v2394
  %v3432 = vmul.f32 %v2715, %v2395
  %v3433 = vmul.f32 %v2716, %v2396
  %v3434 = vmul.f32 %v2717, %v2397
  %v3435 = vmul.f32 %v2718, %v2398
  %v3436 = vmul.f32 %v2719, %v2399
  %v3437 = vmul.f32 %v2720, %v2400
  %v3438 = vmul.f32 %v2721, %v2401
  %v3439 = vmul.f32 %v2722, %v2402
  %v3440 = vmul.f32 %v2723, %v2403
  %v3441 = vmul.f32 %v2724, %v2404
  %v3442 = vmul.f32 %v2725, %v2405
  %v3443 = vmul.f32 %v2726, %v2406
  %v3444 = vmul.f32 %v2727, %v2407
  %v3445 = vmul.f32 %v2728, %v2408
  %v3446 = vmul.f32 %v2729, %v2409
  %v3447 = vmul.f32 %v2730, %v2410
  %v3448 = vmul.f32 %v2731, %v2411
  %v3449 = vmul.f32 %v2732, %v2412
  %v3450 = vmul.f32 %v2733, %v2413
  %v3451 = vmul.f32 %v2734, %v2414
  %v3452 = vmul.f32 %v2735, %v2415
  %v3453 = vmul.f32 %v2736, %v2416
  %v3454 = vmul.f32 %v2737, %v2417
  %v3455 = vmul.f32 %v2738, %v2418
  %v3456 = vmul.f32 %v2739, %v2419
  %v3457 = vmul.f32 %v2740, %v2420
  %v3458 = vmul.f32 %v2741, %v2421
  %v3459 = vmul.f32 %v2742, %v2422
  %v3460 = vmul.f32 %v2743, %v2423
  %v3461 = vmul.f32 %v2744, %v2424
  %v3462 = vmul.f32 %v2745, %v2425
  %v3463 = vmul.f32 %v2746, %v2426
  %v3464 = vmul.f32 %v2747, %v2427
  %v3465 = vmul.f32 %v2748, %v2428
  %v3466 = vmul.f32 %v2749, %v2429
  %v3467 = vmul.f32 %v2750, %v2430
  %v3468 = vmul.f32 %v2751, %v2431
  %v3469 = vmul.f32 %v2752, %v2432
  %v3470 = vmul.f32 %v2753, %v2433
  %v3471 = vmul.f32 %v2754, %v2434
  %v3472 = vmul.f32 %v2755, %v2435
  %v3473 = vmul.f32 %v2756, %v2436
  %v3474 = vmul.f32 %v2757, %v2437
  %v3475 = vmul.f32 %v2758, %v2438
  %v3476 = vmul.f32 %v2759, %v2439
  %v3477 = vmul.f32 %v2760, %v2440
  %v3478 = vsel %vm2761, %v3414, 0.0
  %v3479 = vsel %vm2761, %v3415, 0.0
  %v3480 = vadd.f32 %v3478, %v3479
  %v3481 = vsel %vm2761, %v3416, 0.0
  %v3482 = vadd.f32 %v3480, %v3481
  %v3483 = vsel %vm2761, %v3417, 0.0
  %v3484 = vadd.f32 %v3482, %v3483
  %v3485 = vsel %vm2761, %v3418, 0.0
  %v3486 = vadd.f32 %v3484, %v3485
  %v3487 = vsel %vm2761, %v3419, 0.0
  %v3488 = vadd.f32 %v3486, %v3487
  %v3489 = vsel %vm2761, %v3420, 0.0
  %v3490 = vadd.f32 %v3488, %v3489
  %v3491 = vsel %vm2761, %v3421, 0.0
  %v3492 = vadd.f32 %v3490, %v3491
  %v3493 = vsel %vm2761, %v3422, 0.0
  %v3494 = vadd.f32 %v3492, %v3493
  %v3495 = vsel %vm2761, %v3423, 0.0
  %v3496 = vadd.f32 %v3494, %v3495
  %v3497 = vsel %vm2761, %v3424, 0.0
  %v3498 = vadd.f32 %v3496, %v3497
  %v3499 = vsel %vm2761, %v3425, 0.0
  %v3500 = vadd.f32 %v3498, %v3499
  %v3501 = vsel %vm2761, %v3426, 0.0
  %v3502 = vadd.f32 %v3500, %v3501
  %v3503 = vsel %vm2761, %v3427, 0.0
  %v3504 = vadd.f32 %v3502, %v3503
  %v3505 = vsel %vm2761, %v3428, 0.0
  %v3506 = vadd.f32 %v3504, %v3505
  %v3507 = vsel %vm2761, %v3429, 0.0
  %v3508 = vadd.f32 %v3506, %v3507
  %v3509 = vsel %vm2761, %v3430, 0.0
  %v3510 = vadd.f32 %v3508, %v3509
  %v3511 = vsel %vm2761, %v3431, 0.0
  %v3512 = vadd.f32 %v3510, %v3511
  %v3513 = vsel %vm2761, %v3432, 0.0
  %v3514 = vadd.f32 %v3512, %v3513
  %v3515 = vsel %vm2761, %v3433, 0.0
  %v3516 = vadd.f32 %v3514, %v3515
  %v3517 = vsel %vm2761, %v3434, 0.0
  %v3518 = vadd.f32 %v3516, %v3517
  %v3519 = vsel %vm2761, %v3435, 0.0
  %v3520 = vadd.f32 %v3518, %v3519
  %v3521 = vsel %vm2761, %v3436, 0.0
  %v3522 = vadd.f32 %v3520, %v3521
  %v3523 = vsel %vm2761, %v3437, 0.0
  %v3524 = vadd.f32 %v3522, %v3523
  %v3525 = vsel %vm2761, %v3438, 0.0
  %v3526 = vadd.f32 %v3524, %v3525
  %v3527 = vsel %vm2761, %v3439, 0.0
  %v3528 = vadd.f32 %v3526, %v3527
  %v3529 = vsel %vm2761, %v3440, 0.0
  %v3530 = vadd.f32 %v3528, %v3529
  %v3531 = vsel %vm2761, %v3441, 0.0
  %v3532 = vadd.f32 %v3530, %v3531
  %v3533 = vsel %vm2761, %v3442, 0.0
  %v3534 = vadd.f32 %v3532, %v3533
  %v3535 = vsel %vm2761, %v3443, 0.0
  %v3536 = vadd.f32 %v3534, %v3535
  %v3537 = vsel %vm2761, %v3444, 0.0
  %v3538 = vadd.f32 %v3536, %v3537
  %v3539 = vsel %vm2761, %v3445, 0.0
  %v3540 = vadd.f32 %v3538, %v3539
  %v3541 = vsel %vm2761, %v3446, 0.0
  %v3542 = vadd.f32 %v3540, %v3541
  %v3543 = vsel %vm2761, %v3447, 0.0
  %v3544 = vadd.f32 %v3542, %v3543
  %v3545 = vsel %vm2761, %v3448, 0.0
  %v3546 = vadd.f32 %v3544, %v3545
  %v3547 = vsel %vm2761, %v3449, 0.0
  %v3548 = vadd.f32 %v3546, %v3547
  %v3549 = vsel %vm2761, %v3450, 0.0
  %v3550 = vadd.f32 %v3548, %v3549
  %v3551 = vsel %vm2761, %v3451, 0.0
  %v3552 = vadd.f32 %v3550, %v3551
  %v3553 = vsel %vm2761, %v3452, 0.0
  %v3554 = vadd.f32 %v3552, %v3553
  %v3555 = vsel %vm2761, %v3453, 0.0
  %v3556 = vadd.f32 %v3554, %v3555
  %v3557 = vsel %vm2761, %v3454, 0.0
  %v3558 = vadd.f32 %v3556, %v3557
  %v3559 = vsel %vm2761, %v3455, 0.0
  %v3560 = vadd.f32 %v3558, %v3559
  %v3561 = vsel %vm2761, %v3456, 0.0
  %v3562 = vadd.f32 %v3560, %v3561
  %v3563 = vsel %vm2761, %v3457, 0.0
  %v3564 = vadd.f32 %v3562, %v3563
  %v3565 = vsel %vm2761, %v3458, 0.0
  %v3566 = vadd.f32 %v3564, %v3565
  %v3567 = vsel %vm2761, %v3459, 0.0
  %v3568 = vadd.f32 %v3566, %v3567
  %v3569 = vsel %vm2761, %v3460, 0.0
  %v3570 = vadd.f32 %v3568, %v3569
  %v3571 = vsel %vm2761, %v3461, 0.0
  %v3572 = vadd.f32 %v3570, %v3571
  %v3573 = vsel %vm2761, %v3462, 0.0
  %v3574 = vadd.f32 %v3572, %v3573
  %v3575 = vsel %vm2761, %v3463, 0.0
  %v3576 = vadd.f32 %v3574, %v3575
  %v3577 = vsel %vm2761, %v3464, 0.0
  %v3578 = vadd.f32 %v3576, %v3577
  %v3579 = vsel %vm2761, %v3465, 0.0
  %v3580 = vadd.f32 %v3578, %v3579
  %v3581 = vsel %vm2761, %v3466, 0.0
  %v3582 = vadd.f32 %v3580, %v3581
  %v3583 = vsel %vm2761, %v3467, 0.0
  %v3584 = vadd.f32 %v3582, %v3583
  %v3585 = vsel %vm2761, %v3468, 0.0
  %v3586 = vadd.f32 %v3584, %v3585
  %v3587 = vsel %vm2761, %v3469, 0.0
  %v3588 = vadd.f32 %v3586, %v3587
  %v3589 = vsel %vm2761, %v3470, 0.0
  %v3590 = vadd.f32 %v3588, %v3589
  %v3591 = vsel %vm2761, %v3471, 0.0
  %v3592 = vadd.f32 %v3590, %v3591
  %v3593 = vsel %vm2761, %v3472, 0.0
  %v3594 = vadd.f32 %v3592, %v3593
  %v3595 = vsel %vm2761, %v3473, 0.0
  %v3596 = vadd.f32 %v3594, %v3595
  %v3597 = vsel %vm2761, %v3474, 0.0
  %v3598 = vadd.f32 %v3596, %v3597
  %v3599 = vsel %vm2761, %v3475, 0.0
  %v3600 = vadd.f32 %v3598, %v3599
  %v3601 = vsel %vm2761, %v3476, 0.0
  %v3602 = vadd.f32 %v3600, %v3601
  %v3603 = vsel %vm2761, %v3477, 0.0
  %v3604 = vadd.f32 %v3602, %v3603
  %v3605 = vrot.slane %v3604, 4
  %v3606 = vadd.f32 %v3604, %v3605
  %v3607 = vrot.slane %v3606, 2
  %v3608 = vadd.f32 %v3606, %v3607
  %v3609 = vrot.slane %v3608, 1
  %v3610 = vadd.f32 %v3608, %v3609
  %v3611 = vadd.f32 %v3610, 0.0
  %v3612 = vld [vmem:[%s2] sm:$0x1]
  %v3613 = vadd.f32 %v3612, %v2895
  %vm3614 = vcmask 114688
  %3615 = vst.msk [vmem:[%s2] sm:$0x1] %vm3614, %v3613
  %v3616 = vld [vmem:[%s2 + $0x1] sm:$0x1]
  %v3617 = vadd.f32 %v3616, %v3413
  %3618 = vst.msk [vmem:[%s2 + $0x1] sm:$0x1] %vm3614, %v3617
  %v3619 = vld [vmem:[%s2 + $0x2] sm:$0x1]
  %v3620 = vadd.f32 %v3619, %v3611
  %3621 = vst.msk [vmem:[%s2 + $0x2] sm:$0x1] %vm3614, %v3620
  // Predicated region
  $region14: #{tpu_custom_call.1} parent=0 // pred_check
    _
  $region15: #{tpu_custom_call.1} parent=0 // pred_check_branch
    %3623 = sbr.rel (0) target = $region17
  $region16: #{tpu_custom_call.1} parent=0 // pred_region
    _
  $region17: #{tpu_custom_call.1} parent=0 // pred_fallthru
    _
  // Predicated region
  $region18: #{tpu_custom_call.1} parent=0 // pred_check
    _
  $region19: #{tpu_custom_call.1} parent=0 // pred_check_branch
    %3625 = sbr.rel (0) target = $region21
  $region20: #{tpu_custom_call.1} parent=0 // pred_region
    _
  $region21: #{tpu_custom_call.1} parent=0 // pred_fallthru
    _

</llo_original>
